<compile_context>
chip_gen: v6e
topology: v6e:2x2x1
jax: 0.10.0
libtpu: 0.0.40
codegen_flags: <defaults>
</compile_context>

<pallas_src>
import functools
import math

import jax
import jax.numpy as jnp
from jax.experimental import pallas as pl
from jax.experimental.pallas import tpu as pltpu


# ----------------------------- Pallas kernel --------------------------------

def _decoder_layer_kernel(
    x_ref,      # (m,  D)   decoder-input slab        m  = bt * S
    enc_ref,    # (mk, D)   encoder-output slab       mk = bt * Se
    ms_ref,     # (m, m)    block-diagonal additive mask for self-attention
    mc_ref,     # (m, mk)   block-diagonal additive mask for cross-attention
    wa_ref,     # (4*D, A)  [wq1*1/sqrt(A); wk1; wq2*1/sqrt(A); wk2]
    wd_ref,     # (6*D, D)  [wv1; wo1; wv2; wo2; w2; w1]
    vec_ref,    # (8, D)    [b2; b1; g1; be1; g2; be2; g3; be3]
    o_ref,      # (m, D)
    *, eps=1e-5, compute_dtype=jnp.float32,
):
    x = x_ref[...].astype(jnp.float32)        # (m, D)
    enc = enc_ref[...].astype(jnp.float32)    # (mk, D)
    d = x.shape[-1]

    # --- static, sublane-aligned weight-slab views (zero-cost slices) -------
    wq1 = wa_ref[0 * d:1 * d, :]
    wk1 = wa_ref[1 * d:2 * d, :]
    wq2 = wa_ref[2 * d:3 * d, :]
    wk2 = wa_ref[3 * d:4 * d, :]
    wv1 = wd_ref[0 * d:1 * d, :]
    wo1 = wd_ref[1 * d:2 * d, :]
    wv2 = wd_ref[2 * d:3 * d, :]
    wo2 = wd_ref[3 * d:4 * d, :]
    w2 = wd_ref[4 * d:5 * d, :]
    w1 = wd_ref[5 * d:6 * d, :]
    b2 = vec_ref[0:1, :]
    b1 = vec_ref[1:2, :]
    g1, be1 = vec_ref[2:3, :], vec_ref[3:4, :]
    g2, be2 = vec_ref[4:5, :], vec_ref[5:6, :]
    g3, be3 = vec_ref[6:7, :], vec_ref[7:8, :]

    def mm(lhs, rhs):
        return jnp.dot(lhs.astype(compute_dtype), rhs.astype(compute_dtype),
                       preferred_element_type=jnp.float32)

    def layer_norm(h, g, b):
        # Fused single-pass statistics: two independent XLU reduces per norm.
        mu = jnp.mean(h, axis=-1, keepdims=True)
        ms = jnp.mean(h * h, axis=-1, keepdims=True)
        var = jnp.maximum(ms - mu * mu, 0.0)
        return (h - mu) * jax.lax.rsqrt(var + eps) * g + b

    def attention(q_in, kv_in, mask, wq, wk, wv, wo):
        # 1/sqrt(dim_attn) is folded into wq by the wrapper.
        q = mm(q_in, wq)        # (m, A)
        k = mm(kv_in, wk)       # (mkv, A)
        v = mm(kv_in, wv)       # (mkv, D)
        # One dense scores matmul over the whole tile, batch separation enforced
        # by the additive block-diagonal mask (applied BEFORE the row max).
        scores = jax.lax.dot_general(
            q.astype(compute_dtype), k.astype(compute_dtype),
            dimension_numbers=(((1,), (1,)), ((), ())),
            preferred_element_type=jnp.float32)          # (m, mkv)
        scores = scores + mask
        mrow = jnp.max(scores, axis=-1, keepdims=True)
        e = jnp.exp(scores - mrow)                        # masked entries -> 0
        p = e / jnp.sum(e, axis=-1, keepdims=True)
        head = mm(p, v)                                   # (m, D)
        return mm(head, wo)                               # (m, D)

    # ---- self-attention + LayerNorm 1 -------------------------------------
    a1 = attention(x, x, ms_ref[...], wq1, wk1, wv1, wo1)
    x1 = layer_norm(x + a1, g1, be1)

    # ---- cross-attention (kv = enc) + LayerNorm 2 --------------------------
    a2 = attention(x1, enc, mc_ref[...], wq2, wk2, wv2, wo2)
    x2 = layer_norm(x1 + a2, g2, be2)

    # ---- feed-forward fc1(ELU(fc2(x))) + LayerNorm 3 ------------------------
    z = mm(x2, w2) + b2
    # ELU (alpha=1).  exp argument clamped to <= 0 so no inf is produced.
    z = jnp.where(z > 0.0, z, jnp.exp(jnp.minimum(z, 0.0)) - 1.0)
    a3 = mm(z, w1) + b1
    out = layer_norm(x2 + a3, g3, be3)

    o_ref[...] = out.astype(o_ref.dtype)


# ------------------------------- wrapper -------------------------------------

def _pick_batch_tile(B, S, *, target_rows=512, min_steps=4):
    """Largest divisor bt of B with bt*S <= target_rows, preferring a grid of
    >= min_steps steps (>= 2 per TensorCore on v7x), relaxing to 2 then 1."""
    for steps_req in (min_steps, 2, 1):
        best = 0
        for bt in range(1, B + 1):
            if B % bt:
                continue
            if bt * S <= target_rows and B // bt >= steps_req:
                best = max(best, bt)
        if best:
            return best
    return 1


def _block_mask(bt, q_len, kv_len, neg=-1e9):
    """Additive block-diagonal mask: 0 inside a batch element, -1e9 across."""
    r = jnp.arange(bt * q_len, dtype=jnp.int32) // q_len
    c = jnp.arange(bt * kv_len, dtype=jnp.int32) // kv_len
    return jnp.where(r[:, None] == c[None, :], 0.0, neg).astype(jnp.float32)


def decoder_layer(x, enc, params, *, batch_tile=None, compute_dtype=jnp.float32):
    """x: (B, S, D); enc: (B, Se, D); params: dict (see init_params)."""
    B, S, D = x.shape
    Be, Se, De = enc.shape
    assert Be == B and De == D
    A = params["wq1"].shape[1]

    bt = batch_tile if batch_tile is not None else _pick_batch_tile(B, S)
    assert B % bt == 0
    steps = B // bt
    m = bt * S          # decoder rows per grid step
    mk = bt * Se        # encoder rows per grid step

    # Fold the 1/sqrt(dim_attn) attention scale into the (tiny) Q weights.
    inv_sqrt_a = 1.0 / math.sqrt(A)

    # Coalesced weight/bias slabs (3 DMA descriptors instead of ~20).
    w_a = jnp.concatenate(
        [params["wq1"] * inv_sqrt_a, params["wk1"],
         params["wq2"] * inv_sqrt_a, params["wk2"]], axis=0)          # (4D, A)
    w_d = jnp.concatenate(
        [params["wv1"], params["wo1"], params["wv2"], params["wo2"],
         params["w2"], params["w1"]], axis=0)                         # (6D, D)
    vecs = jnp.concatenate(
        [params["b2"], params["b1"],
         params["g1"], params["be1"],
         params["g2"], params["be2"],
         params["g3"], params["be3"]], axis=0)                        # (8, D)

    # Flat (rows, features) slabs -> lane-friendly blocks, batch folded into M.
    xf = x.reshape(B * S, D)
    ef = enc.reshape(B * Se, D)

    # Precomputed block-diagonal additive masks (constant block across the grid).
    mask_self = _block_mask(bt, S, S)
    mask_cross = _block_mask(bt, S, Se)

    kernel = functools.partial(_decoder_layer_kernel, compute_dtype=compute_dtype)

    # Cost estimate (dense masked attention form).
    flops_step = (
        2 * (2 * m * D * A + m * D * D + m * m * A + m * m * D + m * D * D)       # self
        + 2 * (m * D * A + mk * D * A + mk * D * D
               + m * mk * A + m * mk * D + m * D * D)                             # cross
        + 2 * (2 * m * D * D)                                                     # ff
    )
    transc_step = m * m + m * mk + m * D
    bytes_accessed = 4 * (xf.size + ef.size + B * S * D
                          + mask_self.size + mask_cross.size
                          + w_a.size + w_d.size + vecs.size)

    grid_spec = pltpu.PrefetchScalarGridSpec(
        num_scalar_prefetch=0,
        grid=(steps,),
        in_specs=[
            pl.BlockSpec((m, D), lambda i: (i, 0)),        # x slab
            pl.BlockSpec((mk, D), lambda i: (i, 0)),       # enc slab
            pl.BlockSpec((m, m), lambda i: (0, 0)),        # self-attn mask
            pl.BlockSpec((m, mk), lambda i: (0, 0)),       # cross-attn mask
            pl.BlockSpec((4 * D, A), lambda i: (0, 0)),    # Q/K slab
            pl.BlockSpec((6 * D, D), lambda i: (0, 0)),    # V/O/fc slab
            pl.BlockSpec((8, D), lambda i: (0, 0)),        # bias / LayerNorm slab
        ],
        out_specs=pl.BlockSpec((m, D), lambda i: (i, 0)),
    )

    out_flat = pl.pallas_call(
        kernel,
        out_shape=jax.ShapeDtypeStruct((B * S, D), x.dtype),
        grid_spec=grid_spec,
        compiler_params=pltpu.CompilerParams(
            dimension_semantics=("parallel",),
        ),
        cost_estimate=pl.CostEstimate(
            flops=int(flops_step * steps),
            transcendentals=int(transc_step * steps),
            bytes_accessed=int(bytes_accessed),
        ),
    )(xf, ef, mask_self, mask_cross, w_a, w_d, vecs)
    return out_flat.reshape(B, S, D)


# ------------------------- deterministic parameter init ----------------------

def init_params(key, dim_val, dim_attn):
    ks = jax.random.split(key, 12)
    s = 0.1
    nrm = lambda k, shape: s * jax.random.normal(k, shape, jnp.float32)
    # Linear weights stored (in_features, out_features): y = x @ W (== x @ W_pt.T).
    return {
        # attn1 (self): Q/K/V (bias-free) + head-combine fc (bias-free)
        "wq1": nrm(ks[0], (dim_val, dim_attn)),
        "wk1": nrm(ks[1], (dim_val, dim_attn)),
        "wv1": nrm(ks[2], (dim_val, dim_val)),
        "wo1": nrm(ks[3], (dim_val, dim_val)),
        # attn2 (cross, kv = enc)
        "wq2": nrm(ks[4], (dim_val, dim_attn)),
        "wk2": nrm(ks[5], (dim_val, dim_attn)),
        "wv2": nrm(ks[6], (dim_val, dim_val)),
        "wo2": nrm(ks[7], (dim_val, dim_val)),
        # feed-forward: fc2 applied first, then fc1 (both with bias)
        "w2": nrm(ks[8], (dim_val, dim_val)),
        "b2": nrm(ks[9], (1, dim_val)),
        "w1": nrm(ks[10], (dim_val, dim_val)),
        "b1": nrm(ks[11], (1, dim_val)),
        # LayerNorms (default affine init)
        "g1": jnp.ones((1, dim_val), jnp.float32),
        "be1": jnp.zeros((1, dim_val), jnp.float32),
        "g2": jnp.ones((1, dim_val), jnp.float32),
        "be2": jnp.zeros((1, dim_val), jnp.float32),
        "g3": jnp.ones((1, dim_val), jnp.float32),
        "be3": jnp.zeros((1, dim_val), jnp.float32),
    }


# ------------------------------ pure-JAX reference ----------------------------

def decoder_layer_ref(x, enc, p):
    eps = 1e-5

    def ln(h, g, b):
        mu = h.mean(-1, keepdims=True)
        var = ((h - mu) ** 2).mean(-1, keepdims=True)
        return (h - mu) / jnp.sqrt(var + eps) * g + b

    def mha(q_in, kv_in, wq, wk, wv, wo):
        q = q_in @ wq
        k = kv_in @ wk
        v = kv_in @ wv
        scores = jnp.einsum("bsa,bta->bst", q, k) / math.sqrt(q.shape[-1])
        attn = jax.nn.softmax(scores, axis=-1)
        return jnp.einsum("bst,btd->bsd", attn, v) @ wo

    a = mha(x, x, p["wq1"], p["wk1"], p["wv1"], p["wo1"])
    x1 = ln(a + x, p["g1"], p["be1"])
    a = mha(x1, enc, p["wq2"], p["wk2"], p["wv2"], p["wo2"])
    x2 = ln(a + x1, p["g2"], p["be2"])
    z = x2 @ p["w2"] + p["b2"]
    z = jnp.where(z > 0, z, jnp.exp(z) - 1.0)   # ELU, alpha=1
    a = z @ p["w1"] + p["b1"]
    return ln(x2 + a, p["g3"], p["be3"])


# ----------------------------------- main ------------------------------------

if __name__ == "__main__":
    # dim_val=32, dim_attn=16, n_heads=1 per the module.  Batch sized so the
    # tiler picks bt=32 -> 256 decoder rows / 512 encoder rows per grid step
    # with a 4-long "parallel" grid (>= 2 pipelined steps per v7x TensorCore).
    B, S_dec, S_enc, dim_val, dim_attn = 128, 8, 16, 32, 16

    key = jax.random.PRNGKey(0)
    kx, ke, kp = jax.random.split(key, 3)
    x = jax.random.normal(kx, (B, S_dec, dim_val), jnp.float32)
    enc = jax.random.normal(ke, (B, S_enc, dim_val), jnp.float32)
    params = init_params(kp, dim_val, dim_attn)

    out = decoder_layer(x, enc, params)
    out = jax.block_until_ready(out)

    ref = decoder_layer_ref(x, enc, params)
    assert out.shape == (B, S_dec, dim_val)
    max_err = float(jnp.max(jnp.abs(out - ref)))
    assert jnp.allclose(out, ref, atol=2e-3, rtol=2e-3), \
        f"mismatch vs reference (max abs err {max_err})"

    print("KERNEL_OK")
</pallas_src>

<mosaic_0001>
module attributes {stable_mosaic.version = 11 : i64} {
  func.func @_decoder_layer_kernel(%arg0: i32, %arg1: memref<256x32xf32, #tpu.memory_space<vmem>>, %arg2: memref<512x32xf32, #tpu.memory_space<vmem>>, %arg3: memref<256x256xf32, #tpu.memory_space<vmem>>, %arg4: memref<256x512xf32, #tpu.memory_space<vmem>>, %arg5: memref<128x16xf32, #tpu.memory_space<vmem>>, %arg6: memref<192x32xf32, #tpu.memory_space<vmem>>, %arg7: memref<8x32xf32, #tpu.memory_space<vmem>>, %arg8: memref<256x32xf32, #tpu.memory_space<vmem>>) attributes {dimension_semantics = [#tpu.dimension_semantics<parallel>], iteration_bounds = array<i64: 4>, scalar_prefetch = 0 : i64, scratch_operands = 0 : i64, tpu.core_type = #tpu.core_type<tc>, window_params = [{transform_indices = @transform_0, window_bounds = array<i64: 256, 32>}, {transform_indices = @transform_1, window_bounds = array<i64: 512, 32>}, {pipeline_mode = #tpu.pipeline_mode<synchronous>, transform_indices = @transform_2, window_bounds = array<i64: 256, 256>}, {pipeline_mode = #tpu.pipeline_mode<synchronous>, transform_indices = @transform_3, window_bounds = array<i64: 256, 512>}, {pipeline_mode = #tpu.pipeline_mode<synchronous>, transform_indices = @transform_4, window_bounds = array<i64: 128, 16>}, {pipeline_mode = #tpu.pipeline_mode<synchronous>, transform_indices = @transform_5, window_bounds = array<i64: 192, 32>}, {pipeline_mode = #tpu.pipeline_mode<synchronous>, transform_indices = @transform_6, window_bounds = array<i64: 8, 32>}, {transform_indices = @transform_7, window_bounds = array<i64: 256, 32>}]} {
    %c0 = arith.constant 0 : index
    %c0_0 = arith.constant 0 : index
    %0 = vector.load %arg1[%c0, %c0_0] : memref<256x32xf32, #tpu.memory_space<vmem>>, vector<256x32xf32>
    %c0_1 = arith.constant 0 : index
    %c0_2 = arith.constant 0 : index
    %1 = vector.load %arg2[%c0_1, %c0_2] : memref<512x32xf32, #tpu.memory_space<vmem>>, vector<512x32xf32>
    %c0_3 = arith.constant 0 : index
    %c0_4 = arith.constant 0 : index
    %2 = vector.load %arg5[%c0_3, %c0_4] : memref<128x16xf32, #tpu.memory_space<vmem>>, vector<32x16xf32>
    %c32 = arith.constant 32 : index
    %c0_5 = arith.constant 0 : index
    %3 = vector.load %arg5[%c32, %c0_5] : memref<128x16xf32, #tpu.memory_space<vmem>>, vector<32x16xf32>
    %c64 = arith.constant 64 : index
    %c0_6 = arith.constant 0 : index
    %4 = vector.load %arg5[%c64, %c0_6] : memref<128x16xf32, #tpu.memory_space<vmem>>, vector<32x16xf32>
    %c96 = arith.constant 96 : index
    %c0_7 = arith.constant 0 : index
    %5 = vector.load %arg5[%c96, %c0_7] : memref<128x16xf32, #tpu.memory_space<vmem>>, vector<32x16xf32>
    %c0_8 = arith.constant 0 : index
    %c0_9 = arith.constant 0 : index
    %6 = vector.load %arg6[%c0_8, %c0_9] : memref<192x32xf32, #tpu.memory_space<vmem>>, vector<32x32xf32>
    %c32_10 = arith.constant 32 : index
    %c0_11 = arith.constant 0 : index
    %7 = vector.load %arg6[%c32_10, %c0_11] : memref<192x32xf32, #tpu.memory_space<vmem>>, vector<32x32xf32>
    %c64_12 = arith.constant 64 : index
    %c0_13 = arith.constant 0 : index
    %8 = vector.load %arg6[%c64_12, %c0_13] : memref<192x32xf32, #tpu.memory_space<vmem>>, vector<32x32xf32>
    %c96_14 = arith.constant 96 : index
    %c0_15 = arith.constant 0 : index
    %9 = vector.load %arg6[%c96_14, %c0_15] : memref<192x32xf32, #tpu.memory_space<vmem>>, vector<32x32xf32>
    %c128 = arith.constant 128 : index
    %c0_16 = arith.constant 0 : index
    %10 = vector.load %arg6[%c128, %c0_16] : memref<192x32xf32, #tpu.memory_space<vmem>>, vector<32x32xf32>
    %c160 = arith.constant 160 : index
    %c0_17 = arith.constant 0 : index
    %11 = vector.load %arg6[%c160, %c0_17] : memref<192x32xf32, #tpu.memory_space<vmem>>, vector<32x32xf32>
    %c0_18 = arith.constant 0 : index
    %c0_19 = arith.constant 0 : index
    %12 = vector.load %arg7[%c0_18, %c0_19] : memref<8x32xf32, #tpu.memory_space<vmem>>, vector<1x32xf32>
    %c1 = arith.constant 1 : index
    %c0_20 = arith.constant 0 : index
    %13 = vector.load %arg7[%c1, %c0_20] : memref<8x32xf32, #tpu.memory_space<vmem>>, vector<1x32xf32>
    %c2 = arith.constant 2 : index
    %c0_21 = arith.constant 0 : index
    %14 = vector.load %arg7[%c2, %c0_21] : memref<8x32xf32, #tpu.memory_space<vmem>>, vector<1x32xf32>
    %c3 = arith.constant 3 : index
    %c0_22 = arith.constant 0 : index
    %15 = vector.load %arg7[%c3, %c0_22] : memref<8x32xf32, #tpu.memory_space<vmem>>, vector<1x32xf32>
    %c4 = arith.constant 4 : index
    %c0_23 = arith.constant 0 : index
    %16 = vector.load %arg7[%c4, %c0_23] : memref<8x32xf32, #tpu.memory_space<vmem>>, vector<1x32xf32>
    %c5 = arith.constant 5 : index
    %c0_24 = arith.constant 0 : index
    %17 = vector.load %arg7[%c5, %c0_24] : memref<8x32xf32, #tpu.memory_space<vmem>>, vector<1x32xf32>
    %c6 = arith.constant 6 : index
    %c0_25 = arith.constant 0 : index
    %18 = vector.load %arg7[%c6, %c0_25] : memref<8x32xf32, #tpu.memory_space<vmem>>, vector<1x32xf32>
    %c7 = arith.constant 7 : index
    %c0_26 = arith.constant 0 : index
    %19 = vector.load %arg7[%c7, %c0_26] : memref<8x32xf32, #tpu.memory_space<vmem>>, vector<1x32xf32>
    %c0_27 = arith.constant 0 : index
    %c0_28 = arith.constant 0 : index
    %20 = vector.load %arg3[%c0_27, %c0_28] : memref<256x256xf32, #tpu.memory_space<vmem>>, vector<256x256xf32>
    %cst = arith.constant dense<0.000000e+00> : vector<256x16xf32>
    %21 = tpu.matmul %0, %2, %cst {dimension_numbers = #tpu.dot_dimension_numbers<[1], [0], [0], [1], [0, 0, 1, 1], [], []>} : vector<256x32xf32>, vector<32x16xf32>, vector<256x16xf32> -> vector<256x16xf32>
    %cst_29 = arith.constant dense<0.000000e+00> : vector<256x16xf32>
    %22 = tpu.matmul %0, %3, %cst_29 {dimension_numbers = #tpu.dot_dimension_numbers<[1], [0], [0], [1], [0, 0, 1, 1], [], []>} : vector<256x32xf32>, vector<32x16xf32>, vector<256x16xf32> -> vector<256x16xf32>
    %cst_30 = arith.constant dense<0.000000e+00> : vector<256x32xf32>
    %23 = tpu.matmul %0, %6, %cst_30 {dimension_numbers = #tpu.dot_dimension_numbers<[1], [0], [0], [1], [0, 0, 1, 1], [], []>} : vector<256x32xf32>, vector<32x32xf32>, vector<256x32xf32> -> vector<256x32xf32>
    %cst_31 = arith.constant dense<0.000000e+00> : vector<256x256xf32>
    %24 = tpu.matmul %21, %22, %cst_31 {dimension_numbers = #tpu.dot_dimension_numbers<[1], [1], [0], [0], [0, 0, 1, 0], [], []>} : vector<256x16xf32>, vector<256x16xf32>, vector<256x256xf32> -> vector<256x256xf32>
    %25 = arith.addf %24, %20 : vector<256x256xf32>
    %cst_32 = arith.constant dense<0xFF800000> : vector<256xf32>
    %26 = vector.multi_reduction <maximumf>, %25, %cst_32 [1] : vector<256x256xf32> to vector<256xf32>
    %27 = vector.shape_cast %26 : vector<256xf32> to vector<256x1xf32>
    %28 = vector.broadcast %27 : vector<256x1xf32> to vector<256x256xf32>
    %29 = arith.subf %25, %28 : vector<256x256xf32>
    %30 = math.exp %29 : vector<256x256xf32>
    %cst_33 = arith.constant dense<0.000000e+00> : vector<256xf32>
    %31 = vector.multi_reduction <add>, %30, %cst_33 [1] : vector<256x256xf32> to vector<256xf32>
    %32 = vector.shape_cast %31 : vector<256xf32> to vector<256x1xf32>
    %33 = vector.broadcast %32 : vector<256x1xf32> to vector<256x256xf32>
    %34 = arith.divf %30, %33 : vector<256x256xf32>
    %cst_34 = arith.constant dense<0.000000e+00> : vector<256x32xf32>
    %35 = tpu.matmul %34, %23, %cst_34 {dimension_numbers = #tpu.dot_dimension_numbers<[1], [0], [0], [1], [0, 0, 1, 1], [], []>} : vector<256x256xf32>, vector<256x32xf32>, vector<256x32xf32> -> vector<256x32xf32>
    %cst_35 = arith.constant dense<0.000000e+00> : vector<256x32xf32>
    %36 = tpu.matmul %35, %7, %cst_35 {dimension_numbers = #tpu.dot_dimension_numbers<[1], [0], [0], [1], [0, 0, 1, 1], [], []>} : vector<256x32xf32>, vector<32x32xf32>, vector<256x32xf32> -> vector<256x32xf32>
    %37 = arith.addf %0, %36 : vector<256x32xf32>
    %cst_36 = arith.constant dense<0.000000e+00> : vector<256xf32>
    %38 = vector.multi_reduction <add>, %37, %cst_36 [1] : vector<256x32xf32> to vector<256xf32>
    %39 = vector.shape_cast %38 : vector<256xf32> to vector<256x1xf32>
    %cst_37 = arith.constant 3.200000e+01 : f32
    %40 = vector.broadcast %cst_37 : f32 to vector<256x1xf32>
    %41 = arith.divf %39, %40 : vector<256x1xf32>
    %42 = arith.mulf %37, %37 : vector<256x32xf32>
    %cst_38 = arith.constant dense<0.000000e+00> : vector<256xf32>
    %43 = vector.multi_reduction <add>, %42, %cst_38 [1] : vector<256x32xf32> to vector<256xf32>
    %44 = vector.shape_cast %43 : vector<256xf32> to vector<256x1xf32>
    %cst_39 = arith.constant 3.200000e+01 : f32
    %45 = vector.broadcast %cst_39 : f32 to vector<256x1xf32>
    %46 = arith.divf %44, %45 : vector<256x1xf32>
    %47 = arith.mulf %41, %41 : vector<256x1xf32>
    %48 = arith.subf %46, %47 : vector<256x1xf32>
    %cst_40 = arith.constant 0.000000e+00 : f32
    %49 = vector.broadcast %cst_40 : f32 to vector<256x1xf32>
    %50 = arith.maximumf %48, %49 : vector<256x1xf32>
    %51 = vector.broadcast %41 : vector<256x1xf32> to vector<256x32xf32>
    %52 = arith.subf %37, %51 : vector<256x32xf32>
    %cst_41 = arith.constant 9.99999974E-6 : f32
    %53 = vector.broadcast %cst_41 : f32 to vector<256x1xf32>
    %54 = arith.addf %50, %53 : vector<256x1xf32>
    %55 = math.rsqrt %54 : vector<256x1xf32>
    %56 = vector.broadcast %55 : vector<256x1xf32> to vector<256x32xf32>
    %57 = arith.mulf %52, %56 : vector<256x32xf32>
    %58 = vector.broadcast %14 : vector<1x32xf32> to vector<256x32xf32>
    %59 = arith.mulf %57, %58 : vector<256x32xf32>
    %60 = vector.broadcast %15 : vector<1x32xf32> to vector<256x32xf32>
    %61 = arith.addf %59, %60 : vector<256x32xf32>
    %c0_42 = arith.constant 0 : index
    %c0_43 = arith.constant 0 : index
    %62 = vector.load %arg4[%c0_42, %c0_43] : memref<256x512xf32, #tpu.memory_space<vmem>>, vector<256x512xf32>
    %cst_44 = arith.constant dense<0.000000e+00> : vector<256x16xf32>
    %63 = tpu.matmul %61, %4, %cst_44 {dimension_numbers = #tpu.dot_dimension_numbers<[1], [0], [0], [1], [0, 0, 1, 1], [], []>} : vector<256x32xf32>, vector<32x16xf32>, vector<256x16xf32> -> vector<256x16xf32>
    %cst_45 = arith.constant dense<0.000000e+00> : vector<512x16xf32>
    %64 = tpu.matmul %1, %5, %cst_45 {dimension_numbers = #tpu.dot_dimension_numbers<[1], [0], [0], [1], [0, 0, 1, 1], [], []>} : vector<512x32xf32>, vector<32x16xf32>, vector<512x16xf32> -> vector<512x16xf32>
    %cst_46 = arith.constant dense<0.000000e+00> : vector<512x32xf32>
    %65 = tpu.matmul %1, %8, %cst_46 {dimension_numbers = #tpu.dot_dimension_numbers<[1], [0], [0], [1], [0, 0, 1, 1], [], []>} : vector<512x32xf32>, vector<32x32xf32>, vector<512x32xf32> -> vector<512x32xf32>
    %cst_47 = arith.constant dense<0.000000e+00> : vector<256x512xf32>
    %66 = tpu.matmul %63, %64, %cst_47 {dimension_numbers = #tpu.dot_dimension_numbers<[1], [1], [0], [0], [0, 0, 1, 0], [], []>} : vector<256x16xf32>, vector<512x16xf32>, vector<256x512xf32> -> vector<256x512xf32>
    %67 = arith.addf %66, %62 : vector<256x512xf32>
    %cst_48 = arith.constant dense<0xFF800000> : vector<256xf32>
    %68 = vector.multi_reduction <maximumf>, %67, %cst_48 [1] : vector<256x512xf32> to vector<256xf32>
    %69 = vector.shape_cast %68 : vector<256xf32> to vector<256x1xf32>
    %70 = vector.broadcast %69 : vector<256x1xf32> to vector<256x512xf32>
    %71 = arith.subf %67, %70 : vector<256x512xf32>
    %72 = math.exp %71 : vector<256x512xf32>
    %cst_49 = arith.constant dense<0.000000e+00> : vector<256xf32>
    %73 = vector.multi_reduction <add>, %72, %cst_49 [1] : vector<256x512xf32> to vector<256xf32>
    %74 = vector.shape_cast %73 : vector<256xf32> to vector<256x1xf32>
    %75 = vector.broadcast %74 : vector<256x1xf32> to vector<256x512xf32>
    %76 = arith.divf %72, %75 : vector<256x512xf32>
    %cst_50 = arith.constant dense<0.000000e+00> : vector<256x32xf32>
    %77 = tpu.matmul %76, %65, %cst_50 {dimension_numbers = #tpu.dot_dimension_numbers<[1], [0], [0], [1], [0, 0, 1, 1], [], []>} : vector<256x512xf32>, vector<512x32xf32>, vector<256x32xf32> -> vector<256x32xf32>
    %cst_51 = arith.constant dense<0.000000e+00> : vector<256x32xf32>
    %78 = tpu.matmul %77, %9, %cst_51 {dimension_numbers = #tpu.dot_dimension_numbers<[1], [0], [0], [1], [0, 0, 1, 1], [], []>} : vector<256x32xf32>, vector<32x32xf32>, vector<256x32xf32> -> vector<256x32xf32>
    %79 = arith.addf %61, %78 : vector<256x32xf32>
    %cst_52 = arith.constant dense<0.000000e+00> : vector<256xf32>
    %80 = vector.multi_reduction <add>, %79, %cst_52 [1] : vector<256x32xf32> to vector<256xf32>
    %81 = vector.shape_cast %80 : vector<256xf32> to vector<256x1xf32>
    %cst_53 = arith.constant 3.200000e+01 : f32
    %82 = vector.broadcast %cst_53 : f32 to vector<256x1xf32>
    %83 = arith.divf %81, %82 : vector<256x1xf32>
    %84 = arith.mulf %79, %79 : vector<256x32xf32>
    %cst_54 = arith.constant dense<0.000000e+00> : vector<256xf32>
    %85 = vector.multi_reduction <add>, %84, %cst_54 [1] : vector<256x32xf32> to vector<256xf32>
    %86 = vector.shape_cast %85 : vector<256xf32> to vector<256x1xf32>
    %cst_55 = arith.constant 3.200000e+01 : f32
    %87 = vector.broadcast %cst_55 : f32 to vector<256x1xf32>
    %88 = arith.divf %86, %87 : vector<256x1xf32>
    %89 = arith.mulf %83, %83 : vector<256x1xf32>
    %90 = arith.subf %88, %89 : vector<256x1xf32>
    %cst_56 = arith.constant 0.000000e+00 : f32
    %91 = vector.broadcast %cst_56 : f32 to vector<256x1xf32>
    %92 = arith.maximumf %90, %91 : vector<256x1xf32>
    %93 = vector.broadcast %83 : vector<256x1xf32> to vector<256x32xf32>
    %94 = arith.subf %79, %93 : vector<256x32xf32>
    %cst_57 = arith.constant 9.99999974E-6 : f32
    %95 = vector.broadcast %cst_57 : f32 to vector<256x1xf32>
    %96 = arith.addf %92, %95 : vector<256x1xf32>
    %97 = math.rsqrt %96 : vector<256x1xf32>
    %98 = vector.broadcast %97 : vector<256x1xf32> to vector<256x32xf32>
    %99 = arith.mulf %94, %98 : vector<256x32xf32>
    %100 = vector.broadcast %16 : vector<1x32xf32> to vector<256x32xf32>
    %101 = arith.mulf %99, %100 : vector<256x32xf32>
    %102 = vector.broadcast %17 : vector<1x32xf32> to vector<256x32xf32>
    %103 = arith.addf %101, %102 : vector<256x32xf32>
    %cst_58 = arith.constant dense<0.000000e+00> : vector<256x32xf32>
    %104 = tpu.matmul %103, %10, %cst_58 {dimension_numbers = #tpu.dot_dimension_numbers<[1], [0], [0], [1], [0, 0, 1, 1], [], []>} : vector<256x32xf32>, vector<32x32xf32>, vector<256x32xf32> -> vector<256x32xf32>
    %105 = vector.broadcast %12 : vector<1x32xf32> to vector<256x32xf32>
    %106 = arith.addf %104, %105 : vector<256x32xf32>
    %cst_59 = arith.constant 0.000000e+00 : f32
    %107 = vector.broadcast %cst_59 : f32 to vector<256x32xf32>
    %108 = arith.cmpf ogt, %106, %107 : vector<256x32xf32>
    %cst_60 = arith.constant 0.000000e+00 : f32
    %109 = vector.broadcast %cst_60 : f32 to vector<256x32xf32>
    %110 = arith.minimumf %106, %109 : vector<256x32xf32>
    %111 = math.exp %110 : vector<256x32xf32>
    %cst_61 = arith.constant 1.000000e+00 : f32
    %112 = vector.broadcast %cst_61 : f32 to vector<256x32xf32>
    %113 = arith.subf %111, %112 : vector<256x32xf32>
    %114 = arith.select %108, %106, %113 : vector<256x32xi1>, vector<256x32xf32>
    %cst_62 = arith.constant dense<0.000000e+00> : vector<256x32xf32>
    %115 = tpu.matmul %114, %11, %cst_62 {dimension_numbers = #tpu.dot_dimension_numbers<[1], [0], [0], [1], [0, 0, 1, 1], [], []>} : vector<256x32xf32>, vector<32x32xf32>, vector<256x32xf32> -> vector<256x32xf32>
    %116 = vector.broadcast %13 : vector<1x32xf32> to vector<256x32xf32>
    %117 = arith.addf %115, %116 : vector<256x32xf32>
    %118 = arith.addf %103, %117 : vector<256x32xf32>
    %cst_63 = arith.constant dense<0.000000e+00> : vector<256xf32>
    %119 = vector.multi_reduction <add>, %118, %cst_63 [1] : vector<256x32xf32> to vector<256xf32>
    %120 = vector.shape_cast %119 : vector<256xf32> to vector<256x1xf32>
    %cst_64 = arith.constant 3.200000e+01 : f32
    %121 = vector.broadcast %cst_64 : f32 to vector<256x1xf32>
    %122 = arith.divf %120, %121 : vector<256x1xf32>
    %123 = arith.mulf %118, %118 : vector<256x32xf32>
    %cst_65 = arith.constant dense<0.000000e+00> : vector<256xf32>
    %124 = vector.multi_reduction <add>, %123, %cst_65 [1] : vector<256x32xf32> to vector<256xf32>
    %125 = vector.shape_cast %124 : vector<256xf32> to vector<256x1xf32>
    %cst_66 = arith.constant 3.200000e+01 : f32
    %126 = vector.broadcast %cst_66 : f32 to vector<256x1xf32>
    %127 = arith.divf %125, %126 : vector<256x1xf32>
    %128 = arith.mulf %122, %122 : vector<256x1xf32>
    %129 = arith.subf %127, %128 : vector<256x1xf32>
    %cst_67 = arith.constant 0.000000e+00 : f32
    %130 = vector.broadcast %cst_67 : f32 to vector<256x1xf32>
    %131 = arith.maximumf %129, %130 : vector<256x1xf32>
    %132 = vector.broadcast %122 : vector<256x1xf32> to vector<256x32xf32>
    %133 = arith.subf %118, %132 : vector<256x32xf32>
    %cst_68 = arith.constant 9.99999974E-6 : f32
    %134 = vector.broadcast %cst_68 : f32 to vector<256x1xf32>
    %135 = arith.addf %131, %134 : vector<256x1xf32>
    %136 = math.rsqrt %135 : vector<256x1xf32>
    %137 = vector.broadcast %136 : vector<256x1xf32> to vector<256x32xf32>
    %138 = arith.mulf %133, %137 : vector<256x32xf32>
    %139 = vector.broadcast %18 : vector<1x32xf32> to vector<256x32xf32>
    %140 = arith.mulf %138, %139 : vector<256x32xf32>
    %141 = vector.broadcast %19 : vector<1x32xf32> to vector<256x32xf32>
    %142 = arith.addf %140, %141 : vector<256x32xf32>
    %c0_69 = arith.constant 0 : index
    %c0_70 = arith.constant 0 : index
    %143 = vector.load %arg8[%c0_69, %c0_70] : memref<256x32xf32, #tpu.memory_space<vmem>>, vector<256x32xf32>
    tpu.vector_store %arg8[%c0_69, %c0_70], %142 {strides = array<i32>} : memref<256x32xf32, #tpu.memory_space<vmem>>, vector<256x32xf32>,
    return
  }
  func.func @transform_0(%arg0: i32) -> (i32, i32) {
    %c0_i32 = arith.constant 0 : i32
    %c0_i32_0 = arith.constant 0 : i32
    return %arg0, %c0_i32 : i32, i32
  }
  func.func @transform_1(%arg0: i32) -> (i32, i32) {
    %c0_i32 = arith.constant 0 : i32
    %c0_i32_0 = arith.constant 0 : i32
    return %arg0, %c0_i32 : i32, i32
  }
  func.func @transform_2(%arg0: i32) -> (i32, i32) {
    %c0_i32 = arith.constant 0 : i32
    %c0_i32_0 = arith.constant 0 : i32
    %c0_i32_1 = arith.constant 0 : i32
    return %c0_i32, %c0_i32_0 : i32, i32
  }
  func.func @transform_3(%arg0: i32) -> (i32, i32) {
    %c0_i32 = arith.constant 0 : i32
    %c0_i32_0 = arith.constant 0 : i32
    %c0_i32_1 = arith.constant 0 : i32
    return %c0_i32, %c0_i32_0 : i32, i32
  }
  func.func @transform_4(%arg0: i32) -> (i32, i32) {
    %c0_i32 = arith.constant 0 : i32
    %c0_i32_0 = arith.constant 0 : i32
    %c0_i32_1 = arith.constant 0 : i32
    return %c0_i32, %c0_i32_0 : i32, i32
  }
  func.func @transform_5(%arg0: i32) -> (i32, i32) {
    %c0_i32 = arith.constant 0 : i32
    %c0_i32_0 = arith.constant 0 : i32
    %c0_i32_1 = arith.constant 0 : i32
    return %c0_i32, %c0_i32_0 : i32, i32
  }
  func.func @transform_6(%arg0: i32) -> (i32, i32) {
    %c0_i32 = arith.constant 0 : i32
    %c0_i32_0 = arith.constant 0 : i32
    %c0_i32_1 = arith.constant 0 : i32
    return %c0_i32, %c0_i32_0 : i32, i32
  }
  func.func @transform_7(%arg0: i32) -> (i32, i32) {
    %c0_i32 = arith.constant 0 : i32
    %c0_i32_0 = arith.constant 0 : i32
    return %arg0, %c0_i32 : i32, i32
  }
}

</mosaic_0001>

<llo_original>
// kernel: tpu_custom_call.1
$region0: #{tpu_custom_call.1}
  #allocation0 [shape = 'u32[]', space=smem, size = 0x4, offset = 0x4, fixed_abs, tag = 'smem constant byte address 0x4 - core index']
  #allocation1 [shape = 'u32[144,128]{1,0:T(1,128)}', space=vmem, size = 0x12000, scoped, tag = 'internal scratch']
  %s0 = inlined_call_operand.vmem [shape: f32[1024,32], index: 0, kind: input, shape index: {}]
  %s1 = inlined_call_operand.vmem [shape: f32[2048,32], index: 1, kind: input, shape index: {}]
  %s2 = inlined_call_operand.vmem [shape: f32[256,256], index: 2, kind: input, shape index: {}]
  %s3 = inlined_call_operand.vmem [shape: f32[256,512], index: 3, kind: input, shape index: {}]
  %s4 = inlined_call_operand.vmem [shape: f32[128,16], index: 4, kind: input, shape index: {}]
  %s5 = inlined_call_operand.vmem [shape: f32[192,32], index: 5, kind: input, shape index: {}]
  %s6 = inlined_call_operand.vmem [shape: f32[8,32], index: 6, kind: input, shape index: {}]
  %s7 = inlined_call_operand.vmem [shape: f32[1024,32], index: 7, kind: output, shape index: {}]
  %s8 = sld [smem:[#allocation0]]
  $region61: #{tpu_custom_call.1} parent=0
    _
  %s10 = ssub.s32 1, %s8
  %s11 = scalar_select 0, %s10, %s8
  loop: start=0, step=1, limit=6
  $region2: #{tpu_custom_call.1} parent=0 // loop_pre_header
    _
  $region3: #{tpu_custom_call.1} parent=0 // loop_header
    %s13 = sphi 0, %s17
    %p14 = scmp.ge.s32.totalorder %s13, 6
    %s23 = sphi 0, %s25
    %s26 = sphi 0, %s23
    %s27 = sphi 0, %s26
    %s43 = sphi 0, %s27
    %s49 = sphi 0, %s51
    %s52 = sphi 0, %s49
    %s53 = sphi 0, %s52
    %s69 = sphi 0, %s53
    %s73 = sphi 0, %s73
    %s75 = sphi 0, %s73
    %s76 = sphi 0, %s75
    %s90 = sphi 0, %s76
    %s94 = sphi 0, %s94
    %s96 = sphi 0, %s94
    %s97 = sphi 0, %s96
    %s111 = sphi 0, %s97
    %s115 = sphi 0, %s115
    %s117 = sphi 0, %s115
    %s118 = sphi 0, %s117
    %s132 = sphi 0, %s118
    %s136 = sphi 0, %s136
    %s138 = sphi 0, %s136
    %s139 = sphi 0, %s138
    %s153 = sphi 0, %s139
    %s157 = sphi 0, %s157
    %s159 = sphi 0, %s157
    %s160 = sphi 0, %s159
    %s174 = sphi 0, %s160
    %s180 = sphi 0, %s182
    %s183 = sphi 0, %s180
    %s184 = sphi 0, %s183
    %s200 = sphi 0, %s184
  $region4: #{tpu_custom_call.1} parent=0 // loop_header_branch
    %16 = sbr.rel (%p14) target = $region8
  $region5: #{tpu_custom_call.1} parent=0 // loop_body
    %s18 = ssub.s32 %s13, 1
    %s19 = ssub.s32 %s13, 2
    %s20 = sadd.s32 %s13, 1
    %s21 = ssub.s32 %s13, %s20
    %p22 = scmp.eq.s32.totalorder %s21, 0
    %s24 = sadd.s32 %s23, 1
    %s25 = scalar_select %p22, %s23, %s24
    %p28 = pneg %p22
    %p29 = scmp.eq.s32.totalorder %s13, 3
    %p30 = por %p28, %p29
    %p31 = scmp.ne.s32.totalorder %s23, %s26
    %p32 = scmp.eq.s32.totalorder %s13, 0
    %p33 = por %p31, %p32
    %p34 = scmp.ne.s32.totalorder %s23, %s26
    %p35 = scmp.eq.s32.totalorder %s18, 3
    %p36 = por %p34, %p35
    %p37 = scmp.ne.s32.totalorder %s26, %s27
    %p38 = scmp.eq.s32.totalorder %s18, 0
    %p39 = por %p37, %p38
    %p40 = scmp.ne.s32.totalorder %s26, %s27
    %p41 = scmp.eq.s32.totalorder %s19, 3
    %p42 = por %p40, %p41
    %p44 = scmp.ne.s32.totalorder %s27, %s43
    %p45 = scmp.eq.s32.totalorder %s19, 0
    %p46 = por %p44, %p45
    %s47 = ssub.s32 %s13, %s20
    %p48 = scmp.eq.s32.totalorder %s47, 0
    %s50 = sadd.s32 %s49, 1
    %s51 = scalar_select %p48, %s49, %s50
    %p54 = pneg %p48
    %p55 = scmp.eq.s32.totalorder %s13, 3
    %p56 = por %p54, %p55
    %p57 = scmp.ne.s32.totalorder %s49, %s52
    %p58 = scmp.eq.s32.totalorder %s13, 0
    %p59 = por %p57, %p58
    %p60 = scmp.ne.s32.totalorder %s49, %s52
    %p61 = scmp.eq.s32.totalorder %s18, 3
    %p62 = por %p60, %p61
    %p63 = scmp.ne.s32.totalorder %s52, %s53
    %p64 = scmp.eq.s32.totalorder %s18, 0
    %p65 = por %p63, %p64
    %p66 = scmp.ne.s32.totalorder %s52, %s53
    %p67 = scmp.eq.s32.totalorder %s19, 3
    %p68 = por %p66, %p67
    %p70 = scmp.ne.s32.totalorder %s53, %s69
    %p71 = scmp.eq.s32.totalorder %s19, 0
    %p72 = por %p70, %p71
    %s74 = sadd.s32 %s73, 1
    %p77 = scmp.eq.s32.totalorder %s13, 3
    %p78 = scmp.ne.s32.totalorder %s73, %s75
    %p79 = scmp.eq.s32.totalorder %s13, 0
    %p80 = por %p78, %p79
    %p81 = scmp.ne.s32.totalorder %s73, %s75
    %p82 = scmp.eq.s32.totalorder %s18, 3
    %p83 = por %p81, %p82
    %p84 = scmp.ne.s32.totalorder %s75, %s76
    %p85 = scmp.eq.s32.totalorder %s18, 0
    %p86 = por %p84, %p85
    %p87 = scmp.ne.s32.totalorder %s75, %s76
    %p88 = scmp.eq.s32.totalorder %s19, 3
    %p89 = por %p87, %p88
    %p91 = scmp.ne.s32.totalorder %s76, %s90
    %p92 = scmp.eq.s32.totalorder %s19, 0
    %p93 = por %p91, %p92
    %s95 = sadd.s32 %s94, 1
    %p98 = scmp.eq.s32.totalorder %s13, 3
    %p99 = scmp.ne.s32.totalorder %s94, %s96
    %p100 = scmp.eq.s32.totalorder %s13, 0
    %p101 = por %p99, %p100
    %p102 = scmp.ne.s32.totalorder %s94, %s96
    %p103 = scmp.eq.s32.totalorder %s18, 3
    %p104 = por %p102, %p103
    %p105 = scmp.ne.s32.totalorder %s96, %s97
    %p106 = scmp.eq.s32.totalorder %s18, 0
    %p107 = por %p105, %p106
    %p108 = scmp.ne.s32.totalorder %s96, %s97
    %p109 = scmp.eq.s32.totalorder %s19, 3
    %p110 = por %p108, %p109
    %p112 = scmp.ne.s32.totalorder %s97, %s111
    %p113 = scmp.eq.s32.totalorder %s19, 0
    %p114 = por %p112, %p113
    %s116 = sadd.s32 %s115, 1
    %p119 = scmp.eq.s32.totalorder %s13, 3
    %p120 = scmp.ne.s32.totalorder %s115, %s117
    %p121 = scmp.eq.s32.totalorder %s13, 0
    %p122 = por %p120, %p121
    %p123 = scmp.ne.s32.totalorder %s115, %s117
    %p124 = scmp.eq.s32.totalorder %s18, 3
    %p125 = por %p123, %p124
    %p126 = scmp.ne.s32.totalorder %s117, %s118
    %p127 = scmp.eq.s32.totalorder %s18, 0
    %p128 = por %p126, %p127
    %p129 = scmp.ne.s32.totalorder %s117, %s118
    %p130 = scmp.eq.s32.totalorder %s19, 3
    %p131 = por %p129, %p130
    %p133 = scmp.ne.s32.totalorder %s118, %s132
    %p134 = scmp.eq.s32.totalorder %s19, 0
    %p135 = por %p133, %p134
    %s137 = sadd.s32 %s136, 1
    %p140 = scmp.eq.s32.totalorder %s13, 3
    %p141 = scmp.ne.s32.totalorder %s136, %s138
    %p142 = scmp.eq.s32.totalorder %s13, 0
    %p143 = por %p141, %p142
    %p144 = scmp.ne.s32.totalorder %s136, %s138
    %p145 = scmp.eq.s32.totalorder %s18, 3
    %p146 = por %p144, %p145
    %p147 = scmp.ne.s32.totalorder %s138, %s139
    %p148 = scmp.eq.s32.totalorder %s18, 0
    %p149 = por %p147, %p148
    %p150 = scmp.ne.s32.totalorder %s138, %s139
    %p151 = scmp.eq.s32.totalorder %s19, 3
    %p152 = por %p150, %p151
    %p154 = scmp.ne.s32.totalorder %s139, %s153
    %p155 = scmp.eq.s32.totalorder %s19, 0
    %p156 = por %p154, %p155
    %s158 = sadd.s32 %s157, 1
    %p161 = scmp.eq.s32.totalorder %s13, 3
    %p162 = scmp.ne.s32.totalorder %s157, %s159
    %p163 = scmp.eq.s32.totalorder %s13, 0
    %p164 = por %p162, %p163
    %p165 = scmp.ne.s32.totalorder %s157, %s159
    %p166 = scmp.eq.s32.totalorder %s18, 3
    %p167 = por %p165, %p166
    %p168 = scmp.ne.s32.totalorder %s159, %s160
    %p169 = scmp.eq.s32.totalorder %s18, 0
    %p170 = por %p168, %p169
    %p171 = scmp.ne.s32.totalorder %s159, %s160
    %p172 = scmp.eq.s32.totalorder %s19, 3
    %p173 = por %p171, %p172
    %p175 = scmp.ne.s32.totalorder %s160, %s174
    %p176 = scmp.eq.s32.totalorder %s19, 0
    %p177 = por %p175, %p176
    %s178 = ssub.s32 %s13, %s20
    %p179 = scmp.eq.s32.totalorder %s178, 0
    %s181 = sadd.s32 %s180, 1
    %s182 = scalar_select %p179, %s180, %s181
    %p185 = pneg %p179
    %p186 = scmp.eq.s32.totalorder %s13, 3
    %p187 = por %p185, %p186
    %p188 = scmp.ne.s32.totalorder %s180, %s183
    %p189 = scmp.eq.s32.totalorder %s13, 0
    %p190 = por %p188, %p189
    %p191 = scmp.ne.s32.totalorder %s180, %s183
    %p192 = scmp.eq.s32.totalorder %s18, 3
    %p193 = por %p191, %p192
    %p194 = scmp.ne.s32.totalorder %s183, %s184
    %p195 = scmp.eq.s32.totalorder %s18, 0
    %p196 = por %p194, %p195
    %p197 = scmp.ne.s32.totalorder %s183, %s184
    %p198 = scmp.eq.s32.totalorder %s19, 3
    %p199 = por %p197, %p198
    %p201 = scmp.ne.s32.totalorder %s184, %s200
    %p202 = scmp.eq.s32.totalorder %s19, 0
    %p203 = por %p201, %p202
    %p204 = scmp.le.s32.totalorder 1, %s13
    %p205 = scmp.lt.s32.totalorder %s13, 5
    %p206 = pnand %p204, %p205
    %p207 = pneg %p206
    // Predicated region
    $region9: #{tpu_custom_call.1} parent=5 // pred_check
      _
    $region10: #{tpu_custom_call.1} parent=5 // pred_check_branch
      %209 = sbr.rel (%p206) target = $region12
    $region11: #{tpu_custom_call.1} parent=5 // pred_region
      %s210 = ssub.s32 %s13, 1
      // Predicated region
      $region13: #{tpu_custom_call.1} parent=11 // pred_check
        %p211 = pneg %p86
      $region14: #{tpu_custom_call.1} parent=11 // pred_check_branch
        %213 = sbr.rel (%p211) target = $region16
      $region15: #{tpu_custom_call.1} parent=11 // pred_region
        _
      $region16: #{tpu_custom_call.1} parent=11 // pred_fallthru
        _
      // Predicated region
      $region17: #{tpu_custom_call.1} parent=11 // pred_check
        %p214 = pneg %p107
      $region18: #{tpu_custom_call.1} parent=11 // pred_check_branch
        %216 = sbr.rel (%p214) target = $region20
      $region19: #{tpu_custom_call.1} parent=11 // pred_region
        _
      $region20: #{tpu_custom_call.1} parent=11 // pred_fallthru
        _
      // Predicated region
      $region21: #{tpu_custom_call.1} parent=11 // pred_check
        %p217 = pneg %p128
      $region22: #{tpu_custom_call.1} parent=11 // pred_check_branch
        %219 = sbr.rel (%p217) target = $region24
      $region23: #{tpu_custom_call.1} parent=11 // pred_region
        _
      $region24: #{tpu_custom_call.1} parent=11 // pred_fallthru
        _
      // Predicated region
      $region25: #{tpu_custom_call.1} parent=11 // pred_check
        %p220 = pneg %p149
      $region26: #{tpu_custom_call.1} parent=11 // pred_check_branch
        %222 = sbr.rel (%p220) target = $region28
      $region27: #{tpu_custom_call.1} parent=11 // pred_region
        _
      $region28: #{tpu_custom_call.1} parent=11 // pred_fallthru
        _
      // Predicated region
      $region29: #{tpu_custom_call.1} parent=11 // pred_check
        %p223 = pneg %p170
      $region30: #{tpu_custom_call.1} parent=11 // pred_check_branch
        %225 = sbr.rel (%p223) target = $region32
      $region31: #{tpu_custom_call.1} parent=11 // pred_region
        _
      $region32: #{tpu_custom_call.1} parent=11 // pred_fallthru
        _
    $region12: #{tpu_custom_call.1} parent=5 // pred_fallthru
      _
    %p226 = scmp.lt.s32.totalorder %s13, 4
    // Predicated region
    $region33: #{tpu_custom_call.1} parent=5 // pred_check
      %p227 = pneg %p226
    $region34: #{tpu_custom_call.1} parent=5 // pred_check_branch
      %229 = sbr.rel (%p227) target = $region36
    $region35: #{tpu_custom_call.1} parent=5 // pred_region
      // Predicated region
      $region37: #{tpu_custom_call.1} parent=35 // pred_check
        %p230 = pneg %p33
      $region38: #{tpu_custom_call.1} parent=35 // pred_check_branch
        %232 = sbr.rel (%p230) target = $region40
      $region39: #{tpu_custom_call.1} parent=35 // pred_region
        %s233 = smul.u32 32, %s13
        %p234 = scmp.lt.s32.totalorder %s233, 127
        %s235 = scalar_select %p234, %s233, 127
        %s236 = smul.addr %s235, 8
        %s237 = scalar_lea.vmem %s0, %s236
        %s238 = smul.u32 32, %s13
      $region40: #{tpu_custom_call.1} parent=35 // pred_fallthru
        _
      // Predicated region
      $region41: #{tpu_custom_call.1} parent=35 // pred_check
        %p239 = pneg %p59
      $region42: #{tpu_custom_call.1} parent=35 // pred_check_branch
        %241 = sbr.rel (%p239) target = $region44
      $region43: #{tpu_custom_call.1} parent=35 // pred_region
        %s242 = smul.u32 64, %s13
        %p243 = scmp.lt.s32.totalorder %s242, 255
        %s244 = scalar_select %p243, %s242, 255
        %s245 = smul.addr %s244, 8
        %s246 = scalar_lea.vmem %s1, %s245
        %s247 = smul.u32 64, %s13
      $region44: #{tpu_custom_call.1} parent=35 // pred_fallthru
        _
    $region36: #{tpu_custom_call.1} parent=5 // pred_fallthru
      _
    %p248 = scmp.le.s32.totalorder 1, %s13
    %p249 = scmp.lt.s32.totalorder %s13, 5
    %p250 = pnand %p248, %p249
    %p251 = pneg %p250
    // Predicated region
    $region45: #{tpu_custom_call.1} parent=5 // pred_check
      _
    $region46: #{tpu_custom_call.1} parent=5 // pred_check_branch
      %253 = sbr.rel (%p250) target = $region48
    $region47: #{tpu_custom_call.1} parent=5 // pred_region
      %s254 = ssub.s32 %s13, 1
      %s255 = smul.u32 32, %s18
      %p256 = scmp.lt.s32.totalorder %s255, 127
      %s257 = scalar_select %p256, %s255, 127
      %s258 = smul.addr %s257, 8
      %s259 = scalar_lea.vmem %s0, %s258
      %p260 = pneg %p39
      %p261 = pneg %p36
      %s262 = smul.u32 64, %s18
      %p263 = scmp.lt.s32.totalorder %s262, 255
      %s264 = scalar_select %p263, %s262, 255
      %s265 = smul.addr %s264, 8
      %s266 = scalar_lea.vmem %s1, %s265
      %p267 = pneg %p65
      %p268 = pneg %p62
      %p269 = pneg %p86
      %p270 = pneg %p83
      %p271 = pneg %p107
      %p272 = pneg %p104
      %p273 = pneg %p128
      %p274 = pneg %p125
      %p275 = pneg %p149
      %p276 = pneg %p146
      %p277 = pneg %p170
      %p278 = pneg %p167
      %p279 = pneg %p196
      %p280 = pneg %p193
      %s281 = smul.u32 32, %s18
      %p282 = scmp.lt.s32.totalorder %s281, 127
      %s283 = scalar_select %p282, %s281, 127
      %s284 = smul.addr %s283, 8
      %s285 = scalar_lea.vmem %s7, %s284
      %s286 = smul.u32 32, %s18
      %p287 = scmp.lt.s32.totalorder %s286, 127
      %s288 = scalar_select %p287, %s286, 127
      %s289 = smul.addr %s288, 8
      %s290 = scalar_lea.vmem %s0, %s289
      %s291 = smul.u32 32, %s18
      %s292 = smul.u32 64, %s18
      %p293 = scmp.lt.s32.totalorder %s292, 255
      %s294 = scalar_select %p293, %s292, 255
      %s295 = smul.addr %s294, 8
      %s296 = scalar_lea.vmem %s1, %s295
      %s297 = smul.u32 64, %s18
      %s298 = smul.u32 32, %s18
      %p299 = scmp.lt.s32.totalorder %s298, 127
      %s300 = scalar_select %p299, %s298, 127
      %s301 = smul.addr %s300, 8
      %s302 = scalar_lea.vmem %s7, %s301
      %s303 = smul.u32 32, %s18
      %v304 = vld [vmem:[%s290] sm:$0xff]
      %v305 = vld [vmem:[%s290 + $0x8] sm:$0xff]
      %v306 = vld [vmem:[%s290 + $0x10] sm:$0xff]
      %v307 = vld [vmem:[%s290 + $0x18] sm:$0xff]
      %v308 = vld [vmem:[%s290 + $0x20] sm:$0xff]
      %v309 = vld [vmem:[%s290 + $0x28] sm:$0xff]
      %v310 = vld [vmem:[%s290 + $0x30] sm:$0xff]
      %v311 = vld [vmem:[%s290 + $0x38] sm:$0xff]
      %v312 = vld [vmem:[%s290 + $0x40] sm:$0xff]
      %v313 = vld [vmem:[%s290 + $0x48] sm:$0xff]
      %v314 = vld [vmem:[%s290 + $0x50] sm:$0xff]
      %v315 = vld [vmem:[%s290 + $0x58] sm:$0xff]
      %v316 = vld [vmem:[%s290 + $0x60] sm:$0xff]
      %v317 = vld [vmem:[%s290 + $0x68] sm:$0xff]
      %v318 = vld [vmem:[%s290 + $0x70] sm:$0xff]
      %v319 = vld [vmem:[%s290 + $0x78] sm:$0xff]
      %v320 = vld [vmem:[%s290 + $0x80] sm:$0xff]
      %v321 = vld [vmem:[%s290 + $0x88] sm:$0xff]
      %v322 = vld [vmem:[%s290 + $0x90] sm:$0xff]
      %v323 = vld [vmem:[%s290 + $0x98] sm:$0xff]
      %v324 = vld [vmem:[%s290 + $0xa0] sm:$0xff]
      %v325 = vld [vmem:[%s290 + $0xa8] sm:$0xff]
      %v326 = vld [vmem:[%s290 + $0xb0] sm:$0xff]
      %v327 = vld [vmem:[%s290 + $0xb8] sm:$0xff]
      %v328 = vld [vmem:[%s290 + $0xc0] sm:$0xff]
      %v329 = vld [vmem:[%s290 + $0xc8] sm:$0xff]
      %v330 = vld [vmem:[%s290 + $0xd0] sm:$0xff]
      %v331 = vld [vmem:[%s290 + $0xd8] sm:$0xff]
      %v332 = vld [vmem:[%s290 + $0xe0] sm:$0xff]
      %v333 = vld [vmem:[%s290 + $0xe8] sm:$0xff]
      %v334 = vld [vmem:[%s290 + $0xf0] sm:$0xff]
      %v335 = vld [vmem:[%s290 + $0xf8] sm:$0xff]
      %v336 = vld [vmem:[%s296] sm:$0xff]
      %v337 = vld [vmem:[%s296 + $0x8] sm:$0xff]
      %v338 = vld [vmem:[%s296 + $0x10] sm:$0xff]
      %v339 = vld [vmem:[%s296 + $0x18] sm:$0xff]
      %v340 = vld [vmem:[%s296 + $0x20] sm:$0xff]
      %v341 = vld [vmem:[%s296 + $0x28] sm:$0xff]
      %v342 = vld [vmem:[%s296 + $0x30] sm:$0xff]
      %v343 = vld [vmem:[%s296 + $0x38] sm:$0xff]
      %v344 = vld [vmem:[%s296 + $0x40] sm:$0xff]
      %v345 = vld [vmem:[%s296 + $0x48] sm:$0xff]
      %v346 = vld [vmem:[%s296 + $0x50] sm:$0xff]
      %v347 = vld [vmem:[%s296 + $0x58] sm:$0xff]
      %v348 = vld [vmem:[%s296 + $0x60] sm:$0xff]
      %v349 = vld [vmem:[%s296 + $0x68] sm:$0xff]
      %v350 = vld [vmem:[%s296 + $0x70] sm:$0xff]
      %v351 = vld [vmem:[%s296 + $0x78] sm:$0xff]
      %v352 = vld [vmem:[%s296 + $0x80] sm:$0xff]
      %v353 = vld [vmem:[%s296 + $0x88] sm:$0xff]
      %v354 = vld [vmem:[%s296 + $0x90] sm:$0xff]
      %v355 = vld [vmem:[%s296 + $0x98] sm:$0xff]
      %v356 = vld [vmem:[%s296 + $0xa0] sm:$0xff]
      %v357 = vld [vmem:[%s296 + $0xa8] sm:$0xff]
      %v358 = vld [vmem:[%s296 + $0xb0] sm:$0xff]
      %v359 = vld [vmem:[%s296 + $0xb8] sm:$0xff]
      %v360 = vld [vmem:[%s296 + $0xc0] sm:$0xff]
      %v361 = vld [vmem:[%s296 + $0xc8] sm:$0xff]
      %v362 = vld [vmem:[%s296 + $0xd0] sm:$0xff]
      %v363 = vld [vmem:[%s296 + $0xd8] sm:$0xff]
      %v364 = vld [vmem:[%s296 + $0xe0] sm:$0xff]
      %v365 = vld [vmem:[%s296 + $0xe8] sm:$0xff]
      %v366 = vld [vmem:[%s296 + $0xf0] sm:$0xff]
      %v367 = vld [vmem:[%s296 + $0xf8] sm:$0xff]
      %v368 = vld [vmem:[%s296 + $0x100] sm:$0xff]
      %v369 = vld [vmem:[%s296 + $0x108] sm:$0xff]
      %v370 = vld [vmem:[%s296 + $0x110] sm:$0xff]
      %v371 = vld [vmem:[%s296 + $0x118] sm:$0xff]
      %v372 = vld [vmem:[%s296 + $0x120] sm:$0xff]
      %v373 = vld [vmem:[%s296 + $0x128] sm:$0xff]
      %v374 = vld [vmem:[%s296 + $0x130] sm:$0xff]
      %v375 = vld [vmem:[%s296 + $0x138] sm:$0xff]
      %v376 = vld [vmem:[%s296 + $0x140] sm:$0xff]
      %v377 = vld [vmem:[%s296 + $0x148] sm:$0xff]
      %v378 = vld [vmem:[%s296 + $0x150] sm:$0xff]
      %v379 = vld [vmem:[%s296 + $0x158] sm:$0xff]
      %v380 = vld [vmem:[%s296 + $0x160] sm:$0xff]
      %v381 = vld [vmem:[%s296 + $0x168] sm:$0xff]
      %v382 = vld [vmem:[%s296 + $0x170] sm:$0xff]
      %v383 = vld [vmem:[%s296 + $0x178] sm:$0xff]
      %v384 = vld [vmem:[%s296 + $0x180] sm:$0xff]
      %v385 = vld [vmem:[%s296 + $0x188] sm:$0xff]
      %v386 = vld [vmem:[%s296 + $0x190] sm:$0xff]
      %v387 = vld [vmem:[%s296 + $0x198] sm:$0xff]
      %v388 = vld [vmem:[%s296 + $0x1a0] sm:$0xff]
      %v389 = vld [vmem:[%s296 + $0x1a8] sm:$0xff]
      %v390 = vld [vmem:[%s296 + $0x1b0] sm:$0xff]
      %v391 = vld [vmem:[%s296 + $0x1b8] sm:$0xff]
      %v392 = vld [vmem:[%s296 + $0x1c0] sm:$0xff]
      %v393 = vld [vmem:[%s296 + $0x1c8] sm:$0xff]
      %v394 = vld [vmem:[%s296 + $0x1d0] sm:$0xff]
      %v395 = vld [vmem:[%s296 + $0x1d8] sm:$0xff]
      %v396 = vld [vmem:[%s296 + $0x1e0] sm:$0xff]
      %v397 = vld [vmem:[%s296 + $0x1e8] sm:$0xff]
      %v398 = vld [vmem:[%s296 + $0x1f0] sm:$0xff]
      %v399 = vld [vmem:[%s296 + $0x1f8] sm:$0xff]
      %v400 = vld [vmem:[%s4] sm:$0xff]
      %v401 = vld [vmem:[%s4 + $0x8] sm:$0xff]
      %v402 = vld [vmem:[%s4 + $0x10] sm:$0xff]
      %v403 = vld [vmem:[%s4 + $0x18] sm:$0xff]
      %v404 = vld [vmem:[%s4 + $0x20] sm:$0xff]
      %v405 = vld [vmem:[%s4 + $0x28] sm:$0xff]
      %v406 = vld [vmem:[%s4 + $0x30] sm:$0xff]
      %v407 = vld [vmem:[%s4 + $0x38] sm:$0xff]
      %v408 = vld [vmem:[%s4 + $0x40] sm:$0xff]
      %v409 = vld [vmem:[%s4 + $0x48] sm:$0xff]
      %v410 = vld [vmem:[%s4 + $0x50] sm:$0xff]
      %v411 = vld [vmem:[%s4 + $0x58] sm:$0xff]
      %v412 = vld [vmem:[%s4 + $0x60] sm:$0xff]
      %v413 = vld [vmem:[%s4 + $0x68] sm:$0xff]
      %v414 = vld [vmem:[%s4 + $0x70] sm:$0xff]
      %v415 = vld [vmem:[%s4 + $0x78] sm:$0xff]
      %v416 = vld [vmem:[%s5] sm:$0xff]
      %v417 = vld [vmem:[%s5 + $0x8] sm:$0xff]
      %v418 = vld [vmem:[%s5 + $0x10] sm:$0xff]
      %v419 = vld [vmem:[%s5 + $0x18] sm:$0xff]
      %v420 = vld [vmem:[%s5 + $0x20] sm:$0xff]
      %v421 = vld [vmem:[%s5 + $0x28] sm:$0xff]
      %v422 = vld [vmem:[%s5 + $0x30] sm:$0xff]
      %v423 = vld [vmem:[%s5 + $0x38] sm:$0xff]
      %v424 = vld [vmem:[%s5 + $0x40] sm:$0xff]
      %v425 = vld [vmem:[%s5 + $0x48] sm:$0xff]
      %v426 = vld [vmem:[%s5 + $0x50] sm:$0xff]
      %v427 = vld [vmem:[%s5 + $0x58] sm:$0xff]
      %v428 = vld [vmem:[%s5 + $0x60] sm:$0xff]
      %v429 = vld [vmem:[%s5 + $0x68] sm:$0xff]
      %v430 = vld [vmem:[%s5 + $0x70] sm:$0xff]
      %v431 = vld [vmem:[%s5 + $0x78] sm:$0xff]
      %v432 = vld [vmem:[%s5 + $0x80] sm:$0xff]
      %v433 = vld [vmem:[%s5 + $0x88] sm:$0xff]
      %v434 = vld [vmem:[%s5 + $0x90] sm:$0xff]
      %v435 = vld [vmem:[%s5 + $0x98] sm:$0xff]
      %v436 = vld [vmem:[%s5 + $0xa0] sm:$0xff]
      %v437 = vld [vmem:[%s5 + $0xa8] sm:$0xff]
      %v438 = vld [vmem:[%s5 + $0xb0] sm:$0xff]
      %v439 = vld [vmem:[%s5 + $0xb8] sm:$0xff]
      %v440 = vld [vmem:[%s6] sm:$0x1]
      %v441 = vld [vmem:[%s6 + $0x1] sm:$0x1]
      %v442 = vld [vmem:[%s6 + $0x2] sm:$0x1]
      %v443 = vld [vmem:[%s6 + $0x3] sm:$0x1]
      %v444 = vld [vmem:[%s6 + $0x4] sm:$0x1]
      %v445 = vld [vmem:[%s6 + $0x5] sm:$0x1]
      %v446 = vld [vmem:[%s6 + $0x6] sm:$0x1]
      %v447 = vld [vmem:[%s6 + $0x7] sm:$0x1]
      %v448 = vld [vmem:[%s2] sm:$0xff]
      %v449 = vld [vmem:[%s2 + $0x8] sm:$0xff]
      %v450 = vld [vmem:[%s2 + $0x10] sm:$0xff]
      %v451 = vld [vmem:[%s2 + $0x18] sm:$0xff]
      %v452 = vld [vmem:[%s2 + $0x20] sm:$0xff]
      %v453 = vld [vmem:[%s2 + $0x28] sm:$0xff]
      %v454 = vld [vmem:[%s2 + $0x30] sm:$0xff]
      %v455 = vld [vmem:[%s2 + $0x38] sm:$0xff]
      %v456 = vld [vmem:[%s2 + $0x40] sm:$0xff]
      %v457 = vld [vmem:[%s2 + $0x48] sm:$0xff]
      %v458 = vld [vmem:[%s2 + $0x50] sm:$0xff]
      %v459 = vld [vmem:[%s2 + $0x58] sm:$0xff]
      %v460 = vld [vmem:[%s2 + $0x60] sm:$0xff]
      %v461 = vld [vmem:[%s2 + $0x68] sm:$0xff]
      %v462 = vld [vmem:[%s2 + $0x70] sm:$0xff]
      %v463 = vld [vmem:[%s2 + $0x78] sm:$0xff]
      %v464 = vld [vmem:[%s2 + $0x80] sm:$0xff]
      %v465 = vld [vmem:[%s2 + $0x88] sm:$0xff]
      %v466 = vld [vmem:[%s2 + $0x90] sm:$0xff]
      %v467 = vld [vmem:[%s2 + $0x98] sm:$0xff]
      %v468 = vld [vmem:[%s2 + $0xa0] sm:$0xff]
      %v469 = vld [vmem:[%s2 + $0xa8] sm:$0xff]
      %v470 = vld [vmem:[%s2 + $0xb0] sm:$0xff]
      %v471 = vld [vmem:[%s2 + $0xb8] sm:$0xff]
      %v472 = vld [vmem:[%s2 + $0xc0] sm:$0xff]
      %v473 = vld [vmem:[%s2 + $0xc8] sm:$0xff]
      %v474 = vld [vmem:[%s2 + $0xd0] sm:$0xff]
      %v475 = vld [vmem:[%s2 + $0xd8] sm:$0xff]
      %v476 = vld [vmem:[%s2 + $0xe0] sm:$0xff]
      %v477 = vld [vmem:[%s2 + $0xe8] sm:$0xff]
      %v478 = vld [vmem:[%s2 + $0xf0] sm:$0xff]
      %v479 = vld [vmem:[%s2 + $0xf8] sm:$0xff]
      %v480 = vld [vmem:[%s2 + $0x100] sm:$0xff]
      %v481 = vld [vmem:[%s2 + $0x108] sm:$0xff]
      %v482 = vld [vmem:[%s2 + $0x110] sm:$0xff]
      %v483 = vld [vmem:[%s2 + $0x118] sm:$0xff]
      %v484 = vld [vmem:[%s2 + $0x120] sm:$0xff]
      %v485 = vld [vmem:[%s2 + $0x128] sm:$0xff]
      %v486 = vld [vmem:[%s2 + $0x130] sm:$0xff]
      %v487 = vld [vmem:[%s2 + $0x138] sm:$0xff]
      %v488 = vld [vmem:[%s2 + $0x140] sm:$0xff]
      %v489 = vld [vmem:[%s2 + $0x148] sm:$0xff]
      %v490 = vld [vmem:[%s2 + $0x150] sm:$0xff]
      %v491 = vld [vmem:[%s2 + $0x158] sm:$0xff]
      %v492 = vld [vmem:[%s2 + $0x160] sm:$0xff]
      %v493 = vld [vmem:[%s2 + $0x168] sm:$0xff]
      %v494 = vld [vmem:[%s2 + $0x170] sm:$0xff]
      %v495 = vld [vmem:[%s2 + $0x178] sm:$0xff]
      %v496 = vld [vmem:[%s2 + $0x180] sm:$0xff]
      %v497 = vld [vmem:[%s2 + $0x188] sm:$0xff]
      %v498 = vld [vmem:[%s2 + $0x190] sm:$0xff]
      %v499 = vld [vmem:[%s2 + $0x198] sm:$0xff]
      %v500 = vld [vmem:[%s2 + $0x1a0] sm:$0xff]
      %v501 = vld [vmem:[%s2 + $0x1a8] sm:$0xff]
      %v502 = vld [vmem:[%s2 + $0x1b0] sm:$0xff]
      %v503 = vld [vmem:[%s2 + $0x1b8] sm:$0xff]
      %v504 = vld [vmem:[%s2 + $0x1c0] sm:$0xff]
      %v505 = vld [vmem:[%s2 + $0x1c8] sm:$0xff]
      %v506 = vld [vmem:[%s2 + $0x1d0] sm:$0xff]
      %v507 = vld [vmem:[%s2 + $0x1d8] sm:$0xff]
      %v508 = vld [vmem:[%s2 + $0x1e0] sm:$0xff]
      %v509 = vld [vmem:[%s2 + $0x1e8] sm:$0xff]
      %v510 = vld [vmem:[%s2 + $0x1f0] sm:$0xff]
      %v511 = vld [vmem:[%s2 + $0x1f8] sm:$0xff]
      %vm512 = vcmask 261120
      %v514 = vsel %vm512, %v304, 0
      %v517 = vsel %vm512, %v305, 0
      %v520 = vsel %vm512, %v306, 0
      %v523 = vsel %vm512, %v307, 0
      %v526 = vsel %vm512, %v308, 0
      %v529 = vsel %vm512, %v309, 0
      %v532 = vsel %vm512, %v310, 0
      %v535 = vsel %vm512, %v311, 0
      %v538 = vsel %vm512, %v312, 0
      %v541 = vsel %vm512, %v313, 0
      %v544 = vsel %vm512, %v314, 0
      %v547 = vsel %vm512, %v315, 0
      %v550 = vsel %vm512, %v316, 0
      %v553 = vsel %vm512, %v317, 0
      %v556 = vsel %vm512, %v318, 0
      %v559 = vsel %vm512, %v319, 0
      %v562 = vsel %vm512, %v320, 0
      %v565 = vsel %vm512, %v321, 0
      %v568 = vsel %vm512, %v322, 0
      %v571 = vsel %vm512, %v323, 0
      %v574 = vsel %vm512, %v324, 0
      %v577 = vsel %vm512, %v325, 0
      %v580 = vsel %vm512, %v326, 0
      %v583 = vsel %vm512, %v327, 0
      %v586 = vsel %vm512, %v328, 0
      %v589 = vsel %vm512, %v329, 0
      %v592 = vsel %vm512, %v330, 0
      %v595 = vsel %vm512, %v331, 0
      %v598 = vsel %vm512, %v332, 0
      %v601 = vsel %vm512, %v333, 0
      %v604 = vsel %vm512, %v334, 0
      %v607 = vsel %vm512, %v335, 0
      %609 = vmatprep.subr.mxu0 0.0
      %610 = vmatpush1.msra.mxu0 0.0
      %611 = vmatprep.subr.mxu0 0.0
      %612 = vmatpush1.msra.mxu0 0.0
      %613 = vmatprep.subr.mxu0 0.0
      %614 = vmatpush1.msra.mxu0 0.0
      %615 = vmatprep.subr.mxu0 0.0
      %616 = vmatpush1.msra.mxu0 0.0
      %617 = vmatprep.subr.mxu0 0.0
      %618 = vmatpush1.msra.mxu0 0.0
      %619 = vmatprep.subr.mxu0 0.0
      %620 = vmatpush1.msra.mxu0 0.0
      %621 = vmatprep.subr.mxu0 0.0
      %622 = vmatpush1.msra.mxu0 0.0
      %623 = vmatprep.subr.mxu0 0.0
      %624 = vmatpush1.msra.mxu0 0.0
      %625 = vmatprep.subr.mxu0 0.0
      %626 = vmatpush1.msra.mxu0 0.0
      %627 = vmatprep.subr.mxu0 0.0
      %628 = vmatpush1.msra.mxu0 0.0
      %629 = vmatprep.subr.mxu0 0.0
      %630 = vmatpush1.msra.mxu0 0.0
      %631 = vmatprep.subr.mxu0 0.0
      %632 = vmatpush1.msra.mxu0 0.0
      %633 = vmatprep.subr.mxu0 0.0
      %634 = vmatpush1.msra.mxu0 %v403
      %635 = vmatprep.subr.mxu0 0.0
      %636 = vmatpush1.msra.mxu0 %v402
      %637 = vmatprep.subr.mxu0 0.0
      %638 = vmatpush1.msra.mxu0 %v401
      %639 = vmatprep.subr.mxu0 0.0
      %640 = vmatpush1.msra.mxu0 %v400
      %641 = vmatprep.subr.mxu0 0.0
      %642 = vmatpush2.msra.mxu0 0.0
      %643 = vmatprep.subr.mxu0 0.0
      %644 = vmatpush2.msra.mxu0 0.0
      %645 = vmatprep.subr.mxu0 0.0
      %646 = vmatpush2.msra.mxu0 0.0
      %647 = vmatprep.subr.mxu0 0.0
      %648 = vmatpush2.msra.mxu0 0.0
      %649 = vmatprep.subr.mxu0 0.0
      %650 = vmatpush2.msra.mxu0 0.0
      %651 = vmatprep.subr.mxu0 0.0
      %652 = vmatpush2.msra.mxu0 0.0
      %653 = vmatprep.subr.mxu0 0.0
      %654 = vmatpush2.msra.mxu0 0.0
      %655 = vmatprep.subr.mxu0 0.0
      %656 = vmatpush2.msra.mxu0 0.0
      %657 = vmatprep.subr.mxu0 0.0
      %658 = vmatpush2.msra.mxu0 0.0
      %659 = vmatprep.subr.mxu0 0.0
      %660 = vmatpush2.msra.mxu0 0.0
      %661 = vmatprep.subr.mxu0 0.0
      %662 = vmatpush2.msra.mxu0 0.0
      %663 = vmatprep.subr.mxu0 0.0
      %664 = vmatpush2.msra.mxu0 0.0
      %665 = vmatprep.subr.mxu0 0.0
      %666 = vmatpush2.msra.mxu0 0.0
      %667 = vmatprep.subr.mxu0 0.0
      %668 = vmatpush2.msra.mxu0 0.0
      %669 = vmatprep.subr.mxu0 0.0
      %670 = vmatpush2.msra.mxu0 0.0
      %671 = vmatprep.subr.mxu0 0.0
      %672 = vmatpush2.msra.mxu0 0.0
      %673 = vmatprep.mubr.f32.mxu0 0.0
      %674 = vmatmul.mubr.f32.gmra.mxu0 %v514
      %v675 = vpop.f32.mrf.mxu0
      %v676 = vadd.f32 0.0, %v675
      %v677 = vpop.f32.mrf.mxu0
      %678 = vmatprep.mubr.f32.mxu0 0.0
      %679 = vmatmul.mubr.f32.gmra.mxu0 %v517
      %v680 = vpop.f32.mrf.mxu0
      %v681 = vadd.f32 0.0, %v680
      %v682 = vpop.f32.mrf.mxu0
      %683 = vmatprep.mubr.f32.mxu0 0.0
      %684 = vmatmul.mubr.f32.gmra.mxu0 %v520
      %v685 = vpop.f32.mrf.mxu0
      %v686 = vadd.f32 0.0, %v685
      %v687 = vpop.f32.mrf.mxu0
      %688 = vmatprep.mubr.f32.mxu0 0.0
      %689 = vmatmul.mubr.f32.gmra.mxu0 %v523
      %v690 = vpop.f32.mrf.mxu0
      %v691 = vadd.f32 0.0, %v690
      %v692 = vpop.f32.mrf.mxu0
      %693 = vmatprep.mubr.f32.mxu0 0.0
      %694 = vmatmul.mubr.f32.gmra.mxu0 %v526
      %v695 = vpop.f32.mrf.mxu0
      %v696 = vadd.f32 0.0, %v695
      %v697 = vpop.f32.mrf.mxu0
      %698 = vmatprep.mubr.f32.mxu0 0.0
      %699 = vmatmul.mubr.f32.gmra.mxu0 %v529
      %v700 = vpop.f32.mrf.mxu0
      %v701 = vadd.f32 0.0, %v700
      %v702 = vpop.f32.mrf.mxu0
      %703 = vmatprep.mubr.f32.mxu0 0.0
      %704 = vmatmul.mubr.f32.gmra.mxu0 %v532
      %v705 = vpop.f32.mrf.mxu0
      %v706 = vadd.f32 0.0, %v705
      %v707 = vpop.f32.mrf.mxu0
      %708 = vmatprep.mubr.f32.mxu0 0.0
      %709 = vmatmul.mubr.f32.gmra.mxu0 %v535
      %v710 = vpop.f32.mrf.mxu0
      %v711 = vadd.f32 0.0, %v710
      %v712 = vpop.f32.mrf.mxu0
      %713 = vmatprep.mubr.f32.mxu0 0.0
      %714 = vmatmul.mubr.f32.gmra.mxu0 %v538
      %v715 = vpop.f32.mrf.mxu0
      %v716 = vadd.f32 0.0, %v715
      %v717 = vpop.f32.mrf.mxu0
      %718 = vmatprep.mubr.f32.mxu0 0.0
      %719 = vmatmul.mubr.f32.gmra.mxu0 %v541
      %v720 = vpop.f32.mrf.mxu0
      %v721 = vadd.f32 0.0, %v720
      %v722 = vpop.f32.mrf.mxu0
      %723 = vmatprep.mubr.f32.mxu0 0.0
      %724 = vmatmul.mubr.f32.gmra.mxu0 %v544
      %v725 = vpop.f32.mrf.mxu0
      %v726 = vadd.f32 0.0, %v725
      %v727 = vpop.f32.mrf.mxu0
      %728 = vmatprep.mubr.f32.mxu0 0.0
      %729 = vmatmul.mubr.f32.gmra.mxu0 %v547
      %v730 = vpop.f32.mrf.mxu0
      %v731 = vadd.f32 0.0, %v730
      %v732 = vpop.f32.mrf.mxu0
      %733 = vmatprep.mubr.f32.mxu0 0.0
      %734 = vmatmul.mubr.f32.gmra.mxu0 %v550
      %v735 = vpop.f32.mrf.mxu0
      %v736 = vadd.f32 0.0, %v735
      %v737 = vpop.f32.mrf.mxu0
      %738 = vmatprep.mubr.f32.mxu0 0.0
      %739 = vmatmul.mubr.f32.gmra.mxu0 %v553
      %v740 = vpop.f32.mrf.mxu0
      %v741 = vadd.f32 0.0, %v740
      %v742 = vpop.f32.mrf.mxu0
      %743 = vmatprep.mubr.f32.mxu0 0.0
      %744 = vmatmul.mubr.f32.gmra.mxu0 %v556
      %v745 = vpop.f32.mrf.mxu0
      %v746 = vadd.f32 0.0, %v745
      %v747 = vpop.f32.mrf.mxu0
      %748 = vmatprep.mubr.f32.mxu0 0.0
      %749 = vmatmul.mubr.f32.gmra.mxu0 %v559
      %v750 = vpop.f32.mrf.mxu0
      %v751 = vadd.f32 0.0, %v750
      %v752 = vpop.f32.mrf.mxu0
      %753 = vmatprep.mubr.f32.mxu0 0.0
      %754 = vmatmul.mubr.f32.gmra.mxu0 %v562
      %v755 = vpop.f32.mrf.mxu0
      %v756 = vadd.f32 0.0, %v755
      %v757 = vpop.f32.mrf.mxu0
      %758 = vmatprep.mubr.f32.mxu0 0.0
      %759 = vmatmul.mubr.f32.gmra.mxu0 %v565
      %v760 = vpop.f32.mrf.mxu0
      %v761 = vadd.f32 0.0, %v760
      %v762 = vpop.f32.mrf.mxu0
      %763 = vmatprep.mubr.f32.mxu0 0.0
      %764 = vmatmul.mubr.f32.gmra.mxu0 %v568
      %v765 = vpop.f32.mrf.mxu0
      %v766 = vadd.f32 0.0, %v765
      %v767 = vpop.f32.mrf.mxu0
      %768 = vmatprep.mubr.f32.mxu0 0.0
      %769 = vmatmul.mubr.f32.gmra.mxu0 %v571
      %v770 = vpop.f32.mrf.mxu0
      %v771 = vadd.f32 0.0, %v770
      %v772 = vpop.f32.mrf.mxu0
      %773 = vmatprep.mubr.f32.mxu0 0.0
      %774 = vmatmul.mubr.f32.gmra.mxu0 %v574
      %v775 = vpop.f32.mrf.mxu0
      %v776 = vadd.f32 0.0, %v775
      %v777 = vpop.f32.mrf.mxu0
      %778 = vmatprep.mubr.f32.mxu0 0.0
      %779 = vmatmul.mubr.f32.gmra.mxu0 %v577
      %v780 = vpop.f32.mrf.mxu0
      %v781 = vadd.f32 0.0, %v780
      %v782 = vpop.f32.mrf.mxu0
      %783 = vmatprep.mubr.f32.mxu0 0.0
      %784 = vmatmul.mubr.f32.gmra.mxu0 %v580
      %v785 = vpop.f32.mrf.mxu0
      %v786 = vadd.f32 0.0, %v785
      %v787 = vpop.f32.mrf.mxu0
      %788 = vmatprep.mubr.f32.mxu0 0.0
      %789 = vmatmul.mubr.f32.gmra.mxu0 %v583
      %v790 = vpop.f32.mrf.mxu0
      %v791 = vadd.f32 0.0, %v790
      %v792 = vpop.f32.mrf.mxu0
      %793 = vmatprep.mubr.f32.mxu0 0.0
      %794 = vmatmul.mubr.f32.gmra.mxu0 %v586
      %v795 = vpop.f32.mrf.mxu0
      %v796 = vadd.f32 0.0, %v795
      %v797 = vpop.f32.mrf.mxu0
      %798 = vmatprep.mubr.f32.mxu0 0.0
      %799 = vmatmul.mubr.f32.gmra.mxu0 %v589
      %v800 = vpop.f32.mrf.mxu0
      %v801 = vadd.f32 0.0, %v800
      %v802 = vpop.f32.mrf.mxu0
      %803 = vmatprep.mubr.f32.mxu0 0.0
      %804 = vmatmul.mubr.f32.gmra.mxu0 %v592
      %v805 = vpop.f32.mrf.mxu0
      %v806 = vadd.f32 0.0, %v805
      %v807 = vpop.f32.mrf.mxu0
      %808 = vmatprep.mubr.f32.mxu0 0.0
      %809 = vmatmul.mubr.f32.gmra.mxu0 %v595
      %v810 = vpop.f32.mrf.mxu0
      %v811 = vadd.f32 0.0, %v810
      %v812 = vpop.f32.mrf.mxu0
      %813 = vmatprep.mubr.f32.mxu0 0.0
      %814 = vmatmul.mubr.f32.gmra.mxu0 %v598
      %v815 = vpop.f32.mrf.mxu0
      %v816 = vadd.f32 0.0, %v815
      %v817 = vpop.f32.mrf.mxu0
      %818 = vmatprep.mubr.f32.mxu0 0.0
      %819 = vmatmul.mubr.f32.gmra.mxu0 %v601
      %v820 = vpop.f32.mrf.mxu0
      %v821 = vadd.f32 0.0, %v820
      %v822 = vpop.f32.mrf.mxu0
      %823 = vmatprep.mubr.f32.mxu0 0.0
      %824 = vmatmul.mubr.f32.gmra.mxu0 %v604
      %v825 = vpop.f32.mrf.mxu0
      %v826 = vadd.f32 0.0, %v825
      %v827 = vpop.f32.mrf.mxu0
      %828 = vmatprep.mubr.f32.mxu0 0.0
      %829 = vmatmul.mubr.f32.gmra.mxu0 %v607
      %v830 = vpop.f32.mrf.mxu0
      %v831 = vadd.f32 0.0, %v830
      %v832 = vpop.f32.mrf.mxu0
      %833 = vdwg.mxu0
      %834 = vmatprep.subr.mxu0 0.0
      %835 = vmatpush1.msra.mxu0 0.0
      %836 = vmatprep.subr.mxu0 0.0
      %837 = vmatpush1.msra.mxu0 0.0
      %838 = vmatprep.subr.mxu0 0.0
      %839 = vmatpush1.msra.mxu0 0.0
      %840 = vmatprep.subr.mxu0 0.0
      %841 = vmatpush1.msra.mxu0 0.0
      %842 = vmatprep.subr.mxu0 0.0
      %843 = vmatpush1.msra.mxu0 0.0
      %844 = vmatprep.subr.mxu0 0.0
      %845 = vmatpush1.msra.mxu0 0.0
      %846 = vmatprep.subr.mxu0 0.0
      %847 = vmatpush1.msra.mxu0 0.0
      %848 = vmatprep.subr.mxu0 0.0
      %849 = vmatpush1.msra.mxu0 0.0
      %850 = vmatprep.subr.mxu0 0.0
      %851 = vmatpush1.msra.mxu0 0.0
      %852 = vmatprep.subr.mxu0 0.0
      %853 = vmatpush1.msra.mxu0 0.0
      %854 = vmatprep.subr.mxu0 0.0
      %855 = vmatpush1.msra.mxu0 0.0
      %856 = vmatprep.subr.mxu0 0.0
      %857 = vmatpush1.msra.mxu0 0.0
      %858 = vmatprep.subr.mxu0 0.0
      %859 = vmatpush1.msra.mxu0 %v407
      %860 = vmatprep.subr.mxu0 0.0
      %861 = vmatpush1.msra.mxu0 %v406
      %862 = vmatprep.subr.mxu0 0.0
      %863 = vmatpush1.msra.mxu0 %v405
      %864 = vmatprep.subr.mxu0 0.0
      %865 = vmatpush1.msra.mxu0 %v404
      %866 = vmatprep.subr.mxu0 0.0
      %867 = vmatpush2.msra.mxu0 0.0
      %868 = vmatprep.subr.mxu0 0.0
      %869 = vmatpush2.msra.mxu0 0.0
      %870 = vmatprep.subr.mxu0 0.0
      %871 = vmatpush2.msra.mxu0 0.0
      %872 = vmatprep.subr.mxu0 0.0
      %873 = vmatpush2.msra.mxu0 0.0
      %874 = vmatprep.subr.mxu0 0.0
      %875 = vmatpush2.msra.mxu0 0.0
      %876 = vmatprep.subr.mxu0 0.0
      %877 = vmatpush2.msra.mxu0 0.0
      %878 = vmatprep.subr.mxu0 0.0
      %879 = vmatpush2.msra.mxu0 0.0
      %880 = vmatprep.subr.mxu0 0.0
      %881 = vmatpush2.msra.mxu0 0.0
      %882 = vmatprep.subr.mxu0 0.0
      %883 = vmatpush2.msra.mxu0 0.0
      %884 = vmatprep.subr.mxu0 0.0
      %885 = vmatpush2.msra.mxu0 0.0
      %886 = vmatprep.subr.mxu0 0.0
      %887 = vmatpush2.msra.mxu0 0.0
      %888 = vmatprep.subr.mxu0 0.0
      %889 = vmatpush2.msra.mxu0 0.0
      %890 = vmatprep.subr.mxu0 0.0
      %891 = vmatpush2.msra.mxu0 0.0
      %892 = vmatprep.subr.mxu0 0.0
      %893 = vmatpush2.msra.mxu0 0.0
      %894 = vmatprep.subr.mxu0 0.0
      %895 = vmatpush2.msra.mxu0 0.0
      %896 = vmatprep.subr.mxu0 0.0
      %897 = vmatpush2.msra.mxu0 0.0
      %898 = vmatprep.mubr.f32.mxu0 0.0
      %899 = vmatmul.mubr.f32.gmra.mxu0 %v514
      %v900 = vpop.f32.mrf.mxu0
      %v901 = vadd.f32 0.0, %v900
      %v902 = vpop.f32.mrf.mxu0
      %903 = vmatprep.mubr.f32.mxu0 0.0
      %904 = vmatmul.mubr.f32.gmra.mxu0 %v517
      %v905 = vpop.f32.mrf.mxu0
      %v906 = vadd.f32 0.0, %v905
      %v907 = vpop.f32.mrf.mxu0
      %908 = vmatprep.mubr.f32.mxu0 0.0
      %909 = vmatmul.mubr.f32.gmra.mxu0 %v520
      %v910 = vpop.f32.mrf.mxu0
      %v911 = vadd.f32 0.0, %v910
      %v912 = vpop.f32.mrf.mxu0
      %913 = vmatprep.mubr.f32.mxu0 0.0
      %914 = vmatmul.mubr.f32.gmra.mxu0 %v523
      %v915 = vpop.f32.mrf.mxu0
      %v916 = vadd.f32 0.0, %v915
      %v917 = vpop.f32.mrf.mxu0
      %918 = vmatprep.mubr.f32.mxu0 0.0
      %919 = vmatmul.mubr.f32.gmra.mxu0 %v526
      %v920 = vpop.f32.mrf.mxu0
      %v921 = vadd.f32 0.0, %v920
      %v922 = vpop.f32.mrf.mxu0
      %923 = vmatprep.mubr.f32.mxu0 0.0
      %924 = vmatmul.mubr.f32.gmra.mxu0 %v529
      %v925 = vpop.f32.mrf.mxu0
      %v926 = vadd.f32 0.0, %v925
      %v927 = vpop.f32.mrf.mxu0
      %928 = vmatprep.mubr.f32.mxu0 0.0
      %929 = vmatmul.mubr.f32.gmra.mxu0 %v532
      %v930 = vpop.f32.mrf.mxu0
      %v931 = vadd.f32 0.0, %v930
      %v932 = vpop.f32.mrf.mxu0
      %933 = vmatprep.mubr.f32.mxu0 0.0
      %934 = vmatmul.mubr.f32.gmra.mxu0 %v535
      %v935 = vpop.f32.mrf.mxu0
      %v936 = vadd.f32 0.0, %v935
      %v937 = vpop.f32.mrf.mxu0
      %938 = vmatprep.mubr.f32.mxu0 0.0
      %939 = vmatmul.mubr.f32.gmra.mxu0 %v538
      %v940 = vpop.f32.mrf.mxu0
      %v941 = vadd.f32 0.0, %v940
      %v942 = vpop.f32.mrf.mxu0
      %943 = vmatprep.mubr.f32.mxu0 0.0
      %944 = vmatmul.mubr.f32.gmra.mxu0 %v541
      %v945 = vpop.f32.mrf.mxu0
      %v946 = vadd.f32 0.0, %v945
      %v947 = vpop.f32.mrf.mxu0
      %948 = vmatprep.mubr.f32.mxu0 0.0
      %949 = vmatmul.mubr.f32.gmra.mxu0 %v544
      %v950 = vpop.f32.mrf.mxu0
      %v951 = vadd.f32 0.0, %v950
      %v952 = vpop.f32.mrf.mxu0
      %953 = vmatprep.mubr.f32.mxu0 0.0
      %954 = vmatmul.mubr.f32.gmra.mxu0 %v547
      %v955 = vpop.f32.mrf.mxu0
      %v956 = vadd.f32 0.0, %v955
      %v957 = vpop.f32.mrf.mxu0
      %958 = vmatprep.mubr.f32.mxu0 0.0
      %959 = vmatmul.mubr.f32.gmra.mxu0 %v550
      %v960 = vpop.f32.mrf.mxu0
      %v961 = vadd.f32 0.0, %v960
      %v962 = vpop.f32.mrf.mxu0
      %963 = vmatprep.mubr.f32.mxu0 0.0
      %964 = vmatmul.mubr.f32.gmra.mxu0 %v553
      %v965 = vpop.f32.mrf.mxu0
      %v966 = vadd.f32 0.0, %v965
      %v967 = vpop.f32.mrf.mxu0
      %968 = vmatprep.mubr.f32.mxu0 0.0
      %969 = vmatmul.mubr.f32.gmra.mxu0 %v556
      %v970 = vpop.f32.mrf.mxu0
      %v971 = vadd.f32 0.0, %v970
      %v972 = vpop.f32.mrf.mxu0
      %973 = vmatprep.mubr.f32.mxu0 0.0
      %974 = vmatmul.mubr.f32.gmra.mxu0 %v559
      %v975 = vpop.f32.mrf.mxu0
      %v976 = vadd.f32 0.0, %v975
      %v977 = vpop.f32.mrf.mxu0
      %978 = vmatprep.mubr.f32.mxu0 0.0
      %979 = vmatmul.mubr.f32.gmra.mxu0 %v562
      %v980 = vpop.f32.mrf.mxu0
      %v981 = vadd.f32 0.0, %v980
      %v982 = vpop.f32.mrf.mxu0
      %983 = vmatprep.mubr.f32.mxu0 0.0
      %984 = vmatmul.mubr.f32.gmra.mxu0 %v565
      %v985 = vpop.f32.mrf.mxu0
      %v986 = vadd.f32 0.0, %v985
      %v987 = vpop.f32.mrf.mxu0
      %988 = vmatprep.mubr.f32.mxu0 0.0
      %989 = vmatmul.mubr.f32.gmra.mxu0 %v568
      %v990 = vpop.f32.mrf.mxu0
      %v991 = vadd.f32 0.0, %v990
      %v992 = vpop.f32.mrf.mxu0
      %993 = vmatprep.mubr.f32.mxu0 0.0
      %994 = vmatmul.mubr.f32.gmra.mxu0 %v571
      %v995 = vpop.f32.mrf.mxu0
      %v996 = vadd.f32 0.0, %v995
      %v997 = vpop.f32.mrf.mxu0
      %998 = vmatprep.mubr.f32.mxu0 0.0
      %999 = vmatmul.mubr.f32.gmra.mxu0 %v574
      %v1000 = vpop.f32.mrf.mxu0
      %v1001 = vadd.f32 0.0, %v1000
      %v1002 = vpop.f32.mrf.mxu0
      %1003 = vmatprep.mubr.f32.mxu0 0.0
      %1004 = vmatmul.mubr.f32.gmra.mxu0 %v577
      %v1005 = vpop.f32.mrf.mxu0
      %v1006 = vadd.f32 0.0, %v1005
      %v1007 = vpop.f32.mrf.mxu0
      %1008 = vmatprep.mubr.f32.mxu0 0.0
      %1009 = vmatmul.mubr.f32.gmra.mxu0 %v580
      %v1010 = vpop.f32.mrf.mxu0
      %v1011 = vadd.f32 0.0, %v1010
      %v1012 = vpop.f32.mrf.mxu0
      %1013 = vmatprep.mubr.f32.mxu0 0.0
      %1014 = vmatmul.mubr.f32.gmra.mxu0 %v583
      %v1015 = vpop.f32.mrf.mxu0
      %v1016 = vadd.f32 0.0, %v1015
      %v1017 = vpop.f32.mrf.mxu0
      %1018 = vmatprep.mubr.f32.mxu0 0.0
      %1019 = vmatmul.mubr.f32.gmra.mxu0 %v586
      %v1020 = vpop.f32.mrf.mxu0
      %v1021 = vadd.f32 0.0, %v1020
      %v1022 = vpop.f32.mrf.mxu0
      %1023 = vmatprep.mubr.f32.mxu0 0.0
      %1024 = vmatmul.mubr.f32.gmra.mxu0 %v589
      %v1025 = vpop.f32.mrf.mxu0
      %v1026 = vadd.f32 0.0, %v1025
      %v1027 = vpop.f32.mrf.mxu0
      %1028 = vmatprep.mubr.f32.mxu0 0.0
      %1029 = vmatmul.mubr.f32.gmra.mxu0 %v592
      %v1030 = vpop.f32.mrf.mxu0
      %v1031 = vadd.f32 0.0, %v1030
      %v1032 = vpop.f32.mrf.mxu0
      %1033 = vmatprep.mubr.f32.mxu0 0.0
      %1034 = vmatmul.mubr.f32.gmra.mxu0 %v595
      %v1035 = vpop.f32.mrf.mxu0
      %v1036 = vadd.f32 0.0, %v1035
      %v1037 = vpop.f32.mrf.mxu0
      %1038 = vmatprep.mubr.f32.mxu0 0.0
      %1039 = vmatmul.mubr.f32.gmra.mxu0 %v598
      %v1040 = vpop.f32.mrf.mxu0
      %v1041 = vadd.f32 0.0, %v1040
      %v1042 = vpop.f32.mrf.mxu0
      %1043 = vmatprep.mubr.f32.mxu0 0.0
      %1044 = vmatmul.mubr.f32.gmra.mxu0 %v601
      %v1045 = vpop.f32.mrf.mxu0
      %v1046 = vadd.f32 0.0, %v1045
      %v1047 = vpop.f32.mrf.mxu0
      %1048 = vmatprep.mubr.f32.mxu0 0.0
      %1049 = vmatmul.mubr.f32.gmra.mxu0 %v604
      %v1050 = vpop.f32.mrf.mxu0
      %v1051 = vadd.f32 0.0, %v1050
      %v1052 = vpop.f32.mrf.mxu0
      %1053 = vmatprep.mubr.f32.mxu0 0.0
      %1054 = vmatmul.mubr.f32.gmra.mxu0 %v607
      %v1055 = vpop.f32.mrf.mxu0
      %v1056 = vadd.f32 0.0, %v1055
      %v1057 = vpop.f32.mrf.mxu0
      %1058 = vdwg.mxu0
      %1059 = vmatprep.subr.mxu0 0.0
      %1060 = vmatpush1.msra.mxu0 0.0
      %1061 = vmatprep.subr.mxu0 0.0
      %1062 = vmatpush1.msra.mxu0 0.0
      %1063 = vmatprep.subr.mxu0 0.0
      %1064 = vmatpush1.msra.mxu0 0.0
      %1065 = vmatprep.subr.mxu0 0.0
      %1066 = vmatpush1.msra.mxu0 0.0
      %1067 = vmatprep.subr.mxu0 0.0
      %1068 = vmatpush1.msra.mxu0 0.0
      %1069 = vmatprep.subr.mxu0 0.0
      %1070 = vmatpush1.msra.mxu0 0.0
      %1071 = vmatprep.subr.mxu0 0.0
      %1072 = vmatpush1.msra.mxu0 0.0
      %1073 = vmatprep.subr.mxu0 0.0
      %1074 = vmatpush1.msra.mxu0 0.0
      %1075 = vmatprep.subr.mxu0 0.0
      %1076 = vmatpush1.msra.mxu0 0.0
      %1077 = vmatprep.subr.mxu0 0.0
      %1078 = vmatpush1.msra.mxu0 0.0
      %1079 = vmatprep.subr.mxu0 0.0
      %1080 = vmatpush1.msra.mxu0 0.0
      %1081 = vmatprep.subr.mxu0 0.0
      %1082 = vmatpush1.msra.mxu0 0.0
      %1083 = vmatprep.subr.mxu0 0.0
      %1084 = vmatpush1.msra.mxu0 %v419
      %1085 = vmatprep.subr.mxu0 0.0
      %1086 = vmatpush1.msra.mxu0 %v418
      %1087 = vmatprep.subr.mxu0 0.0
      %1088 = vmatpush1.msra.mxu0 %v417
      %1089 = vmatprep.subr.mxu0 0.0
      %1090 = vmatpush1.msra.mxu0 %v416
      %1091 = vmatprep.subr.mxu0 0.0
      %1092 = vmatpush2.msra.mxu0 0.0
      %1093 = vmatprep.subr.mxu0 0.0
      %1094 = vmatpush2.msra.mxu0 0.0
      %1095 = vmatprep.subr.mxu0 0.0
      %1096 = vmatpush2.msra.mxu0 0.0
      %1097 = vmatprep.subr.mxu0 0.0
      %1098 = vmatpush2.msra.mxu0 0.0
      %1099 = vmatprep.subr.mxu0 0.0
      %1100 = vmatpush2.msra.mxu0 0.0
      %1101 = vmatprep.subr.mxu0 0.0
      %1102 = vmatpush2.msra.mxu0 0.0
      %1103 = vmatprep.subr.mxu0 0.0
      %1104 = vmatpush2.msra.mxu0 0.0
      %1105 = vmatprep.subr.mxu0 0.0
      %1106 = vmatpush2.msra.mxu0 0.0
      %1107 = vmatprep.subr.mxu0 0.0
      %1108 = vmatpush2.msra.mxu0 0.0
      %1109 = vmatprep.subr.mxu0 0.0
      %1110 = vmatpush2.msra.mxu0 0.0
      %1111 = vmatprep.subr.mxu0 0.0
      %1112 = vmatpush2.msra.mxu0 0.0
      %1113 = vmatprep.subr.mxu0 0.0
      %1114 = vmatpush2.msra.mxu0 0.0
      %1115 = vmatprep.subr.mxu0 0.0
      %1116 = vmatpush2.msra.mxu0 0.0
      %1117 = vmatprep.subr.mxu0 0.0
      %1118 = vmatpush2.msra.mxu0 0.0
      %1119 = vmatprep.subr.mxu0 0.0
      %1120 = vmatpush2.msra.mxu0 0.0
      %1121 = vmatprep.subr.mxu0 0.0
      %1122 = vmatpush2.msra.mxu0 0.0
      %1123 = vmatprep.mubr.f32.mxu0 0.0
      %1124 = vmatmul.mubr.f32.gmra.mxu0 %v514
      %v1125 = vpop.f32.mrf.mxu0
      %v1126 = vadd.f32 0.0, %v1125
      %v1127 = vpop.f32.mrf.mxu0
      %1128 = vmatprep.mubr.f32.mxu0 0.0
      %1129 = vmatmul.mubr.f32.gmra.mxu0 %v517
      %v1130 = vpop.f32.mrf.mxu0
      %v1131 = vadd.f32 0.0, %v1130
      %v1132 = vpop.f32.mrf.mxu0
      %1133 = vmatprep.mubr.f32.mxu0 0.0
      %1134 = vmatmul.mubr.f32.gmra.mxu0 %v520
      %v1135 = vpop.f32.mrf.mxu0
      %v1136 = vadd.f32 0.0, %v1135
      %v1137 = vpop.f32.mrf.mxu0
      %1138 = vmatprep.mubr.f32.mxu0 0.0
      %1139 = vmatmul.mubr.f32.gmra.mxu0 %v523
      %v1140 = vpop.f32.mrf.mxu0
      %v1141 = vadd.f32 0.0, %v1140
      %v1142 = vpop.f32.mrf.mxu0
      %1143 = vmatprep.mubr.f32.mxu0 0.0
      %1144 = vmatmul.mubr.f32.gmra.mxu0 %v526
      %v1145 = vpop.f32.mrf.mxu0
      %v1146 = vadd.f32 0.0, %v1145
      %v1147 = vpop.f32.mrf.mxu0
      %1148 = vmatprep.mubr.f32.mxu0 0.0
      %1149 = vmatmul.mubr.f32.gmra.mxu0 %v529
      %v1150 = vpop.f32.mrf.mxu0
      %v1151 = vadd.f32 0.0, %v1150
      %v1152 = vpop.f32.mrf.mxu0
      %1153 = vmatprep.mubr.f32.mxu0 0.0
      %1154 = vmatmul.mubr.f32.gmra.mxu0 %v532
      %v1155 = vpop.f32.mrf.mxu0
      %v1156 = vadd.f32 0.0, %v1155
      %v1157 = vpop.f32.mrf.mxu0
      %1158 = vmatprep.mubr.f32.mxu0 0.0
      %1159 = vmatmul.mubr.f32.gmra.mxu0 %v535
      %v1160 = vpop.f32.mrf.mxu0
      %v1161 = vadd.f32 0.0, %v1160
      %v1162 = vpop.f32.mrf.mxu0
      %1163 = vmatprep.mubr.f32.mxu0 0.0
      %1164 = vmatmul.mubr.f32.gmra.mxu0 %v538
      %v1165 = vpop.f32.mrf.mxu0
      %v1166 = vadd.f32 0.0, %v1165
      %v1167 = vpop.f32.mrf.mxu0
      %1168 = vmatprep.mubr.f32.mxu0 0.0
      %1169 = vmatmul.mubr.f32.gmra.mxu0 %v541
      %v1170 = vpop.f32.mrf.mxu0
      %v1171 = vadd.f32 0.0, %v1170
      %v1172 = vpop.f32.mrf.mxu0
      %1173 = vmatprep.mubr.f32.mxu0 0.0
      %1174 = vmatmul.mubr.f32.gmra.mxu0 %v544
      %v1175 = vpop.f32.mrf.mxu0
      %v1176 = vadd.f32 0.0, %v1175
      %v1177 = vpop.f32.mrf.mxu0
      %1178 = vmatprep.mubr.f32.mxu0 0.0
      %1179 = vmatmul.mubr.f32.gmra.mxu0 %v547
      %v1180 = vpop.f32.mrf.mxu0
      %v1181 = vadd.f32 0.0, %v1180
      %v1182 = vpop.f32.mrf.mxu0
      %1183 = vmatprep.mubr.f32.mxu0 0.0
      %1184 = vmatmul.mubr.f32.gmra.mxu0 %v550
      %v1185 = vpop.f32.mrf.mxu0
      %v1186 = vadd.f32 0.0, %v1185
      %v1187 = vpop.f32.mrf.mxu0
      %1188 = vmatprep.mubr.f32.mxu0 0.0
      %1189 = vmatmul.mubr.f32.gmra.mxu0 %v553
      %v1190 = vpop.f32.mrf.mxu0
      %v1191 = vadd.f32 0.0, %v1190
      %v1192 = vpop.f32.mrf.mxu0
      %1193 = vmatprep.mubr.f32.mxu0 0.0
      %1194 = vmatmul.mubr.f32.gmra.mxu0 %v556
      %v1195 = vpop.f32.mrf.mxu0
      %v1196 = vadd.f32 0.0, %v1195
      %v1197 = vpop.f32.mrf.mxu0
      %1198 = vmatprep.mubr.f32.mxu0 0.0
      %1199 = vmatmul.mubr.f32.gmra.mxu0 %v559
      %v1200 = vpop.f32.mrf.mxu0
      %v1201 = vadd.f32 0.0, %v1200
      %v1202 = vpop.f32.mrf.mxu0
      %1203 = vmatprep.mubr.f32.mxu0 0.0
      %1204 = vmatmul.mubr.f32.gmra.mxu0 %v562
      %v1205 = vpop.f32.mrf.mxu0
      %v1206 = vadd.f32 0.0, %v1205
      %v1207 = vpop.f32.mrf.mxu0
      %1208 = vmatprep.mubr.f32.mxu0 0.0
      %1209 = vmatmul.mubr.f32.gmra.mxu0 %v565
      %v1210 = vpop.f32.mrf.mxu0
      %v1211 = vadd.f32 0.0, %v1210
      %v1212 = vpop.f32.mrf.mxu0
      %1213 = vmatprep.mubr.f32.mxu0 0.0
      %1214 = vmatmul.mubr.f32.gmra.mxu0 %v568
      %v1215 = vpop.f32.mrf.mxu0
      %v1216 = vadd.f32 0.0, %v1215
      %v1217 = vpop.f32.mrf.mxu0
      %1218 = vmatprep.mubr.f32.mxu0 0.0
      %1219 = vmatmul.mubr.f32.gmra.mxu0 %v571
      %v1220 = vpop.f32.mrf.mxu0
      %v1221 = vadd.f32 0.0, %v1220
      %v1222 = vpop.f32.mrf.mxu0
      %1223 = vmatprep.mubr.f32.mxu0 0.0
      %1224 = vmatmul.mubr.f32.gmra.mxu0 %v574
      %v1225 = vpop.f32.mrf.mxu0
      %v1226 = vadd.f32 0.0, %v1225
      %v1227 = vpop.f32.mrf.mxu0
      %1228 = vmatprep.mubr.f32.mxu0 0.0
      %1229 = vmatmul.mubr.f32.gmra.mxu0 %v577
      %v1230 = vpop.f32.mrf.mxu0
      %v1231 = vadd.f32 0.0, %v1230
      %v1232 = vpop.f32.mrf.mxu0
      %1233 = vmatprep.mubr.f32.mxu0 0.0
      %1234 = vmatmul.mubr.f32.gmra.mxu0 %v580
      %v1235 = vpop.f32.mrf.mxu0
      %v1236 = vadd.f32 0.0, %v1235
      %v1237 = vpop.f32.mrf.mxu0
      %1238 = vmatprep.mubr.f32.mxu0 0.0
      %1239 = vmatmul.mubr.f32.gmra.mxu0 %v583
      %v1240 = vpop.f32.mrf.mxu0
      %v1241 = vadd.f32 0.0, %v1240
      %v1242 = vpop.f32.mrf.mxu0
      %1243 = vmatprep.mubr.f32.mxu0 0.0
      %1244 = vmatmul.mubr.f32.gmra.mxu0 %v586
      %v1245 = vpop.f32.mrf.mxu0
      %v1246 = vadd.f32 0.0, %v1245
      %v1247 = vpop.f32.mrf.mxu0
      %1248 = vmatprep.mubr.f32.mxu0 0.0
      %1249 = vmatmul.mubr.f32.gmra.mxu0 %v589
      %v1250 = vpop.f32.mrf.mxu0
      %v1251 = vadd.f32 0.0, %v1250
      %v1252 = vpop.f32.mrf.mxu0
      %1253 = vmatprep.mubr.f32.mxu0 0.0
      %1254 = vmatmul.mubr.f32.gmra.mxu0 %v592
      %v1255 = vpop.f32.mrf.mxu0
      %v1256 = vadd.f32 0.0, %v1255
      %v1257 = vpop.f32.mrf.mxu0
      %1258 = vmatprep.mubr.f32.mxu0 0.0
      %1259 = vmatmul.mubr.f32.gmra.mxu0 %v595
      %v1260 = vpop.f32.mrf.mxu0
      %v1261 = vadd.f32 0.0, %v1260
      %v1262 = vpop.f32.mrf.mxu0
      %1263 = vmatprep.mubr.f32.mxu0 0.0
      %1264 = vmatmul.mubr.f32.gmra.mxu0 %v598
      %v1265 = vpop.f32.mrf.mxu0
      %v1266 = vadd.f32 0.0, %v1265
      %v1267 = vpop.f32.mrf.mxu0
      %1268 = vmatprep.mubr.f32.mxu0 0.0
      %1269 = vmatmul.mubr.f32.gmra.mxu0 %v601
      %v1270 = vpop.f32.mrf.mxu0
      %v1271 = vadd.f32 0.0, %v1270
      %v1272 = vpop.f32.mrf.mxu0
      %1273 = vmatprep.mubr.f32.mxu0 0.0
      %1274 = vmatmul.mubr.f32.gmra.mxu0 %v604
      %v1275 = vpop.f32.mrf.mxu0
      %v1276 = vadd.f32 0.0, %v1275
      %v1277 = vpop.f32.mrf.mxu0
      %1278 = vmatprep.mubr.f32.mxu0 0.0
      %1279 = vmatmul.mubr.f32.gmra.mxu0 %v607
      %v1280 = vpop.f32.mrf.mxu0
      %v1281 = vadd.f32 0.0, %v1280
      %v1282 = vpop.f32.mrf.mxu0
      %1283 = vdwg.mxu0
      %vm1284 = vcmask 130048
      %v1286 = vsel %vm1284, %v676, 0
      %v1289 = vsel %vm1284, %v681, 0
      %v1292 = vsel %vm1284, %v686, 0
      %v1295 = vsel %vm1284, %v691, 0
      %v1298 = vsel %vm1284, %v696, 0
      %v1301 = vsel %vm1284, %v701, 0
      %v1304 = vsel %vm1284, %v706, 0
      %v1307 = vsel %vm1284, %v711, 0
      %v1310 = vsel %vm1284, %v716, 0
      %v1313 = vsel %vm1284, %v721, 0
      %v1316 = vsel %vm1284, %v726, 0
      %v1319 = vsel %vm1284, %v731, 0
      %v1322 = vsel %vm1284, %v736, 0
      %v1325 = vsel %vm1284, %v741, 0
      %v1328 = vsel %vm1284, %v746, 0
      %v1331 = vsel %vm1284, %v751, 0
      %v1334 = vsel %vm1284, %v756, 0
      %v1337 = vsel %vm1284, %v761, 0
      %v1340 = vsel %vm1284, %v766, 0
      %v1343 = vsel %vm1284, %v771, 0
      %v1346 = vsel %vm1284, %v776, 0
      %v1349 = vsel %vm1284, %v781, 0
      %v1352 = vsel %vm1284, %v786, 0
      %v1355 = vsel %vm1284, %v791, 0
      %v1358 = vsel %vm1284, %v796, 0
      %v1361 = vsel %vm1284, %v801, 0
      %v1364 = vsel %vm1284, %v806, 0
      %v1367 = vsel %vm1284, %v811, 0
      %v1370 = vsel %vm1284, %v816, 0
      %v1373 = vsel %vm1284, %v821, 0
      %v1376 = vsel %vm1284, %v826, 0
      %v1379 = vsel %vm1284, %v831, 0
      %v1382 = vsel %vm1284, %v901, 0
      %v1385 = vsel %vm1284, %v906, 0
      %v1388 = vsel %vm1284, %v911, 0
      %v1391 = vsel %vm1284, %v916, 0
      %v1394 = vsel %vm1284, %v921, 0
      %v1397 = vsel %vm1284, %v926, 0
      %v1400 = vsel %vm1284, %v931, 0
      %v1403 = vsel %vm1284, %v936, 0
      %v1406 = vsel %vm1284, %v941, 0
      %v1409 = vsel %vm1284, %v946, 0
      %v1412 = vsel %vm1284, %v951, 0
      %v1415 = vsel %vm1284, %v956, 0
      %v1418 = vsel %vm1284, %v961, 0
      %v1421 = vsel %vm1284, %v966, 0
      %v1424 = vsel %vm1284, %v971, 0
      %v1427 = vsel %vm1284, %v976, 0
      %v1430 = vsel %vm1284, %v981, 0
      %v1433 = vsel %vm1284, %v986, 0
      %v1436 = vsel %vm1284, %v991, 0
      %v1439 = vsel %vm1284, %v996, 0
      %v1442 = vsel %vm1284, %v1001, 0
      %v1445 = vsel %vm1284, %v1006, 0
      %v1448 = vsel %vm1284, %v1011, 0
      %v1451 = vsel %vm1284, %v1016, 0
      %v1454 = vsel %vm1284, %v1021, 0
      %v1457 = vsel %vm1284, %v1026, 0
      %v1460 = vsel %vm1284, %v1031, 0
      %v1463 = vsel %vm1284, %v1036, 0
      %v1466 = vsel %vm1284, %v1041, 0
      %v1469 = vsel %vm1284, %v1046, 0
      %v1472 = vsel %vm1284, %v1051, 0
      %v1475 = vsel %vm1284, %v1056, 0
      %1477 = vmatprep.subr.mxu0 0.0
      %1478 = vmatpush1.xpose.msra.mxu0 %v1427
      %1479 = vmatprep.subr.mxu0 0.0
      %1480 = vmatpush1.xpose.msra.mxu0 %v1424
      %1481 = vmatprep.subr.mxu0 0.0
      %1482 = vmatpush1.xpose.msra.mxu0 %v1421
      %1483 = vmatprep.subr.mxu0 0.0
      %1484 = vmatpush1.xpose.msra.mxu0 %v1418
      %1485 = vmatprep.subr.mxu0 0.0
      %1486 = vmatpush1.xpose.msra.mxu0 %v1415
      %1487 = vmatprep.subr.mxu0 0.0
      %1488 = vmatpush1.xpose.msra.mxu0 %v1412
      %1489 = vmatprep.subr.mxu0 0.0
      %1490 = vmatpush1.xpose.msra.mxu0 %v1409
      %1491 = vmatprep.subr.mxu0 0.0
      %1492 = vmatpush1.xpose.msra.mxu0 %v1406
      %1493 = vmatprep.subr.mxu0 0.0
      %1494 = vmatpush1.xpose.msra.mxu0 %v1403
      %1495 = vmatprep.subr.mxu0 0.0
      %1496 = vmatpush1.xpose.msra.mxu0 %v1400
      %1497 = vmatprep.subr.mxu0 0.0
      %1498 = vmatpush1.xpose.msra.mxu0 %v1397
      %1499 = vmatprep.subr.mxu0 0.0
      %1500 = vmatpush1.xpose.msra.mxu0 %v1394
      %1501 = vmatprep.subr.mxu0 0.0
      %1502 = vmatpush1.xpose.msra.mxu0 %v1391
      %1503 = vmatprep.subr.mxu0 0.0
      %1504 = vmatpush1.xpose.msra.mxu0 %v1388
      %1505 = vmatprep.subr.mxu0 0.0
      %1506 = vmatpush1.xpose.msra.mxu0 %v1385
      %1507 = vmatprep.subr.mxu0 0.0
      %1508 = vmatpush1.xpose.msra.mxu0 %v1382
      %1509 = vmatprep.subr.mxu0 0.0
      %1510 = vmatpush2.xpose.msra.mxu0 %v1475
      %1511 = vmatprep.subr.mxu0 0.0
      %1512 = vmatpush2.xpose.msra.mxu0 %v1472
      %1513 = vmatprep.subr.mxu0 0.0
      %1514 = vmatpush2.xpose.msra.mxu0 %v1469
      %1515 = vmatprep.subr.mxu0 0.0
      %1516 = vmatpush2.xpose.msra.mxu0 %v1466
      %1517 = vmatprep.subr.mxu0 0.0
      %1518 = vmatpush2.xpose.msra.mxu0 %v1463
      %1519 = vmatprep.subr.mxu0 0.0
      %1520 = vmatpush2.xpose.msra.mxu0 %v1460
      %1521 = vmatprep.subr.mxu0 0.0
      %1522 = vmatpush2.xpose.msra.mxu0 %v1457
      %1523 = vmatprep.subr.mxu0 0.0
      %1524 = vmatpush2.xpose.msra.mxu0 %v1454
      %1525 = vmatprep.subr.mxu0 0.0
      %1526 = vmatpush2.xpose.msra.mxu0 %v1451
      %1527 = vmatprep.subr.mxu0 0.0
      %1528 = vmatpush2.xpose.msra.mxu0 %v1448
      %1529 = vmatprep.subr.mxu0 0.0
      %1530 = vmatpush2.xpose.msra.mxu0 %v1445
      %1531 = vmatprep.subr.mxu0 0.0
      %1532 = vmatpush2.xpose.msra.mxu0 %v1442
      %1533 = vmatprep.subr.mxu0 0.0
      %1534 = vmatpush2.xpose.msra.mxu0 %v1439
      %1535 = vmatprep.subr.mxu0 0.0
      %1536 = vmatpush2.xpose.msra.mxu0 %v1436
      %1537 = vmatprep.subr.mxu0 0.0
      %1538 = vmatpush2.xpose.msra.mxu0 %v1433
      %1539 = vmatprep.subr.mxu0 0.0
      %1540 = vmatpush2.xpose.msra.mxu0 %v1430
      %1541 = vmatprep.mubr.f32.mxu0 0.0
      %1542 = vmatmul.mubr.f32.gmra.mxu0 %v1286
      %v1543 = vpop.f32.mrf.mxu0
      %v1544 = vadd.f32 %v448, %v1543
      %v1545 = vpop.f32.mrf.mxu0
      %v1546 = vadd.f32 %v449, %v1545
      %1547 = vmatprep.mubr.f32.mxu0 0.0
      %1548 = vmatmul.mubr.f32.gmra.mxu0 %v1289
      %v1549 = vpop.f32.mrf.mxu0
      %v1550 = vadd.f32 %v450, %v1549
      %v1551 = vpop.f32.mrf.mxu0
      %v1552 = vadd.f32 %v451, %v1551
      %1553 = vmatprep.mubr.f32.mxu0 0.0
      %1554 = vmatmul.mubr.f32.gmra.mxu0 %v1292
      %v1555 = vpop.f32.mrf.mxu0
      %v1556 = vadd.f32 %v452, %v1555
      %v1557 = vpop.f32.mrf.mxu0
      %v1558 = vadd.f32 %v453, %v1557
      %1559 = vmatprep.mubr.f32.mxu0 0.0
      %1560 = vmatmul.mubr.f32.gmra.mxu0 %v1295
      %v1561 = vpop.f32.mrf.mxu0
      %v1562 = vadd.f32 %v454, %v1561
      %v1563 = vpop.f32.mrf.mxu0
      %v1564 = vadd.f32 %v455, %v1563
      %1565 = vmatprep.mubr.f32.mxu0 0.0
      %1566 = vmatmul.mubr.f32.gmra.mxu0 %v1298
      %v1567 = vpop.f32.mrf.mxu0
      %v1568 = vadd.f32 %v456, %v1567
      %v1569 = vpop.f32.mrf.mxu0
      %v1570 = vadd.f32 %v457, %v1569
      %1571 = vmatprep.mubr.f32.mxu0 0.0
      %1572 = vmatmul.mubr.f32.gmra.mxu0 %v1301
      %v1573 = vpop.f32.mrf.mxu0
      %v1574 = vadd.f32 %v458, %v1573
      %v1575 = vpop.f32.mrf.mxu0
      %v1576 = vadd.f32 %v459, %v1575
      %1577 = vmatprep.mubr.f32.mxu0 0.0
      %1578 = vmatmul.mubr.f32.gmra.mxu0 %v1304
      %v1579 = vpop.f32.mrf.mxu0
      %v1580 = vadd.f32 %v460, %v1579
      %v1581 = vpop.f32.mrf.mxu0
      %v1582 = vadd.f32 %v461, %v1581
      %1583 = vmatprep.mubr.f32.mxu0 0.0
      %1584 = vmatmul.mubr.f32.gmra.mxu0 %v1307
      %v1585 = vpop.f32.mrf.mxu0
      %v1586 = vadd.f32 %v462, %v1585
      %v1587 = vpop.f32.mrf.mxu0
      %v1588 = vadd.f32 %v463, %v1587
      %1589 = vmatprep.mubr.f32.mxu0 0.0
      %1590 = vmatmul.mubr.f32.gmra.mxu0 %v1310
      %v1591 = vpop.f32.mrf.mxu0
      %v1592 = vadd.f32 %v464, %v1591
      %v1593 = vpop.f32.mrf.mxu0
      %v1594 = vadd.f32 %v465, %v1593
      %1595 = vmatprep.mubr.f32.mxu0 0.0
      %1596 = vmatmul.mubr.f32.gmra.mxu0 %v1313
      %v1597 = vpop.f32.mrf.mxu0
      %v1598 = vadd.f32 %v466, %v1597
      %v1599 = vpop.f32.mrf.mxu0
      %v1600 = vadd.f32 %v467, %v1599
      %1601 = vmatprep.mubr.f32.mxu0 0.0
      %1602 = vmatmul.mubr.f32.gmra.mxu0 %v1316
      %v1603 = vpop.f32.mrf.mxu0
      %v1604 = vadd.f32 %v468, %v1603
      %v1605 = vpop.f32.mrf.mxu0
      %v1606 = vadd.f32 %v469, %v1605
      %1607 = vmatprep.mubr.f32.mxu0 0.0
      %1608 = vmatmul.mubr.f32.gmra.mxu0 %v1319
      %v1609 = vpop.f32.mrf.mxu0
      %v1610 = vadd.f32 %v470, %v1609
      %v1611 = vpop.f32.mrf.mxu0
      %v1612 = vadd.f32 %v471, %v1611
      %1613 = vmatprep.mubr.f32.mxu0 0.0
      %1614 = vmatmul.mubr.f32.gmra.mxu0 %v1322
      %v1615 = vpop.f32.mrf.mxu0
      %v1616 = vadd.f32 %v472, %v1615
      %v1617 = vpop.f32.mrf.mxu0
      %v1618 = vadd.f32 %v473, %v1617
      %1619 = vmatprep.mubr.f32.mxu0 0.0
      %1620 = vmatmul.mubr.f32.gmra.mxu0 %v1325
      %v1621 = vpop.f32.mrf.mxu0
      %v1622 = vadd.f32 %v474, %v1621
      %v1623 = vpop.f32.mrf.mxu0
      %v1624 = vadd.f32 %v475, %v1623
      %1625 = vmatprep.mubr.f32.mxu0 0.0
      %1626 = vmatmul.mubr.f32.gmra.mxu0 %v1328
      %v1627 = vpop.f32.mrf.mxu0
      %v1628 = vadd.f32 %v476, %v1627
      %v1629 = vpop.f32.mrf.mxu0
      %v1630 = vadd.f32 %v477, %v1629
      %1631 = vmatprep.mubr.f32.mxu0 0.0
      %1632 = vmatmul.mubr.f32.gmra.mxu0 %v1331
      %v1633 = vpop.f32.mrf.mxu0
      %v1634 = vadd.f32 %v478, %v1633
      %v1635 = vpop.f32.mrf.mxu0
      %v1636 = vadd.f32 %v479, %v1635
      %1637 = vmatprep.mubr.f32.mxu0 0.0
      %1638 = vmatmul.mubr.f32.gmra.mxu0 %v1334
      %v1639 = vpop.f32.mrf.mxu0
      %v1640 = vadd.f32 %v480, %v1639
      %v1641 = vpop.f32.mrf.mxu0
      %v1642 = vadd.f32 %v481, %v1641
      %1643 = vmatprep.mubr.f32.mxu0 0.0
      %1644 = vmatmul.mubr.f32.gmra.mxu0 %v1337
      %v1645 = vpop.f32.mrf.mxu0
      %v1646 = vadd.f32 %v482, %v1645
      %v1647 = vpop.f32.mrf.mxu0
      %v1648 = vadd.f32 %v483, %v1647
      %1649 = vmatprep.mubr.f32.mxu0 0.0
      %1650 = vmatmul.mubr.f32.gmra.mxu0 %v1340
      %v1651 = vpop.f32.mrf.mxu0
      %v1652 = vadd.f32 %v484, %v1651
      %v1653 = vpop.f32.mrf.mxu0
      %v1654 = vadd.f32 %v485, %v1653
      %1655 = vmatprep.mubr.f32.mxu0 0.0
      %1656 = vmatmul.mubr.f32.gmra.mxu0 %v1343
      %v1657 = vpop.f32.mrf.mxu0
      %v1658 = vadd.f32 %v486, %v1657
      %v1659 = vpop.f32.mrf.mxu0
      %v1660 = vadd.f32 %v487, %v1659
      %1661 = vmatprep.mubr.f32.mxu0 0.0
      %1662 = vmatmul.mubr.f32.gmra.mxu0 %v1346
      %v1663 = vpop.f32.mrf.mxu0
      %v1664 = vadd.f32 %v488, %v1663
      %v1665 = vpop.f32.mrf.mxu0
      %v1666 = vadd.f32 %v489, %v1665
      %1667 = vmatprep.mubr.f32.mxu0 0.0
      %1668 = vmatmul.mubr.f32.gmra.mxu0 %v1349
      %v1669 = vpop.f32.mrf.mxu0
      %v1670 = vadd.f32 %v490, %v1669
      %v1671 = vpop.f32.mrf.mxu0
      %v1672 = vadd.f32 %v491, %v1671
      %1673 = vmatprep.mubr.f32.mxu0 0.0
      %1674 = vmatmul.mubr.f32.gmra.mxu0 %v1352
      %v1675 = vpop.f32.mrf.mxu0
      %v1676 = vadd.f32 %v492, %v1675
      %v1677 = vpop.f32.mrf.mxu0
      %v1678 = vadd.f32 %v493, %v1677
      %1679 = vmatprep.mubr.f32.mxu0 0.0
      %1680 = vmatmul.mubr.f32.gmra.mxu0 %v1355
      %v1681 = vpop.f32.mrf.mxu0
      %v1682 = vadd.f32 %v494, %v1681
      %v1683 = vpop.f32.mrf.mxu0
      %v1684 = vadd.f32 %v495, %v1683
      %1685 = vmatprep.mubr.f32.mxu0 0.0
      %1686 = vmatmul.mubr.f32.gmra.mxu0 %v1358
      %v1687 = vpop.f32.mrf.mxu0
      %v1688 = vadd.f32 %v496, %v1687
      %v1689 = vpop.f32.mrf.mxu0
      %v1690 = vadd.f32 %v497, %v1689
      %1691 = vmatprep.mubr.f32.mxu0 0.0
      %1692 = vmatmul.mubr.f32.gmra.mxu0 %v1361
      %v1693 = vpop.f32.mrf.mxu0
      %v1694 = vadd.f32 %v498, %v1693
      %v1695 = vpop.f32.mrf.mxu0
      %v1696 = vadd.f32 %v499, %v1695
      %1697 = vmatprep.mubr.f32.mxu0 0.0
      %1698 = vmatmul.mubr.f32.gmra.mxu0 %v1364
      %v1699 = vpop.f32.mrf.mxu0
      %v1700 = vadd.f32 %v500, %v1699
      %v1701 = vpop.f32.mrf.mxu0
      %v1702 = vadd.f32 %v501, %v1701
      %1703 = vmatprep.mubr.f32.mxu0 0.0
      %1704 = vmatmul.mubr.f32.gmra.mxu0 %v1367
      %v1705 = vpop.f32.mrf.mxu0
      %v1706 = vadd.f32 %v502, %v1705
      %v1707 = vpop.f32.mrf.mxu0
      %v1708 = vadd.f32 %v503, %v1707
      %1709 = vmatprep.mubr.f32.mxu0 0.0
      %1710 = vmatmul.mubr.f32.gmra.mxu0 %v1370
      %v1711 = vpop.f32.mrf.mxu0
      %v1712 = vadd.f32 %v504, %v1711
      %v1713 = vpop.f32.mrf.mxu0
      %v1714 = vadd.f32 %v505, %v1713
      %1715 = vmatprep.mubr.f32.mxu0 0.0
      %1716 = vmatmul.mubr.f32.gmra.mxu0 %v1373
      %v1717 = vpop.f32.mrf.mxu0
      %v1718 = vadd.f32 %v506, %v1717
      %v1719 = vpop.f32.mrf.mxu0
      %v1720 = vadd.f32 %v507, %v1719
      %1721 = vmatprep.mubr.f32.mxu0 0.0
      %1722 = vmatmul.mubr.f32.gmra.mxu0 %v1376
      %v1723 = vpop.f32.mrf.mxu0
      %v1724 = vadd.f32 %v508, %v1723
      %v1725 = vpop.f32.mrf.mxu0
      %v1726 = vadd.f32 %v509, %v1725
      %1727 = vmatprep.mubr.f32.mxu0 0.0
      %1728 = vmatmul.mubr.f32.gmra.mxu0 %v1379
      %v1729 = vpop.f32.mrf.mxu0
      %v1730 = vadd.f32 %v510, %v1729
      %v1731 = vpop.f32.mrf.mxu0
      %v1732 = vadd.f32 %v511, %v1731
      %1733 = vdwg.mxu0
      %v1734 = vmax.f32 %v1544, %v1546
      %1735 = vmax.xlane.f32.xlu0 %v1734
      %v1736 = vpop.xlane.xlu0 %1735
      %v1737 = vmax.f32 %v1550, %v1552
      %1738 = vmax.xlane.f32.xlu0 %v1737
      %v1739 = vpop.xlane.xlu0 %1738
      %v1740 = vmax.f32 %v1556, %v1558
      %1741 = vmax.xlane.f32.xlu0 %v1740
      %v1742 = vpop.xlane.xlu0 %1741
      %v1743 = vmax.f32 %v1562, %v1564
      %1744 = vmax.xlane.f32.xlu0 %v1743
      %v1745 = vpop.xlane.xlu0 %1744
      %v1746 = vmax.f32 %v1568, %v1570
      %1747 = vmax.xlane.f32.xlu0 %v1746
      %v1748 = vpop.xlane.xlu0 %1747
      %v1749 = vmax.f32 %v1574, %v1576
      %1750 = vmax.xlane.f32.xlu0 %v1749
      %v1751 = vpop.xlane.xlu0 %1750
      %v1752 = vmax.f32 %v1580, %v1582
      %1753 = vmax.xlane.f32.xlu0 %v1752
      %v1754 = vpop.xlane.xlu0 %1753
      %v1755 = vmax.f32 %v1586, %v1588
      %1756 = vmax.xlane.f32.xlu0 %v1755
      %v1757 = vpop.xlane.xlu0 %1756
      %v1758 = vmax.f32 %v1592, %v1594
      %1759 = vmax.xlane.f32.xlu0 %v1758
      %v1760 = vpop.xlane.xlu0 %1759
      %v1761 = vmax.f32 %v1598, %v1600
      %1762 = vmax.xlane.f32.xlu0 %v1761
      %v1763 = vpop.xlane.xlu0 %1762
      %v1764 = vmax.f32 %v1604, %v1606
      %1765 = vmax.xlane.f32.xlu0 %v1764
      %v1766 = vpop.xlane.xlu0 %1765
      %v1767 = vmax.f32 %v1610, %v1612
      %1768 = vmax.xlane.f32.xlu0 %v1767
      %v1769 = vpop.xlane.xlu0 %1768
      %v1770 = vmax.f32 %v1616, %v1618
      %1771 = vmax.xlane.f32.xlu0 %v1770
      %v1772 = vpop.xlane.xlu0 %1771
      %v1773 = vmax.f32 %v1622, %v1624
      %1774 = vmax.xlane.f32.xlu0 %v1773
      %v1775 = vpop.xlane.xlu0 %1774
      %v1776 = vmax.f32 %v1628, %v1630
      %1777 = vmax.xlane.f32.xlu0 %v1776
      %v1778 = vpop.xlane.xlu0 %1777
      %v1779 = vmax.f32 %v1634, %v1636
      %1780 = vmax.xlane.f32.xlu0 %v1779
      %v1781 = vpop.xlane.xlu0 %1780
      %v1782 = vmax.f32 %v1640, %v1642
      %1783 = vmax.xlane.f32.xlu0 %v1782
      %v1784 = vpop.xlane.xlu0 %1783
      %v1785 = vmax.f32 %v1646, %v1648
      %1786 = vmax.xlane.f32.xlu0 %v1785
      %v1787 = vpop.xlane.xlu0 %1786
      %v1788 = vmax.f32 %v1652, %v1654
      %1789 = vmax.xlane.f32.xlu0 %v1788
      %v1790 = vpop.xlane.xlu0 %1789
      %v1791 = vmax.f32 %v1658, %v1660
      %1792 = vmax.xlane.f32.xlu0 %v1791
      %v1793 = vpop.xlane.xlu0 %1792
      %v1794 = vmax.f32 %v1664, %v1666
      %1795 = vmax.xlane.f32.xlu0 %v1794
      %v1796 = vpop.xlane.xlu0 %1795
      %v1797 = vmax.f32 %v1670, %v1672
      %1798 = vmax.xlane.f32.xlu0 %v1797
      %v1799 = vpop.xlane.xlu0 %1798
      %v1800 = vmax.f32 %v1676, %v1678
      %1801 = vmax.xlane.f32.xlu0 %v1800
      %v1802 = vpop.xlane.xlu0 %1801
      %v1803 = vmax.f32 %v1682, %v1684
      %1804 = vmax.xlane.f32.xlu0 %v1803
      %v1805 = vpop.xlane.xlu0 %1804
      %v1806 = vmax.f32 %v1688, %v1690
      %1807 = vmax.xlane.f32.xlu0 %v1806
      %v1808 = vpop.xlane.xlu0 %1807
      %v1809 = vmax.f32 %v1694, %v1696
      %1810 = vmax.xlane.f32.xlu0 %v1809
      %v1811 = vpop.xlane.xlu0 %1810
      %v1812 = vmax.f32 %v1700, %v1702
      %1813 = vmax.xlane.f32.xlu0 %v1812
      %v1814 = vpop.xlane.xlu0 %1813
      %v1815 = vmax.f32 %v1706, %v1708
      %1816 = vmax.xlane.f32.xlu0 %v1815
      %v1817 = vpop.xlane.xlu0 %1816
      %v1818 = vmax.f32 %v1712, %v1714
      %1819 = vmax.xlane.f32.xlu0 %v1818
      %v1820 = vpop.xlane.xlu0 %1819
      %v1821 = vmax.f32 %v1718, %v1720
      %1822 = vmax.xlane.f32.xlu0 %v1821
      %v1823 = vpop.xlane.xlu0 %1822
      %v1824 = vmax.f32 %v1724, %v1726
      %1825 = vmax.xlane.f32.xlu0 %v1824
      %v1826 = vpop.xlane.xlu0 %1825
      %v1827 = vmax.f32 %v1730, %v1732
      %1828 = vmax.xlane.f32.xlu0 %v1827
      %v1829 = vpop.xlane.xlu0 %1828
      %v1830 = vsub.f32 %v1544, %v1736
      %v1831 = vsub.f32 %v1546, %v1736
      %v1832 = vsub.f32 %v1550, %v1739
      %v1833 = vsub.f32 %v1552, %v1739
      %v1834 = vsub.f32 %v1556, %v1742
      %v1835 = vsub.f32 %v1558, %v1742
      %v1836 = vsub.f32 %v1562, %v1745
      %v1837 = vsub.f32 %v1564, %v1745
      %v1838 = vsub.f32 %v1568, %v1748
      %v1839 = vsub.f32 %v1570, %v1748
      %v1840 = vsub.f32 %v1574, %v1751
      %v1841 = vsub.f32 %v1576, %v1751
      %v1842 = vsub.f32 %v1580, %v1754
      %v1843 = vsub.f32 %v1582, %v1754
      %v1844 = vsub.f32 %v1586, %v1757
      %v1845 = vsub.f32 %v1588, %v1757
      %v1846 = vsub.f32 %v1592, %v1760
      %v1847 = vsub.f32 %v1594, %v1760
      %v1848 = vsub.f32 %v1598, %v1763
      %v1849 = vsub.f32 %v1600, %v1763
      %v1850 = vsub.f32 %v1604, %v1766
      %v1851 = vsub.f32 %v1606, %v1766
      %v1852 = vsub.f32 %v1610, %v1769
      %v1853 = vsub.f32 %v1612, %v1769
      %v1854 = vsub.f32 %v1616, %v1772
      %v1855 = vsub.f32 %v1618, %v1772
      %v1856 = vsub.f32 %v1622, %v1775
      %v1857 = vsub.f32 %v1624, %v1775
      %v1858 = vsub.f32 %v1628, %v1778
      %v1859 = vsub.f32 %v1630, %v1778
      %v1860 = vsub.f32 %v1634, %v1781
      %v1861 = vsub.f32 %v1636, %v1781
      %v1862 = vsub.f32 %v1640, %v1784
      %v1863 = vsub.f32 %v1642, %v1784
      %v1864 = vsub.f32 %v1646, %v1787
      %v1865 = vsub.f32 %v1648, %v1787
      %v1866 = vsub.f32 %v1652, %v1790
      %v1867 = vsub.f32 %v1654, %v1790
      %v1868 = vsub.f32 %v1658, %v1793
      %v1869 = vsub.f32 %v1660, %v1793
      %v1870 = vsub.f32 %v1664, %v1796
      %v1871 = vsub.f32 %v1666, %v1796
      %v1872 = vsub.f32 %v1670, %v1799
      %v1873 = vsub.f32 %v1672, %v1799
      %v1874 = vsub.f32 %v1676, %v1802
      %v1875 = vsub.f32 %v1678, %v1802
      %v1876 = vsub.f32 %v1682, %v1805
      %v1877 = vsub.f32 %v1684, %v1805
      %v1878 = vsub.f32 %v1688, %v1808
      %v1879 = vsub.f32 %v1690, %v1808
      %v1880 = vsub.f32 %v1694, %v1811
      %v1881 = vsub.f32 %v1696, %v1811
      %v1882 = vsub.f32 %v1700, %v1814
      %v1883 = vsub.f32 %v1702, %v1814
      %v1884 = vsub.f32 %v1706, %v1817
      %v1885 = vsub.f32 %v1708, %v1817
      %v1886 = vsub.f32 %v1712, %v1820
      %v1887 = vsub.f32 %v1714, %v1820
      %v1888 = vsub.f32 %v1718, %v1823
      %v1889 = vsub.f32 %v1720, %v1823
      %v1890 = vsub.f32 %v1724, %v1826
      %v1891 = vsub.f32 %v1726, %v1826
      %v1892 = vsub.f32 %v1730, %v1829
      %v1893 = vsub.f32 %v1732, %v1829
      %v1894 = vmul.f32 %v1830, 1.442695
      %v1895 = vpow.pop %v1894
      %v1896 = vmul.f32 %v1831, 1.442695
      %v1897 = vpow.pop %v1896
      %v1898 = vmul.f32 %v1832, 1.442695
      %v1899 = vpow.pop %v1898
      %v1900 = vmul.f32 %v1833, 1.442695
      %v1901 = vpow.pop %v1900
      %v1902 = vmul.f32 %v1834, 1.442695
      %v1903 = vpow.pop %v1902
      %v1904 = vmul.f32 %v1835, 1.442695
      %v1905 = vpow.pop %v1904
      %v1906 = vmul.f32 %v1836, 1.442695
      %v1907 = vpow.pop %v1906
      %v1908 = vmul.f32 %v1837, 1.442695
      %v1909 = vpow.pop %v1908
      %v1910 = vmul.f32 %v1838, 1.442695
      %v1911 = vpow.pop %v1910
      %v1912 = vmul.f32 %v1839, 1.442695
      %v1913 = vpow.pop %v1912
      %v1914 = vmul.f32 %v1840, 1.442695
      %v1915 = vpow.pop %v1914
      %v1916 = vmul.f32 %v1841, 1.442695
      %v1917 = vpow.pop %v1916
      %v1918 = vmul.f32 %v1842, 1.442695
      %v1919 = vpow.pop %v1918
      %v1920 = vmul.f32 %v1843, 1.442695
      %v1921 = vpow.pop %v1920
      %v1922 = vmul.f32 %v1844, 1.442695
      %v1923 = vpow.pop %v1922
      %v1924 = vmul.f32 %v1845, 1.442695
      %v1925 = vpow.pop %v1924
      %v1926 = vmul.f32 %v1846, 1.442695
      %v1927 = vpow.pop %v1926
      %v1928 = vmul.f32 %v1847, 1.442695
      %v1929 = vpow.pop %v1928
      %v1930 = vmul.f32 %v1848, 1.442695
      %v1931 = vpow.pop %v1930
      %v1932 = vmul.f32 %v1849, 1.442695
      %v1933 = vpow.pop %v1932
      %v1934 = vmul.f32 %v1850, 1.442695
      %v1935 = vpow.pop %v1934
      %v1936 = vmul.f32 %v1851, 1.442695
      %v1937 = vpow.pop %v1936
      %v1938 = vmul.f32 %v1852, 1.442695
      %v1939 = vpow.pop %v1938
      %v1940 = vmul.f32 %v1853, 1.442695
      %v1941 = vpow.pop %v1940
      %v1942 = vmul.f32 %v1854, 1.442695
      %v1943 = vpow.pop %v1942
      %v1944 = vmul.f32 %v1855, 1.442695
      %v1945 = vpow.pop %v1944
      %v1946 = vmul.f32 %v1856, 1.442695
      %v1947 = vpow.pop %v1946
      %v1948 = vmul.f32 %v1857, 1.442695
      %v1949 = vpow.pop %v1948
      %v1950 = vmul.f32 %v1858, 1.442695
      %v1951 = vpow.pop %v1950
      %v1952 = vmul.f32 %v1859, 1.442695
      %v1953 = vpow.pop %v1952
      %v1954 = vmul.f32 %v1860, 1.442695
      %v1955 = vpow.pop %v1954
      %v1956 = vmul.f32 %v1861, 1.442695
      %v1957 = vpow.pop %v1956
      %v1958 = vmul.f32 %v1862, 1.442695
      %v1959 = vpow.pop %v1958
      %v1960 = vmul.f32 %v1863, 1.442695
      %v1961 = vpow.pop %v1960
      %v1962 = vmul.f32 %v1864, 1.442695
      %v1963 = vpow.pop %v1962
      %v1964 = vmul.f32 %v1865, 1.442695
      %v1965 = vpow.pop %v1964
      %v1966 = vmul.f32 %v1866, 1.442695
      %v1967 = vpow.pop %v1966
      %v1968 = vmul.f32 %v1867, 1.442695
      %v1969 = vpow.pop %v1968
      %v1970 = vmul.f32 %v1868, 1.442695
      %v1971 = vpow.pop %v1970
      %v1972 = vmul.f32 %v1869, 1.442695
      %v1973 = vpow.pop %v1972
      %v1974 = vmul.f32 %v1870, 1.442695
      %v1975 = vpow.pop %v1974
      %v1976 = vmul.f32 %v1871, 1.442695
      %v1977 = vpow.pop %v1976
      %v1978 = vmul.f32 %v1872, 1.442695
      %v1979 = vpow.pop %v1978
      %v1980 = vmul.f32 %v1873, 1.442695
      %v1981 = vpow.pop %v1980
      %v1982 = vmul.f32 %v1874, 1.442695
      %v1983 = vpow.pop %v1982
      %v1984 = vmul.f32 %v1875, 1.442695
      %v1985 = vpow.pop %v1984
      %v1986 = vmul.f32 %v1876, 1.442695
      %v1987 = vpow.pop %v1986
      %v1988 = vmul.f32 %v1877, 1.442695
      %v1989 = vpow.pop %v1988
      %v1990 = vmul.f32 %v1878, 1.442695
      %v1991 = vpow.pop %v1990
      %v1992 = vmul.f32 %v1879, 1.442695
      %v1993 = vpow.pop %v1992
      %v1994 = vmul.f32 %v1880, 1.442695
      %v1995 = vpow.pop %v1994
      %v1996 = vmul.f32 %v1881, 1.442695
      %v1997 = vpow.pop %v1996
      %v1998 = vmul.f32 %v1882, 1.442695
      %v1999 = vpow.pop %v1998
      %v2000 = vmul.f32 %v1883, 1.442695
      %v2001 = vpow.pop %v2000
      %v2002 = vmul.f32 %v1884, 1.442695
      %v2003 = vpow.pop %v2002
      %v2004 = vmul.f32 %v1885, 1.442695
      %v2005 = vpow.pop %v2004
      %v2006 = vmul.f32 %v1886, 1.442695
      %v2007 = vpow.pop %v2006
      %v2008 = vmul.f32 %v1887, 1.442695
      %v2009 = vpow.pop %v2008
      %v2010 = vmul.f32 %v1888, 1.442695
      %v2011 = vpow.pop %v2010
      %v2012 = vmul.f32 %v1889, 1.442695
      %v2013 = vpow.pop %v2012
      %v2014 = vmul.f32 %v1890, 1.442695
      %v2015 = vpow.pop %v2014
      %v2016 = vmul.f32 %v1891, 1.442695
      %v2017 = vpow.pop %v2016
      %v2018 = vmul.f32 %v1892, 1.442695
      %v2019 = vpow.pop %v2018
      %v2020 = vmul.f32 %v1893, 1.442695
      %v2021 = vpow.pop %v2020
      %v2022 = vadd.f32 %v1895, %v1897
      %2023 = vadd.xlane.f32.xlu0 %v2022
      %v2024 = vpop.xlane.xlu0 %2023
      %v2025 = vadd.f32 %v1899, %v1901
      %2026 = vadd.xlane.f32.xlu0 %v2025
      %v2027 = vpop.xlane.xlu0 %2026
      %v2028 = vadd.f32 %v1903, %v1905
      %2029 = vadd.xlane.f32.xlu0 %v2028
      %v2030 = vpop.xlane.xlu0 %2029
      %v2031 = vadd.f32 %v1907, %v1909
      %2032 = vadd.xlane.f32.xlu0 %v2031
      %v2033 = vpop.xlane.xlu0 %2032
      %v2034 = vadd.f32 %v1911, %v1913
      %2035 = vadd.xlane.f32.xlu0 %v2034
      %v2036 = vpop.xlane.xlu0 %2035
      %v2037 = vadd.f32 %v1915, %v1917
      %2038 = vadd.xlane.f32.xlu0 %v2037
      %v2039 = vpop.xlane.xlu0 %2038
      %v2040 = vadd.f32 %v1919, %v1921
      %2041 = vadd.xlane.f32.xlu0 %v2040
      %v2042 = vpop.xlane.xlu0 %2041
      %v2043 = vadd.f32 %v1923, %v1925
      %2044 = vadd.xlane.f32.xlu0 %v2043
      %v2045 = vpop.xlane.xlu0 %2044
      %v2046 = vadd.f32 %v1927, %v1929
      %2047 = vadd.xlane.f32.xlu0 %v2046
      %v2048 = vpop.xlane.xlu0 %2047
      %v2049 = vadd.f32 %v1931, %v1933
      %2050 = vadd.xlane.f32.xlu0 %v2049
      %v2051 = vpop.xlane.xlu0 %2050
      %v2052 = vadd.f32 %v1935, %v1937
      %2053 = vadd.xlane.f32.xlu0 %v2052
      %v2054 = vpop.xlane.xlu0 %2053
      %v2055 = vadd.f32 %v1939, %v1941
      %2056 = vadd.xlane.f32.xlu0 %v2055
      %v2057 = vpop.xlane.xlu0 %2056
      %v2058 = vadd.f32 %v1943, %v1945
      %2059 = vadd.xlane.f32.xlu0 %v2058
      %v2060 = vpop.xlane.xlu0 %2059
      %v2061 = vadd.f32 %v1947, %v1949
      %2062 = vadd.xlane.f32.xlu0 %v2061
      %v2063 = vpop.xlane.xlu0 %2062
      %v2064 = vadd.f32 %v1951, %v1953
      %2065 = vadd.xlane.f32.xlu0 %v2064
      %v2066 = vpop.xlane.xlu0 %2065
      %v2067 = vadd.f32 %v1955, %v1957
      %2068 = vadd.xlane.f32.xlu0 %v2067
      %v2069 = vpop.xlane.xlu0 %2068
      %v2070 = vadd.f32 %v1959, %v1961
      %2071 = vadd.xlane.f32.xlu0 %v2070
      %v2072 = vpop.xlane.xlu0 %2071
      %v2073 = vadd.f32 %v1963, %v1965
      %2074 = vadd.xlane.f32.xlu0 %v2073
      %v2075 = vpop.xlane.xlu0 %2074
      %v2076 = vadd.f32 %v1967, %v1969
      %2077 = vadd.xlane.f32.xlu0 %v2076
      %v2078 = vpop.xlane.xlu0 %2077
      %v2079 = vadd.f32 %v1971, %v1973
      %2080 = vadd.xlane.f32.xlu0 %v2079
      %v2081 = vpop.xlane.xlu0 %2080
      %v2082 = vadd.f32 %v1975, %v1977
      %2083 = vadd.xlane.f32.xlu0 %v2082
      %v2084 = vpop.xlane.xlu0 %2083
      %v2085 = vadd.f32 %v1979, %v1981
      %2086 = vadd.xlane.f32.xlu0 %v2085
      %v2087 = vpop.xlane.xlu0 %2086
      %v2088 = vadd.f32 %v1983, %v1985
      %2089 = vadd.xlane.f32.xlu0 %v2088
      %v2090 = vpop.xlane.xlu0 %2089
      %v2091 = vadd.f32 %v1987, %v1989
      %2092 = vadd.xlane.f32.xlu0 %v2091
      %v2093 = vpop.xlane.xlu0 %2092
      %v2094 = vadd.f32 %v1991, %v1993
      %2095 = vadd.xlane.f32.xlu0 %v2094
      %v2096 = vpop.xlane.xlu0 %2095
      %v2097 = vadd.f32 %v1995, %v1997
      %2098 = vadd.xlane.f32.xlu0 %v2097
      %v2099 = vpop.xlane.xlu0 %2098
      %v2100 = vadd.f32 %v1999, %v2001
      %2101 = vadd.xlane.f32.xlu0 %v2100
      %v2102 = vpop.xlane.xlu0 %2101
      %v2103 = vadd.f32 %v2003, %v2005
      %2104 = vadd.xlane.f32.xlu0 %v2103
      %v2105 = vpop.xlane.xlu0 %2104
      %v2106 = vadd.f32 %v2007, %v2009
      %2107 = vadd.xlane.f32.xlu0 %v2106
      %v2108 = vpop.xlane.xlu0 %2107
      %v2109 = vadd.f32 %v2011, %v2013
      %2110 = vadd.xlane.f32.xlu0 %v2109
      %v2111 = vpop.xlane.xlu0 %2110
      %v2112 = vadd.f32 %v2015, %v2017
      %2113 = vadd.xlane.f32.xlu0 %v2112
      %v2114 = vpop.xlane.xlu0 %2113
      %v2115 = vadd.f32 %v2019, %v2021
      %2116 = vadd.xlane.f32.xlu0 %v2115
      %v2117 = vpop.xlane.xlu0 %2116
      %v2118 = vrcp.pop %v2024
      %v2119 = vmul.f32 %v1895, %v2118
      %v2120 = vmul.f32 %v1897, %v2118
      %v2121 = vrcp.pop %v2027
      %v2122 = vmul.f32 %v1899, %v2121
      %v2123 = vmul.f32 %v1901, %v2121
      %v2124 = vrcp.pop %v2030
      %v2125 = vmul.f32 %v1903, %v2124
      %v2126 = vmul.f32 %v1905, %v2124
      %v2127 = vrcp.pop %v2033
      %v2128 = vmul.f32 %v1907, %v2127
      %v2129 = vmul.f32 %v1909, %v2127
      %v2130 = vrcp.pop %v2036
      %v2131 = vmul.f32 %v1911, %v2130
      %v2132 = vmul.f32 %v1913, %v2130
      %v2133 = vrcp.pop %v2039
      %v2134 = vmul.f32 %v1915, %v2133
      %v2135 = vmul.f32 %v1917, %v2133
      %v2136 = vrcp.pop %v2042
      %v2137 = vmul.f32 %v1919, %v2136
      %v2138 = vmul.f32 %v1921, %v2136
      %v2139 = vrcp.pop %v2045
      %v2140 = vmul.f32 %v1923, %v2139
      %v2141 = vmul.f32 %v1925, %v2139
      %v2142 = vrcp.pop %v2048
      %v2143 = vmul.f32 %v1927, %v2142
      %v2144 = vmul.f32 %v1929, %v2142
      %v2145 = vrcp.pop %v2051
      %v2146 = vmul.f32 %v1931, %v2145
      %v2147 = vmul.f32 %v1933, %v2145
      %v2148 = vrcp.pop %v2054
      %v2149 = vmul.f32 %v1935, %v2148
      %v2150 = vmul.f32 %v1937, %v2148
      %v2151 = vrcp.pop %v2057
      %v2152 = vmul.f32 %v1939, %v2151
      %v2153 = vmul.f32 %v1941, %v2151
      %v2154 = vrcp.pop %v2060
      %v2155 = vmul.f32 %v1943, %v2154
      %v2156 = vmul.f32 %v1945, %v2154
      %v2157 = vrcp.pop %v2063
      %v2158 = vmul.f32 %v1947, %v2157
      %v2159 = vmul.f32 %v1949, %v2157
      %v2160 = vrcp.pop %v2066
      %v2161 = vmul.f32 %v1951, %v2160
      %v2162 = vmul.f32 %v1953, %v2160
      %v2163 = vrcp.pop %v2069
      %v2164 = vmul.f32 %v1955, %v2163
      %v2165 = vmul.f32 %v1957, %v2163
      %v2166 = vrcp.pop %v2072
      %v2167 = vmul.f32 %v1959, %v2166
      %v2168 = vmul.f32 %v1961, %v2166
      %v2169 = vrcp.pop %v2075
      %v2170 = vmul.f32 %v1963, %v2169
      %v2171 = vmul.f32 %v1965, %v2169
      %v2172 = vrcp.pop %v2078
      %v2173 = vmul.f32 %v1967, %v2172
      %v2174 = vmul.f32 %v1969, %v2172
      %v2175 = vrcp.pop %v2081
      %v2176 = vmul.f32 %v1971, %v2175
      %v2177 = vmul.f32 %v1973, %v2175
      %v2178 = vrcp.pop %v2084
      %v2179 = vmul.f32 %v1975, %v2178
      %v2180 = vmul.f32 %v1977, %v2178
      %v2181 = vrcp.pop %v2087
      %v2182 = vmul.f32 %v1979, %v2181
      %v2183 = vmul.f32 %v1981, %v2181
      %v2184 = vrcp.pop %v2090
      %v2185 = vmul.f32 %v1983, %v2184
      %v2186 = vmul.f32 %v1985, %v2184
      %v2187 = vrcp.pop %v2093
      %v2188 = vmul.f32 %v1987, %v2187
      %v2189 = vmul.f32 %v1989, %v2187
      %v2190 = vrcp.pop %v2096
      %v2191 = vmul.f32 %v1991, %v2190
      %v2192 = vmul.f32 %v1993, %v2190
      %v2193 = vrcp.pop %v2099
      %v2194 = vmul.f32 %v1995, %v2193
      %v2195 = vmul.f32 %v1997, %v2193
      %v2196 = vrcp.pop %v2102
      %v2197 = vmul.f32 %v1999, %v2196
      %v2198 = vmul.f32 %v2001, %v2196
      %v2199 = vrcp.pop %v2105
      %v2200 = vmul.f32 %v2003, %v2199
      %v2201 = vmul.f32 %v2005, %v2199
      %v2202 = vrcp.pop %v2108
      %v2203 = vmul.f32 %v2007, %v2202
      %v2204 = vmul.f32 %v2009, %v2202
      %v2205 = vrcp.pop %v2111
      %v2206 = vmul.f32 %v2011, %v2205
      %v2207 = vmul.f32 %v2013, %v2205
      %v2208 = vrcp.pop %v2114
      %v2209 = vmul.f32 %v2015, %v2208
      %v2210 = vmul.f32 %v2017, %v2208
      %v2211 = vrcp.pop %v2117
      %v2212 = vmul.f32 %v2019, %v2211
      %v2213 = vmul.f32 %v2021, %v2211
      %2214 = vmatprep.subr.mxu0 0.0
      %2215 = vmatpush1.msra.mxu0 %v1201
      %2216 = vmatprep.subr.mxu0 0.0
      %2217 = vmatpush1.msra.mxu0 %v1196
      %2218 = vmatprep.subr.mxu0 0.0
      %2219 = vmatpush1.msra.mxu0 %v1191
      %2220 = vmatprep.subr.mxu0 0.0
      %2221 = vmatpush1.msra.mxu0 %v1186
      %2222 = vmatprep.subr.mxu0 0.0
      %2223 = vmatpush1.msra.mxu0 %v1181
      %2224 = vmatprep.subr.mxu0 0.0
      %2225 = vmatpush1.msra.mxu0 %v1176
      %2226 = vmatprep.subr.mxu0 0.0
      %2227 = vmatpush1.msra.mxu0 %v1171
      %2228 = vmatprep.subr.mxu0 0.0
      %2229 = vmatpush1.msra.mxu0 %v1166
      %2230 = vmatprep.subr.mxu0 0.0
      %2231 = vmatpush1.msra.mxu0 %v1161
      %2232 = vmatprep.subr.mxu0 0.0
      %2233 = vmatpush1.msra.mxu0 %v1156
      %2234 = vmatprep.subr.mxu0 0.0
      %2235 = vmatpush1.msra.mxu0 %v1151
      %2236 = vmatprep.subr.mxu0 0.0
      %2237 = vmatpush1.msra.mxu0 %v1146
      %2238 = vmatprep.subr.mxu0 0.0
      %2239 = vmatpush1.msra.mxu0 %v1141
      %2240 = vmatprep.subr.mxu0 0.0
      %2241 = vmatpush1.msra.mxu0 %v1136
      %2242 = vmatprep.subr.mxu0 0.0
      %2243 = vmatpush1.msra.mxu0 %v1131
      %2244 = vmatprep.subr.mxu0 0.0
      %2245 = vmatpush1.msra.mxu0 %v1126
      %2246 = vmatprep.subr.mxu0 0.0
      %2247 = vmatpush2.msra.mxu0 %v1281
      %2248 = vmatprep.subr.mxu0 0.0
      %2249 = vmatpush2.msra.mxu0 %v1276
      %2250 = vmatprep.subr.mxu0 0.0
      %2251 = vmatpush2.msra.mxu0 %v1271
      %2252 = vmatprep.subr.mxu0 0.0
      %2253 = vmatpush2.msra.mxu0 %v1266
      %2254 = vmatprep.subr.mxu0 0.0
      %2255 = vmatpush2.msra.mxu0 %v1261
      %2256 = vmatprep.subr.mxu0 0.0
      %2257 = vmatpush2.msra.mxu0 %v1256
      %2258 = vmatprep.subr.mxu0 0.0
      %2259 = vmatpush2.msra.mxu0 %v1251
      %2260 = vmatprep.subr.mxu0 0.0
      %2261 = vmatpush2.msra.mxu0 %v1246
      %2262 = vmatprep.subr.mxu0 0.0
      %2263 = vmatpush2.msra.mxu0 %v1241
      %2264 = vmatprep.subr.mxu0 0.0
      %2265 = vmatpush2.msra.mxu0 %v1236
      %2266 = vmatprep.subr.mxu0 0.0
      %2267 = vmatpush2.msra.mxu0 %v1231
      %2268 = vmatprep.subr.mxu0 0.0
      %2269 = vmatpush2.msra.mxu0 %v1226
      %2270 = vmatprep.subr.mxu0 0.0
      %2271 = vmatpush2.msra.mxu0 %v1221
      %2272 = vmatprep.subr.mxu0 0.0
      %2273 = vmatpush2.msra.mxu0 %v1216
      %2274 = vmatprep.subr.mxu0 0.0
      %2275 = vmatpush2.msra.mxu0 %v1211
      %2276 = vmatprep.subr.mxu0 0.0
      %2277 = vmatpush2.msra.mxu0 %v1206
      %2278 = vmatprep.mubr.f32.mxu0 %v2120
      %2279 = vmatmul.mubr.f32.gmra.mxu0 %v2119
      %v2280 = vpop.f32.mrf.mxu0
      %v2281 = vadd.f32 0.0, %v2280
      %v2282 = vpop.f32.mrf.mxu0
      %2283 = vmatprep.mubr.f32.mxu0 %v2123
      %2284 = vmatmul.mubr.f32.gmra.mxu0 %v2122
      %v2285 = vpop.f32.mrf.mxu0
      %v2286 = vadd.f32 0.0, %v2285
      %v2287 = vpop.f32.mrf.mxu0
      %2288 = vmatprep.mubr.f32.mxu0 %v2126
      %2289 = vmatmul.mubr.f32.gmra.mxu0 %v2125
      %v2290 = vpop.f32.mrf.mxu0
      %v2291 = vadd.f32 0.0, %v2290
      %v2292 = vpop.f32.mrf.mxu0
      %2293 = vmatprep.mubr.f32.mxu0 %v2129
      %2294 = vmatmul.mubr.f32.gmra.mxu0 %v2128
      %v2295 = vpop.f32.mrf.mxu0
      %v2296 = vadd.f32 0.0, %v2295
      %v2297 = vpop.f32.mrf.mxu0
      %2298 = vmatprep.mubr.f32.mxu0 %v2132
      %2299 = vmatmul.mubr.f32.gmra.mxu0 %v2131
      %v2300 = vpop.f32.mrf.mxu0
      %v2301 = vadd.f32 0.0, %v2300
      %v2302 = vpop.f32.mrf.mxu0
      %2303 = vmatprep.mubr.f32.mxu0 %v2135
      %2304 = vmatmul.mubr.f32.gmra.mxu0 %v2134
      %v2305 = vpop.f32.mrf.mxu0
      %v2306 = vadd.f32 0.0, %v2305
      %v2307 = vpop.f32.mrf.mxu0
      %2308 = vmatprep.mubr.f32.mxu0 %v2138
      %2309 = vmatmul.mubr.f32.gmra.mxu0 %v2137
      %v2310 = vpop.f32.mrf.mxu0
      %v2311 = vadd.f32 0.0, %v2310
      %v2312 = vpop.f32.mrf.mxu0
      %2313 = vmatprep.mubr.f32.mxu0 %v2141
      %2314 = vmatmul.mubr.f32.gmra.mxu0 %v2140
      %v2315 = vpop.f32.mrf.mxu0
      %v2316 = vadd.f32 0.0, %v2315
      %v2317 = vpop.f32.mrf.mxu0
      %2318 = vmatprep.mubr.f32.mxu0 %v2144
      %2319 = vmatmul.mubr.f32.gmra.mxu0 %v2143
      %v2320 = vpop.f32.mrf.mxu0
      %v2321 = vadd.f32 0.0, %v2320
      %v2322 = vpop.f32.mrf.mxu0
      %2323 = vmatprep.mubr.f32.mxu0 %v2147
      %2324 = vmatmul.mubr.f32.gmra.mxu0 %v2146
      %v2325 = vpop.f32.mrf.mxu0
      %v2326 = vadd.f32 0.0, %v2325
      %v2327 = vpop.f32.mrf.mxu0
      %2328 = vmatprep.mubr.f32.mxu0 %v2150
      %2329 = vmatmul.mubr.f32.gmra.mxu0 %v2149
      %v2330 = vpop.f32.mrf.mxu0
      %v2331 = vadd.f32 0.0, %v2330
      %v2332 = vpop.f32.mrf.mxu0
      %2333 = vmatprep.mubr.f32.mxu0 %v2153
      %2334 = vmatmul.mubr.f32.gmra.mxu0 %v2152
      %v2335 = vpop.f32.mrf.mxu0
      %v2336 = vadd.f32 0.0, %v2335
      %v2337 = vpop.f32.mrf.mxu0
      %2338 = vmatprep.mubr.f32.mxu0 %v2156
      %2339 = vmatmul.mubr.f32.gmra.mxu0 %v2155
      %v2340 = vpop.f32.mrf.mxu0
      %v2341 = vadd.f32 0.0, %v2340
      %v2342 = vpop.f32.mrf.mxu0
      %2343 = vmatprep.mubr.f32.mxu0 %v2159
      %2344 = vmatmul.mubr.f32.gmra.mxu0 %v2158
      %v2345 = vpop.f32.mrf.mxu0
      %v2346 = vadd.f32 0.0, %v2345
      %v2347 = vpop.f32.mrf.mxu0
      %2348 = vmatprep.mubr.f32.mxu0 %v2162
      %2349 = vmatmul.mubr.f32.gmra.mxu0 %v2161
      %v2350 = vpop.f32.mrf.mxu0
      %v2351 = vadd.f32 0.0, %v2350
      %v2352 = vpop.f32.mrf.mxu0
      %2353 = vmatprep.mubr.f32.mxu0 %v2165
      %2354 = vmatmul.mubr.f32.gmra.mxu0 %v2164
      %v2355 = vpop.f32.mrf.mxu0
      %v2356 = vadd.f32 0.0, %v2355
      %v2357 = vpop.f32.mrf.mxu0
      %2358 = vmatprep.mubr.f32.mxu0 %v2168
      %2359 = vmatmul.mubr.f32.gmra.mxu0 %v2167
      %v2360 = vpop.f32.mrf.mxu0
      %v2361 = vadd.f32 0.0, %v2360
      %v2362 = vpop.f32.mrf.mxu0
      %2363 = vmatprep.mubr.f32.mxu0 %v2171
      %2364 = vmatmul.mubr.f32.gmra.mxu0 %v2170
      %v2365 = vpop.f32.mrf.mxu0
      %v2366 = vadd.f32 0.0, %v2365
      %v2367 = vpop.f32.mrf.mxu0
      %2368 = vmatprep.mubr.f32.mxu0 %v2174
      %2369 = vmatmul.mubr.f32.gmra.mxu0 %v2173
      %v2370 = vpop.f32.mrf.mxu0
      %v2371 = vadd.f32 0.0, %v2370
      %v2372 = vpop.f32.mrf.mxu0
      %2373 = vmatprep.mubr.f32.mxu0 %v2177
      %2374 = vmatmul.mubr.f32.gmra.mxu0 %v2176
      %v2375 = vpop.f32.mrf.mxu0
      %v2376 = vadd.f32 0.0, %v2375
      %v2377 = vpop.f32.mrf.mxu0
      %2378 = vmatprep.mubr.f32.mxu0 %v2180
      %2379 = vmatmul.mubr.f32.gmra.mxu0 %v2179
      %v2380 = vpop.f32.mrf.mxu0
      %v2381 = vadd.f32 0.0, %v2380
      %v2382 = vpop.f32.mrf.mxu0
      %2383 = vmatprep.mubr.f32.mxu0 %v2183
      %2384 = vmatmul.mubr.f32.gmra.mxu0 %v2182
      %v2385 = vpop.f32.mrf.mxu0
      %v2386 = vadd.f32 0.0, %v2385
      %v2387 = vpop.f32.mrf.mxu0
      %2388 = vmatprep.mubr.f32.mxu0 %v2186
      %2389 = vmatmul.mubr.f32.gmra.mxu0 %v2185
      %v2390 = vpop.f32.mrf.mxu0
      %v2391 = vadd.f32 0.0, %v2390
      %v2392 = vpop.f32.mrf.mxu0
      %2393 = vmatprep.mubr.f32.mxu0 %v2189
      %2394 = vmatmul.mubr.f32.gmra.mxu0 %v2188
      %v2395 = vpop.f32.mrf.mxu0
      %v2396 = vadd.f32 0.0, %v2395
      %v2397 = vpop.f32.mrf.mxu0
      %2398 = vmatprep.mubr.f32.mxu0 %v2192
      %2399 = vmatmul.mubr.f32.gmra.mxu0 %v2191
      %v2400 = vpop.f32.mrf.mxu0
      %v2401 = vadd.f32 0.0, %v2400
      %v2402 = vpop.f32.mrf.mxu0
      %2403 = vmatprep.mubr.f32.mxu0 %v2195
      %2404 = vmatmul.mubr.f32.gmra.mxu0 %v2194
      %v2405 = vpop.f32.mrf.mxu0
      %v2406 = vadd.f32 0.0, %v2405
      %v2407 = vpop.f32.mrf.mxu0
      %2408 = vmatprep.mubr.f32.mxu0 %v2198
      %2409 = vmatmul.mubr.f32.gmra.mxu0 %v2197
      %v2410 = vpop.f32.mrf.mxu0
      %v2411 = vadd.f32 0.0, %v2410
      %v2412 = vpop.f32.mrf.mxu0
      %2413 = vmatprep.mubr.f32.mxu0 %v2201
      %2414 = vmatmul.mubr.f32.gmra.mxu0 %v2200
      %v2415 = vpop.f32.mrf.mxu0
      %v2416 = vadd.f32 0.0, %v2415
      %v2417 = vpop.f32.mrf.mxu0
      %2418 = vmatprep.mubr.f32.mxu0 %v2204
      %2419 = vmatmul.mubr.f32.gmra.mxu0 %v2203
      %v2420 = vpop.f32.mrf.mxu0
      %v2421 = vadd.f32 0.0, %v2420
      %v2422 = vpop.f32.mrf.mxu0
      %2423 = vmatprep.mubr.f32.mxu0 %v2207
      %2424 = vmatmul.mubr.f32.gmra.mxu0 %v2206
      %v2425 = vpop.f32.mrf.mxu0
      %v2426 = vadd.f32 0.0, %v2425
      %v2427 = vpop.f32.mrf.mxu0
      %2428 = vmatprep.mubr.f32.mxu0 %v2210
      %2429 = vmatmul.mubr.f32.gmra.mxu0 %v2209
      %v2430 = vpop.f32.mrf.mxu0
      %v2431 = vadd.f32 0.0, %v2430
      %v2432 = vpop.f32.mrf.mxu0
      %2433 = vmatprep.mubr.f32.mxu0 %v2213
      %2434 = vmatmul.mubr.f32.gmra.mxu0 %v2212
      %v2435 = vpop.f32.mrf.mxu0
      %v2436 = vadd.f32 0.0, %v2435
      %v2437 = vpop.f32.mrf.mxu0
      %2438 = vdwg.mxu0
      %v2440 = vsel %vm512, %v2281, 0
      %v2443 = vsel %vm512, %v2286, 0
      %v2446 = vsel %vm512, %v2291, 0
      %v2449 = vsel %vm512, %v2296, 0
      %v2452 = vsel %vm512, %v2301, 0
      %v2455 = vsel %vm512, %v2306, 0
      %v2458 = vsel %vm512, %v2311, 0
      %v2461 = vsel %vm512, %v2316, 0
      %v2464 = vsel %vm512, %v2321, 0
      %v2467 = vsel %vm512, %v2326, 0
      %v2470 = vsel %vm512, %v2331, 0
      %v2473 = vsel %vm512, %v2336, 0
      %v2476 = vsel %vm512, %v2341, 0
      %v2479 = vsel %vm512, %v2346, 0
      %v2482 = vsel %vm512, %v2351, 0
      %v2485 = vsel %vm512, %v2356, 0
      %v2488 = vsel %vm512, %v2361, 0
      %v2491 = vsel %vm512, %v2366, 0
      %v2494 = vsel %vm512, %v2371, 0
      %v2497 = vsel %vm512, %v2376, 0
      %v2500 = vsel %vm512, %v2381, 0
      %v2503 = vsel %vm512, %v2386, 0
      %v2506 = vsel %vm512, %v2391, 0
      %v2509 = vsel %vm512, %v2396, 0
      %v2512 = vsel %vm512, %v2401, 0
      %v2515 = vsel %vm512, %v2406, 0
      %v2518 = vsel %vm512, %v2411, 0
      %v2521 = vsel %vm512, %v2416, 0
      %v2524 = vsel %vm512, %v2421, 0
      %v2527 = vsel %vm512, %v2426, 0
      %v2530 = vsel %vm512, %v2431, 0
      %v2533 = vsel %vm512, %v2436, 0
      %2535 = vmatprep.subr.mxu0 0.0
      %2536 = vmatpush1.msra.mxu0 0.0
      %2537 = vmatprep.subr.mxu0 0.0
      %2538 = vmatpush1.msra.mxu0 0.0
      %2539 = vmatprep.subr.mxu0 0.0
      %2540 = vmatpush1.msra.mxu0 0.0
      %2541 = vmatprep.subr.mxu0 0.0
      %2542 = vmatpush1.msra.mxu0 0.0
      %2543 = vmatprep.subr.mxu0 0.0
      %2544 = vmatpush1.msra.mxu0 0.0
      %2545 = vmatprep.subr.mxu0 0.0
      %2546 = vmatpush1.msra.mxu0 0.0
      %2547 = vmatprep.subr.mxu0 0.0
      %2548 = vmatpush1.msra.mxu0 0.0
      %2549 = vmatprep.subr.mxu0 0.0
      %2550 = vmatpush1.msra.mxu0 0.0
      %2551 = vmatprep.subr.mxu0 0.0
      %2552 = vmatpush1.msra.mxu0 0.0
      %2553 = vmatprep.subr.mxu0 0.0
      %2554 = vmatpush1.msra.mxu0 0.0
      %2555 = vmatprep.subr.mxu0 0.0
      %2556 = vmatpush1.msra.mxu0 0.0
      %2557 = vmatprep.subr.mxu0 0.0
      %2558 = vmatpush1.msra.mxu0 0.0
      %2559 = vmatprep.subr.mxu0 0.0
      %2560 = vmatpush1.msra.mxu0 %v423
      %2561 = vmatprep.subr.mxu0 0.0
      %2562 = vmatpush1.msra.mxu0 %v422
      %2563 = vmatprep.subr.mxu0 0.0
      %2564 = vmatpush1.msra.mxu0 %v421
      %2565 = vmatprep.subr.mxu0 0.0
      %2566 = vmatpush1.msra.mxu0 %v420
      %2567 = vmatprep.subr.mxu0 0.0
      %2568 = vmatpush2.msra.mxu0 0.0
      %2569 = vmatprep.subr.mxu0 0.0
      %2570 = vmatpush2.msra.mxu0 0.0
      %2571 = vmatprep.subr.mxu0 0.0
      %2572 = vmatpush2.msra.mxu0 0.0
      %2573 = vmatprep.subr.mxu0 0.0
      %2574 = vmatpush2.msra.mxu0 0.0
      %2575 = vmatprep.subr.mxu0 0.0
      %2576 = vmatpush2.msra.mxu0 0.0
      %2577 = vmatprep.subr.mxu0 0.0
      %2578 = vmatpush2.msra.mxu0 0.0
      %2579 = vmatprep.subr.mxu0 0.0
      %2580 = vmatpush2.msra.mxu0 0.0
      %2581 = vmatprep.subr.mxu0 0.0
      %2582 = vmatpush2.msra.mxu0 0.0
      %2583 = vmatprep.subr.mxu0 0.0
      %2584 = vmatpush2.msra.mxu0 0.0
      %2585 = vmatprep.subr.mxu0 0.0
      %2586 = vmatpush2.msra.mxu0 0.0
      %2587 = vmatprep.subr.mxu0 0.0
      %2588 = vmatpush2.msra.mxu0 0.0
      %2589 = vmatprep.subr.mxu0 0.0
      %2590 = vmatpush2.msra.mxu0 0.0
      %2591 = vmatprep.subr.mxu0 0.0
      %2592 = vmatpush2.msra.mxu0 0.0
      %2593 = vmatprep.subr.mxu0 0.0
      %2594 = vmatpush2.msra.mxu0 0.0
      %2595 = vmatprep.subr.mxu0 0.0
      %2596 = vmatpush2.msra.mxu0 0.0
      %2597 = vmatprep.subr.mxu0 0.0
      %2598 = vmatpush2.msra.mxu0 0.0
      %2599 = vmatprep.mubr.f32.mxu0 0.0
      %2600 = vmatmul.mubr.f32.gmra.mxu0 %v2440
      %v2601 = vpop.f32.mrf.mxu0
      %v2602 = vadd.f32 0.0, %v2601
      %v2603 = vpop.f32.mrf.mxu0
      %2604 = vmatprep.mubr.f32.mxu0 0.0
      %2605 = vmatmul.mubr.f32.gmra.mxu0 %v2443
      %v2606 = vpop.f32.mrf.mxu0
      %v2607 = vadd.f32 0.0, %v2606
      %v2608 = vpop.f32.mrf.mxu0
      %2609 = vmatprep.mubr.f32.mxu0 0.0
      %2610 = vmatmul.mubr.f32.gmra.mxu0 %v2446
      %v2611 = vpop.f32.mrf.mxu0
      %v2612 = vadd.f32 0.0, %v2611
      %v2613 = vpop.f32.mrf.mxu0
      %2614 = vmatprep.mubr.f32.mxu0 0.0
      %2615 = vmatmul.mubr.f32.gmra.mxu0 %v2449
      %v2616 = vpop.f32.mrf.mxu0
      %v2617 = vadd.f32 0.0, %v2616
      %v2618 = vpop.f32.mrf.mxu0
      %2619 = vmatprep.mubr.f32.mxu0 0.0
      %2620 = vmatmul.mubr.f32.gmra.mxu0 %v2452
      %v2621 = vpop.f32.mrf.mxu0
      %v2622 = vadd.f32 0.0, %v2621
      %v2623 = vpop.f32.mrf.mxu0
      %2624 = vmatprep.mubr.f32.mxu0 0.0
      %2625 = vmatmul.mubr.f32.gmra.mxu0 %v2455
      %v2626 = vpop.f32.mrf.mxu0
      %v2627 = vadd.f32 0.0, %v2626
      %v2628 = vpop.f32.mrf.mxu0
      %2629 = vmatprep.mubr.f32.mxu0 0.0
      %2630 = vmatmul.mubr.f32.gmra.mxu0 %v2458
      %v2631 = vpop.f32.mrf.mxu0
      %v2632 = vadd.f32 0.0, %v2631
      %v2633 = vpop.f32.mrf.mxu0
      %2634 = vmatprep.mubr.f32.mxu0 0.0
      %2635 = vmatmul.mubr.f32.gmra.mxu0 %v2461
      %v2636 = vpop.f32.mrf.mxu0
      %v2637 = vadd.f32 0.0, %v2636
      %v2638 = vpop.f32.mrf.mxu0
      %2639 = vmatprep.mubr.f32.mxu0 0.0
      %2640 = vmatmul.mubr.f32.gmra.mxu0 %v2464
      %v2641 = vpop.f32.mrf.mxu0
      %v2642 = vadd.f32 0.0, %v2641
      %v2643 = vpop.f32.mrf.mxu0
      %2644 = vmatprep.mubr.f32.mxu0 0.0
      %2645 = vmatmul.mubr.f32.gmra.mxu0 %v2467
      %v2646 = vpop.f32.mrf.mxu0
      %v2647 = vadd.f32 0.0, %v2646
      %v2648 = vpop.f32.mrf.mxu0
      %2649 = vmatprep.mubr.f32.mxu0 0.0
      %2650 = vmatmul.mubr.f32.gmra.mxu0 %v2470
      %v2651 = vpop.f32.mrf.mxu0
      %v2652 = vadd.f32 0.0, %v2651
      %v2653 = vpop.f32.mrf.mxu0
      %2654 = vmatprep.mubr.f32.mxu0 0.0
      %2655 = vmatmul.mubr.f32.gmra.mxu0 %v2473
      %v2656 = vpop.f32.mrf.mxu0
      %v2657 = vadd.f32 0.0, %v2656
      %v2658 = vpop.f32.mrf.mxu0
      %2659 = vmatprep.mubr.f32.mxu0 0.0
      %2660 = vmatmul.mubr.f32.gmra.mxu0 %v2476
      %v2661 = vpop.f32.mrf.mxu0
      %v2662 = vadd.f32 0.0, %v2661
      %v2663 = vpop.f32.mrf.mxu0
      %2664 = vmatprep.mubr.f32.mxu0 0.0
      %2665 = vmatmul.mubr.f32.gmra.mxu0 %v2479
      %v2666 = vpop.f32.mrf.mxu0
      %v2667 = vadd.f32 0.0, %v2666
      %v2668 = vpop.f32.mrf.mxu0
      %2669 = vmatprep.mubr.f32.mxu0 0.0
      %2670 = vmatmul.mubr.f32.gmra.mxu0 %v2482
      %v2671 = vpop.f32.mrf.mxu0
      %v2672 = vadd.f32 0.0, %v2671
      %v2673 = vpop.f32.mrf.mxu0
      %2674 = vmatprep.mubr.f32.mxu0 0.0
      %2675 = vmatmul.mubr.f32.gmra.mxu0 %v2485
      %v2676 = vpop.f32.mrf.mxu0
      %v2677 = vadd.f32 0.0, %v2676
      %v2678 = vpop.f32.mrf.mxu0
      %2679 = vmatprep.mubr.f32.mxu0 0.0
      %2680 = vmatmul.mubr.f32.gmra.mxu0 %v2488
      %v2681 = vpop.f32.mrf.mxu0
      %v2682 = vadd.f32 0.0, %v2681
      %v2683 = vpop.f32.mrf.mxu0
      %2684 = vmatprep.mubr.f32.mxu0 0.0
      %2685 = vmatmul.mubr.f32.gmra.mxu0 %v2491
      %v2686 = vpop.f32.mrf.mxu0
      %v2687 = vadd.f32 0.0, %v2686
      %v2688 = vpop.f32.mrf.mxu0
      %2689 = vmatprep.mubr.f32.mxu0 0.0
      %2690 = vmatmul.mubr.f32.gmra.mxu0 %v2494
      %v2691 = vpop.f32.mrf.mxu0
      %v2692 = vadd.f32 0.0, %v2691
      %v2693 = vpop.f32.mrf.mxu0
      %2694 = vmatprep.mubr.f32.mxu0 0.0
      %2695 = vmatmul.mubr.f32.gmra.mxu0 %v2497
      %v2696 = vpop.f32.mrf.mxu0
      %v2697 = vadd.f32 0.0, %v2696
      %v2698 = vpop.f32.mrf.mxu0
      %2699 = vmatprep.mubr.f32.mxu0 0.0
      %2700 = vmatmul.mubr.f32.gmra.mxu0 %v2500
      %v2701 = vpop.f32.mrf.mxu0
      %v2702 = vadd.f32 0.0, %v2701
      %v2703 = vpop.f32.mrf.mxu0
      %2704 = vmatprep.mubr.f32.mxu0 0.0
      %2705 = vmatmul.mubr.f32.gmra.mxu0 %v2503
      %v2706 = vpop.f32.mrf.mxu0
      %v2707 = vadd.f32 0.0, %v2706
      %v2708 = vpop.f32.mrf.mxu0
      %2709 = vmatprep.mubr.f32.mxu0 0.0
      %2710 = vmatmul.mubr.f32.gmra.mxu0 %v2506
      %v2711 = vpop.f32.mrf.mxu0
      %v2712 = vadd.f32 0.0, %v2711
      %v2713 = vpop.f32.mrf.mxu0
      %2714 = vmatprep.mubr.f32.mxu0 0.0
      %2715 = vmatmul.mubr.f32.gmra.mxu0 %v2509
      %v2716 = vpop.f32.mrf.mxu0
      %v2717 = vadd.f32 0.0, %v2716
      %v2718 = vpop.f32.mrf.mxu0
      %2719 = vmatprep.mubr.f32.mxu0 0.0
      %2720 = vmatmul.mubr.f32.gmra.mxu0 %v2512
      %v2721 = vpop.f32.mrf.mxu0
      %v2722 = vadd.f32 0.0, %v2721
      %v2723 = vpop.f32.mrf.mxu0
      %2724 = vmatprep.mubr.f32.mxu0 0.0
      %2725 = vmatmul.mubr.f32.gmra.mxu0 %v2515
      %v2726 = vpop.f32.mrf.mxu0
      %v2727 = vadd.f32 0.0, %v2726
      %v2728 = vpop.f32.mrf.mxu0
      %2729 = vmatprep.mubr.f32.mxu0 0.0
      %2730 = vmatmul.mubr.f32.gmra.mxu0 %v2518
      %v2731 = vpop.f32.mrf.mxu0
      %v2732 = vadd.f32 0.0, %v2731
      %v2733 = vpop.f32.mrf.mxu0
      %2734 = vmatprep.mubr.f32.mxu0 0.0
      %2735 = vmatmul.mubr.f32.gmra.mxu0 %v2521
      %v2736 = vpop.f32.mrf.mxu0
      %v2737 = vadd.f32 0.0, %v2736
      %v2738 = vpop.f32.mrf.mxu0
      %2739 = vmatprep.mubr.f32.mxu0 0.0
      %2740 = vmatmul.mubr.f32.gmra.mxu0 %v2524
      %v2741 = vpop.f32.mrf.mxu0
      %v2742 = vadd.f32 0.0, %v2741
      %v2743 = vpop.f32.mrf.mxu0
      %2744 = vmatprep.mubr.f32.mxu0 0.0
      %2745 = vmatmul.mubr.f32.gmra.mxu0 %v2527
      %v2746 = vpop.f32.mrf.mxu0
      %v2747 = vadd.f32 0.0, %v2746
      %v2748 = vpop.f32.mrf.mxu0
      %2749 = vmatprep.mubr.f32.mxu0 0.0
      %2750 = vmatmul.mubr.f32.gmra.mxu0 %v2530
      %v2751 = vpop.f32.mrf.mxu0
      %v2752 = vadd.f32 0.0, %v2751
      %v2753 = vpop.f32.mrf.mxu0
      %2754 = vmatprep.mubr.f32.mxu0 0.0
      %2755 = vmatmul.mubr.f32.gmra.mxu0 %v2533
      %v2756 = vpop.f32.mrf.mxu0
      %v2757 = vadd.f32 0.0, %v2756
      %v2758 = vpop.f32.mrf.mxu0
      %2759 = vdwg.mxu0
      %v2760 = vadd.f32 %v304, %v2602
      %v2761 = vadd.f32 %v305, %v2607
      %v2762 = vadd.f32 %v306, %v2612
      %v2763 = vadd.f32 %v307, %v2617
      %v2764 = vadd.f32 %v308, %v2622
      %v2765 = vadd.f32 %v309, %v2627
      %v2766 = vadd.f32 %v310, %v2632
      %v2767 = vadd.f32 %v311, %v2637
      %v2768 = vadd.f32 %v312, %v2642
      %v2769 = vadd.f32 %v313, %v2647
      %v2770 = vadd.f32 %v314, %v2652
      %v2771 = vadd.f32 %v315, %v2657
      %v2772 = vadd.f32 %v316, %v2662
      %v2773 = vadd.f32 %v317, %v2667
      %v2774 = vadd.f32 %v318, %v2672
      %v2775 = vadd.f32 %v319, %v2677
      %v2776 = vadd.f32 %v320, %v2682
      %v2777 = vadd.f32 %v321, %v2687
      %v2778 = vadd.f32 %v322, %v2692
      %v2779 = vadd.f32 %v323, %v2697
      %v2780 = vadd.f32 %v324, %v2702
      %v2781 = vadd.f32 %v325, %v2707
      %v2782 = vadd.f32 %v326, %v2712
      %v2783 = vadd.f32 %v327, %v2717
      %v2784 = vadd.f32 %v328, %v2722
      %v2785 = vadd.f32 %v329, %v2727
      %v2786 = vadd.f32 %v330, %v2732
      %v2787 = vadd.f32 %v331, %v2737
      %v2788 = vadd.f32 %v332, %v2742
      %v2789 = vadd.f32 %v333, %v2747
      %v2790 = vadd.f32 %v334, %v2752
      %v2791 = vadd.f32 %v335, %v2757
      %v2792 = vsel %vm512, %v2760, 0.0
      %2793 = vadd.xlane.f32.xlu0 %v2792
      %v2794 = vpop.xlane.xlu0 %2793
      %v2795 = vsel %vm512, %v2761, 0.0
      %2796 = vadd.xlane.f32.xlu0 %v2795
      %v2797 = vpop.xlane.xlu0 %2796
      %v2798 = vsel %vm512, %v2762, 0.0
      %2799 = vadd.xlane.f32.xlu0 %v2798
      %v2800 = vpop.xlane.xlu0 %2799
      %v2801 = vsel %vm512, %v2763, 0.0
      %2802 = vadd.xlane.f32.xlu0 %v2801
      %v2803 = vpop.xlane.xlu0 %2802
      %v2804 = vsel %vm512, %v2764, 0.0
      %2805 = vadd.xlane.f32.xlu0 %v2804
      %v2806 = vpop.xlane.xlu0 %2805
      %v2807 = vsel %vm512, %v2765, 0.0
      %2808 = vadd.xlane.f32.xlu0 %v2807
      %v2809 = vpop.xlane.xlu0 %2808
      %v2810 = vsel %vm512, %v2766, 0.0
      %2811 = vadd.xlane.f32.xlu0 %v2810
      %v2812 = vpop.xlane.xlu0 %2811
      %v2813 = vsel %vm512, %v2767, 0.0
      %2814 = vadd.xlane.f32.xlu0 %v2813
      %v2815 = vpop.xlane.xlu0 %2814
      %v2816 = vsel %vm512, %v2768, 0.0
      %2817 = vadd.xlane.f32.xlu0 %v2816
      %v2818 = vpop.xlane.xlu0 %2817
      %v2819 = vsel %vm512, %v2769, 0.0
      %2820 = vadd.xlane.f32.xlu0 %v2819
      %v2821 = vpop.xlane.xlu0 %2820
      %v2822 = vsel %vm512, %v2770, 0.0
      %2823 = vadd.xlane.f32.xlu0 %v2822
      %v2824 = vpop.xlane.xlu0 %2823
      %v2825 = vsel %vm512, %v2771, 0.0
      %2826 = vadd.xlane.f32.xlu0 %v2825
      %v2827 = vpop.xlane.xlu0 %2826
      %v2828 = vsel %vm512, %v2772, 0.0
      %2829 = vadd.xlane.f32.xlu0 %v2828
      %v2830 = vpop.xlane.xlu0 %2829
      %v2831 = vsel %vm512, %v2773, 0.0
      %2832 = vadd.xlane.f32.xlu0 %v2831
      %v2833 = vpop.xlane.xlu0 %2832
      %v2834 = vsel %vm512, %v2774, 0.0
      %2835 = vadd.xlane.f32.xlu0 %v2834
      %v2836 = vpop.xlane.xlu0 %2835
      %v2837 = vsel %vm512, %v2775, 0.0
      %2838 = vadd.xlane.f32.xlu0 %v2837
      %v2839 = vpop.xlane.xlu0 %2838
      %v2840 = vsel %vm512, %v2776, 0.0
      %2841 = vadd.xlane.f32.xlu0 %v2840
      %v2842 = vpop.xlane.xlu0 %2841
      %v2843 = vsel %vm512, %v2777, 0.0
      %2844 = vadd.xlane.f32.xlu0 %v2843
      %v2845 = vpop.xlane.xlu0 %2844
      %v2846 = vsel %vm512, %v2778, 0.0
      %2847 = vadd.xlane.f32.xlu0 %v2846
      %v2848 = vpop.xlane.xlu0 %2847
      %v2849 = vsel %vm512, %v2779, 0.0
      %2850 = vadd.xlane.f32.xlu0 %v2849
      %v2851 = vpop.xlane.xlu0 %2850
      %v2852 = vsel %vm512, %v2780, 0.0
      %2853 = vadd.xlane.f32.xlu0 %v2852
      %v2854 = vpop.xlane.xlu0 %2853
      %v2855 = vsel %vm512, %v2781, 0.0
      %2856 = vadd.xlane.f32.xlu0 %v2855
      %v2857 = vpop.xlane.xlu0 %2856
      %v2858 = vsel %vm512, %v2782, 0.0
      %2859 = vadd.xlane.f32.xlu0 %v2858
      %v2860 = vpop.xlane.xlu0 %2859
      %v2861 = vsel %vm512, %v2783, 0.0
      %2862 = vadd.xlane.f32.xlu0 %v2861
      %v2863 = vpop.xlane.xlu0 %2862
      %v2864 = vsel %vm512, %v2784, 0.0
      %2865 = vadd.xlane.f32.xlu0 %v2864
      %v2866 = vpop.xlane.xlu0 %2865
      %v2867 = vsel %vm512, %v2785, 0.0
      %2868 = vadd.xlane.f32.xlu0 %v2867
      %v2869 = vpop.xlane.xlu0 %2868
      %v2870 = vsel %vm512, %v2786, 0.0
      %2871 = vadd.xlane.f32.xlu0 %v2870
      %v2872 = vpop.xlane.xlu0 %2871
      %v2873 = vsel %vm512, %v2787, 0.0
      %2874 = vadd.xlane.f32.xlu0 %v2873
      %v2875 = vpop.xlane.xlu0 %2874
      %v2876 = vsel %vm512, %v2788, 0.0
      %2877 = vadd.xlane.f32.xlu0 %v2876
      %v2878 = vpop.xlane.xlu0 %2877
      %v2879 = vsel %vm512, %v2789, 0.0
      %2880 = vadd.xlane.f32.xlu0 %v2879
      %v2881 = vpop.xlane.xlu0 %2880
      %v2882 = vsel %vm512, %v2790, 0.0
      %2883 = vadd.xlane.f32.xlu0 %v2882
      %v2884 = vpop.xlane.xlu0 %2883
      %v2885 = vsel %vm512, %v2791, 0.0
      %2886 = vadd.xlane.f32.xlu0 %v2885
      %v2887 = vpop.xlane.xlu0 %2886
      %v2888 = vrcp.pop 32.0
      %v2889 = vmul.f32 %v2794, %v2888
      %v2890 = vmul.f32 %v2797, %v2888
      %v2891 = vmul.f32 %v2800, %v2888
      %v2892 = vmul.f32 %v2803, %v2888
      %v2893 = vmul.f32 %v2806, %v2888
      %v2894 = vmul.f32 %v2809, %v2888
      %v2895 = vmul.f32 %v2812, %v2888
      %v2896 = vmul.f32 %v2815, %v2888
      %v2897 = vmul.f32 %v2818, %v2888
      %v2898 = vmul.f32 %v2821, %v2888
      %v2899 = vmul.f32 %v2824, %v2888
      %v2900 = vmul.f32 %v2827, %v2888
      %v2901 = vmul.f32 %v2830, %v2888
      %v2902 = vmul.f32 %v2833, %v2888
      %v2903 = vmul.f32 %v2836, %v2888
      %v2904 = vmul.f32 %v2839, %v2888
      %v2905 = vmul.f32 %v2842, %v2888
      %v2906 = vmul.f32 %v2845, %v2888
      %v2907 = vmul.f32 %v2848, %v2888
      %v2908 = vmul.f32 %v2851, %v2888
      %v2909 = vmul.f32 %v2854, %v2888
      %v2910 = vmul.f32 %v2857, %v2888
      %v2911 = vmul.f32 %v2860, %v2888
      %v2912 = vmul.f32 %v2863, %v2888
      %v2913 = vmul.f32 %v2866, %v2888
      %v2914 = vmul.f32 %v2869, %v2888
      %v2915 = vmul.f32 %v2872, %v2888
      %v2916 = vmul.f32 %v2875, %v2888
      %v2917 = vmul.f32 %v2878, %v2888
      %v2918 = vmul.f32 %v2881, %v2888
      %v2919 = vmul.f32 %v2884, %v2888
      %v2920 = vmul.f32 %v2887, %v2888
      %v2921 = vmul.f32 %v2760, %v2760
      %v2922 = vmul.f32 %v2761, %v2761
      %v2923 = vmul.f32 %v2762, %v2762
      %v2924 = vmul.f32 %v2763, %v2763
      %v2925 = vmul.f32 %v2764, %v2764
      %v2926 = vmul.f32 %v2765, %v2765
      %v2927 = vmul.f32 %v2766, %v2766
      %v2928 = vmul.f32 %v2767, %v2767
      %v2929 = vmul.f32 %v2768, %v2768
      %v2930 = vmul.f32 %v2769, %v2769
      %v2931 = vmul.f32 %v2770, %v2770
      %v2932 = vmul.f32 %v2771, %v2771
      %v2933 = vmul.f32 %v2772, %v2772
      %v2934 = vmul.f32 %v2773, %v2773
      %v2935 = vmul.f32 %v2774, %v2774
      %v2936 = vmul.f32 %v2775, %v2775
      %v2937 = vmul.f32 %v2776, %v2776
      %v2938 = vmul.f32 %v2777, %v2777
      %v2939 = vmul.f32 %v2778, %v2778
      %v2940 = vmul.f32 %v2779, %v2779
      %v2941 = vmul.f32 %v2780, %v2780
      %v2942 = vmul.f32 %v2781, %v2781
      %v2943 = vmul.f32 %v2782, %v2782
      %v2944 = vmul.f32 %v2783, %v2783
      %v2945 = vmul.f32 %v2784, %v2784
      %v2946 = vmul.f32 %v2785, %v2785
      %v2947 = vmul.f32 %v2786, %v2786
      %v2948 = vmul.f32 %v2787, %v2787
      %v2949 = vmul.f32 %v2788, %v2788
      %v2950 = vmul.f32 %v2789, %v2789
      %v2951 = vmul.f32 %v2790, %v2790
      %v2952 = vmul.f32 %v2791, %v2791
      %v2953 = vsel %vm512, %v2921, 0.0
      %2954 = vadd.xlane.f32.xlu0 %v2953
      %v2955 = vpop.xlane.xlu0 %2954
      %v2956 = vsel %vm512, %v2922, 0.0
      %2957 = vadd.xlane.f32.xlu0 %v2956
      %v2958 = vpop.xlane.xlu0 %2957
      %v2959 = vsel %vm512, %v2923, 0.0
      %2960 = vadd.xlane.f32.xlu0 %v2959
      %v2961 = vpop.xlane.xlu0 %2960
      %v2962 = vsel %vm512, %v2924, 0.0
      %2963 = vadd.xlane.f32.xlu0 %v2962
      %v2964 = vpop.xlane.xlu0 %2963
      %v2965 = vsel %vm512, %v2925, 0.0
      %2966 = vadd.xlane.f32.xlu0 %v2965
      %v2967 = vpop.xlane.xlu0 %2966
      %v2968 = vsel %vm512, %v2926, 0.0
      %2969 = vadd.xlane.f32.xlu0 %v2968
      %v2970 = vpop.xlane.xlu0 %2969
      %v2971 = vsel %vm512, %v2927, 0.0
      %2972 = vadd.xlane.f32.xlu0 %v2971
      %v2973 = vpop.xlane.xlu0 %2972
      %v2974 = vsel %vm512, %v2928, 0.0
      %2975 = vadd.xlane.f32.xlu0 %v2974
      %v2976 = vpop.xlane.xlu0 %2975
      %v2977 = vsel %vm512, %v2929, 0.0
      %2978 = vadd.xlane.f32.xlu0 %v2977
      %v2979 = vpop.xlane.xlu0 %2978
      %v2980 = vsel %vm512, %v2930, 0.0
      %2981 = vadd.xlane.f32.xlu0 %v2980
      %v2982 = vpop.xlane.xlu0 %2981
      %v2983 = vsel %vm512, %v2931, 0.0
      %2984 = vadd.xlane.f32.xlu0 %v2983
      %v2985 = vpop.xlane.xlu0 %2984
      %v2986 = vsel %vm512, %v2932, 0.0
      %2987 = vadd.xlane.f32.xlu0 %v2986
      %v2988 = vpop.xlane.xlu0 %2987
      %v2989 = vsel %vm512, %v2933, 0.0
      %2990 = vadd.xlane.f32.xlu0 %v2989
      %v2991 = vpop.xlane.xlu0 %2990
      %v2992 = vsel %vm512, %v2934, 0.0
      %2993 = vadd.xlane.f32.xlu0 %v2992
      %v2994 = vpop.xlane.xlu0 %2993
      %v2995 = vsel %vm512, %v2935, 0.0
      %2996 = vadd.xlane.f32.xlu0 %v2995
      %v2997 = vpop.xlane.xlu0 %2996
      %v2998 = vsel %vm512, %v2936, 0.0
      %2999 = vadd.xlane.f32.xlu0 %v2998
      %v3000 = vpop.xlane.xlu0 %2999
      %v3001 = vsel %vm512, %v2937, 0.0
      %3002 = vadd.xlane.f32.xlu0 %v3001
      %v3003 = vpop.xlane.xlu0 %3002
      %v3004 = vsel %vm512, %v2938, 0.0
      %3005 = vadd.xlane.f32.xlu0 %v3004
      %v3006 = vpop.xlane.xlu0 %3005
      %v3007 = vsel %vm512, %v2939, 0.0
      %3008 = vadd.xlane.f32.xlu0 %v3007
      %v3009 = vpop.xlane.xlu0 %3008
      %v3010 = vsel %vm512, %v2940, 0.0
      %3011 = vadd.xlane.f32.xlu0 %v3010
      %v3012 = vpop.xlane.xlu0 %3011
      %v3013 = vsel %vm512, %v2941, 0.0
      %3014 = vadd.xlane.f32.xlu0 %v3013
      %v3015 = vpop.xlane.xlu0 %3014
      %v3016 = vsel %vm512, %v2942, 0.0
      %3017 = vadd.xlane.f32.xlu0 %v3016
      %v3018 = vpop.xlane.xlu0 %3017
      %v3019 = vsel %vm512, %v2943, 0.0
      %3020 = vadd.xlane.f32.xlu0 %v3019
      %v3021 = vpop.xlane.xlu0 %3020
      %v3022 = vsel %vm512, %v2944, 0.0
      %3023 = vadd.xlane.f32.xlu0 %v3022
      %v3024 = vpop.xlane.xlu0 %3023
      %v3025 = vsel %vm512, %v2945, 0.0
      %3026 = vadd.xlane.f32.xlu0 %v3025
      %v3027 = vpop.xlane.xlu0 %3026
      %v3028 = vsel %vm512, %v2946, 0.0
      %3029 = vadd.xlane.f32.xlu0 %v3028
      %v3030 = vpop.xlane.xlu0 %3029
      %v3031 = vsel %vm512, %v2947, 0.0
      %3032 = vadd.xlane.f32.xlu0 %v3031
      %v3033 = vpop.xlane.xlu0 %3032
      %v3034 = vsel %vm512, %v2948, 0.0
      %3035 = vadd.xlane.f32.xlu0 %v3034
      %v3036 = vpop.xlane.xlu0 %3035
      %v3037 = vsel %vm512, %v2949, 0.0
      %3038 = vadd.xlane.f32.xlu0 %v3037
      %v3039 = vpop.xlane.xlu0 %3038
      %v3040 = vsel %vm512, %v2950, 0.0
      %3041 = vadd.xlane.f32.xlu0 %v3040
      %v3042 = vpop.xlane.xlu0 %3041
      %v3043 = vsel %vm512, %v2951, 0.0
      %3044 = vadd.xlane.f32.xlu0 %v3043
      %v3045 = vpop.xlane.xlu0 %3044
      %v3046 = vsel %vm512, %v2952, 0.0
      %3047 = vadd.xlane.f32.xlu0 %v3046
      %v3048 = vpop.xlane.xlu0 %3047
      %v3049 = vmul.f32 %v2955, %v2888
      %v3050 = vmul.f32 %v2958, %v2888
      %v3051 = vmul.f32 %v2961, %v2888
      %v3052 = vmul.f32 %v2964, %v2888
      %v3053 = vmul.f32 %v2967, %v2888
      %v3054 = vmul.f32 %v2970, %v2888
      %v3055 = vmul.f32 %v2973, %v2888
      %v3056 = vmul.f32 %v2976, %v2888
      %v3057 = vmul.f32 %v2979, %v2888
      %v3058 = vmul.f32 %v2982, %v2888
      %v3059 = vmul.f32 %v2985, %v2888
      %v3060 = vmul.f32 %v2988, %v2888
      %v3061 = vmul.f32 %v2991, %v2888
      %v3062 = vmul.f32 %v2994, %v2888
      %v3063 = vmul.f32 %v2997, %v2888
      %v3064 = vmul.f32 %v3000, %v2888
      %v3065 = vmul.f32 %v3003, %v2888
      %v3066 = vmul.f32 %v3006, %v2888
      %v3067 = vmul.f32 %v3009, %v2888
      %v3068 = vmul.f32 %v3012, %v2888
      %v3069 = vmul.f32 %v3015, %v2888
      %v3070 = vmul.f32 %v3018, %v2888
      %v3071 = vmul.f32 %v3021, %v2888
      %v3072 = vmul.f32 %v3024, %v2888
      %v3073 = vmul.f32 %v3027, %v2888
      %v3074 = vmul.f32 %v3030, %v2888
      %v3075 = vmul.f32 %v3033, %v2888
      %v3076 = vmul.f32 %v3036, %v2888
      %v3077 = vmul.f32 %v3039, %v2888
      %v3078 = vmul.f32 %v3042, %v2888
      %v3079 = vmul.f32 %v3045, %v2888
      %v3080 = vmul.f32 %v3048, %v2888
      %v3081 = vmul.f32 %v2889, %v2889
      %v3082 = vmul.f32 %v2890, %v2890
      %v3083 = vmul.f32 %v2891, %v2891
      %v3084 = vmul.f32 %v2892, %v2892
      %v3085 = vmul.f32 %v2893, %v2893
      %v3086 = vmul.f32 %v2894, %v2894
      %v3087 = vmul.f32 %v2895, %v2895
      %v3088 = vmul.f32 %v2896, %v2896
      %v3089 = vmul.f32 %v2897, %v2897
      %v3090 = vmul.f32 %v2898, %v2898
      %v3091 = vmul.f32 %v2899, %v2899
      %v3092 = vmul.f32 %v2900, %v2900
      %v3093 = vmul.f32 %v2901, %v2901
      %v3094 = vmul.f32 %v2902, %v2902
      %v3095 = vmul.f32 %v2903, %v2903
      %v3096 = vmul.f32 %v2904, %v2904
      %v3097 = vmul.f32 %v2905, %v2905
      %v3098 = vmul.f32 %v2906, %v2906
      %v3099 = vmul.f32 %v2907, %v2907
      %v3100 = vmul.f32 %v2908, %v2908
      %v3101 = vmul.f32 %v2909, %v2909
      %v3102 = vmul.f32 %v2910, %v2910
      %v3103 = vmul.f32 %v2911, %v2911
      %v3104 = vmul.f32 %v2912, %v2912
      %v3105 = vmul.f32 %v2913, %v2913
      %v3106 = vmul.f32 %v2914, %v2914
      %v3107 = vmul.f32 %v2915, %v2915
      %v3108 = vmul.f32 %v2916, %v2916
      %v3109 = vmul.f32 %v2917, %v2917
      %v3110 = vmul.f32 %v2918, %v2918
      %v3111 = vmul.f32 %v2919, %v2919
      %v3112 = vmul.f32 %v2920, %v2920
      %v3113 = vsub.f32 %v3049, %v3081
      %v3114 = vsub.f32 %v3050, %v3082
      %v3115 = vsub.f32 %v3051, %v3083
      %v3116 = vsub.f32 %v3052, %v3084
      %v3117 = vsub.f32 %v3053, %v3085
      %v3118 = vsub.f32 %v3054, %v3086
      %v3119 = vsub.f32 %v3055, %v3087
      %v3120 = vsub.f32 %v3056, %v3088
      %v3121 = vsub.f32 %v3057, %v3089
      %v3122 = vsub.f32 %v3058, %v3090
      %v3123 = vsub.f32 %v3059, %v3091
      %v3124 = vsub.f32 %v3060, %v3092
      %v3125 = vsub.f32 %v3061, %v3093
      %v3126 = vsub.f32 %v3062, %v3094
      %v3127 = vsub.f32 %v3063, %v3095
      %v3128 = vsub.f32 %v3064, %v3096
      %v3129 = vsub.f32 %v3065, %v3097
      %v3130 = vsub.f32 %v3066, %v3098
      %v3131 = vsub.f32 %v3067, %v3099
      %v3132 = vsub.f32 %v3068, %v3100
      %v3133 = vsub.f32 %v3069, %v3101
      %v3134 = vsub.f32 %v3070, %v3102
      %v3135 = vsub.f32 %v3071, %v3103
      %v3136 = vsub.f32 %v3072, %v3104
      %v3137 = vsub.f32 %v3073, %v3105
      %v3138 = vsub.f32 %v3074, %v3106
      %v3139 = vsub.f32 %v3075, %v3107
      %v3140 = vsub.f32 %v3076, %v3108
      %v3141 = vsub.f32 %v3077, %v3109
      %v3142 = vsub.f32 %v3078, %v3110
      %v3143 = vsub.f32 %v3079, %v3111
      %v3144 = vsub.f32 %v3080, %v3112
      %v3145 = vmax.f32 %v3113, 0.0
      %v3146 = vmax.f32 %v3114, 0.0
      %v3147 = vmax.f32 %v3115, 0.0
      %v3148 = vmax.f32 %v3116, 0.0
      %v3149 = vmax.f32 %v3117, 0.0
      %v3150 = vmax.f32 %v3118, 0.0
      %v3151 = vmax.f32 %v3119, 0.0
      %v3152 = vmax.f32 %v3120, 0.0
      %v3153 = vmax.f32 %v3121, 0.0
      %v3154 = vmax.f32 %v3122, 0.0
      %v3155 = vmax.f32 %v3123, 0.0
      %v3156 = vmax.f32 %v3124, 0.0
      %v3157 = vmax.f32 %v3125, 0.0
      %v3158 = vmax.f32 %v3126, 0.0
      %v3159 = vmax.f32 %v3127, 0.0
      %v3160 = vmax.f32 %v3128, 0.0
      %v3161 = vmax.f32 %v3129, 0.0
      %v3162 = vmax.f32 %v3130, 0.0
      %v3163 = vmax.f32 %v3131, 0.0
      %v3164 = vmax.f32 %v3132, 0.0
      %v3165 = vmax.f32 %v3133, 0.0
      %v3166 = vmax.f32 %v3134, 0.0
      %v3167 = vmax.f32 %v3135, 0.0
      %v3168 = vmax.f32 %v3136, 0.0
      %v3169 = vmax.f32 %v3137, 0.0
      %v3170 = vmax.f32 %v3138, 0.0
      %v3171 = vmax.f32 %v3139, 0.0
      %v3172 = vmax.f32 %v3140, 0.0
      %v3173 = vmax.f32 %v3141, 0.0
      %v3174 = vmax.f32 %v3142, 0.0
      %v3175 = vmax.f32 %v3143, 0.0
      %v3176 = vmax.f32 %v3144, 0.0
      %v3177 = vsub.f32 %v2760, %v2889
      %v3178 = vsub.f32 %v2761, %v2890
      %v3179 = vsub.f32 %v2762, %v2891
      %v3180 = vsub.f32 %v2763, %v2892
      %v3181 = vsub.f32 %v2764, %v2893
      %v3182 = vsub.f32 %v2765, %v2894
      %v3183 = vsub.f32 %v2766, %v2895
      %v3184 = vsub.f32 %v2767, %v2896
      %v3185 = vsub.f32 %v2768, %v2897
      %v3186 = vsub.f32 %v2769, %v2898
      %v3187 = vsub.f32 %v2770, %v2899
      %v3188 = vsub.f32 %v2771, %v2900
      %v3189 = vsub.f32 %v2772, %v2901
      %v3190 = vsub.f32 %v2773, %v2902
      %v3191 = vsub.f32 %v2774, %v2903
      %v3192 = vsub.f32 %v2775, %v2904
      %v3193 = vsub.f32 %v2776, %v2905
      %v3194 = vsub.f32 %v2777, %v2906
      %v3195 = vsub.f32 %v2778, %v2907
      %v3196 = vsub.f32 %v2779, %v2908
      %v3197 = vsub.f32 %v2780, %v2909
      %v3198 = vsub.f32 %v2781, %v2910
      %v3199 = vsub.f32 %v2782, %v2911
      %v3200 = vsub.f32 %v2783, %v2912
      %v3201 = vsub.f32 %v2784, %v2913
      %v3202 = vsub.f32 %v2785, %v2914
      %v3203 = vsub.f32 %v2786, %v2915
      %v3204 = vsub.f32 %v2787, %v2916
      %v3205 = vsub.f32 %v2788, %v2917
      %v3206 = vsub.f32 %v2789, %v2918
      %v3207 = vsub.f32 %v2790, %v2919
      %v3208 = vsub.f32 %v2791, %v2920
      %v3209 = vadd.f32 %v3145, 1e-05
      %v3210 = vadd.f32 %v3146, 1e-05
      %v3211 = vadd.f32 %v3147, 1e-05
      %v3212 = vadd.f32 %v3148, 1e-05
      %v3213 = vadd.f32 %v3149, 1e-05
      %v3214 = vadd.f32 %v3150, 1e-05
      %v3215 = vadd.f32 %v3151, 1e-05
      %v3216 = vadd.f32 %v3152, 1e-05
      %v3217 = vadd.f32 %v3153, 1e-05
      %v3218 = vadd.f32 %v3154, 1e-05
      %v3219 = vadd.f32 %v3155, 1e-05
      %v3220 = vadd.f32 %v3156, 1e-05
      %v3221 = vadd.f32 %v3157, 1e-05
      %v3222 = vadd.f32 %v3158, 1e-05
      %v3223 = vadd.f32 %v3159, 1e-05
      %v3224 = vadd.f32 %v3160, 1e-05
      %v3225 = vadd.f32 %v3161, 1e-05
      %v3226 = vadd.f32 %v3162, 1e-05
      %v3227 = vadd.f32 %v3163, 1e-05
      %v3228 = vadd.f32 %v3164, 1e-05
      %v3229 = vadd.f32 %v3165, 1e-05
      %v3230 = vadd.f32 %v3166, 1e-05
      %v3231 = vadd.f32 %v3167, 1e-05
      %v3232 = vadd.f32 %v3168, 1e-05
      %v3233 = vadd.f32 %v3169, 1e-05
      %v3234 = vadd.f32 %v3170, 1e-05
      %v3235 = vadd.f32 %v3171, 1e-05
      %v3236 = vadd.f32 %v3172, 1e-05
      %v3237 = vadd.f32 %v3173, 1e-05
      %v3238 = vadd.f32 %v3174, 1e-05
      %v3239 = vadd.f32 %v3175, 1e-05
      %v3240 = vadd.f32 %v3176, 1e-05
      %v3241 = vrsqrt.pop %v3209
      %v3242 = vrsqrt.pop %v3210
      %v3243 = vrsqrt.pop %v3211
      %v3244 = vrsqrt.pop %v3212
      %v3245 = vrsqrt.pop %v3213
      %v3246 = vrsqrt.pop %v3214
      %v3247 = vrsqrt.pop %v3215
      %v3248 = vrsqrt.pop %v3216
      %v3249 = vrsqrt.pop %v3217
      %v3250 = vrsqrt.pop %v3218
      %v3251 = vrsqrt.pop %v3219
      %v3252 = vrsqrt.pop %v3220
      %v3253 = vrsqrt.pop %v3221
      %v3254 = vrsqrt.pop %v3222
      %v3255 = vrsqrt.pop %v3223
      %v3256 = vrsqrt.pop %v3224
      %v3257 = vrsqrt.pop %v3225
      %v3258 = vrsqrt.pop %v3226
      %v3259 = vrsqrt.pop %v3227
      %v3260 = vrsqrt.pop %v3228
      %v3261 = vrsqrt.pop %v3229
      %v3262 = vrsqrt.pop %v3230
      %v3263 = vrsqrt.pop %v3231
      %v3264 = vrsqrt.pop %v3232
      %v3265 = vrsqrt.pop %v3233
      %v3266 = vrsqrt.pop %v3234
      %v3267 = vrsqrt.pop %v3235
      %v3268 = vrsqrt.pop %v3236
      %v3269 = vrsqrt.pop %v3237
      %v3270 = vrsqrt.pop %v3238
      %v3271 = vrsqrt.pop %v3239
      %v3272 = vrsqrt.pop %v3240
      %v3273 = vmul.f32 %v3177, %v3241
      %v3274 = vmul.f32 %v3178, %v3242
      %v3275 = vmul.f32 %v3179, %v3243
      %v3276 = vmul.f32 %v3180, %v3244
      %v3277 = vmul.f32 %v3181, %v3245
      %v3278 = vmul.f32 %v3182, %v3246
      %v3279 = vmul.f32 %v3183, %v3247
      %v3280 = vmul.f32 %v3184, %v3248
      %v3281 = vmul.f32 %v3185, %v3249
      %v3282 = vmul.f32 %v3186, %v3250
      %v3283 = vmul.f32 %v3187, %v3251
      %v3284 = vmul.f32 %v3188, %v3252
      %v3285 = vmul.f32 %v3189, %v3253
      %v3286 = vmul.f32 %v3190, %v3254
      %v3287 = vmul.f32 %v3191, %v3255
      %v3288 = vmul.f32 %v3192, %v3256
      %v3289 = vmul.f32 %v3193, %v3257
      %v3290 = vmul.f32 %v3194, %v3258
      %v3291 = vmul.f32 %v3195, %v3259
      %v3292 = vmul.f32 %v3196, %v3260
      %v3293 = vmul.f32 %v3197, %v3261
      %v3294 = vmul.f32 %v3198, %v3262
      %v3295 = vmul.f32 %v3199, %v3263
      %v3296 = vmul.f32 %v3200, %v3264
      %v3297 = vmul.f32 %v3201, %v3265
      %v3298 = vmul.f32 %v3202, %v3266
      %v3299 = vmul.f32 %v3203, %v3267
      %v3300 = vmul.f32 %v3204, %v3268
      %v3301 = vmul.f32 %v3205, %v3269
      %v3302 = vmul.f32 %v3206, %v3270
      %v3303 = vmul.f32 %v3207, %v3271
      %v3304 = vmul.f32 %v3208, %v3272
      %v3305 = vlaneseq
      %v3306 = vshrl.u32 %v3305, 7
      %v3307 = vsub.s32 0, %v3306
      %v3308 = vrot.slane %v442, %v3307
      %v3309 = vmul.f32 %v3273, %v3308
      %v3310 = vmul.f32 %v3274, %v3308
      %v3311 = vmul.f32 %v3275, %v3308
      %v3312 = vmul.f32 %v3276, %v3308
      %v3313 = vmul.f32 %v3277, %v3308
      %v3314 = vmul.f32 %v3278, %v3308
      %v3315 = vmul.f32 %v3279, %v3308
      %v3316 = vmul.f32 %v3280, %v3308
      %v3317 = vmul.f32 %v3281, %v3308
      %v3318 = vmul.f32 %v3282, %v3308
      %v3319 = vmul.f32 %v3283, %v3308
      %v3320 = vmul.f32 %v3284, %v3308
      %v3321 = vmul.f32 %v3285, %v3308
      %v3322 = vmul.f32 %v3286, %v3308
      %v3323 = vmul.f32 %v3287, %v3308
      %v3324 = vmul.f32 %v3288, %v3308
      %v3325 = vmul.f32 %v3289, %v3308
      %v3326 = vmul.f32 %v3290, %v3308
      %v3327 = vmul.f32 %v3291, %v3308
      %v3328 = vmul.f32 %v3292, %v3308
      %v3329 = vmul.f32 %v3293, %v3308
      %v3330 = vmul.f32 %v3294, %v3308
      %v3331 = vmul.f32 %v3295, %v3308
      %v3332 = vmul.f32 %v3296, %v3308
      %v3333 = vmul.f32 %v3297, %v3308
      %v3334 = vmul.f32 %v3298, %v3308
      %v3335 = vmul.f32 %v3299, %v3308
      %v3336 = vmul.f32 %v3300, %v3308
      %v3337 = vmul.f32 %v3301, %v3308
      %v3338 = vmul.f32 %v3302, %v3308
      %v3339 = vmul.f32 %v3303, %v3308
      %v3340 = vmul.f32 %v3304, %v3308
      %v3341 = vlaneseq
      %v3342 = vshrl.u32 %v3341, 7
      %v3343 = vsub.s32 0, %v3342
      %v3344 = vrot.slane %v443, %v3343
      %v3345 = vadd.f32 %v3309, %v3344
      %v3346 = vadd.f32 %v3310, %v3344
      %v3347 = vadd.f32 %v3311, %v3344
      %v3348 = vadd.f32 %v3312, %v3344
      %v3349 = vadd.f32 %v3313, %v3344
      %v3350 = vadd.f32 %v3314, %v3344
      %v3351 = vadd.f32 %v3315, %v3344
      %v3352 = vadd.f32 %v3316, %v3344
      %v3353 = vadd.f32 %v3317, %v3344
      %v3354 = vadd.f32 %v3318, %v3344
      %v3355 = vadd.f32 %v3319, %v3344
      %v3356 = vadd.f32 %v3320, %v3344
      %v3357 = vadd.f32 %v3321, %v3344
      %v3358 = vadd.f32 %v3322, %v3344
      %v3359 = vadd.f32 %v3323, %v3344
      %v3360 = vadd.f32 %v3324, %v3344
      %v3361 = vadd.f32 %v3325, %v3344
      %v3362 = vadd.f32 %v3326, %v3344
      %v3363 = vadd.f32 %v3327, %v3344
      %v3364 = vadd.f32 %v3328, %v3344
      %v3365 = vadd.f32 %v3329, %v3344
      %v3366 = vadd.f32 %v3330, %v3344
      %v3367 = vadd.f32 %v3331, %v3344
      %v3368 = vadd.f32 %v3332, %v3344
      %v3369 = vadd.f32 %v3333, %v3344
      %v3370 = vadd.f32 %v3334, %v3344
      %v3371 = vadd.f32 %v3335, %v3344
      %v3372 = vadd.f32 %v3336, %v3344
      %v3373 = vadd.f32 %v3337, %v3344
      %v3374 = vadd.f32 %v3338, %v3344
      %v3375 = vadd.f32 %v3339, %v3344
      %v3376 = vadd.f32 %v3340, %v3344
      %v3377 = vld [vmem:[%s3] sm:$0xff]
      %v3378 = vld [vmem:[%s3 + $0x8] sm:$0xff]
      %v3379 = vld [vmem:[%s3 + $0x10] sm:$0xff]
      %v3380 = vld [vmem:[%s3 + $0x18] sm:$0xff]
      %v3381 = vld [vmem:[%s3 + $0x20] sm:$0xff]
      %v3382 = vld [vmem:[%s3 + $0x28] sm:$0xff]
      %v3383 = vld [vmem:[%s3 + $0x30] sm:$0xff]
      %v3384 = vld [vmem:[%s3 + $0x38] sm:$0xff]
      %v3385 = vld [vmem:[%s3 + $0x40] sm:$0xff]
      %v3386 = vld [vmem:[%s3 + $0x48] sm:$0xff]
      %v3387 = vld [vmem:[%s3 + $0x50] sm:$0xff]
      %v3388 = vld [vmem:[%s3 + $0x58] sm:$0xff]
      %v3389 = vld [vmem:[%s3 + $0x60] sm:$0xff]
      %v3390 = vld [vmem:[%s3 + $0x68] sm:$0xff]
      %v3391 = vld [vmem:[%s3 + $0x70] sm:$0xff]
      %v3392 = vld [vmem:[%s3 + $0x78] sm:$0xff]
      %v3393 = vld [vmem:[%s3 + $0x80] sm:$0xff]
      %v3394 = vld [vmem:[%s3 + $0x88] sm:$0xff]
      %v3395 = vld [vmem:[%s3 + $0x90] sm:$0xff]
      %v3396 = vld [vmem:[%s3 + $0x98] sm:$0xff]
      %v3397 = vld [vmem:[%s3 + $0xa0] sm:$0xff]
      %v3398 = vld [vmem:[%s3 + $0xa8] sm:$0xff]
      %v3399 = vld [vmem:[%s3 + $0xb0] sm:$0xff]
      %v3400 = vld [vmem:[%s3 + $0xb8] sm:$0xff]
      %v3401 = vld [vmem:[%s3 + $0xc0] sm:$0xff]
      %v3402 = vld [vmem:[%s3 + $0xc8] sm:$0xff]
      %v3403 = vld [vmem:[%s3 + $0xd0] sm:$0xff]
      %v3404 = vld [vmem:[%s3 + $0xd8] sm:$0xff]
      %v3405 = vld [vmem:[%s3 + $0xe0] sm:$0xff]
      %v3406 = vld [vmem:[%s3 + $0xe8] sm:$0xff]
      %v3407 = vld [vmem:[%s3 + $0xf0] sm:$0xff]
      %v3408 = vld [vmem:[%s3 + $0xf8] sm:$0xff]
      %v3409 = vld [vmem:[%s3 + $0x100] sm:$0xff]
      %v3410 = vld [vmem:[%s3 + $0x108] sm:$0xff]
      %v3411 = vld [vmem:[%s3 + $0x110] sm:$0xff]
      %v3412 = vld [vmem:[%s3 + $0x118] sm:$0xff]
      %v3413 = vld [vmem:[%s3 + $0x120] sm:$0xff]
      %v3414 = vld [vmem:[%s3 + $0x128] sm:$0xff]
      %v3415 = vld [vmem:[%s3 + $0x130] sm:$0xff]
      %v3416 = vld [vmem:[%s3 + $0x138] sm:$0xff]
      %v3417 = vld [vmem:[%s3 + $0x140] sm:$0xff]
      %v3418 = vld [vmem:[%s3 + $0x148] sm:$0xff]
      %v3419 = vld [vmem:[%s3 + $0x150] sm:$0xff]
      %v3420 = vld [vmem:[%s3 + $0x158] sm:$0xff]
      %v3421 = vld [vmem:[%s3 + $0x160] sm:$0xff]
      %v3422 = vld [vmem:[%s3 + $0x168] sm:$0xff]
      %v3423 = vld [vmem:[%s3 + $0x170] sm:$0xff]
      %v3424 = vld [vmem:[%s3 + $0x178] sm:$0xff]
      %v3425 = vld [vmem:[%s3 + $0x180] sm:$0xff]
      %v3426 = vld [vmem:[%s3 + $0x188] sm:$0xff]
      %v3427 = vld [vmem:[%s3 + $0x190] sm:$0xff]
      %v3428 = vld [vmem:[%s3 + $0x198] sm:$0xff]
      %v3429 = vld [vmem:[%s3 + $0x1a0] sm:$0xff]
      %v3430 = vld [vmem:[%s3 + $0x1a8] sm:$0xff]
      %v3431 = vld [vmem:[%s3 + $0x1b0] sm:$0xff]
      %v3432 = vld [vmem:[%s3 + $0x1b8] sm:$0xff]
      %v3433 = vld [vmem:[%s3 + $0x1c0] sm:$0xff]
      %v3434 = vld [vmem:[%s3 + $0x1c8] sm:$0xff]
      %v3435 = vld [vmem:[%s3 + $0x1d0] sm:$0xff]
      %v3436 = vld [vmem:[%s3 + $0x1d8] sm:$0xff]
      %v3437 = vld [vmem:[%s3 + $0x1e0] sm:$0xff]
      %v3438 = vld [vmem:[%s3 + $0x1e8] sm:$0xff]
      %v3439 = vld [vmem:[%s3 + $0x1f0] sm:$0xff]
      %v3440 = vld [vmem:[%s3 + $0x1f8] sm:$0xff]
      %v3441 = vld [vmem:[%s3 + $0x200] sm:$0xff]
      %v3442 = vld [vmem:[%s3 + $0x208] sm:$0xff]
      %v3443 = vld [vmem:[%s3 + $0x210] sm:$0xff]
      %v3444 = vld [vmem:[%s3 + $0x218] sm:$0xff]
      %v3445 = vld [vmem:[%s3 + $0x220] sm:$0xff]
      %v3446 = vld [vmem:[%s3 + $0x228] sm:$0xff]
      %v3447 = vld [vmem:[%s3 + $0x230] sm:$0xff]
      %v3448 = vld [vmem:[%s3 + $0x238] sm:$0xff]
      %v3449 = vld [vmem:[%s3 + $0x240] sm:$0xff]
      %v3450 = vld [vmem:[%s3 + $0x248] sm:$0xff]
      %v3451 = vld [vmem:[%s3 + $0x250] sm:$0xff]
      %v3452 = vld [vmem:[%s3 + $0x258] sm:$0xff]
      %v3453 = vld [vmem:[%s3 + $0x260] sm:$0xff]
      %v3454 = vld [vmem:[%s3 + $0x268] sm:$0xff]
      %v3455 = vld [vmem:[%s3 + $0x270] sm:$0xff]
      %v3456 = vld [vmem:[%s3 + $0x278] sm:$0xff]
      %v3457 = vld [vmem:[%s3 + $0x280] sm:$0xff]
      %v3458 = vld [vmem:[%s3 + $0x288] sm:$0xff]
      %v3459 = vld [vmem:[%s3 + $0x290] sm:$0xff]
      %v3460 = vld [vmem:[%s3 + $0x298] sm:$0xff]
      %v3461 = vld [vmem:[%s3 + $0x2a0] sm:$0xff]
      %v3462 = vld [vmem:[%s3 + $0x2a8] sm:$0xff]
      %v3463 = vld [vmem:[%s3 + $0x2b0] sm:$0xff]
      %v3464 = vld [vmem:[%s3 + $0x2b8] sm:$0xff]
      %v3465 = vld [vmem:[%s3 + $0x2c0] sm:$0xff]
      %v3466 = vld [vmem:[%s3 + $0x2c8] sm:$0xff]
      %v3467 = vld [vmem:[%s3 + $0x2d0] sm:$0xff]
      %v3468 = vld [vmem:[%s3 + $0x2d8] sm:$0xff]
      %v3469 = vld [vmem:[%s3 + $0x2e0] sm:$0xff]
      %v3470 = vld [vmem:[%s3 + $0x2e8] sm:$0xff]
      %v3471 = vld [vmem:[%s3 + $0x2f0] sm:$0xff]
      %v3472 = vld [vmem:[%s3 + $0x2f8] sm:$0xff]
      %v3473 = vld [vmem:[%s3 + $0x300] sm:$0xff]
      %v3474 = vld [vmem:[%s3 + $0x308] sm:$0xff]
      %v3475 = vld [vmem:[%s3 + $0x310] sm:$0xff]
      %v3476 = vld [vmem:[%s3 + $0x318] sm:$0xff]
      %v3477 = vld [vmem:[%s3 + $0x320] sm:$0xff]
      %v3478 = vld [vmem:[%s3 + $0x328] sm:$0xff]
      %v3479 = vld [vmem:[%s3 + $0x330] sm:$0xff]
      %v3480 = vld [vmem:[%s3 + $0x338] sm:$0xff]
      %v3481 = vld [vmem:[%s3 + $0x340] sm:$0xff]
      %v3482 = vld [vmem:[%s3 + $0x348] sm:$0xff]
      %v3483 = vld [vmem:[%s3 + $0x350] sm:$0xff]
      %v3484 = vld [vmem:[%s3 + $0x358] sm:$0xff]
      %v3485 = vld [vmem:[%s3 + $0x360] sm:$0xff]
      %v3486 = vld [vmem:[%s3 + $0x368] sm:$0xff]
      %v3487 = vld [vmem:[%s3 + $0x370] sm:$0xff]
      %v3488 = vld [vmem:[%s3 + $0x378] sm:$0xff]
      %v3489 = vld [vmem:[%s3 + $0x380] sm:$0xff]
      %v3490 = vld [vmem:[%s3 + $0x388] sm:$0xff]
      %v3491 = vld [vmem:[%s3 + $0x390] sm:$0xff]
      %v3492 = vld [vmem:[%s3 + $0x398] sm:$0xff]
      %v3493 = vld [vmem:[%s3 + $0x3a0] sm:$0xff]
      %v3494 = vld [vmem:[%s3 + $0x3a8] sm:$0xff]
      %v3495 = vld [vmem:[%s3 + $0x3b0] sm:$0xff]
      %v3496 = vld [vmem:[%s3 + $0x3b8] sm:$0xff]
      %v3497 = vld [vmem:[%s3 + $0x3c0] sm:$0xff]
      %v3498 = vld [vmem:[%s3 + $0x3c8] sm:$0xff]
      %v3499 = vld [vmem:[%s3 + $0x3d0] sm:$0xff]
      %v3500 = vld [vmem:[%s3 + $0x3d8] sm:$0xff]
      %v3501 = vld [vmem:[%s3 + $0x3e0] sm:$0xff]
      %v3502 = vld [vmem:[%s3 + $0x3e8] sm:$0xff]
      %v3503 = vld [vmem:[%s3 + $0x3f0] sm:$0xff]
      %v3504 = vld [vmem:[%s3 + $0x3f8] sm:$0xff]
      %v3506 = vsel %vm512, %v3345, 0
      %v3509 = vsel %vm512, %v3346, 0
      %v3512 = vsel %vm512, %v3347, 0
      %v3515 = vsel %vm512, %v3348, 0
      %v3518 = vsel %vm512, %v3349, 0
      %v3521 = vsel %vm512, %v3350, 0
      %v3524 = vsel %vm512, %v3351, 0
      %v3527 = vsel %vm512, %v3352, 0
      %v3530 = vsel %vm512, %v3353, 0
      %v3533 = vsel %vm512, %v3354, 0
      %v3536 = vsel %vm512, %v3355, 0
      %v3539 = vsel %vm512, %v3356, 0
      %v3542 = vsel %vm512, %v3357, 0
      %v3545 = vsel %vm512, %v3358, 0
      %v3548 = vsel %vm512, %v3359, 0
      %v3551 = vsel %vm512, %v3360, 0
      %v3554 = vsel %vm512, %v3361, 0
      %v3557 = vsel %vm512, %v3362, 0
      %v3560 = vsel %vm512, %v3363, 0
      %v3563 = vsel %vm512, %v3364, 0
      %v3566 = vsel %vm512, %v3365, 0
      %v3569 = vsel %vm512, %v3366, 0
      %v3572 = vsel %vm512, %v3367, 0
      %v3575 = vsel %vm512, %v3368, 0
      %v3578 = vsel %vm512, %v3369, 0
      %v3581 = vsel %vm512, %v3370, 0
      %v3584 = vsel %vm512, %v3371, 0
      %v3587 = vsel %vm512, %v3372, 0
      %v3590 = vsel %vm512, %v3373, 0
      %v3593 = vsel %vm512, %v3374, 0
      %v3596 = vsel %vm512, %v3375, 0
      %v3599 = vsel %vm512, %v3376, 0
      %3601 = vmatprep.subr.mxu0 0.0
      %3602 = vmatpush1.msra.mxu0 0.0
      %3603 = vmatprep.subr.mxu0 0.0
      %3604 = vmatpush1.msra.mxu0 0.0
      %3605 = vmatprep.subr.mxu0 0.0
      %3606 = vmatpush1.msra.mxu0 0.0
      %3607 = vmatprep.subr.mxu0 0.0
      %3608 = vmatpush1.msra.mxu0 0.0
      %3609 = vmatprep.subr.mxu0 0.0
      %3610 = vmatpush1.msra.mxu0 0.0
      %3611 = vmatprep.subr.mxu0 0.0
      %3612 = vmatpush1.msra.mxu0 0.0
      %3613 = vmatprep.subr.mxu0 0.0
      %3614 = vmatpush1.msra.mxu0 0.0
      %3615 = vmatprep.subr.mxu0 0.0
      %3616 = vmatpush1.msra.mxu0 0.0
      %3617 = vmatprep.subr.mxu0 0.0
      %3618 = vmatpush1.msra.mxu0 0.0
      %3619 = vmatprep.subr.mxu0 0.0
      %3620 = vmatpush1.msra.mxu0 0.0
      %3621 = vmatprep.subr.mxu0 0.0
      %3622 = vmatpush1.msra.mxu0 0.0
      %3623 = vmatprep.subr.mxu0 0.0
      %3624 = vmatpush1.msra.mxu0 0.0
      %3625 = vmatprep.subr.mxu0 0.0
      %3626 = vmatpush1.msra.mxu0 %v411
      %3627 = vmatprep.subr.mxu0 0.0
      %3628 = vmatpush1.msra.mxu0 %v410
      %3629 = vmatprep.subr.mxu0 0.0
      %3630 = vmatpush1.msra.mxu0 %v409
      %3631 = vmatprep.subr.mxu0 0.0
      %3632 = vmatpush1.msra.mxu0 %v408
      %3633 = vmatprep.subr.mxu0 0.0
      %3634 = vmatpush2.msra.mxu0 0.0
      %3635 = vmatprep.subr.mxu0 0.0
      %3636 = vmatpush2.msra.mxu0 0.0
      %3637 = vmatprep.subr.mxu0 0.0
      %3638 = vmatpush2.msra.mxu0 0.0
      %3639 = vmatprep.subr.mxu0 0.0
      %3640 = vmatpush2.msra.mxu0 0.0
      %3641 = vmatprep.subr.mxu0 0.0
      %3642 = vmatpush2.msra.mxu0 0.0
      %3643 = vmatprep.subr.mxu0 0.0
      %3644 = vmatpush2.msra.mxu0 0.0
      %3645 = vmatprep.subr.mxu0 0.0
      %3646 = vmatpush2.msra.mxu0 0.0
      %3647 = vmatprep.subr.mxu0 0.0
      %3648 = vmatpush2.msra.mxu0 0.0
      %3649 = vmatprep.subr.mxu0 0.0
      %3650 = vmatpush2.msra.mxu0 0.0
      %3651 = vmatprep.subr.mxu0 0.0
      %3652 = vmatpush2.msra.mxu0 0.0
      %3653 = vmatprep.subr.mxu0 0.0
      %3654 = vmatpush2.msra.mxu0 0.0
      %3655 = vmatprep.subr.mxu0 0.0
      %3656 = vmatpush2.msra.mxu0 0.0
      %3657 = vmatprep.subr.mxu0 0.0
      %3658 = vmatpush2.msra.mxu0 0.0
      %3659 = vmatprep.subr.mxu0 0.0
      %3660 = vmatpush2.msra.mxu0 0.0
      %3661 = vmatprep.subr.mxu0 0.0
      %3662 = vmatpush2.msra.mxu0 0.0
      %3663 = vmatprep.subr.mxu0 0.0
      %3664 = vmatpush2.msra.mxu0 0.0
      %3665 = vmatprep.mubr.f32.mxu0 0.0
      %3666 = vmatmul.mubr.f32.gmra.mxu0 %v3506
      %v3667 = vpop.f32.mrf.mxu0
      %v3668 = vadd.f32 0.0, %v3667
      %v3669 = vpop.f32.mrf.mxu0
      %3670 = vmatprep.mubr.f32.mxu0 0.0
      %3671 = vmatmul.mubr.f32.gmra.mxu0 %v3509
      %v3672 = vpop.f32.mrf.mxu0
      %v3673 = vadd.f32 0.0, %v3672
      %v3674 = vpop.f32.mrf.mxu0
      %3675 = vmatprep.mubr.f32.mxu0 0.0
      %3676 = vmatmul.mubr.f32.gmra.mxu0 %v3512
      %v3677 = vpop.f32.mrf.mxu0
      %v3678 = vadd.f32 0.0, %v3677
      %v3679 = vpop.f32.mrf.mxu0
      %3680 = vmatprep.mubr.f32.mxu0 0.0
      %3681 = vmatmul.mubr.f32.gmra.mxu0 %v3515
      %v3682 = vpop.f32.mrf.mxu0
      %v3683 = vadd.f32 0.0, %v3682
      %v3684 = vpop.f32.mrf.mxu0
      %3685 = vmatprep.mubr.f32.mxu0 0.0
      %3686 = vmatmul.mubr.f32.gmra.mxu0 %v3518
      %v3687 = vpop.f32.mrf.mxu0
      %v3688 = vadd.f32 0.0, %v3687
      %v3689 = vpop.f32.mrf.mxu0
      %3690 = vmatprep.mubr.f32.mxu0 0.0
      %3691 = vmatmul.mubr.f32.gmra.mxu0 %v3521
      %v3692 = vpop.f32.mrf.mxu0
      %v3693 = vadd.f32 0.0, %v3692
      %v3694 = vpop.f32.mrf.mxu0
      %3695 = vmatprep.mubr.f32.mxu0 0.0
      %3696 = vmatmul.mubr.f32.gmra.mxu0 %v3524
      %v3697 = vpop.f32.mrf.mxu0
      %v3698 = vadd.f32 0.0, %v3697
      %v3699 = vpop.f32.mrf.mxu0
      %3700 = vmatprep.mubr.f32.mxu0 0.0
      %3701 = vmatmul.mubr.f32.gmra.mxu0 %v3527
      %v3702 = vpop.f32.mrf.mxu0
      %v3703 = vadd.f32 0.0, %v3702
      %v3704 = vpop.f32.mrf.mxu0
      %3705 = vmatprep.mubr.f32.mxu0 0.0
      %3706 = vmatmul.mubr.f32.gmra.mxu0 %v3530
      %v3707 = vpop.f32.mrf.mxu0
      %v3708 = vadd.f32 0.0, %v3707
      %v3709 = vpop.f32.mrf.mxu0
      %3710 = vmatprep.mubr.f32.mxu0 0.0
      %3711 = vmatmul.mubr.f32.gmra.mxu0 %v3533
      %v3712 = vpop.f32.mrf.mxu0
      %v3713 = vadd.f32 0.0, %v3712
      %v3714 = vpop.f32.mrf.mxu0
      %3715 = vmatprep.mubr.f32.mxu0 0.0
      %3716 = vmatmul.mubr.f32.gmra.mxu0 %v3536
      %v3717 = vpop.f32.mrf.mxu0
      %v3718 = vadd.f32 0.0, %v3717
      %v3719 = vpop.f32.mrf.mxu0
      %3720 = vmatprep.mubr.f32.mxu0 0.0
      %3721 = vmatmul.mubr.f32.gmra.mxu0 %v3539
      %v3722 = vpop.f32.mrf.mxu0
      %v3723 = vadd.f32 0.0, %v3722
      %v3724 = vpop.f32.mrf.mxu0
      %3725 = vmatprep.mubr.f32.mxu0 0.0
      %3726 = vmatmul.mubr.f32.gmra.mxu0 %v3542
      %v3727 = vpop.f32.mrf.mxu0
      %v3728 = vadd.f32 0.0, %v3727
      %v3729 = vpop.f32.mrf.mxu0
      %3730 = vmatprep.mubr.f32.mxu0 0.0
      %3731 = vmatmul.mubr.f32.gmra.mxu0 %v3545
      %v3732 = vpop.f32.mrf.mxu0
      %v3733 = vadd.f32 0.0, %v3732
      %v3734 = vpop.f32.mrf.mxu0
      %3735 = vmatprep.mubr.f32.mxu0 0.0
      %3736 = vmatmul.mubr.f32.gmra.mxu0 %v3548
      %v3737 = vpop.f32.mrf.mxu0
      %v3738 = vadd.f32 0.0, %v3737
      %v3739 = vpop.f32.mrf.mxu0
      %3740 = vmatprep.mubr.f32.mxu0 0.0
      %3741 = vmatmul.mubr.f32.gmra.mxu0 %v3551
      %v3742 = vpop.f32.mrf.mxu0
      %v3743 = vadd.f32 0.0, %v3742
      %v3744 = vpop.f32.mrf.mxu0
      %3745 = vmatprep.mubr.f32.mxu0 0.0
      %3746 = vmatmul.mubr.f32.gmra.mxu0 %v3554
      %v3747 = vpop.f32.mrf.mxu0
      %v3748 = vadd.f32 0.0, %v3747
      %v3749 = vpop.f32.mrf.mxu0
      %3750 = vmatprep.mubr.f32.mxu0 0.0
      %3751 = vmatmul.mubr.f32.gmra.mxu0 %v3557
      %v3752 = vpop.f32.mrf.mxu0
      %v3753 = vadd.f32 0.0, %v3752
      %v3754 = vpop.f32.mrf.mxu0
      %3755 = vmatprep.mubr.f32.mxu0 0.0
      %3756 = vmatmul.mubr.f32.gmra.mxu0 %v3560
      %v3757 = vpop.f32.mrf.mxu0
      %v3758 = vadd.f32 0.0, %v3757
      %v3759 = vpop.f32.mrf.mxu0
      %3760 = vmatprep.mubr.f32.mxu0 0.0
      %3761 = vmatmul.mubr.f32.gmra.mxu0 %v3563
      %v3762 = vpop.f32.mrf.mxu0
      %v3763 = vadd.f32 0.0, %v3762
      %v3764 = vpop.f32.mrf.mxu0
      %3765 = vmatprep.mubr.f32.mxu0 0.0
      %3766 = vmatmul.mubr.f32.gmra.mxu0 %v3566
      %v3767 = vpop.f32.mrf.mxu0
      %v3768 = vadd.f32 0.0, %v3767
      %v3769 = vpop.f32.mrf.mxu0
      %3770 = vmatprep.mubr.f32.mxu0 0.0
      %3771 = vmatmul.mubr.f32.gmra.mxu0 %v3569
      %v3772 = vpop.f32.mrf.mxu0
      %v3773 = vadd.f32 0.0, %v3772
      %v3774 = vpop.f32.mrf.mxu0
      %3775 = vmatprep.mubr.f32.mxu0 0.0
      %3776 = vmatmul.mubr.f32.gmra.mxu0 %v3572
      %v3777 = vpop.f32.mrf.mxu0
      %v3778 = vadd.f32 0.0, %v3777
      %v3779 = vpop.f32.mrf.mxu0
      %3780 = vmatprep.mubr.f32.mxu0 0.0
      %3781 = vmatmul.mubr.f32.gmra.mxu0 %v3575
      %v3782 = vpop.f32.mrf.mxu0
      %v3783 = vadd.f32 0.0, %v3782
      %v3784 = vpop.f32.mrf.mxu0
      %3785 = vmatprep.mubr.f32.mxu0 0.0
      %3786 = vmatmul.mubr.f32.gmra.mxu0 %v3578
      %v3787 = vpop.f32.mrf.mxu0
      %v3788 = vadd.f32 0.0, %v3787
      %v3789 = vpop.f32.mrf.mxu0
      %3790 = vmatprep.mubr.f32.mxu0 0.0
      %3791 = vmatmul.mubr.f32.gmra.mxu0 %v3581
      %v3792 = vpop.f32.mrf.mxu0
      %v3793 = vadd.f32 0.0, %v3792
      %v3794 = vpop.f32.mrf.mxu0
      %3795 = vmatprep.mubr.f32.mxu0 0.0
      %3796 = vmatmul.mubr.f32.gmra.mxu0 %v3584
      %v3797 = vpop.f32.mrf.mxu0
      %v3798 = vadd.f32 0.0, %v3797
      %v3799 = vpop.f32.mrf.mxu0
      %3800 = vmatprep.mubr.f32.mxu0 0.0
      %3801 = vmatmul.mubr.f32.gmra.mxu0 %v3587
      %v3802 = vpop.f32.mrf.mxu0
      %v3803 = vadd.f32 0.0, %v3802
      %v3804 = vpop.f32.mrf.mxu0
      %3805 = vmatprep.mubr.f32.mxu0 0.0
      %3806 = vmatmul.mubr.f32.gmra.mxu0 %v3590
      %v3807 = vpop.f32.mrf.mxu0
      %v3808 = vadd.f32 0.0, %v3807
      %v3809 = vpop.f32.mrf.mxu0
      %3810 = vmatprep.mubr.f32.mxu0 0.0
      %3811 = vmatmul.mubr.f32.gmra.mxu0 %v3593
      %v3812 = vpop.f32.mrf.mxu0
      %v3813 = vadd.f32 0.0, %v3812
      %v3814 = vpop.f32.mrf.mxu0
      %3815 = vmatprep.mubr.f32.mxu0 0.0
      %3816 = vmatmul.mubr.f32.gmra.mxu0 %v3596
      %v3817 = vpop.f32.mrf.mxu0
      %v3818 = vadd.f32 0.0, %v3817
      %v3819 = vpop.f32.mrf.mxu0
      %3820 = vmatprep.mubr.f32.mxu0 0.0
      %3821 = vmatmul.mubr.f32.gmra.mxu0 %v3599
      %v3822 = vpop.f32.mrf.mxu0
      %v3823 = vadd.f32 0.0, %v3822
      %v3824 = vpop.f32.mrf.mxu0
      %3825 = vdwg.mxu0
      %v3827 = vsel %vm512, %v336, 0
      %v3830 = vsel %vm512, %v337, 0
      %v3833 = vsel %vm512, %v338, 0
      %v3836 = vsel %vm512, %v339, 0
      %v3839 = vsel %vm512, %v340, 0
      %v3842 = vsel %vm512, %v341, 0
      %v3845 = vsel %vm512, %v342, 0
      %v3848 = vsel %vm512, %v343, 0
      %v3851 = vsel %vm512, %v344, 0
      %v3854 = vsel %vm512, %v345, 0
      %v3857 = vsel %vm512, %v346, 0
      %v3860 = vsel %vm512, %v347, 0
      %v3863 = vsel %vm512, %v348, 0
      %v3866 = vsel %vm512, %v349, 0
      %v3869 = vsel %vm512, %v350, 0
      %v3872 = vsel %vm512, %v351, 0
      %v3875 = vsel %vm512, %v352, 0
      %v3878 = vsel %vm512, %v353, 0
      %v3881 = vsel %vm512, %v354, 0
      %v3884 = vsel %vm512, %v355, 0
      %v3887 = vsel %vm512, %v356, 0
      %v3890 = vsel %vm512, %v357, 0
      %v3893 = vsel %vm512, %v358, 0
      %v3896 = vsel %vm512, %v359, 0
      %v3899 = vsel %vm512, %v360, 0
      %v3902 = vsel %vm512, %v361, 0
      %v3905 = vsel %vm512, %v362, 0
      %v3908 = vsel %vm512, %v363, 0
      %v3911 = vsel %vm512, %v364, 0
      %v3914 = vsel %vm512, %v365, 0
      %v3917 = vsel %vm512, %v366, 0
      %v3920 = vsel %vm512, %v367, 0
      %v3923 = vsel %vm512, %v368, 0
      %v3926 = vsel %vm512, %v369, 0
      %v3929 = vsel %vm512, %v370, 0
      %v3932 = vsel %vm512, %v371, 0
      %v3935 = vsel %vm512, %v372, 0
      %v3938 = vsel %vm512, %v373, 0
      %v3941 = vsel %vm512, %v374, 0
      %v3944 = vsel %vm512, %v375, 0
      %v3947 = vsel %vm512, %v376, 0
      %v3950 = vsel %vm512, %v377, 0
      %v3953 = vsel %vm512, %v378, 0
      %v3956 = vsel %vm512, %v379, 0
      %v3959 = vsel %vm512, %v380, 0
      %v3962 = vsel %vm512, %v381, 0
      %v3965 = vsel %vm512, %v382, 0
      %v3968 = vsel %vm512, %v383, 0
      %v3971 = vsel %vm512, %v384, 0
      %v3974 = vsel %vm512, %v385, 0
      %v3977 = vsel %vm512, %v386, 0
      %v3980 = vsel %vm512, %v387, 0
      %v3983 = vsel %vm512, %v388, 0
      %v3986 = vsel %vm512, %v389, 0
      %v3989 = vsel %vm512, %v390, 0
      %v3992 = vsel %vm512, %v391, 0
      %v3995 = vsel %vm512, %v392, 0
      %v3998 = vsel %vm512, %v393, 0
      %v4001 = vsel %vm512, %v394, 0
      %v4004 = vsel %vm512, %v395, 0
      %v4007 = vsel %vm512, %v396, 0
      %v4010 = vsel %vm512, %v397, 0
      %v4013 = vsel %vm512, %v398, 0
      %v4016 = vsel %vm512, %v399, 0
      %4018 = vmatprep.subr.mxu0 0.0
      %4019 = vmatpush1.msra.mxu0 0.0
      %4020 = vmatprep.subr.mxu0 0.0
      %4021 = vmatpush1.msra.mxu0 0.0
      %4022 = vmatprep.subr.mxu0 0.0
      %4023 = vmatpush1.msra.mxu0 0.0
      %4024 = vmatprep.subr.mxu0 0.0
      %4025 = vmatpush1.msra.mxu0 0.0
      %4026 = vmatprep.subr.mxu0 0.0
      %4027 = vmatpush1.msra.mxu0 0.0
      %4028 = vmatprep.subr.mxu0 0.0
      %4029 = vmatpush1.msra.mxu0 0.0
      %4030 = vmatprep.subr.mxu0 0.0
      %4031 = vmatpush1.msra.mxu0 0.0
      %4032 = vmatprep.subr.mxu0 0.0
      %4033 = vmatpush1.msra.mxu0 0.0
      %4034 = vmatprep.subr.mxu0 0.0
      %4035 = vmatpush1.msra.mxu0 0.0
      %4036 = vmatprep.subr.mxu0 0.0
      %4037 = vmatpush1.msra.mxu0 0.0
      %4038 = vmatprep.subr.mxu0 0.0
      %4039 = vmatpush1.msra.mxu0 0.0
      %4040 = vmatprep.subr.mxu0 0.0
      %4041 = vmatpush1.msra.mxu0 0.0
      %4042 = vmatprep.subr.mxu0 0.0
      %4043 = vmatpush1.msra.mxu0 %v415
      %4044 = vmatprep.subr.mxu0 0.0
      %4045 = vmatpush1.msra.mxu0 %v414
      %4046 = vmatprep.subr.mxu0 0.0
      %4047 = vmatpush1.msra.mxu0 %v413
      %4048 = vmatprep.subr.mxu0 0.0
      %4049 = vmatpush1.msra.mxu0 %v412
      %4050 = vmatprep.subr.mxu0 0.0
      %4051 = vmatpush2.msra.mxu0 0.0
      %4052 = vmatprep.subr.mxu0 0.0
      %4053 = vmatpush2.msra.mxu0 0.0
      %4054 = vmatprep.subr.mxu0 0.0
      %4055 = vmatpush2.msra.mxu0 0.0
      %4056 = vmatprep.subr.mxu0 0.0
      %4057 = vmatpush2.msra.mxu0 0.0
      %4058 = vmatprep.subr.mxu0 0.0
      %4059 = vmatpush2.msra.mxu0 0.0
      %4060 = vmatprep.subr.mxu0 0.0
      %4061 = vmatpush2.msra.mxu0 0.0
      %4062 = vmatprep.subr.mxu0 0.0
      %4063 = vmatpush2.msra.mxu0 0.0
      %4064 = vmatprep.subr.mxu0 0.0
      %4065 = vmatpush2.msra.mxu0 0.0
      %4066 = vmatprep.subr.mxu0 0.0
      %4067 = vmatpush2.msra.mxu0 0.0
      %4068 = vmatprep.subr.mxu0 0.0
      %4069 = vmatpush2.msra.mxu0 0.0
      %4070 = vmatprep.subr.mxu0 0.0
      %4071 = vmatpush2.msra.mxu0 0.0
      %4072 = vmatprep.subr.mxu0 0.0
      %4073 = vmatpush2.msra.mxu0 0.0
      %4074 = vmatprep.subr.mxu0 0.0
      %4075 = vmatpush2.msra.mxu0 0.0
      %4076 = vmatprep.subr.mxu0 0.0
      %4077 = vmatpush2.msra.mxu0 0.0
      %4078 = vmatprep.subr.mxu0 0.0
      %4079 = vmatpush2.msra.mxu0 0.0
      %4080 = vmatprep.subr.mxu0 0.0
      %4081 = vmatpush2.msra.mxu0 0.0
      %4082 = vmatprep.mubr.f32.mxu0 0.0
      %4083 = vmatmul.mubr.f32.gmra.mxu0 %v3827
      %v4084 = vpop.f32.mrf.mxu0
      %v4085 = vadd.f32 0.0, %v4084
      %v4086 = vpop.f32.mrf.mxu0
      %4087 = vmatprep.mubr.f32.mxu0 0.0
      %4088 = vmatmul.mubr.f32.gmra.mxu0 %v3830
      %v4089 = vpop.f32.mrf.mxu0
      %v4090 = vadd.f32 0.0, %v4089
      %v4091 = vpop.f32.mrf.mxu0
      %4092 = vmatprep.mubr.f32.mxu0 0.0
      %4093 = vmatmul.mubr.f32.gmra.mxu0 %v3833
      %v4094 = vpop.f32.mrf.mxu0
      %v4095 = vadd.f32 0.0, %v4094
      %v4096 = vpop.f32.mrf.mxu0
      %4097 = vmatprep.mubr.f32.mxu0 0.0
      %4098 = vmatmul.mubr.f32.gmra.mxu0 %v3836
      %v4099 = vpop.f32.mrf.mxu0
      %v4100 = vadd.f32 0.0, %v4099
      %v4101 = vpop.f32.mrf.mxu0
      %4102 = vmatprep.mubr.f32.mxu0 0.0
      %4103 = vmatmul.mubr.f32.gmra.mxu0 %v3839
      %v4104 = vpop.f32.mrf.mxu0
      %v4105 = vadd.f32 0.0, %v4104
      %v4106 = vpop.f32.mrf.mxu0
      %4107 = vmatprep.mubr.f32.mxu0 0.0
      %4108 = vmatmul.mubr.f32.gmra.mxu0 %v3842
      %v4109 = vpop.f32.mrf.mxu0
      %v4110 = vadd.f32 0.0, %v4109
      %v4111 = vpop.f32.mrf.mxu0
      %4112 = vmatprep.mubr.f32.mxu0 0.0
      %4113 = vmatmul.mubr.f32.gmra.mxu0 %v3845
      %v4114 = vpop.f32.mrf.mxu0
      %v4115 = vadd.f32 0.0, %v4114
      %v4116 = vpop.f32.mrf.mxu0
      %4117 = vmatprep.mubr.f32.mxu0 0.0
      %4118 = vmatmul.mubr.f32.gmra.mxu0 %v3848
      %v4119 = vpop.f32.mrf.mxu0
      %v4120 = vadd.f32 0.0, %v4119
      %v4121 = vpop.f32.mrf.mxu0
      %4122 = vmatprep.mubr.f32.mxu0 0.0
      %4123 = vmatmul.mubr.f32.gmra.mxu0 %v3851
      %v4124 = vpop.f32.mrf.mxu0
      %v4125 = vadd.f32 0.0, %v4124
      %v4126 = vpop.f32.mrf.mxu0
      %4127 = vmatprep.mubr.f32.mxu0 0.0
      %4128 = vmatmul.mubr.f32.gmra.mxu0 %v3854
      %v4129 = vpop.f32.mrf.mxu0
      %v4130 = vadd.f32 0.0, %v4129
      %v4131 = vpop.f32.mrf.mxu0
      %4132 = vmatprep.mubr.f32.mxu0 0.0
      %4133 = vmatmul.mubr.f32.gmra.mxu0 %v3857
      %v4134 = vpop.f32.mrf.mxu0
      %v4135 = vadd.f32 0.0, %v4134
      %v4136 = vpop.f32.mrf.mxu0
      %4137 = vmatprep.mubr.f32.mxu0 0.0
      %4138 = vmatmul.mubr.f32.gmra.mxu0 %v3860
      %v4139 = vpop.f32.mrf.mxu0
      %v4140 = vadd.f32 0.0, %v4139
      %v4141 = vpop.f32.mrf.mxu0
      %4142 = vmatprep.mubr.f32.mxu0 0.0
      %4143 = vmatmul.mubr.f32.gmra.mxu0 %v3863
      %v4144 = vpop.f32.mrf.mxu0
      %v4145 = vadd.f32 0.0, %v4144
      %v4146 = vpop.f32.mrf.mxu0
      %4147 = vmatprep.mubr.f32.mxu0 0.0
      %4148 = vmatmul.mubr.f32.gmra.mxu0 %v3866
      %v4149 = vpop.f32.mrf.mxu0
      %v4150 = vadd.f32 0.0, %v4149
      %v4151 = vpop.f32.mrf.mxu0
      %4152 = vmatprep.mubr.f32.mxu0 0.0
      %4153 = vmatmul.mubr.f32.gmra.mxu0 %v3869
      %v4154 = vpop.f32.mrf.mxu0
      %v4155 = vadd.f32 0.0, %v4154
      %v4156 = vpop.f32.mrf.mxu0
      %4157 = vmatprep.mubr.f32.mxu0 0.0
      %4158 = vmatmul.mubr.f32.gmra.mxu0 %v3872
      %v4159 = vpop.f32.mrf.mxu0
      %v4160 = vadd.f32 0.0, %v4159
      %v4161 = vpop.f32.mrf.mxu0
      %4162 = vmatprep.mubr.f32.mxu0 0.0
      %4163 = vmatmul.mubr.f32.gmra.mxu0 %v3875
      %v4164 = vpop.f32.mrf.mxu0
      %v4165 = vadd.f32 0.0, %v4164
      %v4166 = vpop.f32.mrf.mxu0
      %4167 = vmatprep.mubr.f32.mxu0 0.0
      %4168 = vmatmul.mubr.f32.gmra.mxu0 %v3878
      %v4169 = vpop.f32.mrf.mxu0
      %v4170 = vadd.f32 0.0, %v4169
      %v4171 = vpop.f32.mrf.mxu0
      %4172 = vmatprep.mubr.f32.mxu0 0.0
      %4173 = vmatmul.mubr.f32.gmra.mxu0 %v3881
      %v4174 = vpop.f32.mrf.mxu0
      %v4175 = vadd.f32 0.0, %v4174
      %v4176 = vpop.f32.mrf.mxu0
      %4177 = vmatprep.mubr.f32.mxu0 0.0
      %4178 = vmatmul.mubr.f32.gmra.mxu0 %v3884
      %v4179 = vpop.f32.mrf.mxu0
      %v4180 = vadd.f32 0.0, %v4179
      %v4181 = vpop.f32.mrf.mxu0
      %4182 = vmatprep.mubr.f32.mxu0 0.0
      %4183 = vmatmul.mubr.f32.gmra.mxu0 %v3887
      %v4184 = vpop.f32.mrf.mxu0
      %v4185 = vadd.f32 0.0, %v4184
      %v4186 = vpop.f32.mrf.mxu0
      %4187 = vmatprep.mubr.f32.mxu0 0.0
      %4188 = vmatmul.mubr.f32.gmra.mxu0 %v3890
      %v4189 = vpop.f32.mrf.mxu0
      %v4190 = vadd.f32 0.0, %v4189
      %v4191 = vpop.f32.mrf.mxu0
      %4192 = vmatprep.mubr.f32.mxu0 0.0
      %4193 = vmatmul.mubr.f32.gmra.mxu0 %v3893
      %v4194 = vpop.f32.mrf.mxu0
      %v4195 = vadd.f32 0.0, %v4194
      %v4196 = vpop.f32.mrf.mxu0
      %4197 = vmatprep.mubr.f32.mxu0 0.0
      %4198 = vmatmul.mubr.f32.gmra.mxu0 %v3896
      %v4199 = vpop.f32.mrf.mxu0
      %v4200 = vadd.f32 0.0, %v4199
      %v4201 = vpop.f32.mrf.mxu0
      %4202 = vmatprep.mubr.f32.mxu0 0.0
      %4203 = vmatmul.mubr.f32.gmra.mxu0 %v3899
      %v4204 = vpop.f32.mrf.mxu0
      %v4205 = vadd.f32 0.0, %v4204
      %v4206 = vpop.f32.mrf.mxu0
      %4207 = vmatprep.mubr.f32.mxu0 0.0
      %4208 = vmatmul.mubr.f32.gmra.mxu0 %v3902
      %v4209 = vpop.f32.mrf.mxu0
      %v4210 = vadd.f32 0.0, %v4209
      %v4211 = vpop.f32.mrf.mxu0
      %4212 = vmatprep.mubr.f32.mxu0 0.0
      %4213 = vmatmul.mubr.f32.gmra.mxu0 %v3905
      %v4214 = vpop.f32.mrf.mxu0
      %v4215 = vadd.f32 0.0, %v4214
      %v4216 = vpop.f32.mrf.mxu0
      %4217 = vmatprep.mubr.f32.mxu0 0.0
      %4218 = vmatmul.mubr.f32.gmra.mxu0 %v3908
      %v4219 = vpop.f32.mrf.mxu0
      %v4220 = vadd.f32 0.0, %v4219
      %v4221 = vpop.f32.mrf.mxu0
      %4222 = vmatprep.mubr.f32.mxu0 0.0
      %4223 = vmatmul.mubr.f32.gmra.mxu0 %v3911
      %v4224 = vpop.f32.mrf.mxu0
      %v4225 = vadd.f32 0.0, %v4224
      %v4226 = vpop.f32.mrf.mxu0
      %4227 = vmatprep.mubr.f32.mxu0 0.0
      %4228 = vmatmul.mubr.f32.gmra.mxu0 %v3914
      %v4229 = vpop.f32.mrf.mxu0
      %v4230 = vadd.f32 0.0, %v4229
      %v4231 = vpop.f32.mrf.mxu0
      %4232 = vmatprep.mubr.f32.mxu0 0.0
      %4233 = vmatmul.mubr.f32.gmra.mxu0 %v3917
      %v4234 = vpop.f32.mrf.mxu0
      %v4235 = vadd.f32 0.0, %v4234
      %v4236 = vpop.f32.mrf.mxu0
      %4237 = vmatprep.mubr.f32.mxu0 0.0
      %4238 = vmatmul.mubr.f32.gmra.mxu0 %v3920
      %v4239 = vpop.f32.mrf.mxu0
      %v4240 = vadd.f32 0.0, %v4239
      %v4241 = vpop.f32.mrf.mxu0
      %4242 = vmatprep.mubr.f32.mxu0 0.0
      %4243 = vmatmul.mubr.f32.gmra.mxu0 %v3923
      %v4244 = vpop.f32.mrf.mxu0
      %v4245 = vadd.f32 0.0, %v4244
      %v4246 = vpop.f32.mrf.mxu0
      %4247 = vmatprep.mubr.f32.mxu0 0.0
      %4248 = vmatmul.mubr.f32.gmra.mxu0 %v3926
      %v4249 = vpop.f32.mrf.mxu0
      %v4250 = vadd.f32 0.0, %v4249
      %v4251 = vpop.f32.mrf.mxu0
      %4252 = vmatprep.mubr.f32.mxu0 0.0
      %4253 = vmatmul.mubr.f32.gmra.mxu0 %v3929
      %v4254 = vpop.f32.mrf.mxu0
      %v4255 = vadd.f32 0.0, %v4254
      %v4256 = vpop.f32.mrf.mxu0
      %4257 = vmatprep.mubr.f32.mxu0 0.0
      %4258 = vmatmul.mubr.f32.gmra.mxu0 %v3932
      %v4259 = vpop.f32.mrf.mxu0
      %v4260 = vadd.f32 0.0, %v4259
      %v4261 = vpop.f32.mrf.mxu0
      %4262 = vmatprep.mubr.f32.mxu0 0.0
      %4263 = vmatmul.mubr.f32.gmra.mxu0 %v3935
      %v4264 = vpop.f32.mrf.mxu0
      %v4265 = vadd.f32 0.0, %v4264
      %v4266 = vpop.f32.mrf.mxu0
      %4267 = vmatprep.mubr.f32.mxu0 0.0
      %4268 = vmatmul.mubr.f32.gmra.mxu0 %v3938
      %v4269 = vpop.f32.mrf.mxu0
      %v4270 = vadd.f32 0.0, %v4269
      %v4271 = vpop.f32.mrf.mxu0
      %4272 = vmatprep.mubr.f32.mxu0 0.0
      %4273 = vmatmul.mubr.f32.gmra.mxu0 %v3941
      %v4274 = vpop.f32.mrf.mxu0
      %v4275 = vadd.f32 0.0, %v4274
      %v4276 = vpop.f32.mrf.mxu0
      %4277 = vmatprep.mubr.f32.mxu0 0.0
      %4278 = vmatmul.mubr.f32.gmra.mxu0 %v3944
      %v4279 = vpop.f32.mrf.mxu0
      %v4280 = vadd.f32 0.0, %v4279
      %v4281 = vpop.f32.mrf.mxu0
      %4282 = vmatprep.mubr.f32.mxu0 0.0
      %4283 = vmatmul.mubr.f32.gmra.mxu0 %v3947
      %v4284 = vpop.f32.mrf.mxu0
      %v4285 = vadd.f32 0.0, %v4284
      %v4286 = vpop.f32.mrf.mxu0
      %4287 = vmatprep.mubr.f32.mxu0 0.0
      %4288 = vmatmul.mubr.f32.gmra.mxu0 %v3950
      %v4289 = vpop.f32.mrf.mxu0
      %v4290 = vadd.f32 0.0, %v4289
      %v4291 = vpop.f32.mrf.mxu0
      %4292 = vmatprep.mubr.f32.mxu0 0.0
      %4293 = vmatmul.mubr.f32.gmra.mxu0 %v3953
      %v4294 = vpop.f32.mrf.mxu0
      %v4295 = vadd.f32 0.0, %v4294
      %v4296 = vpop.f32.mrf.mxu0
      %4297 = vmatprep.mubr.f32.mxu0 0.0
      %4298 = vmatmul.mubr.f32.gmra.mxu0 %v3956
      %v4299 = vpop.f32.mrf.mxu0
      %v4300 = vadd.f32 0.0, %v4299
      %v4301 = vpop.f32.mrf.mxu0
      %4302 = vmatprep.mubr.f32.mxu0 0.0
      %4303 = vmatmul.mubr.f32.gmra.mxu0 %v3959
      %v4304 = vpop.f32.mrf.mxu0
      %v4305 = vadd.f32 0.0, %v4304
      %v4306 = vpop.f32.mrf.mxu0
      %4307 = vmatprep.mubr.f32.mxu0 0.0
      %4308 = vmatmul.mubr.f32.gmra.mxu0 %v3962
      %v4309 = vpop.f32.mrf.mxu0
      %v4310 = vadd.f32 0.0, %v4309
      %v4311 = vpop.f32.mrf.mxu0
      %4312 = vmatprep.mubr.f32.mxu0 0.0
      %4313 = vmatmul.mubr.f32.gmra.mxu0 %v3965
      %v4314 = vpop.f32.mrf.mxu0
      %v4315 = vadd.f32 0.0, %v4314
      %v4316 = vpop.f32.mrf.mxu0
      %4317 = vmatprep.mubr.f32.mxu0 0.0
      %4318 = vmatmul.mubr.f32.gmra.mxu0 %v3968
      %v4319 = vpop.f32.mrf.mxu0
      %v4320 = vadd.f32 0.0, %v4319
      %v4321 = vpop.f32.mrf.mxu0
      %4322 = vmatprep.mubr.f32.mxu0 0.0
      %4323 = vmatmul.mubr.f32.gmra.mxu0 %v3971
      %v4324 = vpop.f32.mrf.mxu0
      %v4325 = vadd.f32 0.0, %v4324
      %v4326 = vpop.f32.mrf.mxu0
      %4327 = vmatprep.mubr.f32.mxu0 0.0
      %4328 = vmatmul.mubr.f32.gmra.mxu0 %v3974
      %v4329 = vpop.f32.mrf.mxu0
      %v4330 = vadd.f32 0.0, %v4329
      %v4331 = vpop.f32.mrf.mxu0
      %4332 = vmatprep.mubr.f32.mxu0 0.0
      %4333 = vmatmul.mubr.f32.gmra.mxu0 %v3977
      %v4334 = vpop.f32.mrf.mxu0
      %v4335 = vadd.f32 0.0, %v4334
      %v4336 = vpop.f32.mrf.mxu0
      %4337 = vmatprep.mubr.f32.mxu0 0.0
      %4338 = vmatmul.mubr.f32.gmra.mxu0 %v3980
      %v4339 = vpop.f32.mrf.mxu0
      %v4340 = vadd.f32 0.0, %v4339
      %v4341 = vpop.f32.mrf.mxu0
      %4342 = vmatprep.mubr.f32.mxu0 0.0
      %4343 = vmatmul.mubr.f32.gmra.mxu0 %v3983
      %v4344 = vpop.f32.mrf.mxu0
      %v4345 = vadd.f32 0.0, %v4344
      %v4346 = vpop.f32.mrf.mxu0
      %4347 = vmatprep.mubr.f32.mxu0 0.0
      %4348 = vmatmul.mubr.f32.gmra.mxu0 %v3986
      %v4349 = vpop.f32.mrf.mxu0
      %v4350 = vadd.f32 0.0, %v4349
      %v4351 = vpop.f32.mrf.mxu0
      %4352 = vmatprep.mubr.f32.mxu0 0.0
      %4353 = vmatmul.mubr.f32.gmra.mxu0 %v3989
      %v4354 = vpop.f32.mrf.mxu0
      %v4355 = vadd.f32 0.0, %v4354
      %v4356 = vpop.f32.mrf.mxu0
      %4357 = vmatprep.mubr.f32.mxu0 0.0
      %4358 = vmatmul.mubr.f32.gmra.mxu0 %v3992
      %v4359 = vpop.f32.mrf.mxu0
      %v4360 = vadd.f32 0.0, %v4359
      %v4361 = vpop.f32.mrf.mxu0
      %4362 = vmatprep.mubr.f32.mxu0 0.0
      %4363 = vmatmul.mubr.f32.gmra.mxu0 %v3995
      %v4364 = vpop.f32.mrf.mxu0
      %v4365 = vadd.f32 0.0, %v4364
      %v4366 = vpop.f32.mrf.mxu0
      %4367 = vmatprep.mubr.f32.mxu0 0.0
      %4368 = vmatmul.mubr.f32.gmra.mxu0 %v3998
      %v4369 = vpop.f32.mrf.mxu0
      %v4370 = vadd.f32 0.0, %v4369
      %v4371 = vpop.f32.mrf.mxu0
      %4372 = vmatprep.mubr.f32.mxu0 0.0
      %4373 = vmatmul.mubr.f32.gmra.mxu0 %v4001
      %v4374 = vpop.f32.mrf.mxu0
      %v4375 = vadd.f32 0.0, %v4374
      %v4376 = vpop.f32.mrf.mxu0
      %4377 = vmatprep.mubr.f32.mxu0 0.0
      %4378 = vmatmul.mubr.f32.gmra.mxu0 %v4004
      %v4379 = vpop.f32.mrf.mxu0
      %v4380 = vadd.f32 0.0, %v4379
      %v4381 = vpop.f32.mrf.mxu0
      %4382 = vmatprep.mubr.f32.mxu0 0.0
      %4383 = vmatmul.mubr.f32.gmra.mxu0 %v4007
      %v4384 = vpop.f32.mrf.mxu0
      %v4385 = vadd.f32 0.0, %v4384
      %v4386 = vpop.f32.mrf.mxu0
      %4387 = vmatprep.mubr.f32.mxu0 0.0
      %4388 = vmatmul.mubr.f32.gmra.mxu0 %v4010
      %v4389 = vpop.f32.mrf.mxu0
      %v4390 = vadd.f32 0.0, %v4389
      %v4391 = vpop.f32.mrf.mxu0
      %4392 = vmatprep.mubr.f32.mxu0 0.0
      %4393 = vmatmul.mubr.f32.gmra.mxu0 %v4013
      %v4394 = vpop.f32.mrf.mxu0
      %v4395 = vadd.f32 0.0, %v4394
      %v4396 = vpop.f32.mrf.mxu0
      %4397 = vmatprep.mubr.f32.mxu0 0.0
      %4398 = vmatmul.mubr.f32.gmra.mxu0 %v4016
      %v4399 = vpop.f32.mrf.mxu0
      %v4400 = vadd.f32 0.0, %v4399
      %v4401 = vpop.f32.mrf.mxu0
      %4402 = vdwg.mxu0
      %4403 = vmatprep.subr.mxu0 0.0
      %4404 = vmatpush1.msra.mxu0 0.0
      %4405 = vmatprep.subr.mxu0 0.0
      %4406 = vmatpush1.msra.mxu0 0.0
      %4407 = vmatprep.subr.mxu0 0.0
      %4408 = vmatpush1.msra.mxu0 0.0
      %4409 = vmatprep.subr.mxu0 0.0
      %4410 = vmatpush1.msra.mxu0 0.0
      %4411 = vmatprep.subr.mxu0 0.0
      %4412 = vmatpush1.msra.mxu0 0.0
      %4413 = vmatprep.subr.mxu0 0.0
      %4414 = vmatpush1.msra.mxu0 0.0
      %4415 = vmatprep.subr.mxu0 0.0
      %4416 = vmatpush1.msra.mxu0 0.0
      %4417 = vmatprep.subr.mxu0 0.0
      %4418 = vmatpush1.msra.mxu0 0.0
      %4419 = vmatprep.subr.mxu0 0.0
      %4420 = vmatpush1.msra.mxu0 0.0
      %4421 = vmatprep.subr.mxu0 0.0
      %4422 = vmatpush1.msra.mxu0 0.0
      %4423 = vmatprep.subr.mxu0 0.0
      %4424 = vmatpush1.msra.mxu0 0.0
      %4425 = vmatprep.subr.mxu0 0.0
      %4426 = vmatpush1.msra.mxu0 0.0
      %4427 = vmatprep.subr.mxu0 0.0
      %4428 = vmatpush1.msra.mxu0 %v427
      %4429 = vmatprep.subr.mxu0 0.0
      %4430 = vmatpush1.msra.mxu0 %v426
      %4431 = vmatprep.subr.mxu0 0.0
      %4432 = vmatpush1.msra.mxu0 %v425
      %4433 = vmatprep.subr.mxu0 0.0
      %4434 = vmatpush1.msra.mxu0 %v424
      %4435 = vmatprep.subr.mxu0 0.0
      %4436 = vmatpush2.msra.mxu0 0.0
      %4437 = vmatprep.subr.mxu0 0.0
      %4438 = vmatpush2.msra.mxu0 0.0
      %4439 = vmatprep.subr.mxu0 0.0
      %4440 = vmatpush2.msra.mxu0 0.0
      %4441 = vmatprep.subr.mxu0 0.0
      %4442 = vmatpush2.msra.mxu0 0.0
      %4443 = vmatprep.subr.mxu0 0.0
      %4444 = vmatpush2.msra.mxu0 0.0
      %4445 = vmatprep.subr.mxu0 0.0
      %4446 = vmatpush2.msra.mxu0 0.0
      %4447 = vmatprep.subr.mxu0 0.0
      %4448 = vmatpush2.msra.mxu0 0.0
      %4449 = vmatprep.subr.mxu0 0.0
      %4450 = vmatpush2.msra.mxu0 0.0
      %4451 = vmatprep.subr.mxu0 0.0
      %4452 = vmatpush2.msra.mxu0 0.0
      %4453 = vmatprep.subr.mxu0 0.0
      %4454 = vmatpush2.msra.mxu0 0.0
      %4455 = vmatprep.subr.mxu0 0.0
      %4456 = vmatpush2.msra.mxu0 0.0
      %4457 = vmatprep.subr.mxu0 0.0
      %4458 = vmatpush2.msra.mxu0 0.0
      %4459 = vmatprep.subr.mxu0 0.0
      %4460 = vmatpush2.msra.mxu0 0.0
      %4461 = vmatprep.subr.mxu0 0.0
      %4462 = vmatpush2.msra.mxu0 0.0
      %4463 = vmatprep.subr.mxu0 0.0
      %4464 = vmatpush2.msra.mxu0 0.0
      %4465 = vmatprep.subr.mxu0 0.0
      %4466 = vmatpush2.msra.mxu0 0.0
      %4467 = vmatprep.mubr.f32.mxu0 0.0
      %4468 = vmatmul.mubr.f32.gmra.mxu0 %v3827
      %v4469 = vpop.f32.mrf.mxu0
      %v4470 = vadd.f32 0.0, %v4469
      %v4471 = vpop.f32.mrf.mxu0
      %4472 = vmatprep.mubr.f32.mxu0 0.0
      %4473 = vmatmul.mubr.f32.gmra.mxu0 %v3830
      %v4474 = vpop.f32.mrf.mxu0
      %v4475 = vadd.f32 0.0, %v4474
      %v4476 = vpop.f32.mrf.mxu0
      %4477 = vmatprep.mubr.f32.mxu0 0.0
      %4478 = vmatmul.mubr.f32.gmra.mxu0 %v3833
      %v4479 = vpop.f32.mrf.mxu0
      %v4480 = vadd.f32 0.0, %v4479
      %v4481 = vpop.f32.mrf.mxu0
      %4482 = vmatprep.mubr.f32.mxu0 0.0
      %4483 = vmatmul.mubr.f32.gmra.mxu0 %v3836
      %v4484 = vpop.f32.mrf.mxu0
      %v4485 = vadd.f32 0.0, %v4484
      %v4486 = vpop.f32.mrf.mxu0
      %4487 = vmatprep.mubr.f32.mxu0 0.0
      %4488 = vmatmul.mubr.f32.gmra.mxu0 %v3839
      %v4489 = vpop.f32.mrf.mxu0
      %v4490 = vadd.f32 0.0, %v4489
      %v4491 = vpop.f32.mrf.mxu0
      %4492 = vmatprep.mubr.f32.mxu0 0.0
      %4493 = vmatmul.mubr.f32.gmra.mxu0 %v3842
      %v4494 = vpop.f32.mrf.mxu0
      %v4495 = vadd.f32 0.0, %v4494
      %v4496 = vpop.f32.mrf.mxu0
      %4497 = vmatprep.mubr.f32.mxu0 0.0
      %4498 = vmatmul.mubr.f32.gmra.mxu0 %v3845
      %v4499 = vpop.f32.mrf.mxu0
      %v4500 = vadd.f32 0.0, %v4499
      %v4501 = vpop.f32.mrf.mxu0
      %4502 = vmatprep.mubr.f32.mxu0 0.0
      %4503 = vmatmul.mubr.f32.gmra.mxu0 %v3848
      %v4504 = vpop.f32.mrf.mxu0
      %v4505 = vadd.f32 0.0, %v4504
      %v4506 = vpop.f32.mrf.mxu0
      %4507 = vmatprep.mubr.f32.mxu0 0.0
      %4508 = vmatmul.mubr.f32.gmra.mxu0 %v3851
      %v4509 = vpop.f32.mrf.mxu0
      %v4510 = vadd.f32 0.0, %v4509
      %v4511 = vpop.f32.mrf.mxu0
      %4512 = vmatprep.mubr.f32.mxu0 0.0
      %4513 = vmatmul.mubr.f32.gmra.mxu0 %v3854
      %v4514 = vpop.f32.mrf.mxu0
      %v4515 = vadd.f32 0.0, %v4514
      %v4516 = vpop.f32.mrf.mxu0
      %4517 = vmatprep.mubr.f32.mxu0 0.0
      %4518 = vmatmul.mubr.f32.gmra.mxu0 %v3857
      %v4519 = vpop.f32.mrf.mxu0
      %v4520 = vadd.f32 0.0, %v4519
      %v4521 = vpop.f32.mrf.mxu0
      %4522 = vmatprep.mubr.f32.mxu0 0.0
      %4523 = vmatmul.mubr.f32.gmra.mxu0 %v3860
      %v4524 = vpop.f32.mrf.mxu0
      %v4525 = vadd.f32 0.0, %v4524
      %v4526 = vpop.f32.mrf.mxu0
      %4527 = vmatprep.mubr.f32.mxu0 0.0
      %4528 = vmatmul.mubr.f32.gmra.mxu0 %v3863
      %v4529 = vpop.f32.mrf.mxu0
      %v4530 = vadd.f32 0.0, %v4529
      %v4531 = vpop.f32.mrf.mxu0
      %4532 = vmatprep.mubr.f32.mxu0 0.0
      %4533 = vmatmul.mubr.f32.gmra.mxu0 %v3866
      %v4534 = vpop.f32.mrf.mxu0
      %v4535 = vadd.f32 0.0, %v4534
      %v4536 = vpop.f32.mrf.mxu0
      %4537 = vmatprep.mubr.f32.mxu0 0.0
      %4538 = vmatmul.mubr.f32.gmra.mxu0 %v3869
      %v4539 = vpop.f32.mrf.mxu0
      %v4540 = vadd.f32 0.0, %v4539
      %v4541 = vpop.f32.mrf.mxu0
      %4542 = vmatprep.mubr.f32.mxu0 0.0
      %4543 = vmatmul.mubr.f32.gmra.mxu0 %v3872
      %v4544 = vpop.f32.mrf.mxu0
      %v4545 = vadd.f32 0.0, %v4544
      %v4546 = vpop.f32.mrf.mxu0
      %4547 = vmatprep.mubr.f32.mxu0 0.0
      %4548 = vmatmul.mubr.f32.gmra.mxu0 %v3875
      %v4549 = vpop.f32.mrf.mxu0
      %v4550 = vadd.f32 0.0, %v4549
      %v4551 = vpop.f32.mrf.mxu0
      %4552 = vmatprep.mubr.f32.mxu0 0.0
      %4553 = vmatmul.mubr.f32.gmra.mxu0 %v3878
      %v4554 = vpop.f32.mrf.mxu0
      %v4555 = vadd.f32 0.0, %v4554
      %v4556 = vpop.f32.mrf.mxu0
      %4557 = vmatprep.mubr.f32.mxu0 0.0
      %4558 = vmatmul.mubr.f32.gmra.mxu0 %v3881
      %v4559 = vpop.f32.mrf.mxu0
      %v4560 = vadd.f32 0.0, %v4559
      %v4561 = vpop.f32.mrf.mxu0
      %4562 = vmatprep.mubr.f32.mxu0 0.0
      %4563 = vmatmul.mubr.f32.gmra.mxu0 %v3884
      %v4564 = vpop.f32.mrf.mxu0
      %v4565 = vadd.f32 0.0, %v4564
      %v4566 = vpop.f32.mrf.mxu0
      %4567 = vmatprep.mubr.f32.mxu0 0.0
      %4568 = vmatmul.mubr.f32.gmra.mxu0 %v3887
      %v4569 = vpop.f32.mrf.mxu0
      %v4570 = vadd.f32 0.0, %v4569
      %v4571 = vpop.f32.mrf.mxu0
      %4572 = vmatprep.mubr.f32.mxu0 0.0
      %4573 = vmatmul.mubr.f32.gmra.mxu0 %v3890
      %v4574 = vpop.f32.mrf.mxu0
      %v4575 = vadd.f32 0.0, %v4574
      %v4576 = vpop.f32.mrf.mxu0
      %4577 = vmatprep.mubr.f32.mxu0 0.0
      %4578 = vmatmul.mubr.f32.gmra.mxu0 %v3893
      %v4579 = vpop.f32.mrf.mxu0
      %v4580 = vadd.f32 0.0, %v4579
      %v4581 = vpop.f32.mrf.mxu0
      %4582 = vmatprep.mubr.f32.mxu0 0.0
      %4583 = vmatmul.mubr.f32.gmra.mxu0 %v3896
      %v4584 = vpop.f32.mrf.mxu0
      %v4585 = vadd.f32 0.0, %v4584
      %v4586 = vpop.f32.mrf.mxu0
      %4587 = vmatprep.mubr.f32.mxu0 0.0
      %4588 = vmatmul.mubr.f32.gmra.mxu0 %v3899
      %v4589 = vpop.f32.mrf.mxu0
      %v4590 = vadd.f32 0.0, %v4589
      %v4591 = vpop.f32.mrf.mxu0
      %4592 = vmatprep.mubr.f32.mxu0 0.0
      %4593 = vmatmul.mubr.f32.gmra.mxu0 %v3902
      %v4594 = vpop.f32.mrf.mxu0
      %v4595 = vadd.f32 0.0, %v4594
      %v4596 = vpop.f32.mrf.mxu0
      %4597 = vmatprep.mubr.f32.mxu0 0.0
      %4598 = vmatmul.mubr.f32.gmra.mxu0 %v3905
      %v4599 = vpop.f32.mrf.mxu0
      %v4600 = vadd.f32 0.0, %v4599
      %v4601 = vpop.f32.mrf.mxu0
      %4602 = vmatprep.mubr.f32.mxu0 0.0
      %4603 = vmatmul.mubr.f32.gmra.mxu0 %v3908
      %v4604 = vpop.f32.mrf.mxu0
      %v4605 = vadd.f32 0.0, %v4604
      %v4606 = vpop.f32.mrf.mxu0
      %4607 = vmatprep.mubr.f32.mxu0 0.0
      %4608 = vmatmul.mubr.f32.gmra.mxu0 %v3911
      %v4609 = vpop.f32.mrf.mxu0
      %v4610 = vadd.f32 0.0, %v4609
      %v4611 = vpop.f32.mrf.mxu0
      %4612 = vmatprep.mubr.f32.mxu0 0.0
      %4613 = vmatmul.mubr.f32.gmra.mxu0 %v3914
      %v4614 = vpop.f32.mrf.mxu0
      %v4615 = vadd.f32 0.0, %v4614
      %v4616 = vpop.f32.mrf.mxu0
      %4617 = vmatprep.mubr.f32.mxu0 0.0
      %4618 = vmatmul.mubr.f32.gmra.mxu0 %v3917
      %v4619 = vpop.f32.mrf.mxu0
      %v4620 = vadd.f32 0.0, %v4619
      %v4621 = vpop.f32.mrf.mxu0
      %4622 = vmatprep.mubr.f32.mxu0 0.0
      %4623 = vmatmul.mubr.f32.gmra.mxu0 %v3920
      %v4624 = vpop.f32.mrf.mxu0
      %v4625 = vadd.f32 0.0, %v4624
      %v4626 = vpop.f32.mrf.mxu0
      %4627 = vmatprep.mubr.f32.mxu0 0.0
      %4628 = vmatmul.mubr.f32.gmra.mxu0 %v3923
      %v4629 = vpop.f32.mrf.mxu0
      %v4630 = vadd.f32 0.0, %v4629
      %v4631 = vpop.f32.mrf.mxu0
      %4632 = vmatprep.mubr.f32.mxu0 0.0
      %4633 = vmatmul.mubr.f32.gmra.mxu0 %v3926
      %v4634 = vpop.f32.mrf.mxu0
      %v4635 = vadd.f32 0.0, %v4634
      %v4636 = vpop.f32.mrf.mxu0
      %4637 = vmatprep.mubr.f32.mxu0 0.0
      %4638 = vmatmul.mubr.f32.gmra.mxu0 %v3929
      %v4639 = vpop.f32.mrf.mxu0
      %v4640 = vadd.f32 0.0, %v4639
      %v4641 = vpop.f32.mrf.mxu0
      %4642 = vmatprep.mubr.f32.mxu0 0.0
      %4643 = vmatmul.mubr.f32.gmra.mxu0 %v3932
      %v4644 = vpop.f32.mrf.mxu0
      %v4645 = vadd.f32 0.0, %v4644
      %v4646 = vpop.f32.mrf.mxu0
      %4647 = vmatprep.mubr.f32.mxu0 0.0
      %4648 = vmatmul.mubr.f32.gmra.mxu0 %v3935
      %v4649 = vpop.f32.mrf.mxu0
      %v4650 = vadd.f32 0.0, %v4649
      %v4651 = vpop.f32.mrf.mxu0
      %4652 = vmatprep.mubr.f32.mxu0 0.0
      %4653 = vmatmul.mubr.f32.gmra.mxu0 %v3938
      %v4654 = vpop.f32.mrf.mxu0
      %v4655 = vadd.f32 0.0, %v4654
      %v4656 = vpop.f32.mrf.mxu0
      %4657 = vmatprep.mubr.f32.mxu0 0.0
      %4658 = vmatmul.mubr.f32.gmra.mxu0 %v3941
      %v4659 = vpop.f32.mrf.mxu0
      %v4660 = vadd.f32 0.0, %v4659
      %v4661 = vpop.f32.mrf.mxu0
      %4662 = vmatprep.mubr.f32.mxu0 0.0
      %4663 = vmatmul.mubr.f32.gmra.mxu0 %v3944
      %v4664 = vpop.f32.mrf.mxu0
      %v4665 = vadd.f32 0.0, %v4664
      %v4666 = vpop.f32.mrf.mxu0
      %4667 = vmatprep.mubr.f32.mxu0 0.0
      %4668 = vmatmul.mubr.f32.gmra.mxu0 %v3947
      %v4669 = vpop.f32.mrf.mxu0
      %v4670 = vadd.f32 0.0, %v4669
      %v4671 = vpop.f32.mrf.mxu0
      %4672 = vmatprep.mubr.f32.mxu0 0.0
      %4673 = vmatmul.mubr.f32.gmra.mxu0 %v3950
      %v4674 = vpop.f32.mrf.mxu0
      %v4675 = vadd.f32 0.0, %v4674
      %v4676 = vpop.f32.mrf.mxu0
      %4677 = vmatprep.mubr.f32.mxu0 0.0
      %4678 = vmatmul.mubr.f32.gmra.mxu0 %v3953
      %v4679 = vpop.f32.mrf.mxu0
      %v4680 = vadd.f32 0.0, %v4679
      %v4681 = vpop.f32.mrf.mxu0
      %4682 = vmatprep.mubr.f32.mxu0 0.0
      %4683 = vmatmul.mubr.f32.gmra.mxu0 %v3956
      %v4684 = vpop.f32.mrf.mxu0
      %v4685 = vadd.f32 0.0, %v4684
      %v4686 = vpop.f32.mrf.mxu0
      %4687 = vmatprep.mubr.f32.mxu0 0.0
      %4688 = vmatmul.mubr.f32.gmra.mxu0 %v3959
      %v4689 = vpop.f32.mrf.mxu0
      %v4690 = vadd.f32 0.0, %v4689
      %v4691 = vpop.f32.mrf.mxu0
      %4692 = vmatprep.mubr.f32.mxu0 0.0
      %4693 = vmatmul.mubr.f32.gmra.mxu0 %v3962
      %v4694 = vpop.f32.mrf.mxu0
      %v4695 = vadd.f32 0.0, %v4694
      %v4696 = vpop.f32.mrf.mxu0
      %4697 = vmatprep.mubr.f32.mxu0 0.0
      %4698 = vmatmul.mubr.f32.gmra.mxu0 %v3965
      %v4699 = vpop.f32.mrf.mxu0
      %v4700 = vadd.f32 0.0, %v4699
      %v4701 = vpop.f32.mrf.mxu0
      %4702 = vmatprep.mubr.f32.mxu0 0.0
      %4703 = vmatmul.mubr.f32.gmra.mxu0 %v3968
      %v4704 = vpop.f32.mrf.mxu0
      %v4705 = vadd.f32 0.0, %v4704
      %v4706 = vpop.f32.mrf.mxu0
      %4707 = vmatprep.mubr.f32.mxu0 0.0
      %4708 = vmatmul.mubr.f32.gmra.mxu0 %v3971
      %v4709 = vpop.f32.mrf.mxu0
      %v4710 = vadd.f32 0.0, %v4709
      %v4711 = vpop.f32.mrf.mxu0
      %4712 = vmatprep.mubr.f32.mxu0 0.0
      %4713 = vmatmul.mubr.f32.gmra.mxu0 %v3974
      %v4714 = vpop.f32.mrf.mxu0
      %v4715 = vadd.f32 0.0, %v4714
      %v4716 = vpop.f32.mrf.mxu0
      %4717 = vmatprep.mubr.f32.mxu0 0.0
      %4718 = vmatmul.mubr.f32.gmra.mxu0 %v3977
      %v4719 = vpop.f32.mrf.mxu0
      %v4720 = vadd.f32 0.0, %v4719
      %v4721 = vpop.f32.mrf.mxu0
      %4722 = vmatprep.mubr.f32.mxu0 0.0
      %4723 = vmatmul.mubr.f32.gmra.mxu0 %v3980
      %v4724 = vpop.f32.mrf.mxu0
      %v4725 = vadd.f32 0.0, %v4724
      %v4726 = vpop.f32.mrf.mxu0
      %4727 = vmatprep.mubr.f32.mxu0 0.0
      %4728 = vmatmul.mubr.f32.gmra.mxu0 %v3983
      %v4729 = vpop.f32.mrf.mxu0
      %v4730 = vadd.f32 0.0, %v4729
      %v4731 = vpop.f32.mrf.mxu0
      %4732 = vmatprep.mubr.f32.mxu0 0.0
      %4733 = vmatmul.mubr.f32.gmra.mxu0 %v3986
      %v4734 = vpop.f32.mrf.mxu0
      %v4735 = vadd.f32 0.0, %v4734
      %v4736 = vpop.f32.mrf.mxu0
      %4737 = vmatprep.mubr.f32.mxu0 0.0
      %4738 = vmatmul.mubr.f32.gmra.mxu0 %v3989
      %v4739 = vpop.f32.mrf.mxu0
      %v4740 = vadd.f32 0.0, %v4739
      %v4741 = vpop.f32.mrf.mxu0
      %4742 = vmatprep.mubr.f32.mxu0 0.0
      %4743 = vmatmul.mubr.f32.gmra.mxu0 %v3992
      %v4744 = vpop.f32.mrf.mxu0
      %v4745 = vadd.f32 0.0, %v4744
      %v4746 = vpop.f32.mrf.mxu0
      %4747 = vmatprep.mubr.f32.mxu0 0.0
      %4748 = vmatmul.mubr.f32.gmra.mxu0 %v3995
      %v4749 = vpop.f32.mrf.mxu0
      %v4750 = vadd.f32 0.0, %v4749
      %v4751 = vpop.f32.mrf.mxu0
      %4752 = vmatprep.mubr.f32.mxu0 0.0
      %4753 = vmatmul.mubr.f32.gmra.mxu0 %v3998
      %v4754 = vpop.f32.mrf.mxu0
      %v4755 = vadd.f32 0.0, %v4754
      %v4756 = vpop.f32.mrf.mxu0
      %4757 = vmatprep.mubr.f32.mxu0 0.0
      %4758 = vmatmul.mubr.f32.gmra.mxu0 %v4001
      %v4759 = vpop.f32.mrf.mxu0
      %v4760 = vadd.f32 0.0, %v4759
      %v4761 = vpop.f32.mrf.mxu0
      %4762 = vmatprep.mubr.f32.mxu0 0.0
      %4763 = vmatmul.mubr.f32.gmra.mxu0 %v4004
      %v4764 = vpop.f32.mrf.mxu0
      %v4765 = vadd.f32 0.0, %v4764
      %v4766 = vpop.f32.mrf.mxu0
      %4767 = vmatprep.mubr.f32.mxu0 0.0
      %4768 = vmatmul.mubr.f32.gmra.mxu0 %v4007
      %v4769 = vpop.f32.mrf.mxu0
      %v4770 = vadd.f32 0.0, %v4769
      %v4771 = vpop.f32.mrf.mxu0
      %4772 = vmatprep.mubr.f32.mxu0 0.0
      %4773 = vmatmul.mubr.f32.gmra.mxu0 %v4010
      %v4774 = vpop.f32.mrf.mxu0
      %v4775 = vadd.f32 0.0, %v4774
      %v4776 = vpop.f32.mrf.mxu0
      %4777 = vmatprep.mubr.f32.mxu0 0.0
      %4778 = vmatmul.mubr.f32.gmra.mxu0 %v4013
      %v4779 = vpop.f32.mrf.mxu0
      %v4780 = vadd.f32 0.0, %v4779
      %v4781 = vpop.f32.mrf.mxu0
      %4782 = vmatprep.mubr.f32.mxu0 0.0
      %4783 = vmatmul.mubr.f32.gmra.mxu0 %v4016
      %v4784 = vpop.f32.mrf.mxu0
      %v4785 = vadd.f32 0.0, %v4784
      %v4786 = vpop.f32.mrf.mxu0
      %4787 = vdwg.mxu0
      %v4789 = vsel %vm1284, %v3668, 0
      %v4792 = vsel %vm1284, %v3673, 0
      %v4795 = vsel %vm1284, %v3678, 0
      %v4798 = vsel %vm1284, %v3683, 0
      %v4801 = vsel %vm1284, %v3688, 0
      %v4804 = vsel %vm1284, %v3693, 0
      %v4807 = vsel %vm1284, %v3698, 0
      %v4810 = vsel %vm1284, %v3703, 0
      %v4813 = vsel %vm1284, %v3708, 0
      %v4816 = vsel %vm1284, %v3713, 0
      %v4819 = vsel %vm1284, %v3718, 0
      %v4822 = vsel %vm1284, %v3723, 0
      %v4825 = vsel %vm1284, %v3728, 0
      %v4828 = vsel %vm1284, %v3733, 0
      %v4831 = vsel %vm1284, %v3738, 0
      %v4834 = vsel %vm1284, %v3743, 0
      %v4837 = vsel %vm1284, %v3748, 0
      %v4840 = vsel %vm1284, %v3753, 0
      %v4843 = vsel %vm1284, %v3758, 0
      %v4846 = vsel %vm1284, %v3763, 0
      %v4849 = vsel %vm1284, %v3768, 0
      %v4852 = vsel %vm1284, %v3773, 0
      %v4855 = vsel %vm1284, %v3778, 0
      %v4858 = vsel %vm1284, %v3783, 0
      %v4861 = vsel %vm1284, %v3788, 0
      %v4864 = vsel %vm1284, %v3793, 0
      %v4867 = vsel %vm1284, %v3798, 0
      %v4870 = vsel %vm1284, %v3803, 0
      %v4873 = vsel %vm1284, %v3808, 0
      %v4876 = vsel %vm1284, %v3813, 0
      %v4879 = vsel %vm1284, %v3818, 0
      %v4882 = vsel %vm1284, %v3823, 0
      %v4885 = vsel %vm1284, %v4085, 0
      %v4888 = vsel %vm1284, %v4090, 0
      %v4891 = vsel %vm1284, %v4095, 0
      %v4894 = vsel %vm1284, %v4100, 0
      %v4897 = vsel %vm1284, %v4105, 0
      %v4900 = vsel %vm1284, %v4110, 0
      %v4903 = vsel %vm1284, %v4115, 0
      %v4906 = vsel %vm1284, %v4120, 0
      %v4909 = vsel %vm1284, %v4125, 0
      %v4912 = vsel %vm1284, %v4130, 0
      %v4915 = vsel %vm1284, %v4135, 0
      %v4918 = vsel %vm1284, %v4140, 0
      %v4921 = vsel %vm1284, %v4145, 0
      %v4924 = vsel %vm1284, %v4150, 0
      %v4927 = vsel %vm1284, %v4155, 0
      %v4930 = vsel %vm1284, %v4160, 0
      %v4933 = vsel %vm1284, %v4165, 0
      %v4936 = vsel %vm1284, %v4170, 0
      %v4939 = vsel %vm1284, %v4175, 0
      %v4942 = vsel %vm1284, %v4180, 0
      %v4945 = vsel %vm1284, %v4185, 0
      %v4948 = vsel %vm1284, %v4190, 0
      %v4951 = vsel %vm1284, %v4195, 0
      %v4954 = vsel %vm1284, %v4200, 0
      %v4957 = vsel %vm1284, %v4205, 0
      %v4960 = vsel %vm1284, %v4210, 0
      %v4963 = vsel %vm1284, %v4215, 0
      %v4966 = vsel %vm1284, %v4220, 0
      %v4969 = vsel %vm1284, %v4225, 0
      %v4972 = vsel %vm1284, %v4230, 0
      %v4975 = vsel %vm1284, %v4235, 0
      %v4978 = vsel %vm1284, %v4240, 0
      %v4981 = vsel %vm1284, %v4245, 0
      %v4984 = vsel %vm1284, %v4250, 0
      %v4987 = vsel %vm1284, %v4255, 0
      %v4990 = vsel %vm1284, %v4260, 0
      %v4993 = vsel %vm1284, %v4265, 0
      %v4996 = vsel %vm1284, %v4270, 0
      %v4999 = vsel %vm1284, %v4275, 0
      %v5002 = vsel %vm1284, %v4280, 0
      %v5005 = vsel %vm1284, %v4285, 0
      %v5008 = vsel %vm1284, %v4290, 0
      %v5011 = vsel %vm1284, %v4295, 0
      %v5014 = vsel %vm1284, %v4300, 0
      %v5017 = vsel %vm1284, %v4305, 0
      %v5020 = vsel %vm1284, %v4310, 0
      %v5023 = vsel %vm1284, %v4315, 0
      %v5026 = vsel %vm1284, %v4320, 0
      %v5029 = vsel %vm1284, %v4325, 0
      %v5032 = vsel %vm1284, %v4330, 0
      %v5035 = vsel %vm1284, %v4335, 0
      %v5038 = vsel %vm1284, %v4340, 0
      %v5041 = vsel %vm1284, %v4345, 0
      %v5044 = vsel %vm1284, %v4350, 0
      %v5047 = vsel %vm1284, %v4355, 0
      %v5050 = vsel %vm1284, %v4360, 0
      %v5053 = vsel %vm1284, %v4365, 0
      %v5056 = vsel %vm1284, %v4370, 0
      %v5059 = vsel %vm1284, %v4375, 0
      %v5062 = vsel %vm1284, %v4380, 0
      %v5065 = vsel %vm1284, %v4385, 0
      %v5068 = vsel %vm1284, %v4390, 0
      %v5071 = vsel %vm1284, %v4395, 0
      %v5074 = vsel %vm1284, %v4400, 0
      %5076 = vmatprep.subr.mxu0 0.0
      %5077 = vmatpush1.xpose.msra.mxu0 %v4930
      %5078 = vmatprep.subr.mxu0 0.0
      %5079 = vmatpush1.xpose.msra.mxu0 %v4927
      %5080 = vmatprep.subr.mxu0 0.0
      %5081 = vmatpush1.xpose.msra.mxu0 %v4924
      %5082 = vmatprep.subr.mxu0 0.0
      %5083 = vmatpush1.xpose.msra.mxu0 %v4921
      %5084 = vmatprep.subr.mxu0 0.0
      %5085 = vmatpush1.xpose.msra.mxu0 %v4918
      %5086 = vmatprep.subr.mxu0 0.0
      %5087 = vmatpush1.xpose.msra.mxu0 %v4915
      %5088 = vmatprep.subr.mxu0 0.0
      %5089 = vmatpush1.xpose.msra.mxu0 %v4912
      %5090 = vmatprep.subr.mxu0 0.0
      %5091 = vmatpush1.xpose.msra.mxu0 %v4909
      %5092 = vmatprep.subr.mxu0 0.0
      %5093 = vmatpush1.xpose.msra.mxu0 %v4906
      %5094 = vmatprep.subr.mxu0 0.0
      %5095 = vmatpush1.xpose.msra.mxu0 %v4903
      %5096 = vmatprep.subr.mxu0 0.0
      %5097 = vmatpush1.xpose.msra.mxu0 %v4900
      %5098 = vmatprep.subr.mxu0 0.0
      %5099 = vmatpush1.xpose.msra.mxu0 %v4897
      %5100 = vmatprep.subr.mxu0 0.0
      %5101 = vmatpush1.xpose.msra.mxu0 %v4894
      %5102 = vmatprep.subr.mxu0 0.0
      %5103 = vmatpush1.xpose.msra.mxu0 %v4891
      %5104 = vmatprep.subr.mxu0 0.0
      %5105 = vmatpush1.xpose.msra.mxu0 %v4888
      %5106 = vmatprep.subr.mxu0 0.0
      %5107 = vmatpush1.xpose.msra.mxu0 %v4885
      %5108 = vmatprep.subr.mxu0 0.0
      %5109 = vmatpush2.xpose.msra.mxu0 %v4978
      %5110 = vmatprep.subr.mxu0 0.0
      %5111 = vmatpush2.xpose.msra.mxu0 %v4975
      %5112 = vmatprep.subr.mxu0 0.0
      %5113 = vmatpush2.xpose.msra.mxu0 %v4972
      %5114 = vmatprep.subr.mxu0 0.0
      %5115 = vmatpush2.xpose.msra.mxu0 %v4969
      %5116 = vmatprep.subr.mxu0 0.0
      %5117 = vmatpush2.xpose.msra.mxu0 %v4966
      %5118 = vmatprep.subr.mxu0 0.0
      %5119 = vmatpush2.xpose.msra.mxu0 %v4963
      %5120 = vmatprep.subr.mxu0 0.0
      %5121 = vmatpush2.xpose.msra.mxu0 %v4960
      %5122 = vmatprep.subr.mxu0 0.0
      %5123 = vmatpush2.xpose.msra.mxu0 %v4957
      %5124 = vmatprep.subr.mxu0 0.0
      %5125 = vmatpush2.xpose.msra.mxu0 %v4954
      %5126 = vmatprep.subr.mxu0 0.0
      %5127 = vmatpush2.xpose.msra.mxu0 %v4951
      %5128 = vmatprep.subr.mxu0 0.0
      %5129 = vmatpush2.xpose.msra.mxu0 %v4948
      %5130 = vmatprep.subr.mxu0 0.0
      %5131 = vmatpush2.xpose.msra.mxu0 %v4945
      %5132 = vmatprep.subr.mxu0 0.0
      %5133 = vmatpush2.xpose.msra.mxu0 %v4942
      %5134 = vmatprep.subr.mxu0 0.0
      %5135 = vmatpush2.xpose.msra.mxu0 %v4939
      %5136 = vmatprep.subr.mxu0 0.0
      %5137 = vmatpush2.xpose.msra.mxu0 %v4936
      %5138 = vmatprep.subr.mxu0 0.0
      %5139 = vmatpush2.xpose.msra.mxu0 %v4933
      %5140 = vmatprep.mubr.f32.mxu0 0.0
      %5141 = vmatmul.mubr.f32.gmra.mxu0 %v4789
      %v5142 = vpop.f32.mrf.mxu0
      %v5143 = vadd.f32 %v3377, %v5142
      %v5144 = vpop.f32.mrf.mxu0
      %v5145 = vadd.f32 %v3378, %v5144
      %5146 = vmatprep.mubr.f32.mxu0 0.0
      %5147 = vmatmul.mubr.f32.gmra.mxu0 %v4792
      %v5148 = vpop.f32.mrf.mxu0
      %v5149 = vadd.f32 %v3381, %v5148
      %v5150 = vpop.f32.mrf.mxu0
      %v5151 = vadd.f32 %v3382, %v5150
      %5152 = vmatprep.mubr.f32.mxu0 0.0
      %5153 = vmatmul.mubr.f32.gmra.mxu0 %v4795
      %v5154 = vpop.f32.mrf.mxu0
      %v5155 = vadd.f32 %v3385, %v5154
      %v5156 = vpop.f32.mrf.mxu0
      %v5157 = vadd.f32 %v3386, %v5156
      %5158 = vmatprep.mubr.f32.mxu0 0.0
      %5159 = vmatmul.mubr.f32.gmra.mxu0 %v4798
      %v5160 = vpop.f32.mrf.mxu0
      %v5161 = vadd.f32 %v3389, %v5160
      %v5162 = vpop.f32.mrf.mxu0
      %v5163 = vadd.f32 %v3390, %v5162
      %5164 = vmatprep.mubr.f32.mxu0 0.0
      %5165 = vmatmul.mubr.f32.gmra.mxu0 %v4801
      %v5166 = vpop.f32.mrf.mxu0
      %v5167 = vadd.f32 %v3393, %v5166
      %v5168 = vpop.f32.mrf.mxu0
      %v5169 = vadd.f32 %v3394, %v5168
      %5170 = vmatprep.mubr.f32.mxu0 0.0
      %5171 = vmatmul.mubr.f32.gmra.mxu0 %v4804
      %v5172 = vpop.f32.mrf.mxu0
      %v5173 = vadd.f32 %v3397, %v5172
      %v5174 = vpop.f32.mrf.mxu0
      %v5175 = vadd.f32 %v3398, %v5174
      %5176 = vmatprep.mubr.f32.mxu0 0.0
      %5177 = vmatmul.mubr.f32.gmra.mxu0 %v4807
      %v5178 = vpop.f32.mrf.mxu0
      %v5179 = vadd.f32 %v3401, %v5178
      %v5180 = vpop.f32.mrf.mxu0
      %v5181 = vadd.f32 %v3402, %v5180
      %5182 = vmatprep.mubr.f32.mxu0 0.0
      %5183 = vmatmul.mubr.f32.gmra.mxu0 %v4810
      %v5184 = vpop.f32.mrf.mxu0
      %v5185 = vadd.f32 %v3405, %v5184
      %v5186 = vpop.f32.mrf.mxu0
      %v5187 = vadd.f32 %v3406, %v5186
      %5188 = vmatprep.mubr.f32.mxu0 0.0
      %5189 = vmatmul.mubr.f32.gmra.mxu0 %v4813
      %v5190 = vpop.f32.mrf.mxu0
      %v5191 = vadd.f32 %v3409, %v5190
      %v5192 = vpop.f32.mrf.mxu0
      %v5193 = vadd.f32 %v3410, %v5192
      %5194 = vmatprep.mubr.f32.mxu0 0.0
      %5195 = vmatmul.mubr.f32.gmra.mxu0 %v4816
      %v5196 = vpop.f32.mrf.mxu0
      %v5197 = vadd.f32 %v3413, %v5196
      %v5198 = vpop.f32.mrf.mxu0
      %v5199 = vadd.f32 %v3414, %v5198
      %5200 = vmatprep.mubr.f32.mxu0 0.0
      %5201 = vmatmul.mubr.f32.gmra.mxu0 %v4819
      %v5202 = vpop.f32.mrf.mxu0
      %v5203 = vadd.f32 %v3417, %v5202
      %v5204 = vpop.f32.mrf.mxu0
      %v5205 = vadd.f32 %v3418, %v5204
      %5206 = vmatprep.mubr.f32.mxu0 0.0
      %5207 = vmatmul.mubr.f32.gmra.mxu0 %v4822
      %v5208 = vpop.f32.mrf.mxu0
      %v5209 = vadd.f32 %v3421, %v5208
      %v5210 = vpop.f32.mrf.mxu0
      %v5211 = vadd.f32 %v3422, %v5210
      %5212 = vmatprep.mubr.f32.mxu0 0.0
      %5213 = vmatmul.mubr.f32.gmra.mxu0 %v4825
      %v5214 = vpop.f32.mrf.mxu0
      %v5215 = vadd.f32 %v3425, %v5214
      %v5216 = vpop.f32.mrf.mxu0
      %v5217 = vadd.f32 %v3426, %v5216
      %5218 = vmatprep.mubr.f32.mxu0 0.0
      %5219 = vmatmul.mubr.f32.gmra.mxu0 %v4828
      %v5220 = vpop.f32.mrf.mxu0
      %v5221 = vadd.f32 %v3429, %v5220
      %v5222 = vpop.f32.mrf.mxu0
      %v5223 = vadd.f32 %v3430, %v5222
      %5224 = vmatprep.mubr.f32.mxu0 0.0
      %5225 = vmatmul.mubr.f32.gmra.mxu0 %v4831
      %v5226 = vpop.f32.mrf.mxu0
      %v5227 = vadd.f32 %v3433, %v5226
      %v5228 = vpop.f32.mrf.mxu0
      %v5229 = vadd.f32 %v3434, %v5228
      %5230 = vmatprep.mubr.f32.mxu0 0.0
      %5231 = vmatmul.mubr.f32.gmra.mxu0 %v4834
      %v5232 = vpop.f32.mrf.mxu0
      %v5233 = vadd.f32 %v3437, %v5232
      %v5234 = vpop.f32.mrf.mxu0
      %v5235 = vadd.f32 %v3438, %v5234
      %5236 = vmatprep.mubr.f32.mxu0 0.0
      %5237 = vmatmul.mubr.f32.gmra.mxu0 %v4837
      %v5238 = vpop.f32.mrf.mxu0
      %v5239 = vadd.f32 %v3441, %v5238
      %v5240 = vpop.f32.mrf.mxu0
      %v5241 = vadd.f32 %v3442, %v5240
      %5242 = vmatprep.mubr.f32.mxu0 0.0
      %5243 = vmatmul.mubr.f32.gmra.mxu0 %v4840
      %v5244 = vpop.f32.mrf.mxu0
      %v5245 = vadd.f32 %v3445, %v5244
      %v5246 = vpop.f32.mrf.mxu0
      %v5247 = vadd.f32 %v3446, %v5246
      %5248 = vmatprep.mubr.f32.mxu0 0.0
      %5249 = vmatmul.mubr.f32.gmra.mxu0 %v4843
      %v5250 = vpop.f32.mrf.mxu0
      %v5251 = vadd.f32 %v3449, %v5250
      %v5252 = vpop.f32.mrf.mxu0
      %v5253 = vadd.f32 %v3450, %v5252
      %5254 = vmatprep.mubr.f32.mxu0 0.0
      %5255 = vmatmul.mubr.f32.gmra.mxu0 %v4846
      %v5256 = vpop.f32.mrf.mxu0
      %v5257 = vadd.f32 %v3453, %v5256
      %v5258 = vpop.f32.mrf.mxu0
      %v5259 = vadd.f32 %v3454, %v5258
      %5260 = vmatprep.mubr.f32.mxu0 0.0
      %5261 = vmatmul.mubr.f32.gmra.mxu0 %v4849
      %v5262 = vpop.f32.mrf.mxu0
      %v5263 = vadd.f32 %v3457, %v5262
      %v5264 = vpop.f32.mrf.mxu0
      %v5265 = vadd.f32 %v3458, %v5264
      %5266 = vmatprep.mubr.f32.mxu0 0.0
      %5267 = vmatmul.mubr.f32.gmra.mxu0 %v4852
      %v5268 = vpop.f32.mrf.mxu0
      %v5269 = vadd.f32 %v3461, %v5268
      %v5270 = vpop.f32.mrf.mxu0
      %v5271 = vadd.f32 %v3462, %v5270
      %5272 = vmatprep.mubr.f32.mxu0 0.0
      %5273 = vmatmul.mubr.f32.gmra.mxu0 %v4855
      %v5274 = vpop.f32.mrf.mxu0
      %v5275 = vadd.f32 %v3465, %v5274
      %v5276 = vpop.f32.mrf.mxu0
      %v5277 = vadd.f32 %v3466, %v5276
      %5278 = vmatprep.mubr.f32.mxu0 0.0
      %5279 = vmatmul.mubr.f32.gmra.mxu0 %v4858
      %v5280 = vpop.f32.mrf.mxu0
      %v5281 = vadd.f32 %v3469, %v5280
      %v5282 = vpop.f32.mrf.mxu0
      %v5283 = vadd.f32 %v3470, %v5282
      %5284 = vmatprep.mubr.f32.mxu0 0.0
      %5285 = vmatmul.mubr.f32.gmra.mxu0 %v4861
      %v5286 = vpop.f32.mrf.mxu0
      %v5287 = vadd.f32 %v3473, %v5286
      %v5288 = vpop.f32.mrf.mxu0
      %v5289 = vadd.f32 %v3474, %v5288
      %5290 = vmatprep.mubr.f32.mxu0 0.0
      %5291 = vmatmul.mubr.f32.gmra.mxu0 %v4864
      %v5292 = vpop.f32.mrf.mxu0
      %v5293 = vadd.f32 %v3477, %v5292
      %v5294 = vpop.f32.mrf.mxu0
      %v5295 = vadd.f32 %v3478, %v5294
      %5296 = vmatprep.mubr.f32.mxu0 0.0
      %5297 = vmatmul.mubr.f32.gmra.mxu0 %v4867
      %v5298 = vpop.f32.mrf.mxu0
      %v5299 = vadd.f32 %v3481, %v5298
      %v5300 = vpop.f32.mrf.mxu0
      %v5301 = vadd.f32 %v3482, %v5300
      %5302 = vmatprep.mubr.f32.mxu0 0.0
      %5303 = vmatmul.mubr.f32.gmra.mxu0 %v4870
      %v5304 = vpop.f32.mrf.mxu0
      %v5305 = vadd.f32 %v3485, %v5304
      %v5306 = vpop.f32.mrf.mxu0
      %v5307 = vadd.f32 %v3486, %v5306
      %5308 = vmatprep.mubr.f32.mxu0 0.0
      %5309 = vmatmul.mubr.f32.gmra.mxu0 %v4873
      %v5310 = vpop.f32.mrf.mxu0
      %v5311 = vadd.f32 %v3489, %v5310
      %v5312 = vpop.f32.mrf.mxu0
      %v5313 = vadd.f32 %v3490, %v5312
      %5314 = vmatprep.mubr.f32.mxu0 0.0
      %5315 = vmatmul.mubr.f32.gmra.mxu0 %v4876
      %v5316 = vpop.f32.mrf.mxu0
      %v5317 = vadd.f32 %v3493, %v5316
      %v5318 = vpop.f32.mrf.mxu0
      %v5319 = vadd.f32 %v3494, %v5318
      %5320 = vmatprep.mubr.f32.mxu0 0.0
      %5321 = vmatmul.mubr.f32.gmra.mxu0 %v4879
      %v5322 = vpop.f32.mrf.mxu0
      %v5323 = vadd.f32 %v3497, %v5322
      %v5324 = vpop.f32.mrf.mxu0
      %v5325 = vadd.f32 %v3498, %v5324
      %5326 = vmatprep.mubr.f32.mxu0 0.0
      %5327 = vmatmul.mubr.f32.gmra.mxu0 %v4882
      %v5328 = vpop.f32.mrf.mxu0
      %v5329 = vadd.f32 %v3501, %v5328
      %v5330 = vpop.f32.mrf.mxu0
      %v5331 = vadd.f32 %v3502, %v5330
      %5332 = vdwg.mxu0
      %5333 = vmatprep.subr.mxu0 0.0
      %5334 = vmatpush1.xpose.msra.mxu0 %v5026
      %5335 = vmatprep.subr.mxu0 0.0
      %5336 = vmatpush1.xpose.msra.mxu0 %v5023
      %5337 = vmatprep.subr.mxu0 0.0
      %5338 = vmatpush1.xpose.msra.mxu0 %v5020
      %5339 = vmatprep.subr.mxu0 0.0
      %5340 = vmatpush1.xpose.msra.mxu0 %v5017
      %5341 = vmatprep.subr.mxu0 0.0
      %5342 = vmatpush1.xpose.msra.mxu0 %v5014
      %5343 = vmatprep.subr.mxu0 0.0
      %5344 = vmatpush1.xpose.msra.mxu0 %v5011
      %5345 = vmatprep.subr.mxu0 0.0
      %5346 = vmatpush1.xpose.msra.mxu0 %v5008
      %5347 = vmatprep.subr.mxu0 0.0
      %5348 = vmatpush1.xpose.msra.mxu0 %v5005
      %5349 = vmatprep.subr.mxu0 0.0
      %5350 = vmatpush1.xpose.msra.mxu0 %v5002
      %5351 = vmatprep.subr.mxu0 0.0
      %5352 = vmatpush1.xpose.msra.mxu0 %v4999
      %5353 = vmatprep.subr.mxu0 0.0
      %5354 = vmatpush1.xpose.msra.mxu0 %v4996
      %5355 = vmatprep.subr.mxu0 0.0
      %5356 = vmatpush1.xpose.msra.mxu0 %v4993
      %5357 = vmatprep.subr.mxu0 0.0
      %5358 = vmatpush1.xpose.msra.mxu0 %v4990
      %5359 = vmatprep.subr.mxu0 0.0
      %5360 = vmatpush1.xpose.msra.mxu0 %v4987
      %5361 = vmatprep.subr.mxu0 0.0
      %5362 = vmatpush1.xpose.msra.mxu0 %v4984
      %5363 = vmatprep.subr.mxu0 0.0
      %5364 = vmatpush1.xpose.msra.mxu0 %v4981
      %5365 = vmatprep.subr.mxu0 0.0
      %5366 = vmatpush2.xpose.msra.mxu0 %v5074
      %5367 = vmatprep.subr.mxu0 0.0
      %5368 = vmatpush2.xpose.msra.mxu0 %v5071
      %5369 = vmatprep.subr.mxu0 0.0
      %5370 = vmatpush2.xpose.msra.mxu0 %v5068
      %5371 = vmatprep.subr.mxu0 0.0
      %5372 = vmatpush2.xpose.msra.mxu0 %v5065
      %5373 = vmatprep.subr.mxu0 0.0
      %5374 = vmatpush2.xpose.msra.mxu0 %v5062
      %5375 = vmatprep.subr.mxu0 0.0
      %5376 = vmatpush2.xpose.msra.mxu0 %v5059
      %5377 = vmatprep.subr.mxu0 0.0
      %5378 = vmatpush2.xpose.msra.mxu0 %v5056
      %5379 = vmatprep.subr.mxu0 0.0
      %5380 = vmatpush2.xpose.msra.mxu0 %v5053
      %5381 = vmatprep.subr.mxu0 0.0
      %5382 = vmatpush2.xpose.msra.mxu0 %v5050
      %5383 = vmatprep.subr.mxu0 0.0
      %5384 = vmatpush2.xpose.msra.mxu0 %v5047
      %5385 = vmatprep.subr.mxu0 0.0
      %5386 = vmatpush2.xpose.msra.mxu0 %v5044
      %5387 = vmatprep.subr.mxu0 0.0
      %5388 = vmatpush2.xpose.msra.mxu0 %v5041
      %5389 = vmatprep.subr.mxu0 0.0
      %5390 = vmatpush2.xpose.msra.mxu0 %v5038
      %5391 = vmatprep.subr.mxu0 0.0
      %5392 = vmatpush2.xpose.msra.mxu0 %v5035
      %5393 = vmatprep.subr.mxu0 0.0
      %5394 = vmatpush2.xpose.msra.mxu0 %v5032
      %5395 = vmatprep.subr.mxu0 0.0
      %5396 = vmatpush2.xpose.msra.mxu0 %v5029
      %5397 = vmatprep.mubr.f32.mxu0 0.0
      %5398 = vmatmul.mubr.f32.gmra.mxu0 %v4789
      %v5399 = vpop.f32.mrf.mxu0
      %v5400 = vadd.f32 %v3379, %v5399
      %v5401 = vpop.f32.mrf.mxu0
      %v5402 = vadd.f32 %v3380, %v5401
      %5403 = vmatprep.mubr.f32.mxu0 0.0
      %5404 = vmatmul.mubr.f32.gmra.mxu0 %v4792
      %v5405 = vpop.f32.mrf.mxu0
      %v5406 = vadd.f32 %v3383, %v5405
      %v5407 = vpop.f32.mrf.mxu0
      %v5408 = vadd.f32 %v3384, %v5407
      %5409 = vmatprep.mubr.f32.mxu0 0.0
      %5410 = vmatmul.mubr.f32.gmra.mxu0 %v4795
      %v5411 = vpop.f32.mrf.mxu0
      %v5412 = vadd.f32 %v3387, %v5411
      %v5413 = vpop.f32.mrf.mxu0
      %v5414 = vadd.f32 %v3388, %v5413
      %5415 = vmatprep.mubr.f32.mxu0 0.0
      %5416 = vmatmul.mubr.f32.gmra.mxu0 %v4798
      %v5417 = vpop.f32.mrf.mxu0
      %v5418 = vadd.f32 %v3391, %v5417
      %v5419 = vpop.f32.mrf.mxu0
      %v5420 = vadd.f32 %v3392, %v5419
      %5421 = vmatprep.mubr.f32.mxu0 0.0
      %5422 = vmatmul.mubr.f32.gmra.mxu0 %v4801
      %v5423 = vpop.f32.mrf.mxu0
      %v5424 = vadd.f32 %v3395, %v5423
      %v5425 = vpop.f32.mrf.mxu0
      %v5426 = vadd.f32 %v3396, %v5425
      %5427 = vmatprep.mubr.f32.mxu0 0.0
      %5428 = vmatmul.mubr.f32.gmra.mxu0 %v4804
      %v5429 = vpop.f32.mrf.mxu0
      %v5430 = vadd.f32 %v3399, %v5429
      %v5431 = vpop.f32.mrf.mxu0
      %v5432 = vadd.f32 %v3400, %v5431
      %5433 = vmatprep.mubr.f32.mxu0 0.0
      %5434 = vmatmul.mubr.f32.gmra.mxu0 %v4807
      %v5435 = vpop.f32.mrf.mxu0
      %v5436 = vadd.f32 %v3403, %v5435
      %v5437 = vpop.f32.mrf.mxu0
      %v5438 = vadd.f32 %v3404, %v5437
      %5439 = vmatprep.mubr.f32.mxu0 0.0
      %5440 = vmatmul.mubr.f32.gmra.mxu0 %v4810
      %v5441 = vpop.f32.mrf.mxu0
      %v5442 = vadd.f32 %v3407, %v5441
      %v5443 = vpop.f32.mrf.mxu0
      %v5444 = vadd.f32 %v3408, %v5443
      %5445 = vmatprep.mubr.f32.mxu0 0.0
      %5446 = vmatmul.mubr.f32.gmra.mxu0 %v4813
      %v5447 = vpop.f32.mrf.mxu0
      %v5448 = vadd.f32 %v3411, %v5447
      %v5449 = vpop.f32.mrf.mxu0
      %v5450 = vadd.f32 %v3412, %v5449
      %5451 = vmatprep.mubr.f32.mxu0 0.0
      %5452 = vmatmul.mubr.f32.gmra.mxu0 %v4816
      %v5453 = vpop.f32.mrf.mxu0
      %v5454 = vadd.f32 %v3415, %v5453
      %v5455 = vpop.f32.mrf.mxu0
      %v5456 = vadd.f32 %v3416, %v5455
      %5457 = vmatprep.mubr.f32.mxu0 0.0
      %5458 = vmatmul.mubr.f32.gmra.mxu0 %v4819
      %v5459 = vpop.f32.mrf.mxu0
      %v5460 = vadd.f32 %v3419, %v5459
      %v5461 = vpop.f32.mrf.mxu0
      %v5462 = vadd.f32 %v3420, %v5461
      %5463 = vmatprep.mubr.f32.mxu0 0.0
      %5464 = vmatmul.mubr.f32.gmra.mxu0 %v4822
      %v5465 = vpop.f32.mrf.mxu0
      %v5466 = vadd.f32 %v3423, %v5465
      %v5467 = vpop.f32.mrf.mxu0
      %v5468 = vadd.f32 %v3424, %v5467
      %5469 = vmatprep.mubr.f32.mxu0 0.0
      %5470 = vmatmul.mubr.f32.gmra.mxu0 %v4825
      %v5471 = vpop.f32.mrf.mxu0
      %v5472 = vadd.f32 %v3427, %v5471
      %v5473 = vpop.f32.mrf.mxu0
      %v5474 = vadd.f32 %v3428, %v5473
      %5475 = vmatprep.mubr.f32.mxu0 0.0
      %5476 = vmatmul.mubr.f32.gmra.mxu0 %v4828
      %v5477 = vpop.f32.mrf.mxu0
      %v5478 = vadd.f32 %v3431, %v5477
      %v5479 = vpop.f32.mrf.mxu0
      %v5480 = vadd.f32 %v3432, %v5479
      %5481 = vmatprep.mubr.f32.mxu0 0.0
      %5482 = vmatmul.mubr.f32.gmra.mxu0 %v4831
      %v5483 = vpop.f32.mrf.mxu0
      %v5484 = vadd.f32 %v3435, %v5483
      %v5485 = vpop.f32.mrf.mxu0
      %v5486 = vadd.f32 %v3436, %v5485
      %5487 = vmatprep.mubr.f32.mxu0 0.0
      %5488 = vmatmul.mubr.f32.gmra.mxu0 %v4834
      %v5489 = vpop.f32.mrf.mxu0
      %v5490 = vadd.f32 %v3439, %v5489
      %v5491 = vpop.f32.mrf.mxu0
      %v5492 = vadd.f32 %v3440, %v5491
      %5493 = vmatprep.mubr.f32.mxu0 0.0
      %5494 = vmatmul.mubr.f32.gmra.mxu0 %v4837
      %v5495 = vpop.f32.mrf.mxu0
      %v5496 = vadd.f32 %v3443, %v5495
      %v5497 = vpop.f32.mrf.mxu0
      %v5498 = vadd.f32 %v3444, %v5497
      %5499 = vmatprep.mubr.f32.mxu0 0.0
      %5500 = vmatmul.mubr.f32.gmra.mxu0 %v4840
      %v5501 = vpop.f32.mrf.mxu0
      %v5502 = vadd.f32 %v3447, %v5501
      %v5503 = vpop.f32.mrf.mxu0
      %v5504 = vadd.f32 %v3448, %v5503
      %5505 = vmatprep.mubr.f32.mxu0 0.0
      %5506 = vmatmul.mubr.f32.gmra.mxu0 %v4843
      %v5507 = vpop.f32.mrf.mxu0
      %v5508 = vadd.f32 %v3451, %v5507
      %v5509 = vpop.f32.mrf.mxu0
      %v5510 = vadd.f32 %v3452, %v5509
      %5511 = vmatprep.mubr.f32.mxu0 0.0
      %5512 = vmatmul.mubr.f32.gmra.mxu0 %v4846
      %v5513 = vpop.f32.mrf.mxu0
      %v5514 = vadd.f32 %v3455, %v5513
      %v5515 = vpop.f32.mrf.mxu0
      %v5516 = vadd.f32 %v3456, %v5515
      %5517 = vmatprep.mubr.f32.mxu0 0.0
      %5518 = vmatmul.mubr.f32.gmra.mxu0 %v4849
      %v5519 = vpop.f32.mrf.mxu0
      %v5520 = vadd.f32 %v3459, %v5519
      %v5521 = vpop.f32.mrf.mxu0
      %v5522 = vadd.f32 %v3460, %v5521
      %5523 = vmatprep.mubr.f32.mxu0 0.0
      %5524 = vmatmul.mubr.f32.gmra.mxu0 %v4852
      %v5525 = vpop.f32.mrf.mxu0
      %v5526 = vadd.f32 %v3463, %v5525
      %v5527 = vpop.f32.mrf.mxu0
      %v5528 = vadd.f32 %v3464, %v5527
      %5529 = vmatprep.mubr.f32.mxu0 0.0
      %5530 = vmatmul.mubr.f32.gmra.mxu0 %v4855
      %v5531 = vpop.f32.mrf.mxu0
      %v5532 = vadd.f32 %v3467, %v5531
      %v5533 = vpop.f32.mrf.mxu0
      %v5534 = vadd.f32 %v3468, %v5533
      %5535 = vmatprep.mubr.f32.mxu0 0.0
      %5536 = vmatmul.mubr.f32.gmra.mxu0 %v4858
      %v5537 = vpop.f32.mrf.mxu0
      %v5538 = vadd.f32 %v3471, %v5537
      %v5539 = vpop.f32.mrf.mxu0
      %v5540 = vadd.f32 %v3472, %v5539
      %5541 = vmatprep.mubr.f32.mxu0 0.0
      %5542 = vmatmul.mubr.f32.gmra.mxu0 %v4861
      %v5543 = vpop.f32.mrf.mxu0
      %v5544 = vadd.f32 %v3475, %v5543
      %v5545 = vpop.f32.mrf.mxu0
      %v5546 = vadd.f32 %v3476, %v5545
      %5547 = vmatprep.mubr.f32.mxu0 0.0
      %5548 = vmatmul.mubr.f32.gmra.mxu0 %v4864
      %v5549 = vpop.f32.mrf.mxu0
      %v5550 = vadd.f32 %v3479, %v5549
      %v5551 = vpop.f32.mrf.mxu0
      %v5552 = vadd.f32 %v3480, %v5551
      %5553 = vmatprep.mubr.f32.mxu0 0.0
      %5554 = vmatmul.mubr.f32.gmra.mxu0 %v4867
      %v5555 = vpop.f32.mrf.mxu0
      %v5556 = vadd.f32 %v3483, %v5555
      %v5557 = vpop.f32.mrf.mxu0
      %v5558 = vadd.f32 %v3484, %v5557
      %5559 = vmatprep.mubr.f32.mxu0 0.0
      %5560 = vmatmul.mubr.f32.gmra.mxu0 %v4870
      %v5561 = vpop.f32.mrf.mxu0
      %v5562 = vadd.f32 %v3487, %v5561
      %v5563 = vpop.f32.mrf.mxu0
      %v5564 = vadd.f32 %v3488, %v5563
      %5565 = vmatprep.mubr.f32.mxu0 0.0
      %5566 = vmatmul.mubr.f32.gmra.mxu0 %v4873
      %v5567 = vpop.f32.mrf.mxu0
      %v5568 = vadd.f32 %v3491, %v5567
      %v5569 = vpop.f32.mrf.mxu0
      %v5570 = vadd.f32 %v3492, %v5569
      %5571 = vmatprep.mubr.f32.mxu0 0.0
      %5572 = vmatmul.mubr.f32.gmra.mxu0 %v4876
      %v5573 = vpop.f32.mrf.mxu0
      %v5574 = vadd.f32 %v3495, %v5573
      %v5575 = vpop.f32.mrf.mxu0
      %v5576 = vadd.f32 %v3496, %v5575
      %5577 = vmatprep.mubr.f32.mxu0 0.0
      %5578 = vmatmul.mubr.f32.gmra.mxu0 %v4879
      %v5579 = vpop.f32.mrf.mxu0
      %v5580 = vadd.f32 %v3499, %v5579
      %v5581 = vpop.f32.mrf.mxu0
      %v5582 = vadd.f32 %v3500, %v5581
      %5583 = vmatprep.mubr.f32.mxu0 0.0
      %5584 = vmatmul.mubr.f32.gmra.mxu0 %v4882
      %v5585 = vpop.f32.mrf.mxu0
      %v5586 = vadd.f32 %v3503, %v5585
      %v5587 = vpop.f32.mrf.mxu0
      %v5588 = vadd.f32 %v3504, %v5587
      %5589 = vdwg.mxu0
      %v5590 = vmax.f32 %v5143, %v5145
      %v5591 = vmax.f32 %v5590, %v5400
      %v5592 = vmax.f32 %v5591, %v5402
      %5593 = vmax.xlane.f32.xlu0 %v5592
      %v5594 = vpop.xlane.xlu0 %5593
      %v5595 = vmax.f32 %v5149, %v5151
      %v5596 = vmax.f32 %v5595, %v5406
      %v5597 = vmax.f32 %v5596, %v5408
      %5598 = vmax.xlane.f32.xlu0 %v5597
      %v5599 = vpop.xlane.xlu0 %5598
      %v5600 = vmax.f32 %v5155, %v5157
      %v5601 = vmax.f32 %v5600, %v5412
      %v5602 = vmax.f32 %v5601, %v5414
      %5603 = vmax.xlane.f32.xlu0 %v5602
      %v5604 = vpop.xlane.xlu0 %5603
      %v5605 = vmax.f32 %v5161, %v5163
      %v5606 = vmax.f32 %v5605, %v5418
      %v5607 = vmax.f32 %v5606, %v5420
      %5608 = vmax.xlane.f32.xlu0 %v5607
      %v5609 = vpop.xlane.xlu0 %5608
      %v5610 = vmax.f32 %v5167, %v5169
      %v5611 = vmax.f32 %v5610, %v5424
      %v5612 = vmax.f32 %v5611, %v5426
      %5613 = vmax.xlane.f32.xlu0 %v5612
      %v5614 = vpop.xlane.xlu0 %5613
      %v5615 = vmax.f32 %v5173, %v5175
      %v5616 = vmax.f32 %v5615, %v5430
      %v5617 = vmax.f32 %v5616, %v5432
      %5618 = vmax.xlane.f32.xlu0 %v5617
      %v5619 = vpop.xlane.xlu0 %5618
      %v5620 = vmax.f32 %v5179, %v5181
      %v5621 = vmax.f32 %v5620, %v5436
      %v5622 = vmax.f32 %v5621, %v5438
      %5623 = vmax.xlane.f32.xlu0 %v5622
      %v5624 = vpop.xlane.xlu0 %5623
      %v5625 = vmax.f32 %v5185, %v5187
      %v5626 = vmax.f32 %v5625, %v5442
      %v5627 = vmax.f32 %v5626, %v5444
      %5628 = vmax.xlane.f32.xlu0 %v5627
      %v5629 = vpop.xlane.xlu0 %5628
      %v5630 = vmax.f32 %v5191, %v5193
      %v5631 = vmax.f32 %v5630, %v5448
      %v5632 = vmax.f32 %v5631, %v5450
      %5633 = vmax.xlane.f32.xlu0 %v5632
      %v5634 = vpop.xlane.xlu0 %5633
      %v5635 = vmax.f32 %v5197, %v5199
      %v5636 = vmax.f32 %v5635, %v5454
      %v5637 = vmax.f32 %v5636, %v5456
      %5638 = vmax.xlane.f32.xlu0 %v5637
      %v5639 = vpop.xlane.xlu0 %5638
      %v5640 = vmax.f32 %v5203, %v5205
      %v5641 = vmax.f32 %v5640, %v5460
      %v5642 = vmax.f32 %v5641, %v5462
      %5643 = vmax.xlane.f32.xlu0 %v5642
      %v5644 = vpop.xlane.xlu0 %5643
      %v5645 = vmax.f32 %v5209, %v5211
      %v5646 = vmax.f32 %v5645, %v5466
      %v5647 = vmax.f32 %v5646, %v5468
      %5648 = vmax.xlane.f32.xlu0 %v5647
      %v5649 = vpop.xlane.xlu0 %5648
      %v5650 = vmax.f32 %v5215, %v5217
      %v5651 = vmax.f32 %v5650, %v5472
      %v5652 = vmax.f32 %v5651, %v5474
      %5653 = vmax.xlane.f32.xlu0 %v5652
      %v5654 = vpop.xlane.xlu0 %5653
      %v5655 = vmax.f32 %v5221, %v5223
      %v5656 = vmax.f32 %v5655, %v5478
      %v5657 = vmax.f32 %v5656, %v5480
      %5658 = vmax.xlane.f32.xlu0 %v5657
      %v5659 = vpop.xlane.xlu0 %5658
      %v5660 = vmax.f32 %v5227, %v5229
      %v5661 = vmax.f32 %v5660, %v5484
      %v5662 = vmax.f32 %v5661, %v5486
      %5663 = vmax.xlane.f32.xlu0 %v5662
      %v5664 = vpop.xlane.xlu0 %5663
      %v5665 = vmax.f32 %v5233, %v5235
      %v5666 = vmax.f32 %v5665, %v5490
      %v5667 = vmax.f32 %v5666, %v5492
      %5668 = vmax.xlane.f32.xlu0 %v5667
      %v5669 = vpop.xlane.xlu0 %5668
      %v5670 = vmax.f32 %v5239, %v5241
      %v5671 = vmax.f32 %v5670, %v5496
      %v5672 = vmax.f32 %v5671, %v5498
      %5673 = vmax.xlane.f32.xlu0 %v5672
      %v5674 = vpop.xlane.xlu0 %5673
      %v5675 = vmax.f32 %v5245, %v5247
      %v5676 = vmax.f32 %v5675, %v5502
      %v5677 = vmax.f32 %v5676, %v5504
      %5678 = vmax.xlane.f32.xlu0 %v5677
      %v5679 = vpop.xlane.xlu0 %5678
      %v5680 = vmax.f32 %v5251, %v5253
      %v5681 = vmax.f32 %v5680, %v5508
      %v5682 = vmax.f32 %v5681, %v5510
      %5683 = vmax.xlane.f32.xlu0 %v5682
      %v5684 = vpop.xlane.xlu0 %5683
      %v5685 = vmax.f32 %v5257, %v5259
      %v5686 = vmax.f32 %v5685, %v5514
      %v5687 = vmax.f32 %v5686, %v5516
      %5688 = vmax.xlane.f32.xlu0 %v5687
      %v5689 = vpop.xlane.xlu0 %5688
      %v5690 = vmax.f32 %v5263, %v5265
      %v5691 = vmax.f32 %v5690, %v5520
      %v5692 = vmax.f32 %v5691, %v5522
      %5693 = vmax.xlane.f32.xlu0 %v5692
      %v5694 = vpop.xlane.xlu0 %5693
      %v5695 = vmax.f32 %v5269, %v5271
      %v5696 = vmax.f32 %v5695, %v5526
      %v5697 = vmax.f32 %v5696, %v5528
      %5698 = vmax.xlane.f32.xlu0 %v5697
      %v5699 = vpop.xlane.xlu0 %5698
      %v5700 = vmax.f32 %v5275, %v5277
      %v5701 = vmax.f32 %v5700, %v5532
      %v5702 = vmax.f32 %v5701, %v5534
      %5703 = vmax.xlane.f32.xlu0 %v5702
      %v5704 = vpop.xlane.xlu0 %5703
      %v5705 = vmax.f32 %v5281, %v5283
      %v5706 = vmax.f32 %v5705, %v5538
      %v5707 = vmax.f32 %v5706, %v5540
      %5708 = vmax.xlane.f32.xlu0 %v5707
      %v5709 = vpop.xlane.xlu0 %5708
      %v5710 = vmax.f32 %v5287, %v5289
      %v5711 = vmax.f32 %v5710, %v5544
      %v5712 = vmax.f32 %v5711, %v5546
      %5713 = vmax.xlane.f32.xlu0 %v5712
      %v5714 = vpop.xlane.xlu0 %5713
      %v5715 = vmax.f32 %v5293, %v5295
      %v5716 = vmax.f32 %v5715, %v5550
      %v5717 = vmax.f32 %v5716, %v5552
      %5718 = vmax.xlane.f32.xlu0 %v5717
      %v5719 = vpop.xlane.xlu0 %5718
      %v5720 = vmax.f32 %v5299, %v5301
      %v5721 = vmax.f32 %v5720, %v5556
      %v5722 = vmax.f32 %v5721, %v5558
      %5723 = vmax.xlane.f32.xlu0 %v5722
      %v5724 = vpop.xlane.xlu0 %5723
      %v5725 = vmax.f32 %v5305, %v5307
      %v5726 = vmax.f32 %v5725, %v5562
      %v5727 = vmax.f32 %v5726, %v5564
      %5728 = vmax.xlane.f32.xlu0 %v5727
      %v5729 = vpop.xlane.xlu0 %5728
      %v5730 = vmax.f32 %v5311, %v5313
      %v5731 = vmax.f32 %v5730, %v5568
      %v5732 = vmax.f32 %v5731, %v5570
      %5733 = vmax.xlane.f32.xlu0 %v5732
      %v5734 = vpop.xlane.xlu0 %5733
      %v5735 = vmax.f32 %v5317, %v5319
      %v5736 = vmax.f32 %v5735, %v5574
      %v5737 = vmax.f32 %v5736, %v5576
      %5738 = vmax.xlane.f32.xlu0 %v5737
      %v5739 = vpop.xlane.xlu0 %5738
      %v5740 = vmax.f32 %v5323, %v5325
      %v5741 = vmax.f32 %v5740, %v5580
      %v5742 = vmax.f32 %v5741, %v5582
      %5743 = vmax.xlane.f32.xlu0 %v5742
      %v5744 = vpop.xlane.xlu0 %5743
      %v5745 = vmax.f32 %v5329, %v5331
      %v5746 = vmax.f32 %v5745, %v5586
      %v5747 = vmax.f32 %v5746, %v5588
      %5748 = vmax.xlane.f32.xlu0 %v5747
      %v5749 = vpop.xlane.xlu0 %5748
      %v5750 = vsub.f32 %v5143, %v5594
      %v5751 = vsub.f32 %v5145, %v5594
      %v5752 = vsub.f32 %v5400, %v5594
      %v5753 = vsub.f32 %v5402, %v5594
      %v5754 = vsub.f32 %v5149, %v5599
      %v5755 = vsub.f32 %v5151, %v5599
      %v5756 = vsub.f32 %v5406, %v5599
      %v5757 = vsub.f32 %v5408, %v5599
      %v5758 = vsub.f32 %v5155, %v5604
      %v5759 = vsub.f32 %v5157, %v5604
      %v5760 = vsub.f32 %v5412, %v5604
      %v5761 = vsub.f32 %v5414, %v5604
      %v5762 = vsub.f32 %v5161, %v5609
      %v5763 = vsub.f32 %v5163, %v5609
      %v5764 = vsub.f32 %v5418, %v5609
      %v5765 = vsub.f32 %v5420, %v5609
      %v5766 = vsub.f32 %v5167, %v5614
      %v5767 = vsub.f32 %v5169, %v5614
      %v5768 = vsub.f32 %v5424, %v5614
      %v5769 = vsub.f32 %v5426, %v5614
      %v5770 = vsub.f32 %v5173, %v5619
      %v5771 = vsub.f32 %v5175, %v5619
      %v5772 = vsub.f32 %v5430, %v5619
      %v5773 = vsub.f32 %v5432, %v5619
      %v5774 = vsub.f32 %v5179, %v5624
      %v5775 = vsub.f32 %v5181, %v5624
      %v5776 = vsub.f32 %v5436, %v5624
      %v5777 = vsub.f32 %v5438, %v5624
      %v5778 = vsub.f32 %v5185, %v5629
      %v5779 = vsub.f32 %v5187, %v5629
      %v5780 = vsub.f32 %v5442, %v5629
      %v5781 = vsub.f32 %v5444, %v5629
      %v5782 = vsub.f32 %v5191, %v5634
      %v5783 = vsub.f32 %v5193, %v5634
      %v5784 = vsub.f32 %v5448, %v5634
      %v5785 = vsub.f32 %v5450, %v5634
      %v5786 = vsub.f32 %v5197, %v5639
      %v5787 = vsub.f32 %v5199, %v5639
      %v5788 = vsub.f32 %v5454, %v5639
      %v5789 = vsub.f32 %v5456, %v5639
      %v5790 = vsub.f32 %v5203, %v5644
      %v5791 = vsub.f32 %v5205, %v5644
      %v5792 = vsub.f32 %v5460, %v5644
      %v5793 = vsub.f32 %v5462, %v5644
      %v5794 = vsub.f32 %v5209, %v5649
      %v5795 = vsub.f32 %v5211, %v5649
      %v5796 = vsub.f32 %v5466, %v5649
      %v5797 = vsub.f32 %v5468, %v5649
      %v5798 = vsub.f32 %v5215, %v5654
      %v5799 = vsub.f32 %v5217, %v5654
      %v5800 = vsub.f32 %v5472, %v5654
      %v5801 = vsub.f32 %v5474, %v5654
      %v5802 = vsub.f32 %v5221, %v5659
      %v5803 = vsub.f32 %v5223, %v5659
      %v5804 = vsub.f32 %v5478, %v5659
      %v5805 = vsub.f32 %v5480, %v5659
      %v5806 = vsub.f32 %v5227, %v5664
      %v5807 = vsub.f32 %v5229, %v5664
      %v5808 = vsub.f32 %v5484, %v5664
      %v5809 = vsub.f32 %v5486, %v5664
      %v5810 = vsub.f32 %v5233, %v5669
      %v5811 = vsub.f32 %v5235, %v5669
      %v5812 = vsub.f32 %v5490, %v5669
      %v5813 = vsub.f32 %v5492, %v5669
      %v5814 = vsub.f32 %v5239, %v5674
      %v5815 = vsub.f32 %v5241, %v5674
      %v5816 = vsub.f32 %v5496, %v5674
      %v5817 = vsub.f32 %v5498, %v5674
      %v5818 = vsub.f32 %v5245, %v5679
      %v5819 = vsub.f32 %v5247, %v5679
      %v5820 = vsub.f32 %v5502, %v5679
      %v5821 = vsub.f32 %v5504, %v5679
      %v5822 = vsub.f32 %v5251, %v5684
      %v5823 = vsub.f32 %v5253, %v5684
      %v5824 = vsub.f32 %v5508, %v5684
      %v5825 = vsub.f32 %v5510, %v5684
      %v5826 = vsub.f32 %v5257, %v5689
      %v5827 = vsub.f32 %v5259, %v5689
      %v5828 = vsub.f32 %v5514, %v5689
      %v5829 = vsub.f32 %v5516, %v5689
      %v5830 = vsub.f32 %v5263, %v5694
      %v5831 = vsub.f32 %v5265, %v5694
      %v5832 = vsub.f32 %v5520, %v5694
      %v5833 = vsub.f32 %v5522, %v5694
      %v5834 = vsub.f32 %v5269, %v5699
      %v5835 = vsub.f32 %v5271, %v5699
      %v5836 = vsub.f32 %v5526, %v5699
      %v5837 = vsub.f32 %v5528, %v5699
      %v5838 = vsub.f32 %v5275, %v5704
      %v5839 = vsub.f32 %v5277, %v5704
      %v5840 = vsub.f32 %v5532, %v5704
      %v5841 = vsub.f32 %v5534, %v5704
      %v5842 = vsub.f32 %v5281, %v5709
      %v5843 = vsub.f32 %v5283, %v5709
      %v5844 = vsub.f32 %v5538, %v5709
      %v5845 = vsub.f32 %v5540, %v5709
      %v5846 = vsub.f32 %v5287, %v5714
      %v5847 = vsub.f32 %v5289, %v5714
      %v5848 = vsub.f32 %v5544, %v5714
      %v5849 = vsub.f32 %v5546, %v5714
      %v5850 = vsub.f32 %v5293, %v5719
      %v5851 = vsub.f32 %v5295, %v5719
      %v5852 = vsub.f32 %v5550, %v5719
      %v5853 = vsub.f32 %v5552, %v5719
      %v5854 = vsub.f32 %v5299, %v5724
      %v5855 = vsub.f32 %v5301, %v5724
      %v5856 = vsub.f32 %v5556, %v5724
      %v5857 = vsub.f32 %v5558, %v5724
      %v5858 = vsub.f32 %v5305, %v5729
      %v5859 = vsub.f32 %v5307, %v5729
      %v5860 = vsub.f32 %v5562, %v5729
      %v5861 = vsub.f32 %v5564, %v5729
      %v5862 = vsub.f32 %v5311, %v5734
      %v5863 = vsub.f32 %v5313, %v5734
      %v5864 = vsub.f32 %v5568, %v5734
      %v5865 = vsub.f32 %v5570, %v5734
      %v5866 = vsub.f32 %v5317, %v5739
      %v5867 = vsub.f32 %v5319, %v5739
      %v5868 = vsub.f32 %v5574, %v5739
      %v5869 = vsub.f32 %v5576, %v5739
      %v5870 = vsub.f32 %v5323, %v5744
      %v5871 = vsub.f32 %v5325, %v5744
      %v5872 = vsub.f32 %v5580, %v5744
      %v5873 = vsub.f32 %v5582, %v5744
      %v5874 = vsub.f32 %v5329, %v5749
      %v5875 = vsub.f32 %v5331, %v5749
      %v5876 = vsub.f32 %v5586, %v5749
      %v5877 = vsub.f32 %v5588, %v5749
      %v5878 = vmul.f32 %v5750, 1.442695
      %v5879 = vpow.pop %v5878
      %v5880 = vmul.f32 %v5751, 1.442695
      %v5881 = vpow.pop %v5880
      %v5882 = vmul.f32 %v5752, 1.442695
      %v5883 = vpow.pop %v5882
      %v5884 = vmul.f32 %v5753, 1.442695
      %v5885 = vpow.pop %v5884
      %v5886 = vmul.f32 %v5754, 1.442695
      %v5887 = vpow.pop %v5886
      %v5888 = vmul.f32 %v5755, 1.442695
      %v5889 = vpow.pop %v5888
      %v5890 = vmul.f32 %v5756, 1.442695
      %v5891 = vpow.pop %v5890
      %v5892 = vmul.f32 %v5757, 1.442695
      %v5893 = vpow.pop %v5892
      %v5894 = vmul.f32 %v5758, 1.442695
      %v5895 = vpow.pop %v5894
      %v5896 = vmul.f32 %v5759, 1.442695
      %v5897 = vpow.pop %v5896
      %v5898 = vmul.f32 %v5760, 1.442695
      %v5899 = vpow.pop %v5898
      %v5900 = vmul.f32 %v5761, 1.442695
      %v5901 = vpow.pop %v5900
      %v5902 = vmul.f32 %v5762, 1.442695
      %v5903 = vpow.pop %v5902
      %v5904 = vmul.f32 %v5763, 1.442695
      %v5905 = vpow.pop %v5904
      %v5906 = vmul.f32 %v5764, 1.442695
      %v5907 = vpow.pop %v5906
      %v5908 = vmul.f32 %v5765, 1.442695
      %v5909 = vpow.pop %v5908
      %v5910 = vmul.f32 %v5766, 1.442695
      %v5911 = vpow.pop %v5910
      %v5912 = vmul.f32 %v5767, 1.442695
      %v5913 = vpow.pop %v5912
      %v5914 = vmul.f32 %v5768, 1.442695
      %v5915 = vpow.pop %v5914
      %v5916 = vmul.f32 %v5769, 1.442695
      %v5917 = vpow.pop %v5916
      %v5918 = vmul.f32 %v5770, 1.442695
      %v5919 = vpow.pop %v5918
      %v5920 = vmul.f32 %v5771, 1.442695
      %v5921 = vpow.pop %v5920
      %v5922 = vmul.f32 %v5772, 1.442695
      %v5923 = vpow.pop %v5922
      %v5924 = vmul.f32 %v5773, 1.442695
      %v5925 = vpow.pop %v5924
      %v5926 = vmul.f32 %v5774, 1.442695
      %v5927 = vpow.pop %v5926
      %v5928 = vmul.f32 %v5775, 1.442695
      %v5929 = vpow.pop %v5928
      %v5930 = vmul.f32 %v5776, 1.442695
      %v5931 = vpow.pop %v5930
      %v5932 = vmul.f32 %v5777, 1.442695
      %v5933 = vpow.pop %v5932
      %v5934 = vmul.f32 %v5778, 1.442695
      %v5935 = vpow.pop %v5934
      %v5936 = vmul.f32 %v5779, 1.442695
      %v5937 = vpow.pop %v5936
      %v5938 = vmul.f32 %v5780, 1.442695
      %v5939 = vpow.pop %v5938
      %v5940 = vmul.f32 %v5781, 1.442695
      %v5941 = vpow.pop %v5940
      %v5942 = vmul.f32 %v5782, 1.442695
      %v5943 = vpow.pop %v5942
      %v5944 = vmul.f32 %v5783, 1.442695
      %v5945 = vpow.pop %v5944
      %v5946 = vmul.f32 %v5784, 1.442695
      %v5947 = vpow.pop %v5946
      %v5948 = vmul.f32 %v5785, 1.442695
      %v5949 = vpow.pop %v5948
      %v5950 = vmul.f32 %v5786, 1.442695
      %v5951 = vpow.pop %v5950
      %v5952 = vmul.f32 %v5787, 1.442695
      %v5953 = vpow.pop %v5952
      %v5954 = vmul.f32 %v5788, 1.442695
      %v5955 = vpow.pop %v5954
      %v5956 = vmul.f32 %v5789, 1.442695
      %v5957 = vpow.pop %v5956
      %v5958 = vmul.f32 %v5790, 1.442695
      %v5959 = vpow.pop %v5958
      %v5960 = vmul.f32 %v5791, 1.442695
      %v5961 = vpow.pop %v5960
      %v5962 = vmul.f32 %v5792, 1.442695
      %v5963 = vpow.pop %v5962
      %v5964 = vmul.f32 %v5793, 1.442695
      %v5965 = vpow.pop %v5964
      %v5966 = vmul.f32 %v5794, 1.442695
      %v5967 = vpow.pop %v5966
      %v5968 = vmul.f32 %v5795, 1.442695
      %v5969 = vpow.pop %v5968
      %v5970 = vmul.f32 %v5796, 1.442695
      %v5971 = vpow.pop %v5970
      %v5972 = vmul.f32 %v5797, 1.442695
      %v5973 = vpow.pop %v5972
      %v5974 = vmul.f32 %v5798, 1.442695
      %v5975 = vpow.pop %v5974
      %v5976 = vmul.f32 %v5799, 1.442695
      %v5977 = vpow.pop %v5976
      %v5978 = vmul.f32 %v5800, 1.442695
      %v5979 = vpow.pop %v5978
      %v5980 = vmul.f32 %v5801, 1.442695
      %v5981 = vpow.pop %v5980
      %v5982 = vmul.f32 %v5802, 1.442695
      %v5983 = vpow.pop %v5982
      %v5984 = vmul.f32 %v5803, 1.442695
      %v5985 = vpow.pop %v5984
      %v5986 = vmul.f32 %v5804, 1.442695
      %v5987 = vpow.pop %v5986
      %v5988 = vmul.f32 %v5805, 1.442695
      %v5989 = vpow.pop %v5988
      %v5990 = vmul.f32 %v5806, 1.442695
      %v5991 = vpow.pop %v5990
      %v5992 = vmul.f32 %v5807, 1.442695
      %v5993 = vpow.pop %v5992
      %v5994 = vmul.f32 %v5808, 1.442695
      %v5995 = vpow.pop %v5994
      %v5996 = vmul.f32 %v5809, 1.442695
      %v5997 = vpow.pop %v5996
      %v5998 = vmul.f32 %v5810, 1.442695
      %v5999 = vpow.pop %v5998
      %v6000 = vmul.f32 %v5811, 1.442695
      %v6001 = vpow.pop %v6000
      %v6002 = vmul.f32 %v5812, 1.442695
      %v6003 = vpow.pop %v6002
      %v6004 = vmul.f32 %v5813, 1.442695
      %v6005 = vpow.pop %v6004
      %v6006 = vmul.f32 %v5814, 1.442695
      %v6007 = vpow.pop %v6006
      %v6008 = vmul.f32 %v5815, 1.442695
      %v6009 = vpow.pop %v6008
      %v6010 = vmul.f32 %v5816, 1.442695
      %v6011 = vpow.pop %v6010
      %v6012 = vmul.f32 %v5817, 1.442695
      %v6013 = vpow.pop %v6012
      %v6014 = vmul.f32 %v5818, 1.442695
      %v6015 = vpow.pop %v6014
      %v6016 = vmul.f32 %v5819, 1.442695
      %v6017 = vpow.pop %v6016
      %v6018 = vmul.f32 %v5820, 1.442695
      %v6019 = vpow.pop %v6018
      %v6020 = vmul.f32 %v5821, 1.442695
      %v6021 = vpow.pop %v6020
      %v6022 = vmul.f32 %v5822, 1.442695
      %v6023 = vpow.pop %v6022
      %v6024 = vmul.f32 %v5823, 1.442695
      %v6025 = vpow.pop %v6024
      %v6026 = vmul.f32 %v5824, 1.442695
      %v6027 = vpow.pop %v6026
      %v6028 = vmul.f32 %v5825, 1.442695
      %v6029 = vpow.pop %v6028
      %v6030 = vmul.f32 %v5826, 1.442695
      %v6031 = vpow.pop %v6030
      %v6032 = vmul.f32 %v5827, 1.442695
      %v6033 = vpow.pop %v6032
      %v6034 = vmul.f32 %v5828, 1.442695
      %v6035 = vpow.pop %v6034
      %v6036 = vmul.f32 %v5829, 1.442695
      %v6037 = vpow.pop %v6036
      %v6038 = vmul.f32 %v5830, 1.442695
      %v6039 = vpow.pop %v6038
      %v6040 = vmul.f32 %v5831, 1.442695
      %v6041 = vpow.pop %v6040
      %v6042 = vmul.f32 %v5832, 1.442695
      %v6043 = vpow.pop %v6042
      %v6044 = vmul.f32 %v5833, 1.442695
      %v6045 = vpow.pop %v6044
      %v6046 = vmul.f32 %v5834, 1.442695
      %v6047 = vpow.pop %v6046
      %v6048 = vmul.f32 %v5835, 1.442695
      %v6049 = vpow.pop %v6048
      %v6050 = vmul.f32 %v5836, 1.442695
      %v6051 = vpow.pop %v6050
      %v6052 = vmul.f32 %v5837, 1.442695
      %v6053 = vpow.pop %v6052
      %v6054 = vmul.f32 %v5838, 1.442695
      %v6055 = vpow.pop %v6054
      %v6056 = vmul.f32 %v5839, 1.442695
      %v6057 = vpow.pop %v6056
      %v6058 = vmul.f32 %v5840, 1.442695
      %v6059 = vpow.pop %v6058
      %v6060 = vmul.f32 %v5841, 1.442695
      %v6061 = vpow.pop %v6060
      %v6062 = vmul.f32 %v5842, 1.442695
      %v6063 = vpow.pop %v6062
      %v6064 = vmul.f32 %v5843, 1.442695
      %v6065 = vpow.pop %v6064
      %v6066 = vmul.f32 %v5844, 1.442695
      %v6067 = vpow.pop %v6066
      %v6068 = vmul.f32 %v5845, 1.442695
      %v6069 = vpow.pop %v6068
      %v6070 = vmul.f32 %v5846, 1.442695
      %v6071 = vpow.pop %v6070
      %v6072 = vmul.f32 %v5847, 1.442695
      %v6073 = vpow.pop %v6072
      %v6074 = vmul.f32 %v5848, 1.442695
      %v6075 = vpow.pop %v6074
      %v6076 = vmul.f32 %v5849, 1.442695
      %v6077 = vpow.pop %v6076
      %v6078 = vmul.f32 %v5850, 1.442695
      %v6079 = vpow.pop %v6078
      %v6080 = vmul.f32 %v5851, 1.442695
      %v6081 = vpow.pop %v6080
      %v6082 = vmul.f32 %v5852, 1.442695
      %v6083 = vpow.pop %v6082
      %v6084 = vmul.f32 %v5853, 1.442695
      %v6085 = vpow.pop %v6084
      %v6086 = vmul.f32 %v5854, 1.442695
      %v6087 = vpow.pop %v6086
      %v6088 = vmul.f32 %v5855, 1.442695
      %v6089 = vpow.pop %v6088
      %v6090 = vmul.f32 %v5856, 1.442695
      %v6091 = vpow.pop %v6090
      %v6092 = vmul.f32 %v5857, 1.442695
      %v6093 = vpow.pop %v6092
      %v6094 = vmul.f32 %v5858, 1.442695
      %v6095 = vpow.pop %v6094
      %v6096 = vmul.f32 %v5859, 1.442695
      %v6097 = vpow.pop %v6096
      %v6098 = vmul.f32 %v5860, 1.442695
      %v6099 = vpow.pop %v6098
      %v6100 = vmul.f32 %v5861, 1.442695
      %v6101 = vpow.pop %v6100
      %v6102 = vmul.f32 %v5862, 1.442695
      %v6103 = vpow.pop %v6102
      %v6104 = vmul.f32 %v5863, 1.442695
      %v6105 = vpow.pop %v6104
      %v6106 = vmul.f32 %v5864, 1.442695
      %v6107 = vpow.pop %v6106
      %v6108 = vmul.f32 %v5865, 1.442695
      %v6109 = vpow.pop %v6108
      %v6110 = vmul.f32 %v5866, 1.442695
      %v6111 = vpow.pop %v6110
      %v6112 = vmul.f32 %v5867, 1.442695
      %v6113 = vpow.pop %v6112
      %v6114 = vmul.f32 %v5868, 1.442695
      %v6115 = vpow.pop %v6114
      %v6116 = vmul.f32 %v5869, 1.442695
      %v6117 = vpow.pop %v6116
      %v6118 = vmul.f32 %v5870, 1.442695
      %v6119 = vpow.pop %v6118
      %v6120 = vmul.f32 %v5871, 1.442695
      %v6121 = vpow.pop %v6120
      %v6122 = vmul.f32 %v5872, 1.442695
      %v6123 = vpow.pop %v6122
      %v6124 = vmul.f32 %v5873, 1.442695
      %v6125 = vpow.pop %v6124
      %v6126 = vmul.f32 %v5874, 1.442695
      %v6127 = vpow.pop %v6126
      %v6128 = vmul.f32 %v5875, 1.442695
      %v6129 = vpow.pop %v6128
      %v6130 = vmul.f32 %v5876, 1.442695
      %v6131 = vpow.pop %v6130
      %v6132 = vmul.f32 %v5877, 1.442695
      %v6133 = vpow.pop %v6132
      %v6134 = vadd.f32 %v5879, %v5881
      %v6135 = vadd.f32 %v6134, %v5883
      %v6136 = vadd.f32 %v6135, %v5885
      %6137 = vadd.xlane.f32.xlu0 %v6136
      %v6138 = vpop.xlane.xlu0 %6137
      %v6139 = vadd.f32 %v5887, %v5889
      %v6140 = vadd.f32 %v6139, %v5891
      %v6141 = vadd.f32 %v6140, %v5893
      %6142 = vadd.xlane.f32.xlu0 %v6141
      %v6143 = vpop.xlane.xlu0 %6142
      %v6144 = vadd.f32 %v5895, %v5897
      %v6145 = vadd.f32 %v6144, %v5899
      %v6146 = vadd.f32 %v6145, %v5901
      %6147 = vadd.xlane.f32.xlu0 %v6146
      %v6148 = vpop.xlane.xlu0 %6147
      %v6149 = vadd.f32 %v5903, %v5905
      %v6150 = vadd.f32 %v6149, %v5907
      %v6151 = vadd.f32 %v6150, %v5909
      %6152 = vadd.xlane.f32.xlu0 %v6151
      %v6153 = vpop.xlane.xlu0 %6152
      %v6154 = vadd.f32 %v5911, %v5913
      %v6155 = vadd.f32 %v6154, %v5915
      %v6156 = vadd.f32 %v6155, %v5917
      %6157 = vadd.xlane.f32.xlu0 %v6156
      %v6158 = vpop.xlane.xlu0 %6157
      %v6159 = vadd.f32 %v5919, %v5921
      %v6160 = vadd.f32 %v6159, %v5923
      %v6161 = vadd.f32 %v6160, %v5925
      %6162 = vadd.xlane.f32.xlu0 %v6161
      %v6163 = vpop.xlane.xlu0 %6162
      %v6164 = vadd.f32 %v5927, %v5929
      %v6165 = vadd.f32 %v6164, %v5931
      %v6166 = vadd.f32 %v6165, %v5933
      %6167 = vadd.xlane.f32.xlu0 %v6166
      %v6168 = vpop.xlane.xlu0 %6167
      %v6169 = vadd.f32 %v5935, %v5937
      %v6170 = vadd.f32 %v6169, %v5939
      %v6171 = vadd.f32 %v6170, %v5941
      %6172 = vadd.xlane.f32.xlu0 %v6171
      %v6173 = vpop.xlane.xlu0 %6172
      %v6174 = vadd.f32 %v5943, %v5945
      %v6175 = vadd.f32 %v6174, %v5947
      %v6176 = vadd.f32 %v6175, %v5949
      %6177 = vadd.xlane.f32.xlu0 %v6176
      %v6178 = vpop.xlane.xlu0 %6177
      %v6179 = vadd.f32 %v5951, %v5953
      %v6180 = vadd.f32 %v6179, %v5955
      %v6181 = vadd.f32 %v6180, %v5957
      %6182 = vadd.xlane.f32.xlu0 %v6181
      %v6183 = vpop.xlane.xlu0 %6182
      %v6184 = vadd.f32 %v5959, %v5961
      %v6185 = vadd.f32 %v6184, %v5963
      %v6186 = vadd.f32 %v6185, %v5965
      %6187 = vadd.xlane.f32.xlu0 %v6186
      %v6188 = vpop.xlane.xlu0 %6187
      %v6189 = vadd.f32 %v5967, %v5969
      %v6190 = vadd.f32 %v6189, %v5971
      %v6191 = vadd.f32 %v6190, %v5973
      %6192 = vadd.xlane.f32.xlu0 %v6191
      %v6193 = vpop.xlane.xlu0 %6192
      %v6194 = vadd.f32 %v5975, %v5977
      %v6195 = vadd.f32 %v6194, %v5979
      %v6196 = vadd.f32 %v6195, %v5981
      %6197 = vadd.xlane.f32.xlu0 %v6196
      %v6198 = vpop.xlane.xlu0 %6197
      %v6199 = vadd.f32 %v5983, %v5985
      %v6200 = vadd.f32 %v6199, %v5987
      %v6201 = vadd.f32 %v6200, %v5989
      %6202 = vadd.xlane.f32.xlu0 %v6201
      %v6203 = vpop.xlane.xlu0 %6202
      %v6204 = vadd.f32 %v5991, %v5993
      %v6205 = vadd.f32 %v6204, %v5995
      %v6206 = vadd.f32 %v6205, %v5997
      %6207 = vadd.xlane.f32.xlu0 %v6206
      %v6208 = vpop.xlane.xlu0 %6207
      %v6209 = vadd.f32 %v5999, %v6001
      %v6210 = vadd.f32 %v6209, %v6003
      %v6211 = vadd.f32 %v6210, %v6005
      %6212 = vadd.xlane.f32.xlu0 %v6211
      %v6213 = vpop.xlane.xlu0 %6212
      %v6214 = vadd.f32 %v6007, %v6009
      %v6215 = vadd.f32 %v6214, %v6011
      %v6216 = vadd.f32 %v6215, %v6013
      %6217 = vadd.xlane.f32.xlu0 %v6216
      %v6218 = vpop.xlane.xlu0 %6217
      %v6219 = vadd.f32 %v6015, %v6017
      %v6220 = vadd.f32 %v6219, %v6019
      %v6221 = vadd.f32 %v6220, %v6021
      %6222 = vadd.xlane.f32.xlu0 %v6221
      %v6223 = vpop.xlane.xlu0 %6222
      %v6224 = vadd.f32 %v6023, %v6025
      %v6225 = vadd.f32 %v6224, %v6027
      %v6226 = vadd.f32 %v6225, %v6029
      %6227 = vadd.xlane.f32.xlu0 %v6226
      %v6228 = vpop.xlane.xlu0 %6227
      %v6229 = vadd.f32 %v6031, %v6033
      %v6230 = vadd.f32 %v6229, %v6035
      %v6231 = vadd.f32 %v6230, %v6037
      %6232 = vadd.xlane.f32.xlu0 %v6231
      %v6233 = vpop.xlane.xlu0 %6232
      %v6234 = vadd.f32 %v6039, %v6041
      %v6235 = vadd.f32 %v6234, %v6043
      %v6236 = vadd.f32 %v6235, %v6045
      %6237 = vadd.xlane.f32.xlu0 %v6236
      %v6238 = vpop.xlane.xlu0 %6237
      %v6239 = vadd.f32 %v6047, %v6049
      %v6240 = vadd.f32 %v6239, %v6051
      %v6241 = vadd.f32 %v6240, %v6053
      %6242 = vadd.xlane.f32.xlu0 %v6241
      %v6243 = vpop.xlane.xlu0 %6242
      %v6244 = vadd.f32 %v6055, %v6057
      %v6245 = vadd.f32 %v6244, %v6059
      %v6246 = vadd.f32 %v6245, %v6061
      %6247 = vadd.xlane.f32.xlu0 %v6246
      %v6248 = vpop.xlane.xlu0 %6247
      %v6249 = vadd.f32 %v6063, %v6065
      %v6250 = vadd.f32 %v6249, %v6067
      %v6251 = vadd.f32 %v6250, %v6069
      %6252 = vadd.xlane.f32.xlu0 %v6251
      %v6253 = vpop.xlane.xlu0 %6252
      %v6254 = vadd.f32 %v6071, %v6073
      %v6255 = vadd.f32 %v6254, %v6075
      %v6256 = vadd.f32 %v6255, %v6077
      %6257 = vadd.xlane.f32.xlu0 %v6256
      %v6258 = vpop.xlane.xlu0 %6257
      %v6259 = vadd.f32 %v6079, %v6081
      %v6260 = vadd.f32 %v6259, %v6083
      %v6261 = vadd.f32 %v6260, %v6085
      %6262 = vadd.xlane.f32.xlu0 %v6261
      %v6263 = vpop.xlane.xlu0 %6262
      %v6264 = vadd.f32 %v6087, %v6089
      %v6265 = vadd.f32 %v6264, %v6091
      %v6266 = vadd.f32 %v6265, %v6093
      %6267 = vadd.xlane.f32.xlu0 %v6266
      %v6268 = vpop.xlane.xlu0 %6267
      %v6269 = vadd.f32 %v6095, %v6097
      %v6270 = vadd.f32 %v6269, %v6099
      %v6271 = vadd.f32 %v6270, %v6101
      %6272 = vadd.xlane.f32.xlu0 %v6271
      %v6273 = vpop.xlane.xlu0 %6272
      %v6274 = vadd.f32 %v6103, %v6105
      %v6275 = vadd.f32 %v6274, %v6107
      %v6276 = vadd.f32 %v6275, %v6109
      %6277 = vadd.xlane.f32.xlu0 %v6276
      %v6278 = vpop.xlane.xlu0 %6277
      %v6279 = vadd.f32 %v6111, %v6113
      %v6280 = vadd.f32 %v6279, %v6115
      %v6281 = vadd.f32 %v6280, %v6117
      %6282 = vadd.xlane.f32.xlu0 %v6281
      %v6283 = vpop.xlane.xlu0 %6282
      %v6284 = vadd.f32 %v6119, %v6121
      %v6285 = vadd.f32 %v6284, %v6123
      %v6286 = vadd.f32 %v6285, %v6125
      %6287 = vadd.xlane.f32.xlu0 %v6286
      %v6288 = vpop.xlane.xlu0 %6287
      %v6289 = vadd.f32 %v6127, %v6129
      %v6290 = vadd.f32 %v6289, %v6131
      %v6291 = vadd.f32 %v6290, %v6133
      %6292 = vadd.xlane.f32.xlu0 %v6291
      %v6293 = vpop.xlane.xlu0 %6292
      %v6294 = vrcp.pop %v6138
      %v6295 = vmul.f32 %v5879, %v6294
      %v6296 = vmul.f32 %v5881, %v6294
      %v6297 = vmul.f32 %v5883, %v6294
      %v6298 = vmul.f32 %v5885, %v6294
      %v6299 = vrcp.pop %v6143
      %v6300 = vmul.f32 %v5887, %v6299
      %v6301 = vmul.f32 %v5889, %v6299
      %v6302 = vmul.f32 %v5891, %v6299
      %v6303 = vmul.f32 %v5893, %v6299
      %v6304 = vrcp.pop %v6148
      %v6305 = vmul.f32 %v5895, %v6304
      %v6306 = vmul.f32 %v5897, %v6304
      %v6307 = vmul.f32 %v5899, %v6304
      %v6308 = vmul.f32 %v5901, %v6304
      %v6309 = vrcp.pop %v6153
      %v6310 = vmul.f32 %v5903, %v6309
      %v6311 = vmul.f32 %v5905, %v6309
      %v6312 = vmul.f32 %v5907, %v6309
      %v6313 = vmul.f32 %v5909, %v6309
      %v6314 = vrcp.pop %v6158
      %v6315 = vmul.f32 %v5911, %v6314
      %v6316 = vmul.f32 %v5913, %v6314
      %v6317 = vmul.f32 %v5915, %v6314
      %v6318 = vmul.f32 %v5917, %v6314
      %v6319 = vrcp.pop %v6163
      %v6320 = vmul.f32 %v5919, %v6319
      %v6321 = vmul.f32 %v5921, %v6319
      %v6322 = vmul.f32 %v5923, %v6319
      %v6323 = vmul.f32 %v5925, %v6319
      %v6324 = vrcp.pop %v6168
      %v6325 = vmul.f32 %v5927, %v6324
      %v6326 = vmul.f32 %v5929, %v6324
      %v6327 = vmul.f32 %v5931, %v6324
      %v6328 = vmul.f32 %v5933, %v6324
      %v6329 = vrcp.pop %v6173
      %v6330 = vmul.f32 %v5935, %v6329
      %v6331 = vmul.f32 %v5937, %v6329
      %v6332 = vmul.f32 %v5939, %v6329
      %v6333 = vmul.f32 %v5941, %v6329
      %v6334 = vrcp.pop %v6178
      %v6335 = vmul.f32 %v5943, %v6334
      %v6336 = vmul.f32 %v5945, %v6334
      %v6337 = vmul.f32 %v5947, %v6334
      %v6338 = vmul.f32 %v5949, %v6334
      %v6339 = vrcp.pop %v6183
      %v6340 = vmul.f32 %v5951, %v6339
      %v6341 = vmul.f32 %v5953, %v6339
      %v6342 = vmul.f32 %v5955, %v6339
      %v6343 = vmul.f32 %v5957, %v6339
      %v6344 = vrcp.pop %v6188
      %v6345 = vmul.f32 %v5959, %v6344
      %v6346 = vmul.f32 %v5961, %v6344
      %v6347 = vmul.f32 %v5963, %v6344
      %v6348 = vmul.f32 %v5965, %v6344
      %v6349 = vrcp.pop %v6193
      %v6350 = vmul.f32 %v5967, %v6349
      %v6351 = vmul.f32 %v5969, %v6349
      %v6352 = vmul.f32 %v5971, %v6349
      %v6353 = vmul.f32 %v5973, %v6349
      %v6354 = vrcp.pop %v6198
      %v6355 = vmul.f32 %v5975, %v6354
      %v6356 = vmul.f32 %v5977, %v6354
      %v6357 = vmul.f32 %v5979, %v6354
      %v6358 = vmul.f32 %v5981, %v6354
      %v6359 = vrcp.pop %v6203
      %v6360 = vmul.f32 %v5983, %v6359
      %v6361 = vmul.f32 %v5985, %v6359
      %v6362 = vmul.f32 %v5987, %v6359
      %v6363 = vmul.f32 %v5989, %v6359
      %v6364 = vrcp.pop %v6208
      %v6365 = vmul.f32 %v5991, %v6364
      %v6366 = vmul.f32 %v5993, %v6364
      %v6367 = vmul.f32 %v5995, %v6364
      %v6368 = vmul.f32 %v5997, %v6364
      %v6369 = vrcp.pop %v6213
      %v6370 = vmul.f32 %v5999, %v6369
      %v6371 = vmul.f32 %v6001, %v6369
      %v6372 = vmul.f32 %v6003, %v6369
      %v6373 = vmul.f32 %v6005, %v6369
      %v6374 = vrcp.pop %v6218
      %v6375 = vmul.f32 %v6007, %v6374
      %v6376 = vmul.f32 %v6009, %v6374
      %v6377 = vmul.f32 %v6011, %v6374
      %v6378 = vmul.f32 %v6013, %v6374
      %v6379 = vrcp.pop %v6223
      %v6380 = vmul.f32 %v6015, %v6379
      %v6381 = vmul.f32 %v6017, %v6379
      %v6382 = vmul.f32 %v6019, %v6379
      %v6383 = vmul.f32 %v6021, %v6379
      %v6384 = vrcp.pop %v6228
      %v6385 = vmul.f32 %v6023, %v6384
      %v6386 = vmul.f32 %v6025, %v6384
      %v6387 = vmul.f32 %v6027, %v6384
      %v6388 = vmul.f32 %v6029, %v6384
      %v6389 = vrcp.pop %v6233
      %v6390 = vmul.f32 %v6031, %v6389
      %v6391 = vmul.f32 %v6033, %v6389
      %v6392 = vmul.f32 %v6035, %v6389
      %v6393 = vmul.f32 %v6037, %v6389
      %v6394 = vrcp.pop %v6238
      %v6395 = vmul.f32 %v6039, %v6394
      %v6396 = vmul.f32 %v6041, %v6394
      %v6397 = vmul.f32 %v6043, %v6394
      %v6398 = vmul.f32 %v6045, %v6394
      %v6399 = vrcp.pop %v6243
      %v6400 = vmul.f32 %v6047, %v6399
      %v6401 = vmul.f32 %v6049, %v6399
      %v6402 = vmul.f32 %v6051, %v6399
      %v6403 = vmul.f32 %v6053, %v6399
      %v6404 = vrcp.pop %v6248
      %v6405 = vmul.f32 %v6055, %v6404
      %v6406 = vmul.f32 %v6057, %v6404
      %v6407 = vmul.f32 %v6059, %v6404
      %v6408 = vmul.f32 %v6061, %v6404
      %v6409 = vrcp.pop %v6253
      %v6410 = vmul.f32 %v6063, %v6409
      %v6411 = vmul.f32 %v6065, %v6409
      %v6412 = vmul.f32 %v6067, %v6409
      %v6413 = vmul.f32 %v6069, %v6409
      %v6414 = vrcp.pop %v6258
      %v6415 = vmul.f32 %v6071, %v6414
      %v6416 = vmul.f32 %v6073, %v6414
      %v6417 = vmul.f32 %v6075, %v6414
      %v6418 = vmul.f32 %v6077, %v6414
      %v6419 = vrcp.pop %v6263
      %v6420 = vmul.f32 %v6079, %v6419
      %v6421 = vmul.f32 %v6081, %v6419
      %v6422 = vmul.f32 %v6083, %v6419
      %v6423 = vmul.f32 %v6085, %v6419
      %v6424 = vrcp.pop %v6268
      %v6425 = vmul.f32 %v6087, %v6424
      %v6426 = vmul.f32 %v6089, %v6424
      %v6427 = vmul.f32 %v6091, %v6424
      %v6428 = vmul.f32 %v6093, %v6424
      %v6429 = vrcp.pop %v6273
      %v6430 = vmul.f32 %v6095, %v6429
      %v6431 = vmul.f32 %v6097, %v6429
      %v6432 = vmul.f32 %v6099, %v6429
      %v6433 = vmul.f32 %v6101, %v6429
      %v6434 = vrcp.pop %v6278
      %v6435 = vmul.f32 %v6103, %v6434
      %v6436 = vmul.f32 %v6105, %v6434
      %v6437 = vmul.f32 %v6107, %v6434
      %v6438 = vmul.f32 %v6109, %v6434
      %v6439 = vrcp.pop %v6283
      %v6440 = vmul.f32 %v6111, %v6439
      %v6441 = vmul.f32 %v6113, %v6439
      %v6442 = vmul.f32 %v6115, %v6439
      %v6443 = vmul.f32 %v6117, %v6439
      %v6444 = vrcp.pop %v6288
      %v6445 = vmul.f32 %v6119, %v6444
      %v6446 = vmul.f32 %v6121, %v6444
      %v6447 = vmul.f32 %v6123, %v6444
      %v6448 = vmul.f32 %v6125, %v6444
      %v6449 = vrcp.pop %v6293
      %v6450 = vmul.f32 %v6127, %v6449
      %v6451 = vmul.f32 %v6129, %v6449
      %v6452 = vmul.f32 %v6131, %v6449
      %v6453 = vmul.f32 %v6133, %v6449
      %6454 = vmatprep.subr.mxu0 0.0
      %6455 = vmatpush1.msra.mxu0 %v4545
      %6456 = vmatprep.subr.mxu0 0.0
      %6457 = vmatpush1.msra.mxu0 %v4540
      %6458 = vmatprep.subr.mxu0 0.0
      %6459 = vmatpush1.msra.mxu0 %v4535
      %6460 = vmatprep.subr.mxu0 0.0
      %6461 = vmatpush1.msra.mxu0 %v4530
      %6462 = vmatprep.subr.mxu0 0.0
      %6463 = vmatpush1.msra.mxu0 %v4525
      %6464 = vmatprep.subr.mxu0 0.0
      %6465 = vmatpush1.msra.mxu0 %v4520
      %6466 = vmatprep.subr.mxu0 0.0
      %6467 = vmatpush1.msra.mxu0 %v4515
      %6468 = vmatprep.subr.mxu0 0.0
      %6469 = vmatpush1.msra.mxu0 %v4510
      %6470 = vmatprep.subr.mxu0 0.0
      %6471 = vmatpush1.msra.mxu0 %v4505
      %6472 = vmatprep.subr.mxu0 0.0
      %6473 = vmatpush1.msra.mxu0 %v4500
      %6474 = vmatprep.subr.mxu0 0.0
      %6475 = vmatpush1.msra.mxu0 %v4495
      %6476 = vmatprep.subr.mxu0 0.0
      %6477 = vmatpush1.msra.mxu0 %v4490
      %6478 = vmatprep.subr.mxu0 0.0
      %6479 = vmatpush1.msra.mxu0 %v4485
      %6480 = vmatprep.subr.mxu0 0.0
      %6481 = vmatpush1.msra.mxu0 %v4480
      %6482 = vmatprep.subr.mxu0 0.0
      %6483 = vmatpush1.msra.mxu0 %v4475
      %6484 = vmatprep.subr.mxu0 0.0
      %6485 = vmatpush1.msra.mxu0 %v4470
      %6486 = vmatprep.subr.mxu0 0.0
      %6487 = vmatpush2.msra.mxu0 %v4625
      %6488 = vmatprep.subr.mxu0 0.0
      %6489 = vmatpush2.msra.mxu0 %v4620
      %6490 = vmatprep.subr.mxu0 0.0
      %6491 = vmatpush2.msra.mxu0 %v4615
      %6492 = vmatprep.subr.mxu0 0.0
      %6493 = vmatpush2.msra.mxu0 %v4610
      %6494 = vmatprep.subr.mxu0 0.0
      %6495 = vmatpush2.msra.mxu0 %v4605
      %6496 = vmatprep.subr.mxu0 0.0
      %6497 = vmatpush2.msra.mxu0 %v4600
      %6498 = vmatprep.subr.mxu0 0.0
      %6499 = vmatpush2.msra.mxu0 %v4595
      %6500 = vmatprep.subr.mxu0 0.0
      %6501 = vmatpush2.msra.mxu0 %v4590
      %6502 = vmatprep.subr.mxu0 0.0
      %6503 = vmatpush2.msra.mxu0 %v4585
      %6504 = vmatprep.subr.mxu0 0.0
      %6505 = vmatpush2.msra.mxu0 %v4580
      %6506 = vmatprep.subr.mxu0 0.0
      %6507 = vmatpush2.msra.mxu0 %v4575
      %6508 = vmatprep.subr.mxu0 0.0
      %6509 = vmatpush2.msra.mxu0 %v4570
      %6510 = vmatprep.subr.mxu0 0.0
      %6511 = vmatpush2.msra.mxu0 %v4565
      %6512 = vmatprep.subr.mxu0 0.0
      %6513 = vmatpush2.msra.mxu0 %v4560
      %6514 = vmatprep.subr.mxu0 0.0
      %6515 = vmatpush2.msra.mxu0 %v4555
      %6516 = vmatprep.subr.mxu0 0.0
      %6517 = vmatpush2.msra.mxu0 %v4550
      %6518 = vmatprep.mubr.f32.mxu0 %v6296
      %6519 = vmatmul.mubr.f32.gmra.mxu0 %v6295
      %v6520 = vpop.f32.mrf.mxu0
      %v6521 = vadd.f32 0.0, %v6520
      %v6522 = vpop.f32.mrf.mxu0
      %6523 = vmatprep.mubr.f32.mxu0 %v6301
      %6524 = vmatmul.mubr.f32.gmra.mxu0 %v6300
      %v6525 = vpop.f32.mrf.mxu0
      %v6526 = vadd.f32 0.0, %v6525
      %v6527 = vpop.f32.mrf.mxu0
      %6528 = vmatprep.mubr.f32.mxu0 %v6306
      %6529 = vmatmul.mubr.f32.gmra.mxu0 %v6305
      %v6530 = vpop.f32.mrf.mxu0
      %v6531 = vadd.f32 0.0, %v6530
      %v6532 = vpop.f32.mrf.mxu0
      %6533 = vmatprep.mubr.f32.mxu0 %v6311
      %6534 = vmatmul.mubr.f32.gmra.mxu0 %v6310
      %v6535 = vpop.f32.mrf.mxu0
      %v6536 = vadd.f32 0.0, %v6535
      %v6537 = vpop.f32.mrf.mxu0
      %6538 = vmatprep.mubr.f32.mxu0 %v6316
      %6539 = vmatmul.mubr.f32.gmra.mxu0 %v6315
      %v6540 = vpop.f32.mrf.mxu0
      %v6541 = vadd.f32 0.0, %v6540
      %v6542 = vpop.f32.mrf.mxu0
      %6543 = vmatprep.mubr.f32.mxu0 %v6321
      %6544 = vmatmul.mubr.f32.gmra.mxu0 %v6320
      %v6545 = vpop.f32.mrf.mxu0
      %v6546 = vadd.f32 0.0, %v6545
      %v6547 = vpop.f32.mrf.mxu0
      %6548 = vmatprep.mubr.f32.mxu0 %v6326
      %6549 = vmatmul.mubr.f32.gmra.mxu0 %v6325
      %v6550 = vpop.f32.mrf.mxu0
      %v6551 = vadd.f32 0.0, %v6550
      %v6552 = vpop.f32.mrf.mxu0
      %6553 = vmatprep.mubr.f32.mxu0 %v6331
      %6554 = vmatmul.mubr.f32.gmra.mxu0 %v6330
      %v6555 = vpop.f32.mrf.mxu0
      %v6556 = vadd.f32 0.0, %v6555
      %v6557 = vpop.f32.mrf.mxu0
      %6558 = vmatprep.mubr.f32.mxu0 %v6336
      %6559 = vmatmul.mubr.f32.gmra.mxu0 %v6335
      %v6560 = vpop.f32.mrf.mxu0
      %v6561 = vadd.f32 0.0, %v6560
      %v6562 = vpop.f32.mrf.mxu0
      %6563 = vmatprep.mubr.f32.mxu0 %v6341
      %6564 = vmatmul.mubr.f32.gmra.mxu0 %v6340
      %v6565 = vpop.f32.mrf.mxu0
      %v6566 = vadd.f32 0.0, %v6565
      %v6567 = vpop.f32.mrf.mxu0
      %6568 = vmatprep.mubr.f32.mxu0 %v6346
      %6569 = vmatmul.mubr.f32.gmra.mxu0 %v6345
      %v6570 = vpop.f32.mrf.mxu0
      %v6571 = vadd.f32 0.0, %v6570
      %v6572 = vpop.f32.mrf.mxu0
      %6573 = vmatprep.mubr.f32.mxu0 %v6351
      %6574 = vmatmul.mubr.f32.gmra.mxu0 %v6350
      %v6575 = vpop.f32.mrf.mxu0
      %v6576 = vadd.f32 0.0, %v6575
      %v6577 = vpop.f32.mrf.mxu0
      %6578 = vmatprep.mubr.f32.mxu0 %v6356
      %6579 = vmatmul.mubr.f32.gmra.mxu0 %v6355
      %v6580 = vpop.f32.mrf.mxu0
      %v6581 = vadd.f32 0.0, %v6580
      %v6582 = vpop.f32.mrf.mxu0
      %6583 = vmatprep.mubr.f32.mxu0 %v6361
      %6584 = vmatmul.mubr.f32.gmra.mxu0 %v6360
      %v6585 = vpop.f32.mrf.mxu0
      %v6586 = vadd.f32 0.0, %v6585
      %v6587 = vpop.f32.mrf.mxu0
      %6588 = vmatprep.mubr.f32.mxu0 %v6366
      %6589 = vmatmul.mubr.f32.gmra.mxu0 %v6365
      %v6590 = vpop.f32.mrf.mxu0
      %v6591 = vadd.f32 0.0, %v6590
      %v6592 = vpop.f32.mrf.mxu0
      %6593 = vmatprep.mubr.f32.mxu0 %v6371
      %6594 = vmatmul.mubr.f32.gmra.mxu0 %v6370
      %v6595 = vpop.f32.mrf.mxu0
      %v6596 = vadd.f32 0.0, %v6595
      %v6597 = vpop.f32.mrf.mxu0
      %6598 = vmatprep.mubr.f32.mxu0 %v6376
      %6599 = vmatmul.mubr.f32.gmra.mxu0 %v6375
      %v6600 = vpop.f32.mrf.mxu0
      %v6601 = vadd.f32 0.0, %v6600
      %v6602 = vpop.f32.mrf.mxu0
      %6603 = vmatprep.mubr.f32.mxu0 %v6381
      %6604 = vmatmul.mubr.f32.gmra.mxu0 %v6380
      %v6605 = vpop.f32.mrf.mxu0
      %v6606 = vadd.f32 0.0, %v6605
      %v6607 = vpop.f32.mrf.mxu0
      %6608 = vmatprep.mubr.f32.mxu0 %v6386
      %6609 = vmatmul.mubr.f32.gmra.mxu0 %v6385
      %v6610 = vpop.f32.mrf.mxu0
      %v6611 = vadd.f32 0.0, %v6610
      %v6612 = vpop.f32.mrf.mxu0
      %6613 = vmatprep.mubr.f32.mxu0 %v6391
      %6614 = vmatmul.mubr.f32.gmra.mxu0 %v6390
      %v6615 = vpop.f32.mrf.mxu0
      %v6616 = vadd.f32 0.0, %v6615
      %v6617 = vpop.f32.mrf.mxu0
      %6618 = vmatprep.mubr.f32.mxu0 %v6396
      %6619 = vmatmul.mubr.f32.gmra.mxu0 %v6395
      %v6620 = vpop.f32.mrf.mxu0
      %v6621 = vadd.f32 0.0, %v6620
      %v6622 = vpop.f32.mrf.mxu0
      %6623 = vmatprep.mubr.f32.mxu0 %v6401
      %6624 = vmatmul.mubr.f32.gmra.mxu0 %v6400
      %v6625 = vpop.f32.mrf.mxu0
      %v6626 = vadd.f32 0.0, %v6625
      %v6627 = vpop.f32.mrf.mxu0
      %6628 = vmatprep.mubr.f32.mxu0 %v6406
      %6629 = vmatmul.mubr.f32.gmra.mxu0 %v6405
      %v6630 = vpop.f32.mrf.mxu0
      %v6631 = vadd.f32 0.0, %v6630
      %v6632 = vpop.f32.mrf.mxu0
      %6633 = vmatprep.mubr.f32.mxu0 %v6411
      %6634 = vmatmul.mubr.f32.gmra.mxu0 %v6410
      %v6635 = vpop.f32.mrf.mxu0
      %v6636 = vadd.f32 0.0, %v6635
      %v6637 = vpop.f32.mrf.mxu0
      %6638 = vmatprep.mubr.f32.mxu0 %v6416
      %6639 = vmatmul.mubr.f32.gmra.mxu0 %v6415
      %v6640 = vpop.f32.mrf.mxu0
      %v6641 = vadd.f32 0.0, %v6640
      %v6642 = vpop.f32.mrf.mxu0
      %6643 = vmatprep.mubr.f32.mxu0 %v6421
      %6644 = vmatmul.mubr.f32.gmra.mxu0 %v6420
      %v6645 = vpop.f32.mrf.mxu0
      %v6646 = vadd.f32 0.0, %v6645
      %v6647 = vpop.f32.mrf.mxu0
      %6648 = vmatprep.mubr.f32.mxu0 %v6426
      %6649 = vmatmul.mubr.f32.gmra.mxu0 %v6425
      %v6650 = vpop.f32.mrf.mxu0
      %v6651 = vadd.f32 0.0, %v6650
      %v6652 = vpop.f32.mrf.mxu0
      %6653 = vmatprep.mubr.f32.mxu0 %v6431
      %6654 = vmatmul.mubr.f32.gmra.mxu0 %v6430
      %v6655 = vpop.f32.mrf.mxu0
      %v6656 = vadd.f32 0.0, %v6655
      %v6657 = vpop.f32.mrf.mxu0
      %6658 = vmatprep.mubr.f32.mxu0 %v6436
      %6659 = vmatmul.mubr.f32.gmra.mxu0 %v6435
      %v6660 = vpop.f32.mrf.mxu0
      %v6661 = vadd.f32 0.0, %v6660
      %v6662 = vpop.f32.mrf.mxu0
      %6663 = vmatprep.mubr.f32.mxu0 %v6441
      %6664 = vmatmul.mubr.f32.gmra.mxu0 %v6440
      %v6665 = vpop.f32.mrf.mxu0
      %v6666 = vadd.f32 0.0, %v6665
      %v6667 = vpop.f32.mrf.mxu0
      %6668 = vmatprep.mubr.f32.mxu0 %v6446
      %6669 = vmatmul.mubr.f32.gmra.mxu0 %v6445
      %v6670 = vpop.f32.mrf.mxu0
      %v6671 = vadd.f32 0.0, %v6670
      %v6672 = vpop.f32.mrf.mxu0
      %6673 = vmatprep.mubr.f32.mxu0 %v6451
      %6674 = vmatmul.mubr.f32.gmra.mxu0 %v6450
      %v6675 = vpop.f32.mrf.mxu0
      %v6676 = vadd.f32 0.0, %v6675
      %v6677 = vpop.f32.mrf.mxu0
      %6678 = vdwg.mxu0
      %6679 = vmatprep.subr.mxu0 0.0
      %6680 = vmatpush1.msra.mxu0 %v4705
      %6681 = vmatprep.subr.mxu0 0.0
      %6682 = vmatpush1.msra.mxu0 %v4700
      %6683 = vmatprep.subr.mxu0 0.0
      %6684 = vmatpush1.msra.mxu0 %v4695
      %6685 = vmatprep.subr.mxu0 0.0
      %6686 = vmatpush1.msra.mxu0 %v4690
      %6687 = vmatprep.subr.mxu0 0.0
      %6688 = vmatpush1.msra.mxu0 %v4685
      %6689 = vmatprep.subr.mxu0 0.0
      %6690 = vmatpush1.msra.mxu0 %v4680
      %6691 = vmatprep.subr.mxu0 0.0
      %6692 = vmatpush1.msra.mxu0 %v4675
      %6693 = vmatprep.subr.mxu0 0.0
      %6694 = vmatpush1.msra.mxu0 %v4670
      %6695 = vmatprep.subr.mxu0 0.0
      %6696 = vmatpush1.msra.mxu0 %v4665
      %6697 = vmatprep.subr.mxu0 0.0
      %6698 = vmatpush1.msra.mxu0 %v4660
      %6699 = vmatprep.subr.mxu0 0.0
      %6700 = vmatpush1.msra.mxu0 %v4655
      %6701 = vmatprep.subr.mxu0 0.0
      %6702 = vmatpush1.msra.mxu0 %v4650
      %6703 = vmatprep.subr.mxu0 0.0
      %6704 = vmatpush1.msra.mxu0 %v4645
      %6705 = vmatprep.subr.mxu0 0.0
      %6706 = vmatpush1.msra.mxu0 %v4640
      %6707 = vmatprep.subr.mxu0 0.0
      %6708 = vmatpush1.msra.mxu0 %v4635
      %6709 = vmatprep.subr.mxu0 0.0
      %6710 = vmatpush1.msra.mxu0 %v4630
      %6711 = vmatprep.subr.mxu0 0.0
      %6712 = vmatpush2.msra.mxu0 %v4785
      %6713 = vmatprep.subr.mxu0 0.0
      %6714 = vmatpush2.msra.mxu0 %v4780
      %6715 = vmatprep.subr.mxu0 0.0
      %6716 = vmatpush2.msra.mxu0 %v4775
      %6717 = vmatprep.subr.mxu0 0.0
      %6718 = vmatpush2.msra.mxu0 %v4770
      %6719 = vmatprep.subr.mxu0 0.0
      %6720 = vmatpush2.msra.mxu0 %v4765
      %6721 = vmatprep.subr.mxu0 0.0
      %6722 = vmatpush2.msra.mxu0 %v4760
      %6723 = vmatprep.subr.mxu0 0.0
      %6724 = vmatpush2.msra.mxu0 %v4755
      %6725 = vmatprep.subr.mxu0 0.0
      %6726 = vmatpush2.msra.mxu0 %v4750
      %6727 = vmatprep.subr.mxu0 0.0
      %6728 = vmatpush2.msra.mxu0 %v4745
      %6729 = vmatprep.subr.mxu0 0.0
      %6730 = vmatpush2.msra.mxu0 %v4740
      %6731 = vmatprep.subr.mxu0 0.0
      %6732 = vmatpush2.msra.mxu0 %v4735
      %6733 = vmatprep.subr.mxu0 0.0
      %6734 = vmatpush2.msra.mxu0 %v4730
      %6735 = vmatprep.subr.mxu0 0.0
      %6736 = vmatpush2.msra.mxu0 %v4725
      %6737 = vmatprep.subr.mxu0 0.0
      %6738 = vmatpush2.msra.mxu0 %v4720
      %6739 = vmatprep.subr.mxu0 0.0
      %6740 = vmatpush2.msra.mxu0 %v4715
      %6741 = vmatprep.subr.mxu0 0.0
      %6742 = vmatpush2.msra.mxu0 %v4710
      %6743 = vmatprep.mubr.f32.mxu0 %v6298
      %6744 = vmatmul.mubr.f32.gmra.mxu0 %v6297
      %v6745 = vpop.f32.mrf.mxu0
      %v6746 = vadd.f32 %v6521, %v6745
      %v6747 = vpop.f32.mrf.mxu0
      %6748 = vmatprep.mubr.f32.mxu0 %v6303
      %6749 = vmatmul.mubr.f32.gmra.mxu0 %v6302
      %v6750 = vpop.f32.mrf.mxu0
      %v6751 = vadd.f32 %v6526, %v6750
      %v6752 = vpop.f32.mrf.mxu0
      %6753 = vmatprep.mubr.f32.mxu0 %v6308
      %6754 = vmatmul.mubr.f32.gmra.mxu0 %v6307
      %v6755 = vpop.f32.mrf.mxu0
      %v6756 = vadd.f32 %v6531, %v6755
      %v6757 = vpop.f32.mrf.mxu0
      %6758 = vmatprep.mubr.f32.mxu0 %v6313
      %6759 = vmatmul.mubr.f32.gmra.mxu0 %v6312
      %v6760 = vpop.f32.mrf.mxu0
      %v6761 = vadd.f32 %v6536, %v6760
      %v6762 = vpop.f32.mrf.mxu0
      %6763 = vmatprep.mubr.f32.mxu0 %v6318
      %6764 = vmatmul.mubr.f32.gmra.mxu0 %v6317
      %v6765 = vpop.f32.mrf.mxu0
      %v6766 = vadd.f32 %v6541, %v6765
      %v6767 = vpop.f32.mrf.mxu0
      %6768 = vmatprep.mubr.f32.mxu0 %v6323
      %6769 = vmatmul.mubr.f32.gmra.mxu0 %v6322
      %v6770 = vpop.f32.mrf.mxu0
      %v6771 = vadd.f32 %v6546, %v6770
      %v6772 = vpop.f32.mrf.mxu0
      %6773 = vmatprep.mubr.f32.mxu0 %v6328
      %6774 = vmatmul.mubr.f32.gmra.mxu0 %v6327
      %v6775 = vpop.f32.mrf.mxu0
      %v6776 = vadd.f32 %v6551, %v6775
      %v6777 = vpop.f32.mrf.mxu0
      %6778 = vmatprep.mubr.f32.mxu0 %v6333
      %6779 = vmatmul.mubr.f32.gmra.mxu0 %v6332
      %v6780 = vpop.f32.mrf.mxu0
      %v6781 = vadd.f32 %v6556, %v6780
      %v6782 = vpop.f32.mrf.mxu0
      %6783 = vmatprep.mubr.f32.mxu0 %v6338
      %6784 = vmatmul.mubr.f32.gmra.mxu0 %v6337
      %v6785 = vpop.f32.mrf.mxu0
      %v6786 = vadd.f32 %v6561, %v6785
      %v6787 = vpop.f32.mrf.mxu0
      %6788 = vmatprep.mubr.f32.mxu0 %v6343
      %6789 = vmatmul.mubr.f32.gmra.mxu0 %v6342
      %v6790 = vpop.f32.mrf.mxu0
      %v6791 = vadd.f32 %v6566, %v6790
      %v6792 = vpop.f32.mrf.mxu0
      %6793 = vmatprep.mubr.f32.mxu0 %v6348
      %6794 = vmatmul.mubr.f32.gmra.mxu0 %v6347
      %v6795 = vpop.f32.mrf.mxu0
      %v6796 = vadd.f32 %v6571, %v6795
      %v6797 = vpop.f32.mrf.mxu0
      %6798 = vmatprep.mubr.f32.mxu0 %v6353
      %6799 = vmatmul.mubr.f32.gmra.mxu0 %v6352
      %v6800 = vpop.f32.mrf.mxu0
      %v6801 = vadd.f32 %v6576, %v6800
      %v6802 = vpop.f32.mrf.mxu0
      %6803 = vmatprep.mubr.f32.mxu0 %v6358
      %6804 = vmatmul.mubr.f32.gmra.mxu0 %v6357
      %v6805 = vpop.f32.mrf.mxu0
      %v6806 = vadd.f32 %v6581, %v6805
      %v6807 = vpop.f32.mrf.mxu0
      %6808 = vmatprep.mubr.f32.mxu0 %v6363
      %6809 = vmatmul.mubr.f32.gmra.mxu0 %v6362
      %v6810 = vpop.f32.mrf.mxu0
      %v6811 = vadd.f32 %v6586, %v6810
      %v6812 = vpop.f32.mrf.mxu0
      %6813 = vmatprep.mubr.f32.mxu0 %v6368
      %6814 = vmatmul.mubr.f32.gmra.mxu0 %v6367
      %v6815 = vpop.f32.mrf.mxu0
      %v6816 = vadd.f32 %v6591, %v6815
      %v6817 = vpop.f32.mrf.mxu0
      %6818 = vmatprep.mubr.f32.mxu0 %v6373
      %6819 = vmatmul.mubr.f32.gmra.mxu0 %v6372
      %v6820 = vpop.f32.mrf.mxu0
      %v6821 = vadd.f32 %v6596, %v6820
      %v6822 = vpop.f32.mrf.mxu0
      %6823 = vmatprep.mubr.f32.mxu0 %v6378
      %6824 = vmatmul.mubr.f32.gmra.mxu0 %v6377
      %v6825 = vpop.f32.mrf.mxu0
      %v6826 = vadd.f32 %v6601, %v6825
      %v6827 = vpop.f32.mrf.mxu0
      %6828 = vmatprep.mubr.f32.mxu0 %v6383
      %6829 = vmatmul.mubr.f32.gmra.mxu0 %v6382
      %v6830 = vpop.f32.mrf.mxu0
      %v6831 = vadd.f32 %v6606, %v6830
      %v6832 = vpop.f32.mrf.mxu0
      %6833 = vmatprep.mubr.f32.mxu0 %v6388
      %6834 = vmatmul.mubr.f32.gmra.mxu0 %v6387
      %v6835 = vpop.f32.mrf.mxu0
      %v6836 = vadd.f32 %v6611, %v6835
      %v6837 = vpop.f32.mrf.mxu0
      %6838 = vmatprep.mubr.f32.mxu0 %v6393
      %6839 = vmatmul.mubr.f32.gmra.mxu0 %v6392
      %v6840 = vpop.f32.mrf.mxu0
      %v6841 = vadd.f32 %v6616, %v6840
      %v6842 = vpop.f32.mrf.mxu0
      %6843 = vmatprep.mubr.f32.mxu0 %v6398
      %6844 = vmatmul.mubr.f32.gmra.mxu0 %v6397
      %v6845 = vpop.f32.mrf.mxu0
      %v6846 = vadd.f32 %v6621, %v6845
      %v6847 = vpop.f32.mrf.mxu0
      %6848 = vmatprep.mubr.f32.mxu0 %v6403
      %6849 = vmatmul.mubr.f32.gmra.mxu0 %v6402
      %v6850 = vpop.f32.mrf.mxu0
      %v6851 = vadd.f32 %v6626, %v6850
      %v6852 = vpop.f32.mrf.mxu0
      %6853 = vmatprep.mubr.f32.mxu0 %v6408
      %6854 = vmatmul.mubr.f32.gmra.mxu0 %v6407
      %v6855 = vpop.f32.mrf.mxu0
      %v6856 = vadd.f32 %v6631, %v6855
      %v6857 = vpop.f32.mrf.mxu0
      %6858 = vmatprep.mubr.f32.mxu0 %v6413
      %6859 = vmatmul.mubr.f32.gmra.mxu0 %v6412
      %v6860 = vpop.f32.mrf.mxu0
      %v6861 = vadd.f32 %v6636, %v6860
      %v6862 = vpop.f32.mrf.mxu0
      %6863 = vmatprep.mubr.f32.mxu0 %v6418
      %6864 = vmatmul.mubr.f32.gmra.mxu0 %v6417
      %v6865 = vpop.f32.mrf.mxu0
      %v6866 = vadd.f32 %v6641, %v6865
      %v6867 = vpop.f32.mrf.mxu0
      %6868 = vmatprep.mubr.f32.mxu0 %v6423
      %6869 = vmatmul.mubr.f32.gmra.mxu0 %v6422
      %v6870 = vpop.f32.mrf.mxu0
      %v6871 = vadd.f32 %v6646, %v6870
      %v6872 = vpop.f32.mrf.mxu0
      %6873 = vmatprep.mubr.f32.mxu0 %v6428
      %6874 = vmatmul.mubr.f32.gmra.mxu0 %v6427
      %v6875 = vpop.f32.mrf.mxu0
      %v6876 = vadd.f32 %v6651, %v6875
      %v6877 = vpop.f32.mrf.mxu0
      %6878 = vmatprep.mubr.f32.mxu0 %v6433
      %6879 = vmatmul.mubr.f32.gmra.mxu0 %v6432
      %v6880 = vpop.f32.mrf.mxu0
      %v6881 = vadd.f32 %v6656, %v6880
      %v6882 = vpop.f32.mrf.mxu0
      %6883 = vmatprep.mubr.f32.mxu0 %v6438
      %6884 = vmatmul.mubr.f32.gmra.mxu0 %v6437
      %v6885 = vpop.f32.mrf.mxu0
      %v6886 = vadd.f32 %v6661, %v6885
      %v6887 = vpop.f32.mrf.mxu0
      %6888 = vmatprep.mubr.f32.mxu0 %v6443
      %6889 = vmatmul.mubr.f32.gmra.mxu0 %v6442
      %v6890 = vpop.f32.mrf.mxu0
      %v6891 = vadd.f32 %v6666, %v6890
      %v6892 = vpop.f32.mrf.mxu0
      %6893 = vmatprep.mubr.f32.mxu0 %v6448
      %6894 = vmatmul.mubr.f32.gmra.mxu0 %v6447
      %v6895 = vpop.f32.mrf.mxu0
      %v6896 = vadd.f32 %v6671, %v6895
      %v6897 = vpop.f32.mrf.mxu0
      %6898 = vmatprep.mubr.f32.mxu0 %v6453
      %6899 = vmatmul.mubr.f32.gmra.mxu0 %v6452
      %v6900 = vpop.f32.mrf.mxu0
      %v6901 = vadd.f32 %v6676, %v6900
      %v6902 = vpop.f32.mrf.mxu0
      %6903 = vdwg.mxu0
      %v6905 = vsel %vm512, %v6746, 0
      %v6908 = vsel %vm512, %v6751, 0
      %v6911 = vsel %vm512, %v6756, 0
      %v6914 = vsel %vm512, %v6761, 0
      %v6917 = vsel %vm512, %v6766, 0
      %v6920 = vsel %vm512, %v6771, 0
      %v6923 = vsel %vm512, %v6776, 0
      %v6926 = vsel %vm512, %v6781, 0
      %v6929 = vsel %vm512, %v6786, 0
      %v6932 = vsel %vm512, %v6791, 0
      %v6935 = vsel %vm512, %v6796, 0
      %v6938 = vsel %vm512, %v6801, 0
      %v6941 = vsel %vm512, %v6806, 0
      %v6944 = vsel %vm512, %v6811, 0
      %v6947 = vsel %vm512, %v6816, 0
      %v6950 = vsel %vm512, %v6821, 0
      %v6953 = vsel %vm512, %v6826, 0
      %v6956 = vsel %vm512, %v6831, 0
      %v6959 = vsel %vm512, %v6836, 0
      %v6962 = vsel %vm512, %v6841, 0
      %v6965 = vsel %vm512, %v6846, 0
      %v6968 = vsel %vm512, %v6851, 0
      %v6971 = vsel %vm512, %v6856, 0
      %v6974 = vsel %vm512, %v6861, 0
      %v6977 = vsel %vm512, %v6866, 0
      %v6980 = vsel %vm512, %v6871, 0
      %v6983 = vsel %vm512, %v6876, 0
      %v6986 = vsel %vm512, %v6881, 0
      %v6989 = vsel %vm512, %v6886, 0
      %v6992 = vsel %vm512, %v6891, 0
      %v6995 = vsel %vm512, %v6896, 0
      %v6998 = vsel %vm512, %v6901, 0
      %7000 = vmatprep.subr.mxu0 0.0
      %7001 = vmatpush1.msra.mxu0 0.0
      %7002 = vmatprep.subr.mxu0 0.0
      %7003 = vmatpush1.msra.mxu0 0.0
      %7004 = vmatprep.subr.mxu0 0.0
      %7005 = vmatpush1.msra.mxu0 0.0
      %7006 = vmatprep.subr.mxu0 0.0
      %7007 = vmatpush1.msra.mxu0 0.0
      %7008 = vmatprep.subr.mxu0 0.0
      %7009 = vmatpush1.msra.mxu0 0.0
      %7010 = vmatprep.subr.mxu0 0.0
      %7011 = vmatpush1.msra.mxu0 0.0
      %7012 = vmatprep.subr.mxu0 0.0
      %7013 = vmatpush1.msra.mxu0 0.0
      %7014 = vmatprep.subr.mxu0 0.0
      %7015 = vmatpush1.msra.mxu0 0.0
      %7016 = vmatprep.subr.mxu0 0.0
      %7017 = vmatpush1.msra.mxu0 0.0
      %7018 = vmatprep.subr.mxu0 0.0
      %7019 = vmatpush1.msra.mxu0 0.0
      %7020 = vmatprep.subr.mxu0 0.0
      %7021 = vmatpush1.msra.mxu0 0.0
      %7022 = vmatprep.subr.mxu0 0.0
      %7023 = vmatpush1.msra.mxu0 0.0
      %7024 = vmatprep.subr.mxu0 0.0
      %7025 = vmatpush1.msra.mxu0 %v431
      %7026 = vmatprep.subr.mxu0 0.0
      %7027 = vmatpush1.msra.mxu0 %v430
      %7028 = vmatprep.subr.mxu0 0.0
      %7029 = vmatpush1.msra.mxu0 %v429
      %7030 = vmatprep.subr.mxu0 0.0
      %7031 = vmatpush1.msra.mxu0 %v428
      %7032 = vmatprep.subr.mxu0 0.0
      %7033 = vmatpush2.msra.mxu0 0.0
      %7034 = vmatprep.subr.mxu0 0.0
      %7035 = vmatpush2.msra.mxu0 0.0
      %7036 = vmatprep.subr.mxu0 0.0
      %7037 = vmatpush2.msra.mxu0 0.0
      %7038 = vmatprep.subr.mxu0 0.0
      %7039 = vmatpush2.msra.mxu0 0.0
      %7040 = vmatprep.subr.mxu0 0.0
      %7041 = vmatpush2.msra.mxu0 0.0
      %7042 = vmatprep.subr.mxu0 0.0
      %7043 = vmatpush2.msra.mxu0 0.0
      %7044 = vmatprep.subr.mxu0 0.0
      %7045 = vmatpush2.msra.mxu0 0.0
      %7046 = vmatprep.subr.mxu0 0.0
      %7047 = vmatpush2.msra.mxu0 0.0
      %7048 = vmatprep.subr.mxu0 0.0
      %7049 = vmatpush2.msra.mxu0 0.0
      %7050 = vmatprep.subr.mxu0 0.0
      %7051 = vmatpush2.msra.mxu0 0.0
      %7052 = vmatprep.subr.mxu0 0.0
      %7053 = vmatpush2.msra.mxu0 0.0
      %7054 = vmatprep.subr.mxu0 0.0
      %7055 = vmatpush2.msra.mxu0 0.0
      %7056 = vmatprep.subr.mxu0 0.0
      %7057 = vmatpush2.msra.mxu0 0.0
      %7058 = vmatprep.subr.mxu0 0.0
      %7059 = vmatpush2.msra.mxu0 0.0
      %7060 = vmatprep.subr.mxu0 0.0
      %7061 = vmatpush2.msra.mxu0 0.0
      %7062 = vmatprep.subr.mxu0 0.0
      %7063 = vmatpush2.msra.mxu0 0.0
      %7064 = vmatprep.mubr.f32.mxu0 0.0
      %7065 = vmatmul.mubr.f32.gmra.mxu0 %v6905
      %v7066 = vpop.f32.mrf.mxu0
      %v7067 = vadd.f32 0.0, %v7066
      %v7068 = vpop.f32.mrf.mxu0
      %7069 = vmatprep.mubr.f32.mxu0 0.0
      %7070 = vmatmul.mubr.f32.gmra.mxu0 %v6908
      %v7071 = vpop.f32.mrf.mxu0
      %v7072 = vadd.f32 0.0, %v7071
      %v7073 = vpop.f32.mrf.mxu0
      %7074 = vmatprep.mubr.f32.mxu0 0.0
      %7075 = vmatmul.mubr.f32.gmra.mxu0 %v6911
      %v7076 = vpop.f32.mrf.mxu0
      %v7077 = vadd.f32 0.0, %v7076
      %v7078 = vpop.f32.mrf.mxu0
      %7079 = vmatprep.mubr.f32.mxu0 0.0
      %7080 = vmatmul.mubr.f32.gmra.mxu0 %v6914
      %v7081 = vpop.f32.mrf.mxu0
      %v7082 = vadd.f32 0.0, %v7081
      %v7083 = vpop.f32.mrf.mxu0
      %7084 = vmatprep.mubr.f32.mxu0 0.0
      %7085 = vmatmul.mubr.f32.gmra.mxu0 %v6917
      %v7086 = vpop.f32.mrf.mxu0
      %v7087 = vadd.f32 0.0, %v7086
      %v7088 = vpop.f32.mrf.mxu0
      %7089 = vmatprep.mubr.f32.mxu0 0.0
      %7090 = vmatmul.mubr.f32.gmra.mxu0 %v6920
      %v7091 = vpop.f32.mrf.mxu0
      %v7092 = vadd.f32 0.0, %v7091
      %v7093 = vpop.f32.mrf.mxu0
      %7094 = vmatprep.mubr.f32.mxu0 0.0
      %7095 = vmatmul.mubr.f32.gmra.mxu0 %v6923
      %v7096 = vpop.f32.mrf.mxu0
      %v7097 = vadd.f32 0.0, %v7096
      %v7098 = vpop.f32.mrf.mxu0
      %7099 = vmatprep.mubr.f32.mxu0 0.0
      %7100 = vmatmul.mubr.f32.gmra.mxu0 %v6926
      %v7101 = vpop.f32.mrf.mxu0
      %v7102 = vadd.f32 0.0, %v7101
      %v7103 = vpop.f32.mrf.mxu0
      %7104 = vmatprep.mubr.f32.mxu0 0.0
      %7105 = vmatmul.mubr.f32.gmra.mxu0 %v6929
      %v7106 = vpop.f32.mrf.mxu0
      %v7107 = vadd.f32 0.0, %v7106
      %v7108 = vpop.f32.mrf.mxu0
      %7109 = vmatprep.mubr.f32.mxu0 0.0
      %7110 = vmatmul.mubr.f32.gmra.mxu0 %v6932
      %v7111 = vpop.f32.mrf.mxu0
      %v7112 = vadd.f32 0.0, %v7111
      %v7113 = vpop.f32.mrf.mxu0
      %7114 = vmatprep.mubr.f32.mxu0 0.0
      %7115 = vmatmul.mubr.f32.gmra.mxu0 %v6935
      %v7116 = vpop.f32.mrf.mxu0
      %v7117 = vadd.f32 0.0, %v7116
      %v7118 = vpop.f32.mrf.mxu0
      %7119 = vmatprep.mubr.f32.mxu0 0.0
      %7120 = vmatmul.mubr.f32.gmra.mxu0 %v6938
      %v7121 = vpop.f32.mrf.mxu0
      %v7122 = vadd.f32 0.0, %v7121
      %v7123 = vpop.f32.mrf.mxu0
      %7124 = vmatprep.mubr.f32.mxu0 0.0
      %7125 = vmatmul.mubr.f32.gmra.mxu0 %v6941
      %v7126 = vpop.f32.mrf.mxu0
      %v7127 = vadd.f32 0.0, %v7126
      %v7128 = vpop.f32.mrf.mxu0
      %7129 = vmatprep.mubr.f32.mxu0 0.0
      %7130 = vmatmul.mubr.f32.gmra.mxu0 %v6944
      %v7131 = vpop.f32.mrf.mxu0
      %v7132 = vadd.f32 0.0, %v7131
      %v7133 = vpop.f32.mrf.mxu0
      %7134 = vmatprep.mubr.f32.mxu0 0.0
      %7135 = vmatmul.mubr.f32.gmra.mxu0 %v6947
      %v7136 = vpop.f32.mrf.mxu0
      %v7137 = vadd.f32 0.0, %v7136
      %v7138 = vpop.f32.mrf.mxu0
      %7139 = vmatprep.mubr.f32.mxu0 0.0
      %7140 = vmatmul.mubr.f32.gmra.mxu0 %v6950
      %v7141 = vpop.f32.mrf.mxu0
      %v7142 = vadd.f32 0.0, %v7141
      %v7143 = vpop.f32.mrf.mxu0
      %7144 = vmatprep.mubr.f32.mxu0 0.0
      %7145 = vmatmul.mubr.f32.gmra.mxu0 %v6953
      %v7146 = vpop.f32.mrf.mxu0
      %v7147 = vadd.f32 0.0, %v7146
      %v7148 = vpop.f32.mrf.mxu0
      %7149 = vmatprep.mubr.f32.mxu0 0.0
      %7150 = vmatmul.mubr.f32.gmra.mxu0 %v6956
      %v7151 = vpop.f32.mrf.mxu0
      %v7152 = vadd.f32 0.0, %v7151
      %v7153 = vpop.f32.mrf.mxu0
      %7154 = vmatprep.mubr.f32.mxu0 0.0
      %7155 = vmatmul.mubr.f32.gmra.mxu0 %v6959
      %v7156 = vpop.f32.mrf.mxu0
      %v7157 = vadd.f32 0.0, %v7156
      %v7158 = vpop.f32.mrf.mxu0
      %7159 = vmatprep.mubr.f32.mxu0 0.0
      %7160 = vmatmul.mubr.f32.gmra.mxu0 %v6962
      %v7161 = vpop.f32.mrf.mxu0
      %v7162 = vadd.f32 0.0, %v7161
      %v7163 = vpop.f32.mrf.mxu0
      %7164 = vmatprep.mubr.f32.mxu0 0.0
      %7165 = vmatmul.mubr.f32.gmra.mxu0 %v6965
      %v7166 = vpop.f32.mrf.mxu0
      %v7167 = vadd.f32 0.0, %v7166
      %v7168 = vpop.f32.mrf.mxu0
      %7169 = vmatprep.mubr.f32.mxu0 0.0
      %7170 = vmatmul.mubr.f32.gmra.mxu0 %v6968
      %v7171 = vpop.f32.mrf.mxu0
      %v7172 = vadd.f32 0.0, %v7171
      %v7173 = vpop.f32.mrf.mxu0
      %7174 = vmatprep.mubr.f32.mxu0 0.0
      %7175 = vmatmul.mubr.f32.gmra.mxu0 %v6971
      %v7176 = vpop.f32.mrf.mxu0
      %v7177 = vadd.f32 0.0, %v7176
      %v7178 = vpop.f32.mrf.mxu0
      %7179 = vmatprep.mubr.f32.mxu0 0.0
      %7180 = vmatmul.mubr.f32.gmra.mxu0 %v6974
      %v7181 = vpop.f32.mrf.mxu0
      %v7182 = vadd.f32 0.0, %v7181
      %v7183 = vpop.f32.mrf.mxu0
      %7184 = vmatprep.mubr.f32.mxu0 0.0
      %7185 = vmatmul.mubr.f32.gmra.mxu0 %v6977
      %v7186 = vpop.f32.mrf.mxu0
      %v7187 = vadd.f32 0.0, %v7186
      %v7188 = vpop.f32.mrf.mxu0
      %7189 = vmatprep.mubr.f32.mxu0 0.0
      %7190 = vmatmul.mubr.f32.gmra.mxu0 %v6980
      %v7191 = vpop.f32.mrf.mxu0
      %v7192 = vadd.f32 0.0, %v7191
      %v7193 = vpop.f32.mrf.mxu0
      %7194 = vmatprep.mubr.f32.mxu0 0.0
      %7195 = vmatmul.mubr.f32.gmra.mxu0 %v6983
      %v7196 = vpop.f32.mrf.mxu0
      %v7197 = vadd.f32 0.0, %v7196
      %v7198 = vpop.f32.mrf.mxu0
      %7199 = vmatprep.mubr.f32.mxu0 0.0
      %7200 = vmatmul.mubr.f32.gmra.mxu0 %v6986
      %v7201 = vpop.f32.mrf.mxu0
      %v7202 = vadd.f32 0.0, %v7201
      %v7203 = vpop.f32.mrf.mxu0
      %7204 = vmatprep.mubr.f32.mxu0 0.0
      %7205 = vmatmul.mubr.f32.gmra.mxu0 %v6989
      %v7206 = vpop.f32.mrf.mxu0
      %v7207 = vadd.f32 0.0, %v7206
      %v7208 = vpop.f32.mrf.mxu0
      %7209 = vmatprep.mubr.f32.mxu0 0.0
      %7210 = vmatmul.mubr.f32.gmra.mxu0 %v6992
      %v7211 = vpop.f32.mrf.mxu0
      %v7212 = vadd.f32 0.0, %v7211
      %v7213 = vpop.f32.mrf.mxu0
      %7214 = vmatprep.mubr.f32.mxu0 0.0
      %7215 = vmatmul.mubr.f32.gmra.mxu0 %v6995
      %v7216 = vpop.f32.mrf.mxu0
      %v7217 = vadd.f32 0.0, %v7216
      %v7218 = vpop.f32.mrf.mxu0
      %7219 = vmatprep.mubr.f32.mxu0 0.0
      %7220 = vmatmul.mubr.f32.gmra.mxu0 %v6998
      %v7221 = vpop.f32.mrf.mxu0
      %v7222 = vadd.f32 0.0, %v7221
      %v7223 = vpop.f32.mrf.mxu0
      %7224 = vdwg.mxu0
      %v7225 = vadd.f32 %v3345, %v7067
      %v7226 = vadd.f32 %v3346, %v7072
      %v7227 = vadd.f32 %v3347, %v7077
      %v7228 = vadd.f32 %v3348, %v7082
      %v7229 = vadd.f32 %v3349, %v7087
      %v7230 = vadd.f32 %v3350, %v7092
      %v7231 = vadd.f32 %v3351, %v7097
      %v7232 = vadd.f32 %v3352, %v7102
      %v7233 = vadd.f32 %v3353, %v7107
      %v7234 = vadd.f32 %v3354, %v7112
      %v7235 = vadd.f32 %v3355, %v7117
      %v7236 = vadd.f32 %v3356, %v7122
      %v7237 = vadd.f32 %v3357, %v7127
      %v7238 = vadd.f32 %v3358, %v7132
      %v7239 = vadd.f32 %v3359, %v7137
      %v7240 = vadd.f32 %v3360, %v7142
      %v7241 = vadd.f32 %v3361, %v7147
      %v7242 = vadd.f32 %v3362, %v7152
      %v7243 = vadd.f32 %v3363, %v7157
      %v7244 = vadd.f32 %v3364, %v7162
      %v7245 = vadd.f32 %v3365, %v7167
      %v7246 = vadd.f32 %v3366, %v7172
      %v7247 = vadd.f32 %v3367, %v7177
      %v7248 = vadd.f32 %v3368, %v7182
      %v7249 = vadd.f32 %v3369, %v7187
      %v7250 = vadd.f32 %v3370, %v7192
      %v7251 = vadd.f32 %v3371, %v7197
      %v7252 = vadd.f32 %v3372, %v7202
      %v7253 = vadd.f32 %v3373, %v7207
      %v7254 = vadd.f32 %v3374, %v7212
      %v7255 = vadd.f32 %v3375, %v7217
      %v7256 = vadd.f32 %v3376, %v7222
      %v7257 = vsel %vm512, %v7225, 0.0
      %7258 = vadd.xlane.f32.xlu0 %v7257
      %v7259 = vpop.xlane.xlu0 %7258
      %v7260 = vsel %vm512, %v7226, 0.0
      %7261 = vadd.xlane.f32.xlu0 %v7260
      %v7262 = vpop.xlane.xlu0 %7261
      %v7263 = vsel %vm512, %v7227, 0.0
      %7264 = vadd.xlane.f32.xlu0 %v7263
      %v7265 = vpop.xlane.xlu0 %7264
      %v7266 = vsel %vm512, %v7228, 0.0
      %7267 = vadd.xlane.f32.xlu0 %v7266
      %v7268 = vpop.xlane.xlu0 %7267
      %v7269 = vsel %vm512, %v7229, 0.0
      %7270 = vadd.xlane.f32.xlu0 %v7269
      %v7271 = vpop.xlane.xlu0 %7270
      %v7272 = vsel %vm512, %v7230, 0.0
      %7273 = vadd.xlane.f32.xlu0 %v7272
      %v7274 = vpop.xlane.xlu0 %7273
      %v7275 = vsel %vm512, %v7231, 0.0
      %7276 = vadd.xlane.f32.xlu0 %v7275
      %v7277 = vpop.xlane.xlu0 %7276
      %v7278 = vsel %vm512, %v7232, 0.0
      %7279 = vadd.xlane.f32.xlu0 %v7278
      %v7280 = vpop.xlane.xlu0 %7279
      %v7281 = vsel %vm512, %v7233, 0.0
      %7282 = vadd.xlane.f32.xlu0 %v7281
      %v7283 = vpop.xlane.xlu0 %7282
      %v7284 = vsel %vm512, %v7234, 0.0
      %7285 = vadd.xlane.f32.xlu0 %v7284
      %v7286 = vpop.xlane.xlu0 %7285
      %v7287 = vsel %vm512, %v7235, 0.0
      %7288 = vadd.xlane.f32.xlu0 %v7287
      %v7289 = vpop.xlane.xlu0 %7288
      %v7290 = vsel %vm512, %v7236, 0.0
      %7291 = vadd.xlane.f32.xlu0 %v7290
      %v7292 = vpop.xlane.xlu0 %7291
      %v7293 = vsel %vm512, %v7237, 0.0
      %7294 = vadd.xlane.f32.xlu0 %v7293
      %v7295 = vpop.xlane.xlu0 %7294
      %v7296 = vsel %vm512, %v7238, 0.0
      %7297 = vadd.xlane.f32.xlu0 %v7296
      %v7298 = vpop.xlane.xlu0 %7297
      %v7299 = vsel %vm512, %v7239, 0.0
      %7300 = vadd.xlane.f32.xlu0 %v7299
      %v7301 = vpop.xlane.xlu0 %7300
      %v7302 = vsel %vm512, %v7240, 0.0
      %7303 = vadd.xlane.f32.xlu0 %v7302
      %v7304 = vpop.xlane.xlu0 %7303
      %v7305 = vsel %vm512, %v7241, 0.0
      %7306 = vadd.xlane.f32.xlu0 %v7305
      %v7307 = vpop.xlane.xlu0 %7306
      %v7308 = vsel %vm512, %v7242, 0.0
      %7309 = vadd.xlane.f32.xlu0 %v7308
      %v7310 = vpop.xlane.xlu0 %7309
      %v7311 = vsel %vm512, %v7243, 0.0
      %7312 = vadd.xlane.f32.xlu0 %v7311
      %v7313 = vpop.xlane.xlu0 %7312
      %v7314 = vsel %vm512, %v7244, 0.0
      %7315 = vadd.xlane.f32.xlu0 %v7314
      %v7316 = vpop.xlane.xlu0 %7315
      %v7317 = vsel %vm512, %v7245, 0.0
      %7318 = vadd.xlane.f32.xlu0 %v7317
      %v7319 = vpop.xlane.xlu0 %7318
      %v7320 = vsel %vm512, %v7246, 0.0
      %7321 = vadd.xlane.f32.xlu0 %v7320
      %v7322 = vpop.xlane.xlu0 %7321
      %v7323 = vsel %vm512, %v7247, 0.0
      %7324 = vadd.xlane.f32.xlu0 %v7323
      %v7325 = vpop.xlane.xlu0 %7324
      %v7326 = vsel %vm512, %v7248, 0.0
      %7327 = vadd.xlane.f32.xlu0 %v7326
      %v7328 = vpop.xlane.xlu0 %7327
      %v7329 = vsel %vm512, %v7249, 0.0
      %7330 = vadd.xlane.f32.xlu0 %v7329
      %v7331 = vpop.xlane.xlu0 %7330
      %v7332 = vsel %vm512, %v7250, 0.0
      %7333 = vadd.xlane.f32.xlu0 %v7332
      %v7334 = vpop.xlane.xlu0 %7333
      %v7335 = vsel %vm512, %v7251, 0.0
      %7336 = vadd.xlane.f32.xlu0 %v7335
      %v7337 = vpop.xlane.xlu0 %7336
      %v7338 = vsel %vm512, %v7252, 0.0
      %7339 = vadd.xlane.f32.xlu0 %v7338
      %v7340 = vpop.xlane.xlu0 %7339
      %v7341 = vsel %vm512, %v7253, 0.0
      %7342 = vadd.xlane.f32.xlu0 %v7341
      %v7343 = vpop.xlane.xlu0 %7342
      %v7344 = vsel %vm512, %v7254, 0.0
      %7345 = vadd.xlane.f32.xlu0 %v7344
      %v7346 = vpop.xlane.xlu0 %7345
      %v7347 = vsel %vm512, %v7255, 0.0
      %7348 = vadd.xlane.f32.xlu0 %v7347
      %v7349 = vpop.xlane.xlu0 %7348
      %v7350 = vsel %vm512, %v7256, 0.0
      %7351 = vadd.xlane.f32.xlu0 %v7350
      %v7352 = vpop.xlane.xlu0 %7351
      %v7353 = vmul.f32 %v7259, %v2888
      %v7354 = vmul.f32 %v7262, %v2888
      %v7355 = vmul.f32 %v7265, %v2888
      %v7356 = vmul.f32 %v7268, %v2888
      %v7357 = vmul.f32 %v7271, %v2888
      %v7358 = vmul.f32 %v7274, %v2888
      %v7359 = vmul.f32 %v7277, %v2888
      %v7360 = vmul.f32 %v7280, %v2888
      %v7361 = vmul.f32 %v7283, %v2888
      %v7362 = vmul.f32 %v7286, %v2888
      %v7363 = vmul.f32 %v7289, %v2888
      %v7364 = vmul.f32 %v7292, %v2888
      %v7365 = vmul.f32 %v7295, %v2888
      %v7366 = vmul.f32 %v7298, %v2888
      %v7367 = vmul.f32 %v7301, %v2888
      %v7368 = vmul.f32 %v7304, %v2888
      %v7369 = vmul.f32 %v7307, %v2888
      %v7370 = vmul.f32 %v7310, %v2888
      %v7371 = vmul.f32 %v7313, %v2888
      %v7372 = vmul.f32 %v7316, %v2888
      %v7373 = vmul.f32 %v7319, %v2888
      %v7374 = vmul.f32 %v7322, %v2888
      %v7375 = vmul.f32 %v7325, %v2888
      %v7376 = vmul.f32 %v7328, %v2888
      %v7377 = vmul.f32 %v7331, %v2888
      %v7378 = vmul.f32 %v7334, %v2888
      %v7379 = vmul.f32 %v7337, %v2888
      %v7380 = vmul.f32 %v7340, %v2888
      %v7381 = vmul.f32 %v7343, %v2888
      %v7382 = vmul.f32 %v7346, %v2888
      %v7383 = vmul.f32 %v7349, %v2888
      %v7384 = vmul.f32 %v7352, %v2888
      %v7385 = vmul.f32 %v7225, %v7225
      %v7386 = vmul.f32 %v7226, %v7226
      %v7387 = vmul.f32 %v7227, %v7227
      %v7388 = vmul.f32 %v7228, %v7228
      %v7389 = vmul.f32 %v7229, %v7229
      %v7390 = vmul.f32 %v7230, %v7230
      %v7391 = vmul.f32 %v7231, %v7231
      %v7392 = vmul.f32 %v7232, %v7232
      %v7393 = vmul.f32 %v7233, %v7233
      %v7394 = vmul.f32 %v7234, %v7234
      %v7395 = vmul.f32 %v7235, %v7235
      %v7396 = vmul.f32 %v7236, %v7236
      %v7397 = vmul.f32 %v7237, %v7237
      %v7398 = vmul.f32 %v7238, %v7238
      %v7399 = vmul.f32 %v7239, %v7239
      %v7400 = vmul.f32 %v7240, %v7240
      %v7401 = vmul.f32 %v7241, %v7241
      %v7402 = vmul.f32 %v7242, %v7242
      %v7403 = vmul.f32 %v7243, %v7243
      %v7404 = vmul.f32 %v7244, %v7244
      %v7405 = vmul.f32 %v7245, %v7245
      %v7406 = vmul.f32 %v7246, %v7246
      %v7407 = vmul.f32 %v7247, %v7247
      %v7408 = vmul.f32 %v7248, %v7248
      %v7409 = vmul.f32 %v7249, %v7249
      %v7410 = vmul.f32 %v7250, %v7250
      %v7411 = vmul.f32 %v7251, %v7251
      %v7412 = vmul.f32 %v7252, %v7252
      %v7413 = vmul.f32 %v7253, %v7253
      %v7414 = vmul.f32 %v7254, %v7254
      %v7415 = vmul.f32 %v7255, %v7255
      %v7416 = vmul.f32 %v7256, %v7256
      %v7417 = vsel %vm512, %v7385, 0.0
      %7418 = vadd.xlane.f32.xlu0 %v7417
      %v7419 = vpop.xlane.xlu0 %7418
      %v7420 = vsel %vm512, %v7386, 0.0
      %7421 = vadd.xlane.f32.xlu0 %v7420
      %v7422 = vpop.xlane.xlu0 %7421
      %v7423 = vsel %vm512, %v7387, 0.0
      %7424 = vadd.xlane.f32.xlu0 %v7423
      %v7425 = vpop.xlane.xlu0 %7424
      %v7426 = vsel %vm512, %v7388, 0.0
      %7427 = vadd.xlane.f32.xlu0 %v7426
      %v7428 = vpop.xlane.xlu0 %7427
      %v7429 = vsel %vm512, %v7389, 0.0
      %7430 = vadd.xlane.f32.xlu0 %v7429
      %v7431 = vpop.xlane.xlu0 %7430
      %v7432 = vsel %vm512, %v7390, 0.0
      %7433 = vadd.xlane.f32.xlu0 %v7432
      %v7434 = vpop.xlane.xlu0 %7433
      %v7435 = vsel %vm512, %v7391, 0.0
      %7436 = vadd.xlane.f32.xlu0 %v7435
      %v7437 = vpop.xlane.xlu0 %7436
      %v7438 = vsel %vm512, %v7392, 0.0
      %7439 = vadd.xlane.f32.xlu0 %v7438
      %v7440 = vpop.xlane.xlu0 %7439
      %v7441 = vsel %vm512, %v7393, 0.0
      %7442 = vadd.xlane.f32.xlu0 %v7441
      %v7443 = vpop.xlane.xlu0 %7442
      %v7444 = vsel %vm512, %v7394, 0.0
      %7445 = vadd.xlane.f32.xlu0 %v7444
      %v7446 = vpop.xlane.xlu0 %7445
      %v7447 = vsel %vm512, %v7395, 0.0
      %7448 = vadd.xlane.f32.xlu0 %v7447
      %v7449 = vpop.xlane.xlu0 %7448
      %v7450 = vsel %vm512, %v7396, 0.0
      %7451 = vadd.xlane.f32.xlu0 %v7450
      %v7452 = vpop.xlane.xlu0 %7451
      %v7453 = vsel %vm512, %v7397, 0.0
      %7454 = vadd.xlane.f32.xlu0 %v7453
      %v7455 = vpop.xlane.xlu0 %7454
      %v7456 = vsel %vm512, %v7398, 0.0
      %7457 = vadd.xlane.f32.xlu0 %v7456
      %v7458 = vpop.xlane.xlu0 %7457
      %v7459 = vsel %vm512, %v7399, 0.0
      %7460 = vadd.xlane.f32.xlu0 %v7459
      %v7461 = vpop.xlane.xlu0 %7460
      %v7462 = vsel %vm512, %v7400, 0.0
      %7463 = vadd.xlane.f32.xlu0 %v7462
      %v7464 = vpop.xlane.xlu0 %7463
      %v7465 = vsel %vm512, %v7401, 0.0
      %7466 = vadd.xlane.f32.xlu0 %v7465
      %v7467 = vpop.xlane.xlu0 %7466
      %v7468 = vsel %vm512, %v7402, 0.0
      %7469 = vadd.xlane.f32.xlu0 %v7468
      %v7470 = vpop.xlane.xlu0 %7469
      %v7471 = vsel %vm512, %v7403, 0.0
      %7472 = vadd.xlane.f32.xlu0 %v7471
      %v7473 = vpop.xlane.xlu0 %7472
      %v7474 = vsel %vm512, %v7404, 0.0
      %7475 = vadd.xlane.f32.xlu0 %v7474
      %v7476 = vpop.xlane.xlu0 %7475
      %v7477 = vsel %vm512, %v7405, 0.0
      %7478 = vadd.xlane.f32.xlu0 %v7477
      %v7479 = vpop.xlane.xlu0 %7478
      %v7480 = vsel %vm512, %v7406, 0.0
      %7481 = vadd.xlane.f32.xlu0 %v7480
      %v7482 = vpop.xlane.xlu0 %7481
      %v7483 = vsel %vm512, %v7407, 0.0
      %7484 = vadd.xlane.f32.xlu0 %v7483
      %v7485 = vpop.xlane.xlu0 %7484
      %v7486 = vsel %vm512, %v7408, 0.0
      %7487 = vadd.xlane.f32.xlu0 %v7486
      %v7488 = vpop.xlane.xlu0 %7487
      %v7489 = vsel %vm512, %v7409, 0.0
      %7490 = vadd.xlane.f32.xlu0 %v7489
      %v7491 = vpop.xlane.xlu0 %7490
      %v7492 = vsel %vm512, %v7410, 0.0
      %7493 = vadd.xlane.f32.xlu0 %v7492
      %v7494 = vpop.xlane.xlu0 %7493
      %v7495 = vsel %vm512, %v7411, 0.0
      %7496 = vadd.xlane.f32.xlu0 %v7495
      %v7497 = vpop.xlane.xlu0 %7496
      %v7498 = vsel %vm512, %v7412, 0.0
      %7499 = vadd.xlane.f32.xlu0 %v7498
      %v7500 = vpop.xlane.xlu0 %7499
      %v7501 = vsel %vm512, %v7413, 0.0
      %7502 = vadd.xlane.f32.xlu0 %v7501
      %v7503 = vpop.xlane.xlu0 %7502
      %v7504 = vsel %vm512, %v7414, 0.0
      %7505 = vadd.xlane.f32.xlu0 %v7504
      %v7506 = vpop.xlane.xlu0 %7505
      %v7507 = vsel %vm512, %v7415, 0.0
      %7508 = vadd.xlane.f32.xlu0 %v7507
      %v7509 = vpop.xlane.xlu0 %7508
      %v7510 = vsel %vm512, %v7416, 0.0
      %7511 = vadd.xlane.f32.xlu0 %v7510
      %v7512 = vpop.xlane.xlu0 %7511
      %v7513 = vmul.f32 %v7419, %v2888
      %v7514 = vmul.f32 %v7422, %v2888
      %v7515 = vmul.f32 %v7425, %v2888
      %v7516 = vmul.f32 %v7428, %v2888
      %v7517 = vmul.f32 %v7431, %v2888
      %v7518 = vmul.f32 %v7434, %v2888
      %v7519 = vmul.f32 %v7437, %v2888
      %v7520 = vmul.f32 %v7440, %v2888
      %v7521 = vmul.f32 %v7443, %v2888
      %v7522 = vmul.f32 %v7446, %v2888
      %v7523 = vmul.f32 %v7449, %v2888
      %v7524 = vmul.f32 %v7452, %v2888
      %v7525 = vmul.f32 %v7455, %v2888
      %v7526 = vmul.f32 %v7458, %v2888
      %v7527 = vmul.f32 %v7461, %v2888
      %v7528 = vmul.f32 %v7464, %v2888
      %v7529 = vmul.f32 %v7467, %v2888
      %v7530 = vmul.f32 %v7470, %v2888
      %v7531 = vmul.f32 %v7473, %v2888
      %v7532 = vmul.f32 %v7476, %v2888
      %v7533 = vmul.f32 %v7479, %v2888
      %v7534 = vmul.f32 %v7482, %v2888
      %v7535 = vmul.f32 %v7485, %v2888
      %v7536 = vmul.f32 %v7488, %v2888
      %v7537 = vmul.f32 %v7491, %v2888
      %v7538 = vmul.f32 %v7494, %v2888
      %v7539 = vmul.f32 %v7497, %v2888
      %v7540 = vmul.f32 %v7500, %v2888
      %v7541 = vmul.f32 %v7503, %v2888
      %v7542 = vmul.f32 %v7506, %v2888
      %v7543 = vmul.f32 %v7509, %v2888
      %v7544 = vmul.f32 %v7512, %v2888
      %v7545 = vmul.f32 %v7353, %v7353
      %v7546 = vmul.f32 %v7354, %v7354
      %v7547 = vmul.f32 %v7355, %v7355
      %v7548 = vmul.f32 %v7356, %v7356
      %v7549 = vmul.f32 %v7357, %v7357
      %v7550 = vmul.f32 %v7358, %v7358
      %v7551 = vmul.f32 %v7359, %v7359
      %v7552 = vmul.f32 %v7360, %v7360
      %v7553 = vmul.f32 %v7361, %v7361
      %v7554 = vmul.f32 %v7362, %v7362
      %v7555 = vmul.f32 %v7363, %v7363
      %v7556 = vmul.f32 %v7364, %v7364
      %v7557 = vmul.f32 %v7365, %v7365
      %v7558 = vmul.f32 %v7366, %v7366
      %v7559 = vmul.f32 %v7367, %v7367
      %v7560 = vmul.f32 %v7368, %v7368
      %v7561 = vmul.f32 %v7369, %v7369
      %v7562 = vmul.f32 %v7370, %v7370
      %v7563 = vmul.f32 %v7371, %v7371
      %v7564 = vmul.f32 %v7372, %v7372
      %v7565 = vmul.f32 %v7373, %v7373
      %v7566 = vmul.f32 %v7374, %v7374
      %v7567 = vmul.f32 %v7375, %v7375
      %v7568 = vmul.f32 %v7376, %v7376
      %v7569 = vmul.f32 %v7377, %v7377
      %v7570 = vmul.f32 %v7378, %v7378
      %v7571 = vmul.f32 %v7379, %v7379
      %v7572 = vmul.f32 %v7380, %v7380
      %v7573 = vmul.f32 %v7381, %v7381
      %v7574 = vmul.f32 %v7382, %v7382
      %v7575 = vmul.f32 %v7383, %v7383
      %v7576 = vmul.f32 %v7384, %v7384
      %v7577 = vsub.f32 %v7513, %v7545
      %v7578 = vsub.f32 %v7514, %v7546
      %v7579 = vsub.f32 %v7515, %v7547
      %v7580 = vsub.f32 %v7516, %v7548
      %v7581 = vsub.f32 %v7517, %v7549
      %v7582 = vsub.f32 %v7518, %v7550
      %v7583 = vsub.f32 %v7519, %v7551
      %v7584 = vsub.f32 %v7520, %v7552
      %v7585 = vsub.f32 %v7521, %v7553
      %v7586 = vsub.f32 %v7522, %v7554
      %v7587 = vsub.f32 %v7523, %v7555
      %v7588 = vsub.f32 %v7524, %v7556
      %v7589 = vsub.f32 %v7525, %v7557
      %v7590 = vsub.f32 %v7526, %v7558
      %v7591 = vsub.f32 %v7527, %v7559
      %v7592 = vsub.f32 %v7528, %v7560
      %v7593 = vsub.f32 %v7529, %v7561
      %v7594 = vsub.f32 %v7530, %v7562
      %v7595 = vsub.f32 %v7531, %v7563
      %v7596 = vsub.f32 %v7532, %v7564
      %v7597 = vsub.f32 %v7533, %v7565
      %v7598 = vsub.f32 %v7534, %v7566
      %v7599 = vsub.f32 %v7535, %v7567
      %v7600 = vsub.f32 %v7536, %v7568
      %v7601 = vsub.f32 %v7537, %v7569
      %v7602 = vsub.f32 %v7538, %v7570
      %v7603 = vsub.f32 %v7539, %v7571
      %v7604 = vsub.f32 %v7540, %v7572
      %v7605 = vsub.f32 %v7541, %v7573
      %v7606 = vsub.f32 %v7542, %v7574
      %v7607 = vsub.f32 %v7543, %v7575
      %v7608 = vsub.f32 %v7544, %v7576
      %v7609 = vmax.f32 %v7577, 0.0
      %v7610 = vmax.f32 %v7578, 0.0
      %v7611 = vmax.f32 %v7579, 0.0
      %v7612 = vmax.f32 %v7580, 0.0
      %v7613 = vmax.f32 %v7581, 0.0
      %v7614 = vmax.f32 %v7582, 0.0
      %v7615 = vmax.f32 %v7583, 0.0
      %v7616 = vmax.f32 %v7584, 0.0
      %v7617 = vmax.f32 %v7585, 0.0
      %v7618 = vmax.f32 %v7586, 0.0
      %v7619 = vmax.f32 %v7587, 0.0
      %v7620 = vmax.f32 %v7588, 0.0
      %v7621 = vmax.f32 %v7589, 0.0
      %v7622 = vmax.f32 %v7590, 0.0
      %v7623 = vmax.f32 %v7591, 0.0
      %v7624 = vmax.f32 %v7592, 0.0
      %v7625 = vmax.f32 %v7593, 0.0
      %v7626 = vmax.f32 %v7594, 0.0
      %v7627 = vmax.f32 %v7595, 0.0
      %v7628 = vmax.f32 %v7596, 0.0
      %v7629 = vmax.f32 %v7597, 0.0
      %v7630 = vmax.f32 %v7598, 0.0
      %v7631 = vmax.f32 %v7599, 0.0
      %v7632 = vmax.f32 %v7600, 0.0
      %v7633 = vmax.f32 %v7601, 0.0
      %v7634 = vmax.f32 %v7602, 0.0
      %v7635 = vmax.f32 %v7603, 0.0
      %v7636 = vmax.f32 %v7604, 0.0
      %v7637 = vmax.f32 %v7605, 0.0
      %v7638 = vmax.f32 %v7606, 0.0
      %v7639 = vmax.f32 %v7607, 0.0
      %v7640 = vmax.f32 %v7608, 0.0
      %v7641 = vsub.f32 %v7225, %v7353
      %v7642 = vsub.f32 %v7226, %v7354
      %v7643 = vsub.f32 %v7227, %v7355
      %v7644 = vsub.f32 %v7228, %v7356
      %v7645 = vsub.f32 %v7229, %v7357
      %v7646 = vsub.f32 %v7230, %v7358
      %v7647 = vsub.f32 %v7231, %v7359
      %v7648 = vsub.f32 %v7232, %v7360
      %v7649 = vsub.f32 %v7233, %v7361
      %v7650 = vsub.f32 %v7234, %v7362
      %v7651 = vsub.f32 %v7235, %v7363
      %v7652 = vsub.f32 %v7236, %v7364
      %v7653 = vsub.f32 %v7237, %v7365
      %v7654 = vsub.f32 %v7238, %v7366
      %v7655 = vsub.f32 %v7239, %v7367
      %v7656 = vsub.f32 %v7240, %v7368
      %v7657 = vsub.f32 %v7241, %v7369
      %v7658 = vsub.f32 %v7242, %v7370
      %v7659 = vsub.f32 %v7243, %v7371
      %v7660 = vsub.f32 %v7244, %v7372
      %v7661 = vsub.f32 %v7245, %v7373
      %v7662 = vsub.f32 %v7246, %v7374
      %v7663 = vsub.f32 %v7247, %v7375
      %v7664 = vsub.f32 %v7248, %v7376
      %v7665 = vsub.f32 %v7249, %v7377
      %v7666 = vsub.f32 %v7250, %v7378
      %v7667 = vsub.f32 %v7251, %v7379
      %v7668 = vsub.f32 %v7252, %v7380
      %v7669 = vsub.f32 %v7253, %v7381
      %v7670 = vsub.f32 %v7254, %v7382
      %v7671 = vsub.f32 %v7255, %v7383
      %v7672 = vsub.f32 %v7256, %v7384
      %v7673 = vadd.f32 %v7609, 1e-05
      %v7674 = vadd.f32 %v7610, 1e-05
      %v7675 = vadd.f32 %v7611, 1e-05
      %v7676 = vadd.f32 %v7612, 1e-05
      %v7677 = vadd.f32 %v7613, 1e-05
      %v7678 = vadd.f32 %v7614, 1e-05
      %v7679 = vadd.f32 %v7615, 1e-05
      %v7680 = vadd.f32 %v7616, 1e-05
      %v7681 = vadd.f32 %v7617, 1e-05
      %v7682 = vadd.f32 %v7618, 1e-05
      %v7683 = vadd.f32 %v7619, 1e-05
      %v7684 = vadd.f32 %v7620, 1e-05
      %v7685 = vadd.f32 %v7621, 1e-05
      %v7686 = vadd.f32 %v7622, 1e-05
      %v7687 = vadd.f32 %v7623, 1e-05
      %v7688 = vadd.f32 %v7624, 1e-05
      %v7689 = vadd.f32 %v7625, 1e-05
      %v7690 = vadd.f32 %v7626, 1e-05
      %v7691 = vadd.f32 %v7627, 1e-05
      %v7692 = vadd.f32 %v7628, 1e-05
      %v7693 = vadd.f32 %v7629, 1e-05
      %v7694 = vadd.f32 %v7630, 1e-05
      %v7695 = vadd.f32 %v7631, 1e-05
      %v7696 = vadd.f32 %v7632, 1e-05
      %v7697 = vadd.f32 %v7633, 1e-05
      %v7698 = vadd.f32 %v7634, 1e-05
      %v7699 = vadd.f32 %v7635, 1e-05
      %v7700 = vadd.f32 %v7636, 1e-05
      %v7701 = vadd.f32 %v7637, 1e-05
      %v7702 = vadd.f32 %v7638, 1e-05
      %v7703 = vadd.f32 %v7639, 1e-05
      %v7704 = vadd.f32 %v7640, 1e-05
      %v7705 = vrsqrt.pop %v7673
      %v7706 = vrsqrt.pop %v7674
      %v7707 = vrsqrt.pop %v7675
      %v7708 = vrsqrt.pop %v7676
      %v7709 = vrsqrt.pop %v7677
      %v7710 = vrsqrt.pop %v7678
      %v7711 = vrsqrt.pop %v7679
      %v7712 = vrsqrt.pop %v7680
      %v7713 = vrsqrt.pop %v7681
      %v7714 = vrsqrt.pop %v7682
      %v7715 = vrsqrt.pop %v7683
      %v7716 = vrsqrt.pop %v7684
      %v7717 = vrsqrt.pop %v7685
      %v7718 = vrsqrt.pop %v7686
      %v7719 = vrsqrt.pop %v7687
      %v7720 = vrsqrt.pop %v7688
      %v7721 = vrsqrt.pop %v7689
      %v7722 = vrsqrt.pop %v7690
      %v7723 = vrsqrt.pop %v7691
      %v7724 = vrsqrt.pop %v7692
      %v7725 = vrsqrt.pop %v7693
      %v7726 = vrsqrt.pop %v7694
      %v7727 = vrsqrt.pop %v7695
      %v7728 = vrsqrt.pop %v7696
      %v7729 = vrsqrt.pop %v7697
      %v7730 = vrsqrt.pop %v7698
      %v7731 = vrsqrt.pop %v7699
      %v7732 = vrsqrt.pop %v7700
      %v7733 = vrsqrt.pop %v7701
      %v7734 = vrsqrt.pop %v7702
      %v7735 = vrsqrt.pop %v7703
      %v7736 = vrsqrt.pop %v7704
      %v7737 = vmul.f32 %v7641, %v7705
      %v7738 = vmul.f32 %v7642, %v7706
      %v7739 = vmul.f32 %v7643, %v7707
      %v7740 = vmul.f32 %v7644, %v7708
      %v7741 = vmul.f32 %v7645, %v7709
      %v7742 = vmul.f32 %v7646, %v7710
      %v7743 = vmul.f32 %v7647, %v7711
      %v7744 = vmul.f32 %v7648, %v7712
      %v7745 = vmul.f32 %v7649, %v7713
      %v7746 = vmul.f32 %v7650, %v7714
      %v7747 = vmul.f32 %v7651, %v7715
      %v7748 = vmul.f32 %v7652, %v7716
      %v7749 = vmul.f32 %v7653, %v7717
      %v7750 = vmul.f32 %v7654, %v7718
      %v7751 = vmul.f32 %v7655, %v7719
      %v7752 = vmul.f32 %v7656, %v7720
      %v7753 = vmul.f32 %v7657, %v7721
      %v7754 = vmul.f32 %v7658, %v7722
      %v7755 = vmul.f32 %v7659, %v7723
      %v7756 = vmul.f32 %v7660, %v7724
      %v7757 = vmul.f32 %v7661, %v7725
      %v7758 = vmul.f32 %v7662, %v7726
      %v7759 = vmul.f32 %v7663, %v7727
      %v7760 = vmul.f32 %v7664, %v7728
      %v7761 = vmul.f32 %v7665, %v7729
      %v7762 = vmul.f32 %v7666, %v7730
      %v7763 = vmul.f32 %v7667, %v7731
      %v7764 = vmul.f32 %v7668, %v7732
      %v7765 = vmul.f32 %v7669, %v7733
      %v7766 = vmul.f32 %v7670, %v7734
      %v7767 = vmul.f32 %v7671, %v7735
      %v7768 = vmul.f32 %v7672, %v7736
      %v7769 = vlaneseq
      %v7770 = vshrl.u32 %v7769, 7
      %v7771 = vsub.s32 0, %v7770
      %v7772 = vrot.slane %v444, %v7771
      %v7773 = vmul.f32 %v7737, %v7772
      %v7774 = vmul.f32 %v7738, %v7772
      %v7775 = vmul.f32 %v7739, %v7772
      %v7776 = vmul.f32 %v7740, %v7772
      %v7777 = vmul.f32 %v7741, %v7772
      %v7778 = vmul.f32 %v7742, %v7772
      %v7779 = vmul.f32 %v7743, %v7772
      %v7780 = vmul.f32 %v7744, %v7772
      %v7781 = vmul.f32 %v7745, %v7772
      %v7782 = vmul.f32 %v7746, %v7772
      %v7783 = vmul.f32 %v7747, %v7772
      %v7784 = vmul.f32 %v7748, %v7772
      %v7785 = vmul.f32 %v7749, %v7772
      %v7786 = vmul.f32 %v7750, %v7772
      %v7787 = vmul.f32 %v7751, %v7772
      %v7788 = vmul.f32 %v7752, %v7772
      %v7789 = vmul.f32 %v7753, %v7772
      %v7790 = vmul.f32 %v7754, %v7772
      %v7791 = vmul.f32 %v7755, %v7772
      %v7792 = vmul.f32 %v7756, %v7772
      %v7793 = vmul.f32 %v7757, %v7772
      %v7794 = vmul.f32 %v7758, %v7772
      %v7795 = vmul.f32 %v7759, %v7772
      %v7796 = vmul.f32 %v7760, %v7772
      %v7797 = vmul.f32 %v7761, %v7772
      %v7798 = vmul.f32 %v7762, %v7772
      %v7799 = vmul.f32 %v7763, %v7772
      %v7800 = vmul.f32 %v7764, %v7772
      %v7801 = vmul.f32 %v7765, %v7772
      %v7802 = vmul.f32 %v7766, %v7772
      %v7803 = vmul.f32 %v7767, %v7772
      %v7804 = vmul.f32 %v7768, %v7772
      %v7805 = vlaneseq
      %v7806 = vshrl.u32 %v7805, 7
      %v7807 = vsub.s32 0, %v7806
      %v7808 = vrot.slane %v445, %v7807
      %v7809 = vadd.f32 %v7773, %v7808
      %v7810 = vadd.f32 %v7774, %v7808
      %v7811 = vadd.f32 %v7775, %v7808
      %v7812 = vadd.f32 %v7776, %v7808
      %v7813 = vadd.f32 %v7777, %v7808
      %v7814 = vadd.f32 %v7778, %v7808
      %v7815 = vadd.f32 %v7779, %v7808
      %v7816 = vadd.f32 %v7780, %v7808
      %v7817 = vadd.f32 %v7781, %v7808
      %v7818 = vadd.f32 %v7782, %v7808
      %v7819 = vadd.f32 %v7783, %v7808
      %v7820 = vadd.f32 %v7784, %v7808
      %v7821 = vadd.f32 %v7785, %v7808
      %v7822 = vadd.f32 %v7786, %v7808
      %v7823 = vadd.f32 %v7787, %v7808
      %v7824 = vadd.f32 %v7788, %v7808
      %v7825 = vadd.f32 %v7789, %v7808
      %v7826 = vadd.f32 %v7790, %v7808
      %v7827 = vadd.f32 %v7791, %v7808
      %v7828 = vadd.f32 %v7792, %v7808
      %v7829 = vadd.f32 %v7793, %v7808
      %v7830 = vadd.f32 %v7794, %v7808
      %v7831 = vadd.f32 %v7795, %v7808
      %v7832 = vadd.f32 %v7796, %v7808
      %v7833 = vadd.f32 %v7797, %v7808
      %v7834 = vadd.f32 %v7798, %v7808
      %v7835 = vadd.f32 %v7799, %v7808
      %v7836 = vadd.f32 %v7800, %v7808
      %v7837 = vadd.f32 %v7801, %v7808
      %v7838 = vadd.f32 %v7802, %v7808
      %v7839 = vadd.f32 %v7803, %v7808
      %v7840 = vadd.f32 %v7804, %v7808
      %v7841 = vlaneseq
      %v7842 = vshrl.u32 %v7841, 7
      %v7843 = vsub.s32 0, %v7842
      %v7844 = vrot.slane %v440, %v7843
      %v7846 = vsel %vm512, %v7809, 0
      %v7849 = vsel %vm512, %v7810, 0
      %v7852 = vsel %vm512, %v7811, 0
      %v7855 = vsel %vm512, %v7812, 0
      %v7858 = vsel %vm512, %v7813, 0
      %v7861 = vsel %vm512, %v7814, 0
      %v7864 = vsel %vm512, %v7815, 0
      %v7867 = vsel %vm512, %v7816, 0
      %v7870 = vsel %vm512, %v7817, 0
      %v7873 = vsel %vm512, %v7818, 0
      %v7876 = vsel %vm512, %v7819, 0
      %v7879 = vsel %vm512, %v7820, 0
      %v7882 = vsel %vm512, %v7821, 0
      %v7885 = vsel %vm512, %v7822, 0
      %v7888 = vsel %vm512, %v7823, 0
      %v7891 = vsel %vm512, %v7824, 0
      %v7894 = vsel %vm512, %v7825, 0
      %v7897 = vsel %vm512, %v7826, 0
      %v7900 = vsel %vm512, %v7827, 0
      %v7903 = vsel %vm512, %v7828, 0
      %v7906 = vsel %vm512, %v7829, 0
      %v7909 = vsel %vm512, %v7830, 0
      %v7912 = vsel %vm512, %v7831, 0
      %v7915 = vsel %vm512, %v7832, 0
      %v7918 = vsel %vm512, %v7833, 0
      %v7921 = vsel %vm512, %v7834, 0
      %v7924 = vsel %vm512, %v7835, 0
      %v7927 = vsel %vm512, %v7836, 0
      %v7930 = vsel %vm512, %v7837, 0
      %v7933 = vsel %vm512, %v7838, 0
      %v7936 = vsel %vm512, %v7839, 0
      %v7939 = vsel %vm512, %v7840, 0
      %7941 = vmatprep.subr.mxu0 0.0
      %7942 = vmatpush1.msra.mxu0 0.0
      %7943 = vmatprep.subr.mxu0 0.0
      %7944 = vmatpush1.msra.mxu0 0.0
      %7945 = vmatprep.subr.mxu0 0.0
      %7946 = vmatpush1.msra.mxu0 0.0
      %7947 = vmatprep.subr.mxu0 0.0
      %7948 = vmatpush1.msra.mxu0 0.0
      %7949 = vmatprep.subr.mxu0 0.0
      %7950 = vmatpush1.msra.mxu0 0.0
      %7951 = vmatprep.subr.mxu0 0.0
      %7952 = vmatpush1.msra.mxu0 0.0
      %7953 = vmatprep.subr.mxu0 0.0
      %7954 = vmatpush1.msra.mxu0 0.0
      %7955 = vmatprep.subr.mxu0 0.0
      %7956 = vmatpush1.msra.mxu0 0.0
      %7957 = vmatprep.subr.mxu0 0.0
      %7958 = vmatpush1.msra.mxu0 0.0
      %7959 = vmatprep.subr.mxu0 0.0
      %7960 = vmatpush1.msra.mxu0 0.0
      %7961 = vmatprep.subr.mxu0 0.0
      %7962 = vmatpush1.msra.mxu0 0.0
      %7963 = vmatprep.subr.mxu0 0.0
      %7964 = vmatpush1.msra.mxu0 0.0
      %7965 = vmatprep.subr.mxu0 0.0
      %7966 = vmatpush1.msra.mxu0 %v435
      %7967 = vmatprep.subr.mxu0 0.0
      %7968 = vmatpush1.msra.mxu0 %v434
      %7969 = vmatprep.subr.mxu0 0.0
      %7970 = vmatpush1.msra.mxu0 %v433
      %7971 = vmatprep.subr.mxu0 0.0
      %7972 = vmatpush1.msra.mxu0 %v432
      %7973 = vmatprep.subr.mxu0 0.0
      %7974 = vmatpush2.msra.mxu0 0.0
      %7975 = vmatprep.subr.mxu0 0.0
      %7976 = vmatpush2.msra.mxu0 0.0
      %7977 = vmatprep.subr.mxu0 0.0
      %7978 = vmatpush2.msra.mxu0 0.0
      %7979 = vmatprep.subr.mxu0 0.0
      %7980 = vmatpush2.msra.mxu0 0.0
      %7981 = vmatprep.subr.mxu0 0.0
      %7982 = vmatpush2.msra.mxu0 0.0
      %7983 = vmatprep.subr.mxu0 0.0
      %7984 = vmatpush2.msra.mxu0 0.0
      %7985 = vmatprep.subr.mxu0 0.0
      %7986 = vmatpush2.msra.mxu0 0.0
      %7987 = vmatprep.subr.mxu0 0.0
      %7988 = vmatpush2.msra.mxu0 0.0
      %7989 = vmatprep.subr.mxu0 0.0
      %7990 = vmatpush2.msra.mxu0 0.0
      %7991 = vmatprep.subr.mxu0 0.0
      %7992 = vmatpush2.msra.mxu0 0.0
      %7993 = vmatprep.subr.mxu0 0.0
      %7994 = vmatpush2.msra.mxu0 0.0
      %7995 = vmatprep.subr.mxu0 0.0
      %7996 = vmatpush2.msra.mxu0 0.0
      %7997 = vmatprep.subr.mxu0 0.0
      %7998 = vmatpush2.msra.mxu0 0.0
      %7999 = vmatprep.subr.mxu0 0.0
      %8000 = vmatpush2.msra.mxu0 0.0
      %8001 = vmatprep.subr.mxu0 0.0
      %8002 = vmatpush2.msra.mxu0 0.0
      %8003 = vmatprep.subr.mxu0 0.0
      %8004 = vmatpush2.msra.mxu0 0.0
      %8005 = vmatprep.mubr.f32.mxu0 0.0
      %8006 = vmatmul.mubr.f32.gmra.mxu0 %v7846
      %v8007 = vpop.f32.mrf.mxu0
      %v8008 = vadd.f32 %v7844, %v8007
      %v8009 = vpop.f32.mrf.mxu0
      %8010 = vmatprep.mubr.f32.mxu0 0.0
      %8011 = vmatmul.mubr.f32.gmra.mxu0 %v7849
      %v8012 = vpop.f32.mrf.mxu0
      %v8013 = vadd.f32 %v7844, %v8012
      %v8014 = vpop.f32.mrf.mxu0
      %8015 = vmatprep.mubr.f32.mxu0 0.0
      %8016 = vmatmul.mubr.f32.gmra.mxu0 %v7852
      %v8017 = vpop.f32.mrf.mxu0
      %v8018 = vadd.f32 %v7844, %v8017
      %v8019 = vpop.f32.mrf.mxu0
      %8020 = vmatprep.mubr.f32.mxu0 0.0
      %8021 = vmatmul.mubr.f32.gmra.mxu0 %v7855
      %v8022 = vpop.f32.mrf.mxu0
      %v8023 = vadd.f32 %v7844, %v8022
      %v8024 = vpop.f32.mrf.mxu0
      %8025 = vmatprep.mubr.f32.mxu0 0.0
      %8026 = vmatmul.mubr.f32.gmra.mxu0 %v7858
      %v8027 = vpop.f32.mrf.mxu0
      %v8028 = vadd.f32 %v7844, %v8027
      %v8029 = vpop.f32.mrf.mxu0
      %8030 = vmatprep.mubr.f32.mxu0 0.0
      %8031 = vmatmul.mubr.f32.gmra.mxu0 %v7861
      %v8032 = vpop.f32.mrf.mxu0
      %v8033 = vadd.f32 %v7844, %v8032
      %v8034 = vpop.f32.mrf.mxu0
      %8035 = vmatprep.mubr.f32.mxu0 0.0
      %8036 = vmatmul.mubr.f32.gmra.mxu0 %v7864
      %v8037 = vpop.f32.mrf.mxu0
      %v8038 = vadd.f32 %v7844, %v8037
      %v8039 = vpop.f32.mrf.mxu0
      %8040 = vmatprep.mubr.f32.mxu0 0.0
      %8041 = vmatmul.mubr.f32.gmra.mxu0 %v7867
      %v8042 = vpop.f32.mrf.mxu0
      %v8043 = vadd.f32 %v7844, %v8042
      %v8044 = vpop.f32.mrf.mxu0
      %8045 = vmatprep.mubr.f32.mxu0 0.0
      %8046 = vmatmul.mubr.f32.gmra.mxu0 %v7870
      %v8047 = vpop.f32.mrf.mxu0
      %v8048 = vadd.f32 %v7844, %v8047
      %v8049 = vpop.f32.mrf.mxu0
      %8050 = vmatprep.mubr.f32.mxu0 0.0
      %8051 = vmatmul.mubr.f32.gmra.mxu0 %v7873
      %v8052 = vpop.f32.mrf.mxu0
      %v8053 = vadd.f32 %v7844, %v8052
      %v8054 = vpop.f32.mrf.mxu0
      %8055 = vmatprep.mubr.f32.mxu0 0.0
      %8056 = vmatmul.mubr.f32.gmra.mxu0 %v7876
      %v8057 = vpop.f32.mrf.mxu0
      %v8058 = vadd.f32 %v7844, %v8057
      %v8059 = vpop.f32.mrf.mxu0
      %8060 = vmatprep.mubr.f32.mxu0 0.0
      %8061 = vmatmul.mubr.f32.gmra.mxu0 %v7879
      %v8062 = vpop.f32.mrf.mxu0
      %v8063 = vadd.f32 %v7844, %v8062
      %v8064 = vpop.f32.mrf.mxu0
      %8065 = vmatprep.mubr.f32.mxu0 0.0
      %8066 = vmatmul.mubr.f32.gmra.mxu0 %v7882
      %v8067 = vpop.f32.mrf.mxu0
      %v8068 = vadd.f32 %v7844, %v8067
      %v8069 = vpop.f32.mrf.mxu0
      %8070 = vmatprep.mubr.f32.mxu0 0.0
      %8071 = vmatmul.mubr.f32.gmra.mxu0 %v7885
      %v8072 = vpop.f32.mrf.mxu0
      %v8073 = vadd.f32 %v7844, %v8072
      %v8074 = vpop.f32.mrf.mxu0
      %8075 = vmatprep.mubr.f32.mxu0 0.0
      %8076 = vmatmul.mubr.f32.gmra.mxu0 %v7888
      %v8077 = vpop.f32.mrf.mxu0
      %v8078 = vadd.f32 %v7844, %v8077
      %v8079 = vpop.f32.mrf.mxu0
      %8080 = vmatprep.mubr.f32.mxu0 0.0
      %8081 = vmatmul.mubr.f32.gmra.mxu0 %v7891
      %v8082 = vpop.f32.mrf.mxu0
      %v8083 = vadd.f32 %v7844, %v8082
      %v8084 = vpop.f32.mrf.mxu0
      %8085 = vmatprep.mubr.f32.mxu0 0.0
      %8086 = vmatmul.mubr.f32.gmra.mxu0 %v7894
      %v8087 = vpop.f32.mrf.mxu0
      %v8088 = vadd.f32 %v7844, %v8087
      %v8089 = vpop.f32.mrf.mxu0
      %8090 = vmatprep.mubr.f32.mxu0 0.0
      %8091 = vmatmul.mubr.f32.gmra.mxu0 %v7897
      %v8092 = vpop.f32.mrf.mxu0
      %v8093 = vadd.f32 %v7844, %v8092
      %v8094 = vpop.f32.mrf.mxu0
      %8095 = vmatprep.mubr.f32.mxu0 0.0
      %8096 = vmatmul.mubr.f32.gmra.mxu0 %v7900
      %v8097 = vpop.f32.mrf.mxu0
      %v8098 = vadd.f32 %v7844, %v8097
      %v8099 = vpop.f32.mrf.mxu0
      %8100 = vmatprep.mubr.f32.mxu0 0.0
      %8101 = vmatmul.mubr.f32.gmra.mxu0 %v7903
      %v8102 = vpop.f32.mrf.mxu0
      %v8103 = vadd.f32 %v7844, %v8102
      %v8104 = vpop.f32.mrf.mxu0
      %8105 = vmatprep.mubr.f32.mxu0 0.0
      %8106 = vmatmul.mubr.f32.gmra.mxu0 %v7906
      %v8107 = vpop.f32.mrf.mxu0
      %v8108 = vadd.f32 %v7844, %v8107
      %v8109 = vpop.f32.mrf.mxu0
      %8110 = vmatprep.mubr.f32.mxu0 0.0
      %8111 = vmatmul.mubr.f32.gmra.mxu0 %v7909
      %v8112 = vpop.f32.mrf.mxu0
      %v8113 = vadd.f32 %v7844, %v8112
      %v8114 = vpop.f32.mrf.mxu0
      %8115 = vmatprep.mubr.f32.mxu0 0.0
      %8116 = vmatmul.mubr.f32.gmra.mxu0 %v7912
      %v8117 = vpop.f32.mrf.mxu0
      %v8118 = vadd.f32 %v7844, %v8117
      %v8119 = vpop.f32.mrf.mxu0
      %8120 = vmatprep.mubr.f32.mxu0 0.0
      %8121 = vmatmul.mubr.f32.gmra.mxu0 %v7915
      %v8122 = vpop.f32.mrf.mxu0
      %v8123 = vadd.f32 %v7844, %v8122
      %v8124 = vpop.f32.mrf.mxu0
      %8125 = vmatprep.mubr.f32.mxu0 0.0
      %8126 = vmatmul.mubr.f32.gmra.mxu0 %v7918
      %v8127 = vpop.f32.mrf.mxu0
      %v8128 = vadd.f32 %v7844, %v8127
      %v8129 = vpop.f32.mrf.mxu0
      %8130 = vmatprep.mubr.f32.mxu0 0.0
      %8131 = vmatmul.mubr.f32.gmra.mxu0 %v7921
      %v8132 = vpop.f32.mrf.mxu0
      %v8133 = vadd.f32 %v7844, %v8132
      %v8134 = vpop.f32.mrf.mxu0
      %8135 = vmatprep.mubr.f32.mxu0 0.0
      %8136 = vmatmul.mubr.f32.gmra.mxu0 %v7924
      %v8137 = vpop.f32.mrf.mxu0
      %v8138 = vadd.f32 %v7844, %v8137
      %v8139 = vpop.f32.mrf.mxu0
      %8140 = vmatprep.mubr.f32.mxu0 0.0
      %8141 = vmatmul.mubr.f32.gmra.mxu0 %v7927
      %v8142 = vpop.f32.mrf.mxu0
      %v8143 = vadd.f32 %v7844, %v8142
      %v8144 = vpop.f32.mrf.mxu0
      %8145 = vmatprep.mubr.f32.mxu0 0.0
      %8146 = vmatmul.mubr.f32.gmra.mxu0 %v7930
      %v8147 = vpop.f32.mrf.mxu0
      %v8148 = vadd.f32 %v7844, %v8147
      %v8149 = vpop.f32.mrf.mxu0
      %8150 = vmatprep.mubr.f32.mxu0 0.0
      %8151 = vmatmul.mubr.f32.gmra.mxu0 %v7933
      %v8152 = vpop.f32.mrf.mxu0
      %v8153 = vadd.f32 %v7844, %v8152
      %v8154 = vpop.f32.mrf.mxu0
      %8155 = vmatprep.mubr.f32.mxu0 0.0
      %8156 = vmatmul.mubr.f32.gmra.mxu0 %v7936
      %v8157 = vpop.f32.mrf.mxu0
      %v8158 = vadd.f32 %v7844, %v8157
      %v8159 = vpop.f32.mrf.mxu0
      %8160 = vmatprep.mubr.f32.mxu0 0.0
      %8161 = vmatmul.mubr.f32.gmra.mxu0 %v7939
      %v8162 = vpop.f32.mrf.mxu0
      %v8163 = vadd.f32 %v7844, %v8162
      %v8164 = vpop.f32.mrf.mxu0
      %8165 = vdwg.mxu0
      %vm8166 = vcmp.gt.f32.partialorder %v8008, 0.0
      %vm8167 = vcmp.gt.f32.partialorder %v8013, 0.0
      %vm8168 = vcmp.gt.f32.partialorder %v8018, 0.0
      %vm8169 = vcmp.gt.f32.partialorder %v8023, 0.0
      %vm8170 = vcmp.gt.f32.partialorder %v8028, 0.0
      %vm8171 = vcmp.gt.f32.partialorder %v8033, 0.0
      %vm8172 = vcmp.gt.f32.partialorder %v8038, 0.0
      %vm8173 = vcmp.gt.f32.partialorder %v8043, 0.0
      %vm8174 = vcmp.gt.f32.partialorder %v8048, 0.0
      %vm8175 = vcmp.gt.f32.partialorder %v8053, 0.0
      %vm8176 = vcmp.gt.f32.partialorder %v8058, 0.0
      %vm8177 = vcmp.gt.f32.partialorder %v8063, 0.0
      %vm8178 = vcmp.gt.f32.partialorder %v8068, 0.0
      %vm8179 = vcmp.gt.f32.partialorder %v8073, 0.0
      %vm8180 = vcmp.gt.f32.partialorder %v8078, 0.0
      %vm8181 = vcmp.gt.f32.partialorder %v8083, 0.0
      %vm8182 = vcmp.gt.f32.partialorder %v8088, 0.0
      %vm8183 = vcmp.gt.f32.partialorder %v8093, 0.0
      %vm8184 = vcmp.gt.f32.partialorder %v8098, 0.0
      %vm8185 = vcmp.gt.f32.partialorder %v8103, 0.0
      %vm8186 = vcmp.gt.f32.partialorder %v8108, 0.0
      %vm8187 = vcmp.gt.f32.partialorder %v8113, 0.0
      %vm8188 = vcmp.gt.f32.partialorder %v8118, 0.0
      %vm8189 = vcmp.gt.f32.partialorder %v8123, 0.0
      %vm8190 = vcmp.gt.f32.partialorder %v8128, 0.0
      %vm8191 = vcmp.gt.f32.partialorder %v8133, 0.0
      %vm8192 = vcmp.gt.f32.partialorder %v8138, 0.0
      %vm8193 = vcmp.gt.f32.partialorder %v8143, 0.0
      %vm8194 = vcmp.gt.f32.partialorder %v8148, 0.0
      %vm8195 = vcmp.gt.f32.partialorder %v8153, 0.0
      %vm8196 = vcmp.gt.f32.partialorder %v8158, 0.0
      %vm8197 = vcmp.gt.f32.partialorder %v8163, 0.0
      %v8198 = vmin.f32 %v8008, 0.0
      %v8199 = vmin.f32 %v8013, 0.0
      %v8200 = vmin.f32 %v8018, 0.0
      %v8201 = vmin.f32 %v8023, 0.0
      %v8202 = vmin.f32 %v8028, 0.0
      %v8203 = vmin.f32 %v8033, 0.0
      %v8204 = vmin.f32 %v8038, 0.0
      %v8205 = vmin.f32 %v8043, 0.0
      %v8206 = vmin.f32 %v8048, 0.0
      %v8207 = vmin.f32 %v8053, 0.0
      %v8208 = vmin.f32 %v8058, 0.0
      %v8209 = vmin.f32 %v8063, 0.0
      %v8210 = vmin.f32 %v8068, 0.0
      %v8211 = vmin.f32 %v8073, 0.0
      %v8212 = vmin.f32 %v8078, 0.0
      %v8213 = vmin.f32 %v8083, 0.0
      %v8214 = vmin.f32 %v8088, 0.0
      %v8215 = vmin.f32 %v8093, 0.0
      %v8216 = vmin.f32 %v8098, 0.0
      %v8217 = vmin.f32 %v8103, 0.0
      %v8218 = vmin.f32 %v8108, 0.0
      %v8219 = vmin.f32 %v8113, 0.0
      %v8220 = vmin.f32 %v8118, 0.0
      %v8221 = vmin.f32 %v8123, 0.0
      %v8222 = vmin.f32 %v8128, 0.0
      %v8223 = vmin.f32 %v8133, 0.0
      %v8224 = vmin.f32 %v8138, 0.0
      %v8225 = vmin.f32 %v8143, 0.0
      %v8226 = vmin.f32 %v8148, 0.0
      %v8227 = vmin.f32 %v8153, 0.0
      %v8228 = vmin.f32 %v8158, 0.0
      %v8229 = vmin.f32 %v8163, 0.0
      %v8230 = vmul.f32 %v8198, 1.442695
      %v8231 = vpow.pop %v8230
      %v8232 = vmul.f32 %v8199, 1.442695
      %v8233 = vpow.pop %v8232
      %v8234 = vmul.f32 %v8200, 1.442695
      %v8235 = vpow.pop %v8234
      %v8236 = vmul.f32 %v8201, 1.442695
      %v8237 = vpow.pop %v8236
      %v8238 = vmul.f32 %v8202, 1.442695
      %v8239 = vpow.pop %v8238
      %v8240 = vmul.f32 %v8203, 1.442695
      %v8241 = vpow.pop %v8240
      %v8242 = vmul.f32 %v8204, 1.442695
      %v8243 = vpow.pop %v8242
      %v8244 = vmul.f32 %v8205, 1.442695
      %v8245 = vpow.pop %v8244
      %v8246 = vmul.f32 %v8206, 1.442695
      %v8247 = vpow.pop %v8246
      %v8248 = vmul.f32 %v8207, 1.442695
      %v8249 = vpow.pop %v8248
      %v8250 = vmul.f32 %v8208, 1.442695
      %v8251 = vpow.pop %v8250
      %v8252 = vmul.f32 %v8209, 1.442695
      %v8253 = vpow.pop %v8252
      %v8254 = vmul.f32 %v8210, 1.442695
      %v8255 = vpow.pop %v8254
      %v8256 = vmul.f32 %v8211, 1.442695
      %v8257 = vpow.pop %v8256
      %v8258 = vmul.f32 %v8212, 1.442695
      %v8259 = vpow.pop %v8258
      %v8260 = vmul.f32 %v8213, 1.442695
      %v8261 = vpow.pop %v8260
      %v8262 = vmul.f32 %v8214, 1.442695
      %v8263 = vpow.pop %v8262
      %v8264 = vmul.f32 %v8215, 1.442695
      %v8265 = vpow.pop %v8264
      %v8266 = vmul.f32 %v8216, 1.442695
      %v8267 = vpow.pop %v8266
      %v8268 = vmul.f32 %v8217, 1.442695
      %v8269 = vpow.pop %v8268
      %v8270 = vmul.f32 %v8218, 1.442695
      %v8271 = vpow.pop %v8270
      %v8272 = vmul.f32 %v8219, 1.442695
      %v8273 = vpow.pop %v8272
      %v8274 = vmul.f32 %v8220, 1.442695
      %v8275 = vpow.pop %v8274
      %v8276 = vmul.f32 %v8221, 1.442695
      %v8277 = vpow.pop %v8276
      %v8278 = vmul.f32 %v8222, 1.442695
      %v8279 = vpow.pop %v8278
      %v8280 = vmul.f32 %v8223, 1.442695
      %v8281 = vpow.pop %v8280
      %v8282 = vmul.f32 %v8224, 1.442695
      %v8283 = vpow.pop %v8282
      %v8284 = vmul.f32 %v8225, 1.442695
      %v8285 = vpow.pop %v8284
      %v8286 = vmul.f32 %v8226, 1.442695
      %v8287 = vpow.pop %v8286
      %v8288 = vmul.f32 %v8227, 1.442695
      %v8289 = vpow.pop %v8288
      %v8290 = vmul.f32 %v8228, 1.442695
      %v8291 = vpow.pop %v8290
      %v8292 = vmul.f32 %v8229, 1.442695
      %v8293 = vpow.pop %v8292
      %v8294 = vsub.f32 %v8231, 1.0
      %v8295 = vsub.f32 %v8233, 1.0
      %v8296 = vsub.f32 %v8235, 1.0
      %v8297 = vsub.f32 %v8237, 1.0
      %v8298 = vsub.f32 %v8239, 1.0
      %v8299 = vsub.f32 %v8241, 1.0
      %v8300 = vsub.f32 %v8243, 1.0
      %v8301 = vsub.f32 %v8245, 1.0
      %v8302 = vsub.f32 %v8247, 1.0
      %v8303 = vsub.f32 %v8249, 1.0
      %v8304 = vsub.f32 %v8251, 1.0
      %v8305 = vsub.f32 %v8253, 1.0
      %v8306 = vsub.f32 %v8255, 1.0
      %v8307 = vsub.f32 %v8257, 1.0
      %v8308 = vsub.f32 %v8259, 1.0
      %v8309 = vsub.f32 %v8261, 1.0
      %v8310 = vsub.f32 %v8263, 1.0
      %v8311 = vsub.f32 %v8265, 1.0
      %v8312 = vsub.f32 %v8267, 1.0
      %v8313 = vsub.f32 %v8269, 1.0
      %v8314 = vsub.f32 %v8271, 1.0
      %v8315 = vsub.f32 %v8273, 1.0
      %v8316 = vsub.f32 %v8275, 1.0
      %v8317 = vsub.f32 %v8277, 1.0
      %v8318 = vsub.f32 %v8279, 1.0
      %v8319 = vsub.f32 %v8281, 1.0
      %v8320 = vsub.f32 %v8283, 1.0
      %v8321 = vsub.f32 %v8285, 1.0
      %v8322 = vsub.f32 %v8287, 1.0
      %v8323 = vsub.f32 %v8289, 1.0
      %v8324 = vsub.f32 %v8291, 1.0
      %v8325 = vsub.f32 %v8293, 1.0
      %v8326 = vsel %vm8166, %v8008, %v8294
      %v8327 = vsel %vm8167, %v8013, %v8295
      %v8328 = vsel %vm8168, %v8018, %v8296
      %v8329 = vsel %vm8169, %v8023, %v8297
      %v8330 = vsel %vm8170, %v8028, %v8298
      %v8331 = vsel %vm8171, %v8033, %v8299
      %v8332 = vsel %vm8172, %v8038, %v8300
      %v8333 = vsel %vm8173, %v8043, %v8301
      %v8334 = vsel %vm8174, %v8048, %v8302
      %v8335 = vsel %vm8175, %v8053, %v8303
      %v8336 = vsel %vm8176, %v8058, %v8304
      %v8337 = vsel %vm8177, %v8063, %v8305
      %v8338 = vsel %vm8178, %v8068, %v8306
      %v8339 = vsel %vm8179, %v8073, %v8307
      %v8340 = vsel %vm8180, %v8078, %v8308
      %v8341 = vsel %vm8181, %v8083, %v8309
      %v8342 = vsel %vm8182, %v8088, %v8310
      %v8343 = vsel %vm8183, %v8093, %v8311
      %v8344 = vsel %vm8184, %v8098, %v8312
      %v8345 = vsel %vm8185, %v8103, %v8313
      %v8346 = vsel %vm8186, %v8108, %v8314
      %v8347 = vsel %vm8187, %v8113, %v8315
      %v8348 = vsel %vm8188, %v8118, %v8316
      %v8349 = vsel %vm8189, %v8123, %v8317
      %v8350 = vsel %vm8190, %v8128, %v8318
      %v8351 = vsel %vm8191, %v8133, %v8319
      %v8352 = vsel %vm8192, %v8138, %v8320
      %v8353 = vsel %vm8193, %v8143, %v8321
      %v8354 = vsel %vm8194, %v8148, %v8322
      %v8355 = vsel %vm8195, %v8153, %v8323
      %v8356 = vsel %vm8196, %v8158, %v8324
      %v8357 = vsel %vm8197, %v8163, %v8325
      %v8358 = vlaneseq
      %v8359 = vshrl.u32 %v8358, 7
      %v8360 = vsub.s32 0, %v8359
      %v8361 = vrot.slane %v441, %v8360
      %v8363 = vsel %vm512, %v8326, 0
      %v8366 = vsel %vm512, %v8327, 0
      %v8369 = vsel %vm512, %v8328, 0
      %v8372 = vsel %vm512, %v8329, 0
      %v8375 = vsel %vm512, %v8330, 0
      %v8378 = vsel %vm512, %v8331, 0
      %v8381 = vsel %vm512, %v8332, 0
      %v8384 = vsel %vm512, %v8333, 0
      %v8387 = vsel %vm512, %v8334, 0
      %v8390 = vsel %vm512, %v8335, 0
      %v8393 = vsel %vm512, %v8336, 0
      %v8396 = vsel %vm512, %v8337, 0
      %v8399 = vsel %vm512, %v8338, 0
      %v8402 = vsel %vm512, %v8339, 0
      %v8405 = vsel %vm512, %v8340, 0
      %v8408 = vsel %vm512, %v8341, 0
      %v8411 = vsel %vm512, %v8342, 0
      %v8414 = vsel %vm512, %v8343, 0
      %v8417 = vsel %vm512, %v8344, 0
      %v8420 = vsel %vm512, %v8345, 0
      %v8423 = vsel %vm512, %v8346, 0
      %v8426 = vsel %vm512, %v8347, 0
      %v8429 = vsel %vm512, %v8348, 0
      %v8432 = vsel %vm512, %v8349, 0
      %v8435 = vsel %vm512, %v8350, 0
      %v8438 = vsel %vm512, %v8351, 0
      %v8441 = vsel %vm512, %v8352, 0
      %v8444 = vsel %vm512, %v8353, 0
      %v8447 = vsel %vm512, %v8354, 0
      %v8450 = vsel %vm512, %v8355, 0
      %v8453 = vsel %vm512, %v8356, 0
      %v8456 = vsel %vm512, %v8357, 0
      %8458 = vmatprep.subr.mxu0 0.0
      %8459 = vmatpush1.msra.mxu0 0.0
      %8460 = vmatprep.subr.mxu0 0.0
      %8461 = vmatpush1.msra.mxu0 0.0
      %8462 = vmatprep.subr.mxu0 0.0
      %8463 = vmatpush1.msra.mxu0 0.0
      %8464 = vmatprep.subr.mxu0 0.0
      %8465 = vmatpush1.msra.mxu0 0.0
      %8466 = vmatprep.subr.mxu0 0.0
      %8467 = vmatpush1.msra.mxu0 0.0
      %8468 = vmatprep.subr.mxu0 0.0
      %8469 = vmatpush1.msra.mxu0 0.0
      %8470 = vmatprep.subr.mxu0 0.0
      %8471 = vmatpush1.msra.mxu0 0.0
      %8472 = vmatprep.subr.mxu0 0.0
      %8473 = vmatpush1.msra.mxu0 0.0
      %8474 = vmatprep.subr.mxu0 0.0
      %8475 = vmatpush1.msra.mxu0 0.0
      %8476 = vmatprep.subr.mxu0 0.0
      %8477 = vmatpush1.msra.mxu0 0.0
      %8478 = vmatprep.subr.mxu0 0.0
      %8479 = vmatpush1.msra.mxu0 0.0
      %8480 = vmatprep.subr.mxu0 0.0
      %8481 = vmatpush1.msra.mxu0 0.0
      %8482 = vmatprep.subr.mxu0 0.0
      %8483 = vmatpush1.msra.mxu0 %v439
      %8484 = vmatprep.subr.mxu0 0.0
      %8485 = vmatpush1.msra.mxu0 %v438
      %8486 = vmatprep.subr.mxu0 0.0
      %8487 = vmatpush1.msra.mxu0 %v437
      %8488 = vmatprep.subr.mxu0 0.0
      %8489 = vmatpush1.msra.mxu0 %v436
      %8490 = vmatprep.subr.mxu0 0.0
      %8491 = vmatpush2.msra.mxu0 0.0
      %8492 = vmatprep.subr.mxu0 0.0
      %8493 = vmatpush2.msra.mxu0 0.0
      %8494 = vmatprep.subr.mxu0 0.0
      %8495 = vmatpush2.msra.mxu0 0.0
      %8496 = vmatprep.subr.mxu0 0.0
      %8497 = vmatpush2.msra.mxu0 0.0
      %8498 = vmatprep.subr.mxu0 0.0
      %8499 = vmatpush2.msra.mxu0 0.0
      %8500 = vmatprep.subr.mxu0 0.0
      %8501 = vmatpush2.msra.mxu0 0.0
      %8502 = vmatprep.subr.mxu0 0.0
      %8503 = vmatpush2.msra.mxu0 0.0
      %8504 = vmatprep.subr.mxu0 0.0
      %8505 = vmatpush2.msra.mxu0 0.0
      %8506 = vmatprep.subr.mxu0 0.0
      %8507 = vmatpush2.msra.mxu0 0.0
      %8508 = vmatprep.subr.mxu0 0.0
      %8509 = vmatpush2.msra.mxu0 0.0
      %8510 = vmatprep.subr.mxu0 0.0
      %8511 = vmatpush2.msra.mxu0 0.0
      %8512 = vmatprep.subr.mxu0 0.0
      %8513 = vmatpush2.msra.mxu0 0.0
      %8514 = vmatprep.subr.mxu0 0.0
      %8515 = vmatpush2.msra.mxu0 0.0
      %8516 = vmatprep.subr.mxu0 0.0
      %8517 = vmatpush2.msra.mxu0 0.0
      %8518 = vmatprep.subr.mxu0 0.0
      %8519 = vmatpush2.msra.mxu0 0.0
      %8520 = vmatprep.subr.mxu0 0.0
      %8521 = vmatpush2.msra.mxu0 0.0
      %8522 = vmatprep.mubr.f32.mxu0 0.0
      %8523 = vmatmul.mubr.f32.gmra.mxu0 %v8363
      %v8524 = vpop.f32.mrf.mxu0
      %v8525 = vadd.f32 %v8361, %v8524
      %v8526 = vpop.f32.mrf.mxu0
      %8527 = vmatprep.mubr.f32.mxu0 0.0
      %8528 = vmatmul.mubr.f32.gmra.mxu0 %v8366
      %v8529 = vpop.f32.mrf.mxu0
      %v8530 = vadd.f32 %v8361, %v8529
      %v8531 = vpop.f32.mrf.mxu0
      %8532 = vmatprep.mubr.f32.mxu0 0.0
      %8533 = vmatmul.mubr.f32.gmra.mxu0 %v8369
      %v8534 = vpop.f32.mrf.mxu0
      %v8535 = vadd.f32 %v8361, %v8534
      %v8536 = vpop.f32.mrf.mxu0
      %8537 = vmatprep.mubr.f32.mxu0 0.0
      %8538 = vmatmul.mubr.f32.gmra.mxu0 %v8372
      %v8539 = vpop.f32.mrf.mxu0
      %v8540 = vadd.f32 %v8361, %v8539
      %v8541 = vpop.f32.mrf.mxu0
      %8542 = vmatprep.mubr.f32.mxu0 0.0
      %8543 = vmatmul.mubr.f32.gmra.mxu0 %v8375
      %v8544 = vpop.f32.mrf.mxu0
      %v8545 = vadd.f32 %v8361, %v8544
      %v8546 = vpop.f32.mrf.mxu0
      %8547 = vmatprep.mubr.f32.mxu0 0.0
      %8548 = vmatmul.mubr.f32.gmra.mxu0 %v8378
      %v8549 = vpop.f32.mrf.mxu0
      %v8550 = vadd.f32 %v8361, %v8549
      %v8551 = vpop.f32.mrf.mxu0
      %8552 = vmatprep.mubr.f32.mxu0 0.0
      %8553 = vmatmul.mubr.f32.gmra.mxu0 %v8381
      %v8554 = vpop.f32.mrf.mxu0
      %v8555 = vadd.f32 %v8361, %v8554
      %v8556 = vpop.f32.mrf.mxu0
      %8557 = vmatprep.mubr.f32.mxu0 0.0
      %8558 = vmatmul.mubr.f32.gmra.mxu0 %v8384
      %v8559 = vpop.f32.mrf.mxu0
      %v8560 = vadd.f32 %v8361, %v8559
      %v8561 = vpop.f32.mrf.mxu0
      %8562 = vmatprep.mubr.f32.mxu0 0.0
      %8563 = vmatmul.mubr.f32.gmra.mxu0 %v8387
      %v8564 = vpop.f32.mrf.mxu0
      %v8565 = vadd.f32 %v8361, %v8564
      %v8566 = vpop.f32.mrf.mxu0
      %8567 = vmatprep.mubr.f32.mxu0 0.0
      %8568 = vmatmul.mubr.f32.gmra.mxu0 %v8390
      %v8569 = vpop.f32.mrf.mxu0
      %v8570 = vadd.f32 %v8361, %v8569
      %v8571 = vpop.f32.mrf.mxu0
      %8572 = vmatprep.mubr.f32.mxu0 0.0
      %8573 = vmatmul.mubr.f32.gmra.mxu0 %v8393
      %v8574 = vpop.f32.mrf.mxu0
      %v8575 = vadd.f32 %v8361, %v8574
      %v8576 = vpop.f32.mrf.mxu0
      %8577 = vmatprep.mubr.f32.mxu0 0.0
      %8578 = vmatmul.mubr.f32.gmra.mxu0 %v8396
      %v8579 = vpop.f32.mrf.mxu0
      %v8580 = vadd.f32 %v8361, %v8579
      %v8581 = vpop.f32.mrf.mxu0
      %8582 = vmatprep.mubr.f32.mxu0 0.0
      %8583 = vmatmul.mubr.f32.gmra.mxu0 %v8399
      %v8584 = vpop.f32.mrf.mxu0
      %v8585 = vadd.f32 %v8361, %v8584
      %v8586 = vpop.f32.mrf.mxu0
      %8587 = vmatprep.mubr.f32.mxu0 0.0
      %8588 = vmatmul.mubr.f32.gmra.mxu0 %v8402
      %v8589 = vpop.f32.mrf.mxu0
      %v8590 = vadd.f32 %v8361, %v8589
      %v8591 = vpop.f32.mrf.mxu0
      %8592 = vmatprep.mubr.f32.mxu0 0.0
      %8593 = vmatmul.mubr.f32.gmra.mxu0 %v8405
      %v8594 = vpop.f32.mrf.mxu0
      %v8595 = vadd.f32 %v8361, %v8594
      %v8596 = vpop.f32.mrf.mxu0
      %8597 = vmatprep.mubr.f32.mxu0 0.0
      %8598 = vmatmul.mubr.f32.gmra.mxu0 %v8408
      %v8599 = vpop.f32.mrf.mxu0
      %v8600 = vadd.f32 %v8361, %v8599
      %v8601 = vpop.f32.mrf.mxu0
      %8602 = vmatprep.mubr.f32.mxu0 0.0
      %8603 = vmatmul.mubr.f32.gmra.mxu0 %v8411
      %v8604 = vpop.f32.mrf.mxu0
      %v8605 = vadd.f32 %v8361, %v8604
      %v8606 = vpop.f32.mrf.mxu0
      %8607 = vmatprep.mubr.f32.mxu0 0.0
      %8608 = vmatmul.mubr.f32.gmra.mxu0 %v8414
      %v8609 = vpop.f32.mrf.mxu0
      %v8610 = vadd.f32 %v8361, %v8609
      %v8611 = vpop.f32.mrf.mxu0
      %8612 = vmatprep.mubr.f32.mxu0 0.0
      %8613 = vmatmul.mubr.f32.gmra.mxu0 %v8417
      %v8614 = vpop.f32.mrf.mxu0
      %v8615 = vadd.f32 %v8361, %v8614
      %v8616 = vpop.f32.mrf.mxu0
      %8617 = vmatprep.mubr.f32.mxu0 0.0
      %8618 = vmatmul.mubr.f32.gmra.mxu0 %v8420
      %v8619 = vpop.f32.mrf.mxu0
      %v8620 = vadd.f32 %v8361, %v8619
      %v8621 = vpop.f32.mrf.mxu0
      %8622 = vmatprep.mubr.f32.mxu0 0.0
      %8623 = vmatmul.mubr.f32.gmra.mxu0 %v8423
      %v8624 = vpop.f32.mrf.mxu0
      %v8625 = vadd.f32 %v8361, %v8624
      %v8626 = vpop.f32.mrf.mxu0
      %8627 = vmatprep.mubr.f32.mxu0 0.0
      %8628 = vmatmul.mubr.f32.gmra.mxu0 %v8426
      %v8629 = vpop.f32.mrf.mxu0
      %v8630 = vadd.f32 %v8361, %v8629
      %v8631 = vpop.f32.mrf.mxu0
      %8632 = vmatprep.mubr.f32.mxu0 0.0
      %8633 = vmatmul.mubr.f32.gmra.mxu0 %v8429
      %v8634 = vpop.f32.mrf.mxu0
      %v8635 = vadd.f32 %v8361, %v8634
      %v8636 = vpop.f32.mrf.mxu0
      %8637 = vmatprep.mubr.f32.mxu0 0.0
      %8638 = vmatmul.mubr.f32.gmra.mxu0 %v8432
      %v8639 = vpop.f32.mrf.mxu0
      %v8640 = vadd.f32 %v8361, %v8639
      %v8641 = vpop.f32.mrf.mxu0
      %8642 = vmatprep.mubr.f32.mxu0 0.0
      %8643 = vmatmul.mubr.f32.gmra.mxu0 %v8435
      %v8644 = vpop.f32.mrf.mxu0
      %v8645 = vadd.f32 %v8361, %v8644
      %v8646 = vpop.f32.mrf.mxu0
      %8647 = vmatprep.mubr.f32.mxu0 0.0
      %8648 = vmatmul.mubr.f32.gmra.mxu0 %v8438
      %v8649 = vpop.f32.mrf.mxu0
      %v8650 = vadd.f32 %v8361, %v8649
      %v8651 = vpop.f32.mrf.mxu0
      %8652 = vmatprep.mubr.f32.mxu0 0.0
      %8653 = vmatmul.mubr.f32.gmra.mxu0 %v8441
      %v8654 = vpop.f32.mrf.mxu0
      %v8655 = vadd.f32 %v8361, %v8654
      %v8656 = vpop.f32.mrf.mxu0
      %8657 = vmatprep.mubr.f32.mxu0 0.0
      %8658 = vmatmul.mubr.f32.gmra.mxu0 %v8444
      %v8659 = vpop.f32.mrf.mxu0
      %v8660 = vadd.f32 %v8361, %v8659
      %v8661 = vpop.f32.mrf.mxu0
      %8662 = vmatprep.mubr.f32.mxu0 0.0
      %8663 = vmatmul.mubr.f32.gmra.mxu0 %v8447
      %v8664 = vpop.f32.mrf.mxu0
      %v8665 = vadd.f32 %v8361, %v8664
      %v8666 = vpop.f32.mrf.mxu0
      %8667 = vmatprep.mubr.f32.mxu0 0.0
      %8668 = vmatmul.mubr.f32.gmra.mxu0 %v8450
      %v8669 = vpop.f32.mrf.mxu0
      %v8670 = vadd.f32 %v8361, %v8669
      %v8671 = vpop.f32.mrf.mxu0
      %8672 = vmatprep.mubr.f32.mxu0 0.0
      %8673 = vmatmul.mubr.f32.gmra.mxu0 %v8453
      %v8674 = vpop.f32.mrf.mxu0
      %v8675 = vadd.f32 %v8361, %v8674
      %v8676 = vpop.f32.mrf.mxu0
      %8677 = vmatprep.mubr.f32.mxu0 0.0
      %8678 = vmatmul.mubr.f32.gmra.mxu0 %v8456
      %v8679 = vpop.f32.mrf.mxu0
      %v8680 = vadd.f32 %v8361, %v8679
      %v8681 = vpop.f32.mrf.mxu0
      %8682 = vdwg.mxu0
      %v8683 = vadd.f32 %v7809, %v8525
      %v8684 = vadd.f32 %v7810, %v8530
      %v8685 = vadd.f32 %v7811, %v8535
      %v8686 = vadd.f32 %v7812, %v8540
      %v8687 = vadd.f32 %v7813, %v8545
      %v8688 = vadd.f32 %v7814, %v8550
      %v8689 = vadd.f32 %v7815, %v8555
      %v8690 = vadd.f32 %v7816, %v8560
      %v8691 = vadd.f32 %v7817, %v8565
      %v8692 = vadd.f32 %v7818, %v8570
      %v8693 = vadd.f32 %v7819, %v8575
      %v8694 = vadd.f32 %v7820, %v8580
      %v8695 = vadd.f32 %v7821, %v8585
      %v8696 = vadd.f32 %v7822, %v8590
      %v8697 = vadd.f32 %v7823, %v8595
      %v8698 = vadd.f32 %v7824, %v8600
      %v8699 = vadd.f32 %v7825, %v8605
      %v8700 = vadd.f32 %v7826, %v8610
      %v8701 = vadd.f32 %v7827, %v8615
      %v8702 = vadd.f32 %v7828, %v8620
      %v8703 = vadd.f32 %v7829, %v8625
      %v8704 = vadd.f32 %v7830, %v8630
      %v8705 = vadd.f32 %v7831, %v8635
      %v8706 = vadd.f32 %v7832, %v8640
      %v8707 = vadd.f32 %v7833, %v8645
      %v8708 = vadd.f32 %v7834, %v8650
      %v8709 = vadd.f32 %v7835, %v8655
      %v8710 = vadd.f32 %v7836, %v8660
      %v8711 = vadd.f32 %v7837, %v8665
      %v8712 = vadd.f32 %v7838, %v8670
      %v8713 = vadd.f32 %v7839, %v8675
      %v8714 = vadd.f32 %v7840, %v8680
      %v8715 = vsel %vm512, %v8683, 0.0
      %8716 = vadd.xlane.f32.xlu0 %v8715
      %v8717 = vpop.xlane.xlu0 %8716
      %v8718 = vsel %vm512, %v8684, 0.0
      %8719 = vadd.xlane.f32.xlu0 %v8718
      %v8720 = vpop.xlane.xlu0 %8719
      %v8721 = vsel %vm512, %v8685, 0.0
      %8722 = vadd.xlane.f32.xlu0 %v8721
      %v8723 = vpop.xlane.xlu0 %8722
      %v8724 = vsel %vm512, %v8686, 0.0
      %8725 = vadd.xlane.f32.xlu0 %v8724
      %v8726 = vpop.xlane.xlu0 %8725
      %v8727 = vsel %vm512, %v8687, 0.0
      %8728 = vadd.xlane.f32.xlu0 %v8727
      %v8729 = vpop.xlane.xlu0 %8728
      %v8730 = vsel %vm512, %v8688, 0.0
      %8731 = vadd.xlane.f32.xlu0 %v8730
      %v8732 = vpop.xlane.xlu0 %8731
      %v8733 = vsel %vm512, %v8689, 0.0
      %8734 = vadd.xlane.f32.xlu0 %v8733
      %v8735 = vpop.xlane.xlu0 %8734
      %v8736 = vsel %vm512, %v8690, 0.0
      %8737 = vadd.xlane.f32.xlu0 %v8736
      %v8738 = vpop.xlane.xlu0 %8737
      %v8739 = vsel %vm512, %v8691, 0.0
      %8740 = vadd.xlane.f32.xlu0 %v8739
      %v8741 = vpop.xlane.xlu0 %8740
      %v8742 = vsel %vm512, %v8692, 0.0
      %8743 = vadd.xlane.f32.xlu0 %v8742
      %v8744 = vpop.xlane.xlu0 %8743
      %v8745 = vsel %vm512, %v8693, 0.0
      %8746 = vadd.xlane.f32.xlu0 %v8745
      %v8747 = vpop.xlane.xlu0 %8746
      %v8748 = vsel %vm512, %v8694, 0.0
      %8749 = vadd.xlane.f32.xlu0 %v8748
      %v8750 = vpop.xlane.xlu0 %8749
      %v8751 = vsel %vm512, %v8695, 0.0
      %8752 = vadd.xlane.f32.xlu0 %v8751
      %v8753 = vpop.xlane.xlu0 %8752
      %v8754 = vsel %vm512, %v8696, 0.0
      %8755 = vadd.xlane.f32.xlu0 %v8754
      %v8756 = vpop.xlane.xlu0 %8755
      %v8757 = vsel %vm512, %v8697, 0.0
      %8758 = vadd.xlane.f32.xlu0 %v8757
      %v8759 = vpop.xlane.xlu0 %8758
      %v8760 = vsel %vm512, %v8698, 0.0
      %8761 = vadd.xlane.f32.xlu0 %v8760
      %v8762 = vpop.xlane.xlu0 %8761
      %v8763 = vsel %vm512, %v8699, 0.0
      %8764 = vadd.xlane.f32.xlu0 %v8763
      %v8765 = vpop.xlane.xlu0 %8764
      %v8766 = vsel %vm512, %v8700, 0.0
      %8767 = vadd.xlane.f32.xlu0 %v8766
      %v8768 = vpop.xlane.xlu0 %8767
      %v8769 = vsel %vm512, %v8701, 0.0
      %8770 = vadd.xlane.f32.xlu0 %v8769
      %v8771 = vpop.xlane.xlu0 %8770
      %v8772 = vsel %vm512, %v8702, 0.0
      %8773 = vadd.xlane.f32.xlu0 %v8772
      %v8774 = vpop.xlane.xlu0 %8773
      %v8775 = vsel %vm512, %v8703, 0.0
      %8776 = vadd.xlane.f32.xlu0 %v8775
      %v8777 = vpop.xlane.xlu0 %8776
      %v8778 = vsel %vm512, %v8704, 0.0
      %8779 = vadd.xlane.f32.xlu0 %v8778
      %v8780 = vpop.xlane.xlu0 %8779
      %v8781 = vsel %vm512, %v8705, 0.0
      %8782 = vadd.xlane.f32.xlu0 %v8781
      %v8783 = vpop.xlane.xlu0 %8782
      %v8784 = vsel %vm512, %v8706, 0.0
      %8785 = vadd.xlane.f32.xlu0 %v8784
      %v8786 = vpop.xlane.xlu0 %8785
      %v8787 = vsel %vm512, %v8707, 0.0
      %8788 = vadd.xlane.f32.xlu0 %v8787
      %v8789 = vpop.xlane.xlu0 %8788
      %v8790 = vsel %vm512, %v8708, 0.0
      %8791 = vadd.xlane.f32.xlu0 %v8790
      %v8792 = vpop.xlane.xlu0 %8791
      %v8793 = vsel %vm512, %v8709, 0.0
      %8794 = vadd.xlane.f32.xlu0 %v8793
      %v8795 = vpop.xlane.xlu0 %8794
      %v8796 = vsel %vm512, %v8710, 0.0
      %8797 = vadd.xlane.f32.xlu0 %v8796
      %v8798 = vpop.xlane.xlu0 %8797
      %v8799 = vsel %vm512, %v8711, 0.0
      %8800 = vadd.xlane.f32.xlu0 %v8799
      %v8801 = vpop.xlane.xlu0 %8800
      %v8802 = vsel %vm512, %v8712, 0.0
      %8803 = vadd.xlane.f32.xlu0 %v8802
      %v8804 = vpop.xlane.xlu0 %8803
      %v8805 = vsel %vm512, %v8713, 0.0
      %8806 = vadd.xlane.f32.xlu0 %v8805
      %v8807 = vpop.xlane.xlu0 %8806
      %v8808 = vsel %vm512, %v8714, 0.0
      %8809 = vadd.xlane.f32.xlu0 %v8808
      %v8810 = vpop.xlane.xlu0 %8809
      %v8811 = vmul.f32 %v8717, %v2888
      %v8812 = vmul.f32 %v8720, %v2888
      %v8813 = vmul.f32 %v8723, %v2888
      %v8814 = vmul.f32 %v8726, %v2888
      %v8815 = vmul.f32 %v8729, %v2888
      %v8816 = vmul.f32 %v8732, %v2888
      %v8817 = vmul.f32 %v8735, %v2888
      %v8818 = vmul.f32 %v8738, %v2888
      %v8819 = vmul.f32 %v8741, %v2888
      %v8820 = vmul.f32 %v8744, %v2888
      %v8821 = vmul.f32 %v8747, %v2888
      %v8822 = vmul.f32 %v8750, %v2888
      %v8823 = vmul.f32 %v8753, %v2888
      %v8824 = vmul.f32 %v8756, %v2888
      %v8825 = vmul.f32 %v8759, %v2888
      %v8826 = vmul.f32 %v8762, %v2888
      %v8827 = vmul.f32 %v8765, %v2888
      %v8828 = vmul.f32 %v8768, %v2888
      %v8829 = vmul.f32 %v8771, %v2888
      %v8830 = vmul.f32 %v8774, %v2888
      %v8831 = vmul.f32 %v8777, %v2888
      %v8832 = vmul.f32 %v8780, %v2888
      %v8833 = vmul.f32 %v8783, %v2888
      %v8834 = vmul.f32 %v8786, %v2888
      %v8835 = vmul.f32 %v8789, %v2888
      %v8836 = vmul.f32 %v8792, %v2888
      %v8837 = vmul.f32 %v8795, %v2888
      %v8838 = vmul.f32 %v8798, %v2888
      %v8839 = vmul.f32 %v8801, %v2888
      %v8840 = vmul.f32 %v8804, %v2888
      %v8841 = vmul.f32 %v8807, %v2888
      %v8842 = vmul.f32 %v8810, %v2888
      %v8843 = vmul.f32 %v8683, %v8683
      %v8844 = vmul.f32 %v8684, %v8684
      %v8845 = vmul.f32 %v8685, %v8685
      %v8846 = vmul.f32 %v8686, %v8686
      %v8847 = vmul.f32 %v8687, %v8687
      %v8848 = vmul.f32 %v8688, %v8688
      %v8849 = vmul.f32 %v8689, %v8689
      %v8850 = vmul.f32 %v8690, %v8690
      %v8851 = vmul.f32 %v8691, %v8691
      %v8852 = vmul.f32 %v8692, %v8692
      %v8853 = vmul.f32 %v8693, %v8693
      %v8854 = vmul.f32 %v8694, %v8694
      %v8855 = vmul.f32 %v8695, %v8695
      %v8856 = vmul.f32 %v8696, %v8696
      %v8857 = vmul.f32 %v8697, %v8697
      %v8858 = vmul.f32 %v8698, %v8698
      %v8859 = vmul.f32 %v8699, %v8699
      %v8860 = vmul.f32 %v8700, %v8700
      %v8861 = vmul.f32 %v8701, %v8701
      %v8862 = vmul.f32 %v8702, %v8702
      %v8863 = vmul.f32 %v8703, %v8703
      %v8864 = vmul.f32 %v8704, %v8704
      %v8865 = vmul.f32 %v8705, %v8705
      %v8866 = vmul.f32 %v8706, %v8706
      %v8867 = vmul.f32 %v8707, %v8707
      %v8868 = vmul.f32 %v8708, %v8708
      %v8869 = vmul.f32 %v8709, %v8709
      %v8870 = vmul.f32 %v8710, %v8710
      %v8871 = vmul.f32 %v8711, %v8711
      %v8872 = vmul.f32 %v8712, %v8712
      %v8873 = vmul.f32 %v8713, %v8713
      %v8874 = vmul.f32 %v8714, %v8714
      %v8875 = vsel %vm512, %v8843, 0.0
      %8876 = vadd.xlane.f32.xlu0 %v8875
      %v8877 = vpop.xlane.xlu0 %8876
      %v8878 = vsel %vm512, %v8844, 0.0
      %8879 = vadd.xlane.f32.xlu0 %v8878
      %v8880 = vpop.xlane.xlu0 %8879
      %v8881 = vsel %vm512, %v8845, 0.0
      %8882 = vadd.xlane.f32.xlu0 %v8881
      %v8883 = vpop.xlane.xlu0 %8882
      %v8884 = vsel %vm512, %v8846, 0.0
      %8885 = vadd.xlane.f32.xlu0 %v8884
      %v8886 = vpop.xlane.xlu0 %8885
      %v8887 = vsel %vm512, %v8847, 0.0
      %8888 = vadd.xlane.f32.xlu0 %v8887
      %v8889 = vpop.xlane.xlu0 %8888
      %v8890 = vsel %vm512, %v8848, 0.0
      %8891 = vadd.xlane.f32.xlu0 %v8890
      %v8892 = vpop.xlane.xlu0 %8891
      %v8893 = vsel %vm512, %v8849, 0.0
      %8894 = vadd.xlane.f32.xlu0 %v8893
      %v8895 = vpop.xlane.xlu0 %8894
      %v8896 = vsel %vm512, %v8850, 0.0
      %8897 = vadd.xlane.f32.xlu0 %v8896
      %v8898 = vpop.xlane.xlu0 %8897
      %v8899 = vsel %vm512, %v8851, 0.0
      %8900 = vadd.xlane.f32.xlu0 %v8899
      %v8901 = vpop.xlane.xlu0 %8900
      %v8902 = vsel %vm512, %v8852, 0.0
      %8903 = vadd.xlane.f32.xlu0 %v8902
      %v8904 = vpop.xlane.xlu0 %8903
      %v8905 = vsel %vm512, %v8853, 0.0
      %8906 = vadd.xlane.f32.xlu0 %v8905
      %v8907 = vpop.xlane.xlu0 %8906
      %v8908 = vsel %vm512, %v8854, 0.0
      %8909 = vadd.xlane.f32.xlu0 %v8908
      %v8910 = vpop.xlane.xlu0 %8909
      %v8911 = vsel %vm512, %v8855, 0.0
      %8912 = vadd.xlane.f32.xlu0 %v8911
      %v8913 = vpop.xlane.xlu0 %8912
      %v8914 = vsel %vm512, %v8856, 0.0
      %8915 = vadd.xlane.f32.xlu0 %v8914
      %v8916 = vpop.xlane.xlu0 %8915
      %v8917 = vsel %vm512, %v8857, 0.0
      %8918 = vadd.xlane.f32.xlu0 %v8917
      %v8919 = vpop.xlane.xlu0 %8918
      %v8920 = vsel %vm512, %v8858, 0.0
      %8921 = vadd.xlane.f32.xlu0 %v8920
      %v8922 = vpop.xlane.xlu0 %8921
      %v8923 = vsel %vm512, %v8859, 0.0
      %8924 = vadd.xlane.f32.xlu0 %v8923
      %v8925 = vpop.xlane.xlu0 %8924
      %v8926 = vsel %vm512, %v8860, 0.0
      %8927 = vadd.xlane.f32.xlu0 %v8926
      %v8928 = vpop.xlane.xlu0 %8927
      %v8929 = vsel %vm512, %v8861, 0.0
      %8930 = vadd.xlane.f32.xlu0 %v8929
      %v8931 = vpop.xlane.xlu0 %8930
      %v8932 = vsel %vm512, %v8862, 0.0
      %8933 = vadd.xlane.f32.xlu0 %v8932
      %v8934 = vpop.xlane.xlu0 %8933
      %v8935 = vsel %vm512, %v8863, 0.0
      %8936 = vadd.xlane.f32.xlu0 %v8935
      %v8937 = vpop.xlane.xlu0 %8936
      %v8938 = vsel %vm512, %v8864, 0.0
      %8939 = vadd.xlane.f32.xlu0 %v8938
      %v8940 = vpop.xlane.xlu0 %8939
      %v8941 = vsel %vm512, %v8865, 0.0
      %8942 = vadd.xlane.f32.xlu0 %v8941
      %v8943 = vpop.xlane.xlu0 %8942
      %v8944 = vsel %vm512, %v8866, 0.0
      %8945 = vadd.xlane.f32.xlu0 %v8944
      %v8946 = vpop.xlane.xlu0 %8945
      %v8947 = vsel %vm512, %v8867, 0.0
      %8948 = vadd.xlane.f32.xlu0 %v8947
      %v8949 = vpop.xlane.xlu0 %8948
      %v8950 = vsel %vm512, %v8868, 0.0
      %8951 = vadd.xlane.f32.xlu0 %v8950
      %v8952 = vpop.xlane.xlu0 %8951
      %v8953 = vsel %vm512, %v8869, 0.0
      %8954 = vadd.xlane.f32.xlu0 %v8953
      %v8955 = vpop.xlane.xlu0 %8954
      %v8956 = vsel %vm512, %v8870, 0.0
      %8957 = vadd.xlane.f32.xlu0 %v8956
      %v8958 = vpop.xlane.xlu0 %8957
      %v8959 = vsel %vm512, %v8871, 0.0
      %8960 = vadd.xlane.f32.xlu0 %v8959
      %v8961 = vpop.xlane.xlu0 %8960
      %v8962 = vsel %vm512, %v8872, 0.0
      %8963 = vadd.xlane.f32.xlu0 %v8962
      %v8964 = vpop.xlane.xlu0 %8963
      %v8965 = vsel %vm512, %v8873, 0.0
      %8966 = vadd.xlane.f32.xlu0 %v8965
      %v8967 = vpop.xlane.xlu0 %8966
      %v8968 = vsel %vm512, %v8874, 0.0
      %8969 = vadd.xlane.f32.xlu0 %v8968
      %v8970 = vpop.xlane.xlu0 %8969
      %v8971 = vmul.f32 %v8877, %v2888
      %v8972 = vmul.f32 %v8880, %v2888
      %v8973 = vmul.f32 %v8883, %v2888
      %v8974 = vmul.f32 %v8886, %v2888
      %v8975 = vmul.f32 %v8889, %v2888
      %v8976 = vmul.f32 %v8892, %v2888
      %v8977 = vmul.f32 %v8895, %v2888
      %v8978 = vmul.f32 %v8898, %v2888
      %v8979 = vmul.f32 %v8901, %v2888
      %v8980 = vmul.f32 %v8904, %v2888
      %v8981 = vmul.f32 %v8907, %v2888
      %v8982 = vmul.f32 %v8910, %v2888
      %v8983 = vmul.f32 %v8913, %v2888
      %v8984 = vmul.f32 %v8916, %v2888
      %v8985 = vmul.f32 %v8919, %v2888
      %v8986 = vmul.f32 %v8922, %v2888
      %v8987 = vmul.f32 %v8925, %v2888
      %v8988 = vmul.f32 %v8928, %v2888
      %v8989 = vmul.f32 %v8931, %v2888
      %v8990 = vmul.f32 %v8934, %v2888
      %v8991 = vmul.f32 %v8937, %v2888
      %v8992 = vmul.f32 %v8940, %v2888
      %v8993 = vmul.f32 %v8943, %v2888
      %v8994 = vmul.f32 %v8946, %v2888
      %v8995 = vmul.f32 %v8949, %v2888
      %v8996 = vmul.f32 %v8952, %v2888
      %v8997 = vmul.f32 %v8955, %v2888
      %v8998 = vmul.f32 %v8958, %v2888
      %v8999 = vmul.f32 %v8961, %v2888
      %v9000 = vmul.f32 %v8964, %v2888
      %v9001 = vmul.f32 %v8967, %v2888
      %v9002 = vmul.f32 %v8970, %v2888
      %v9003 = vmul.f32 %v8811, %v8811
      %v9004 = vmul.f32 %v8812, %v8812
      %v9005 = vmul.f32 %v8813, %v8813
      %v9006 = vmul.f32 %v8814, %v8814
      %v9007 = vmul.f32 %v8815, %v8815
      %v9008 = vmul.f32 %v8816, %v8816
      %v9009 = vmul.f32 %v8817, %v8817
      %v9010 = vmul.f32 %v8818, %v8818
      %v9011 = vmul.f32 %v8819, %v8819
      %v9012 = vmul.f32 %v8820, %v8820
      %v9013 = vmul.f32 %v8821, %v8821
      %v9014 = vmul.f32 %v8822, %v8822
      %v9015 = vmul.f32 %v8823, %v8823
      %v9016 = vmul.f32 %v8824, %v8824
      %v9017 = vmul.f32 %v8825, %v8825
      %v9018 = vmul.f32 %v8826, %v8826
      %v9019 = vmul.f32 %v8827, %v8827
      %v9020 = vmul.f32 %v8828, %v8828
      %v9021 = vmul.f32 %v8829, %v8829
      %v9022 = vmul.f32 %v8830, %v8830
      %v9023 = vmul.f32 %v8831, %v8831
      %v9024 = vmul.f32 %v8832, %v8832
      %v9025 = vmul.f32 %v8833, %v8833
      %v9026 = vmul.f32 %v8834, %v8834
      %v9027 = vmul.f32 %v8835, %v8835
      %v9028 = vmul.f32 %v8836, %v8836
      %v9029 = vmul.f32 %v8837, %v8837
      %v9030 = vmul.f32 %v8838, %v8838
      %v9031 = vmul.f32 %v8839, %v8839
      %v9032 = vmul.f32 %v8840, %v8840
      %v9033 = vmul.f32 %v8841, %v8841
      %v9034 = vmul.f32 %v8842, %v8842
      %v9035 = vsub.f32 %v8971, %v9003
      %v9036 = vsub.f32 %v8972, %v9004
      %v9037 = vsub.f32 %v8973, %v9005
      %v9038 = vsub.f32 %v8974, %v9006
      %v9039 = vsub.f32 %v8975, %v9007
      %v9040 = vsub.f32 %v8976, %v9008
      %v9041 = vsub.f32 %v8977, %v9009
      %v9042 = vsub.f32 %v8978, %v9010
      %v9043 = vsub.f32 %v8979, %v9011
      %v9044 = vsub.f32 %v8980, %v9012
      %v9045 = vsub.f32 %v8981, %v9013
      %v9046 = vsub.f32 %v8982, %v9014
      %v9047 = vsub.f32 %v8983, %v9015
      %v9048 = vsub.f32 %v8984, %v9016
      %v9049 = vsub.f32 %v8985, %v9017
      %v9050 = vsub.f32 %v8986, %v9018
      %v9051 = vsub.f32 %v8987, %v9019
      %v9052 = vsub.f32 %v8988, %v9020
      %v9053 = vsub.f32 %v8989, %v9021
      %v9054 = vsub.f32 %v8990, %v9022
      %v9055 = vsub.f32 %v8991, %v9023
      %v9056 = vsub.f32 %v8992, %v9024
      %v9057 = vsub.f32 %v8993, %v9025
      %v9058 = vsub.f32 %v8994, %v9026
      %v9059 = vsub.f32 %v8995, %v9027
      %v9060 = vsub.f32 %v8996, %v9028
      %v9061 = vsub.f32 %v8997, %v9029
      %v9062 = vsub.f32 %v8998, %v9030
      %v9063 = vsub.f32 %v8999, %v9031
      %v9064 = vsub.f32 %v9000, %v9032
      %v9065 = vsub.f32 %v9001, %v9033
      %v9066 = vsub.f32 %v9002, %v9034
      %v9067 = vmax.f32 %v9035, 0.0
      %v9068 = vmax.f32 %v9036, 0.0
      %v9069 = vmax.f32 %v9037, 0.0
      %v9070 = vmax.f32 %v9038, 0.0
      %v9071 = vmax.f32 %v9039, 0.0
      %v9072 = vmax.f32 %v9040, 0.0
      %v9073 = vmax.f32 %v9041, 0.0
      %v9074 = vmax.f32 %v9042, 0.0
      %v9075 = vmax.f32 %v9043, 0.0
      %v9076 = vmax.f32 %v9044, 0.0
      %v9077 = vmax.f32 %v9045, 0.0
      %v9078 = vmax.f32 %v9046, 0.0
      %v9079 = vmax.f32 %v9047, 0.0
      %v9080 = vmax.f32 %v9048, 0.0
      %v9081 = vmax.f32 %v9049, 0.0
      %v9082 = vmax.f32 %v9050, 0.0
      %v9083 = vmax.f32 %v9051, 0.0
      %v9084 = vmax.f32 %v9052, 0.0
      %v9085 = vmax.f32 %v9053, 0.0
      %v9086 = vmax.f32 %v9054, 0.0
      %v9087 = vmax.f32 %v9055, 0.0
      %v9088 = vmax.f32 %v9056, 0.0
      %v9089 = vmax.f32 %v9057, 0.0
      %v9090 = vmax.f32 %v9058, 0.0
      %v9091 = vmax.f32 %v9059, 0.0
      %v9092 = vmax.f32 %v9060, 0.0
      %v9093 = vmax.f32 %v9061, 0.0
      %v9094 = vmax.f32 %v9062, 0.0
      %v9095 = vmax.f32 %v9063, 0.0
      %v9096 = vmax.f32 %v9064, 0.0
      %v9097 = vmax.f32 %v9065, 0.0
      %v9098 = vmax.f32 %v9066, 0.0
      %v9099 = vsub.f32 %v8683, %v8811
      %v9100 = vsub.f32 %v8684, %v8812
      %v9101 = vsub.f32 %v8685, %v8813
      %v9102 = vsub.f32 %v8686, %v8814
      %v9103 = vsub.f32 %v8687, %v8815
      %v9104 = vsub.f32 %v8688, %v8816
      %v9105 = vsub.f32 %v8689, %v8817
      %v9106 = vsub.f32 %v8690, %v8818
      %v9107 = vsub.f32 %v8691, %v8819
      %v9108 = vsub.f32 %v8692, %v8820
      %v9109 = vsub.f32 %v8693, %v8821
      %v9110 = vsub.f32 %v8694, %v8822
      %v9111 = vsub.f32 %v8695, %v8823
      %v9112 = vsub.f32 %v8696, %v8824
      %v9113 = vsub.f32 %v8697, %v8825
      %v9114 = vsub.f32 %v8698, %v8826
      %v9115 = vsub.f32 %v8699, %v8827
      %v9116 = vsub.f32 %v8700, %v8828
      %v9117 = vsub.f32 %v8701, %v8829
      %v9118 = vsub.f32 %v8702, %v8830
      %v9119 = vsub.f32 %v8703, %v8831
      %v9120 = vsub.f32 %v8704, %v8832
      %v9121 = vsub.f32 %v8705, %v8833
      %v9122 = vsub.f32 %v8706, %v8834
      %v9123 = vsub.f32 %v8707, %v8835
      %v9124 = vsub.f32 %v8708, %v8836
      %v9125 = vsub.f32 %v8709, %v8837
      %v9126 = vsub.f32 %v8710, %v8838
      %v9127 = vsub.f32 %v8711, %v8839
      %v9128 = vsub.f32 %v8712, %v8840
      %v9129 = vsub.f32 %v8713, %v8841
      %v9130 = vsub.f32 %v8714, %v8842
      %v9131 = vadd.f32 %v9067, 1e-05
      %v9132 = vadd.f32 %v9068, 1e-05
      %v9133 = vadd.f32 %v9069, 1e-05
      %v9134 = vadd.f32 %v9070, 1e-05
      %v9135 = vadd.f32 %v9071, 1e-05
      %v9136 = vadd.f32 %v9072, 1e-05
      %v9137 = vadd.f32 %v9073, 1e-05
      %v9138 = vadd.f32 %v9074, 1e-05
      %v9139 = vadd.f32 %v9075, 1e-05
      %v9140 = vadd.f32 %v9076, 1e-05
      %v9141 = vadd.f32 %v9077, 1e-05
      %v9142 = vadd.f32 %v9078, 1e-05
      %v9143 = vadd.f32 %v9079, 1e-05
      %v9144 = vadd.f32 %v9080, 1e-05
      %v9145 = vadd.f32 %v9081, 1e-05
      %v9146 = vadd.f32 %v9082, 1e-05
      %v9147 = vadd.f32 %v9083, 1e-05
      %v9148 = vadd.f32 %v9084, 1e-05
      %v9149 = vadd.f32 %v9085, 1e-05
      %v9150 = vadd.f32 %v9086, 1e-05
      %v9151 = vadd.f32 %v9087, 1e-05
      %v9152 = vadd.f32 %v9088, 1e-05
      %v9153 = vadd.f32 %v9089, 1e-05
      %v9154 = vadd.f32 %v9090, 1e-05
      %v9155 = vadd.f32 %v9091, 1e-05
      %v9156 = vadd.f32 %v9092, 1e-05
      %v9157 = vadd.f32 %v9093, 1e-05
      %v9158 = vadd.f32 %v9094, 1e-05
      %v9159 = vadd.f32 %v9095, 1e-05
      %v9160 = vadd.f32 %v9096, 1e-05
      %v9161 = vadd.f32 %v9097, 1e-05
      %v9162 = vadd.f32 %v9098, 1e-05
      %v9163 = vrsqrt.pop %v9131
      %v9164 = vrsqrt.pop %v9132
      %v9165 = vrsqrt.pop %v9133
      %v9166 = vrsqrt.pop %v9134
      %v9167 = vrsqrt.pop %v9135
      %v9168 = vrsqrt.pop %v9136
      %v9169 = vrsqrt.pop %v9137
      %v9170 = vrsqrt.pop %v9138
      %v9171 = vrsqrt.pop %v9139
      %v9172 = vrsqrt.pop %v9140
      %v9173 = vrsqrt.pop %v9141
      %v9174 = vrsqrt.pop %v9142
      %v9175 = vrsqrt.pop %v9143
      %v9176 = vrsqrt.pop %v9144
      %v9177 = vrsqrt.pop %v9145
      %v9178 = vrsqrt.pop %v9146
      %v9179 = vrsqrt.pop %v9147
      %v9180 = vrsqrt.pop %v9148
      %v9181 = vrsqrt.pop %v9149
      %v9182 = vrsqrt.pop %v9150
      %v9183 = vrsqrt.pop %v9151
      %v9184 = vrsqrt.pop %v9152
      %v9185 = vrsqrt.pop %v9153
      %v9186 = vrsqrt.pop %v9154
      %v9187 = vrsqrt.pop %v9155
      %v9188 = vrsqrt.pop %v9156
      %v9189 = vrsqrt.pop %v9157
      %v9190 = vrsqrt.pop %v9158
      %v9191 = vrsqrt.pop %v9159
      %v9192 = vrsqrt.pop %v9160
      %v9193 = vrsqrt.pop %v9161
      %v9194 = vrsqrt.pop %v9162
      %v9195 = vmul.f32 %v9099, %v9163
      %v9196 = vmul.f32 %v9100, %v9164
      %v9197 = vmul.f32 %v9101, %v9165
      %v9198 = vmul.f32 %v9102, %v9166
      %v9199 = vmul.f32 %v9103, %v9167
      %v9200 = vmul.f32 %v9104, %v9168
      %v9201 = vmul.f32 %v9105, %v9169
      %v9202 = vmul.f32 %v9106, %v9170
      %v9203 = vmul.f32 %v9107, %v9171
      %v9204 = vmul.f32 %v9108, %v9172
      %v9205 = vmul.f32 %v9109, %v9173
      %v9206 = vmul.f32 %v9110, %v9174
      %v9207 = vmul.f32 %v9111, %v9175
      %v9208 = vmul.f32 %v9112, %v9176
      %v9209 = vmul.f32 %v9113, %v9177
      %v9210 = vmul.f32 %v9114, %v9178
      %v9211 = vmul.f32 %v9115, %v9179
      %v9212 = vmul.f32 %v9116, %v9180
      %v9213 = vmul.f32 %v9117, %v9181
      %v9214 = vmul.f32 %v9118, %v9182
      %v9215 = vmul.f32 %v9119, %v9183
      %v9216 = vmul.f32 %v9120, %v9184
      %v9217 = vmul.f32 %v9121, %v9185
      %v9218 = vmul.f32 %v9122, %v9186
      %v9219 = vmul.f32 %v9123, %v9187
      %v9220 = vmul.f32 %v9124, %v9188
      %v9221 = vmul.f32 %v9125, %v9189
      %v9222 = vmul.f32 %v9126, %v9190
      %v9223 = vmul.f32 %v9127, %v9191
      %v9224 = vmul.f32 %v9128, %v9192
      %v9225 = vmul.f32 %v9129, %v9193
      %v9226 = vmul.f32 %v9130, %v9194
      %v9227 = vlaneseq
      %v9228 = vshrl.u32 %v9227, 7
      %v9229 = vsub.s32 0, %v9228
      %v9230 = vrot.slane %v446, %v9229
      %v9231 = vmul.f32 %v9195, %v9230
      %v9232 = vmul.f32 %v9196, %v9230
      %v9233 = vmul.f32 %v9197, %v9230
      %v9234 = vmul.f32 %v9198, %v9230
      %v9235 = vmul.f32 %v9199, %v9230
      %v9236 = vmul.f32 %v9200, %v9230
      %v9237 = vmul.f32 %v9201, %v9230
      %v9238 = vmul.f32 %v9202, %v9230
      %v9239 = vmul.f32 %v9203, %v9230
      %v9240 = vmul.f32 %v9204, %v9230
      %v9241 = vmul.f32 %v9205, %v9230
      %v9242 = vmul.f32 %v9206, %v9230
      %v9243 = vmul.f32 %v9207, %v9230
      %v9244 = vmul.f32 %v9208, %v9230
      %v9245 = vmul.f32 %v9209, %v9230
      %v9246 = vmul.f32 %v9210, %v9230
      %v9247 = vmul.f32 %v9211, %v9230
      %v9248 = vmul.f32 %v9212, %v9230
      %v9249 = vmul.f32 %v9213, %v9230
      %v9250 = vmul.f32 %v9214, %v9230
      %v9251 = vmul.f32 %v9215, %v9230
      %v9252 = vmul.f32 %v9216, %v9230
      %v9253 = vmul.f32 %v9217, %v9230
      %v9254 = vmul.f32 %v9218, %v9230
      %v9255 = vmul.f32 %v9219, %v9230
      %v9256 = vmul.f32 %v9220, %v9230
      %v9257 = vmul.f32 %v9221, %v9230
      %v9258 = vmul.f32 %v9222, %v9230
      %v9259 = vmul.f32 %v9223, %v9230
      %v9260 = vmul.f32 %v9224, %v9230
      %v9261 = vmul.f32 %v9225, %v9230
      %v9262 = vmul.f32 %v9226, %v9230
      %v9263 = vlaneseq
      %v9264 = vshrl.u32 %v9263, 7
      %v9265 = vsub.s32 0, %v9264
      %v9266 = vrot.slane %v447, %v9265
      %v9267 = vadd.f32 %v9231, %v9266
      %v9268 = vadd.f32 %v9232, %v9266
      %v9269 = vadd.f32 %v9233, %v9266
      %v9270 = vadd.f32 %v9234, %v9266
      %v9271 = vadd.f32 %v9235, %v9266
      %v9272 = vadd.f32 %v9236, %v9266
      %v9273 = vadd.f32 %v9237, %v9266
      %v9274 = vadd.f32 %v9238, %v9266
      %v9275 = vadd.f32 %v9239, %v9266
      %v9276 = vadd.f32 %v9240, %v9266
      %v9277 = vadd.f32 %v9241, %v9266
      %v9278 = vadd.f32 %v9242, %v9266
      %v9279 = vadd.f32 %v9243, %v9266
      %v9280 = vadd.f32 %v9244, %v9266
      %v9281 = vadd.f32 %v9245, %v9266
      %v9282 = vadd.f32 %v9246, %v9266
      %v9283 = vadd.f32 %v9247, %v9266
      %v9284 = vadd.f32 %v9248, %v9266
      %v9285 = vadd.f32 %v9249, %v9266
      %v9286 = vadd.f32 %v9250, %v9266
      %v9287 = vadd.f32 %v9251, %v9266
      %v9288 = vadd.f32 %v9252, %v9266
      %v9289 = vadd.f32 %v9253, %v9266
      %v9290 = vadd.f32 %v9254, %v9266
      %v9291 = vadd.f32 %v9255, %v9266
      %v9292 = vadd.f32 %v9256, %v9266
      %v9293 = vadd.f32 %v9257, %v9266
      %v9294 = vadd.f32 %v9258, %v9266
      %v9295 = vadd.f32 %v9259, %v9266
      %v9296 = vadd.f32 %v9260, %v9266
      %v9297 = vadd.f32 %v9261, %v9266
      %v9298 = vadd.f32 %v9262, %v9266
      %9299 = vst.msk [vmem:[%s302] sm:$0xff] %vm512, %v9267
      %9300 = vst.msk [vmem:[%s302 + $0x8] sm:$0xff] %vm512, %v9268
      %9301 = vst.msk [vmem:[%s302 + $0x10] sm:$0xff] %vm512, %v9269
      %9302 = vst.msk [vmem:[%s302 + $0x18] sm:$0xff] %vm512, %v9270
      %9303 = vst.msk [vmem:[%s302 + $0x20] sm:$0xff] %vm512, %v9271
      %9304 = vst.msk [vmem:[%s302 + $0x28] sm:$0xff] %vm512, %v9272
      %9305 = vst.msk [vmem:[%s302 + $0x30] sm:$0xff] %vm512, %v9273
      %9306 = vst.msk [vmem:[%s302 + $0x38] sm:$0xff] %vm512, %v9274
      %9307 = vst.msk [vmem:[%s302 + $0x40] sm:$0xff] %vm512, %v9275
      %9308 = vst.msk [vmem:[%s302 + $0x48] sm:$0xff] %vm512, %v9276
      %9309 = vst.msk [vmem:[%s302 + $0x50] sm:$0xff] %vm512, %v9277
      %9310 = vst.msk [vmem:[%s302 + $0x58] sm:$0xff] %vm512, %v9278
      %9311 = vst.msk [vmem:[%s302 + $0x60] sm:$0xff] %vm512, %v9279
      %9312 = vst.msk [vmem:[%s302 + $0x68] sm:$0xff] %vm512, %v9280
      %9313 = vst.msk [vmem:[%s302 + $0x70] sm:$0xff] %vm512, %v9281
      %9314 = vst.msk [vmem:[%s302 + $0x78] sm:$0xff] %vm512, %v9282
      %9315 = vst.msk [vmem:[%s302 + $0x80] sm:$0xff] %vm512, %v9283
      %9316 = vst.msk [vmem:[%s302 + $0x88] sm:$0xff] %vm512, %v9284
      %9317 = vst.msk [vmem:[%s302 + $0x90] sm:$0xff] %vm512, %v9285
      %9318 = vst.msk [vmem:[%s302 + $0x98] sm:$0xff] %vm512, %v9286
      %9319 = vst.msk [vmem:[%s302 + $0xa0] sm:$0xff] %vm512, %v9287
      %9320 = vst.msk [vmem:[%s302 + $0xa8] sm:$0xff] %vm512, %v9288
      %9321 = vst.msk [vmem:[%s302 + $0xb0] sm:$0xff] %vm512, %v9289
      %9322 = vst.msk [vmem:[%s302 + $0xb8] sm:$0xff] %vm512, %v9290
      %9323 = vst.msk [vmem:[%s302 + $0xc0] sm:$0xff] %vm512, %v9291
      %9324 = vst.msk [vmem:[%s302 + $0xc8] sm:$0xff] %vm512, %v9292
      %9325 = vst.msk [vmem:[%s302 + $0xd0] sm:$0xff] %vm512, %v9293
      %9326 = vst.msk [vmem:[%s302 + $0xd8] sm:$0xff] %vm512, %v9294
      %9327 = vst.msk [vmem:[%s302 + $0xe0] sm:$0xff] %vm512, %v9295
      %9328 = vst.msk [vmem:[%s302 + $0xe8] sm:$0xff] %vm512, %v9296
      %9329 = vst.msk [vmem:[%s302 + $0xf0] sm:$0xff] %vm512, %v9297
      %9330 = vst.msk [vmem:[%s302 + $0xf8] sm:$0xff] %vm512, %v9298
      %s9331 = smul.u32 32, %s18
      %p9332 = scmp.lt.s32.totalorder %s9331, 127
      %s9333 = scalar_select %p9332, %s9331, 127
      %s9334 = smul.addr %s9333, 8
      %s9335 = scalar_lea.vmem %s7, %s9334
      // Predicated region
      $region49: #{tpu_custom_call.1} parent=47 // pred_check
        %p9336 = pneg %p193
      $region50: #{tpu_custom_call.1} parent=47 // pred_check_branch
        %9338 = sbr.rel (%p9336) target = $region52
      $region51: #{tpu_custom_call.1} parent=47 // pred_region
        %s9339 = smul.u32 32, %s18
      $region52: #{tpu_custom_call.1} parent=47 // pred_fallthru
        _
    $region48: #{tpu_custom_call.1} parent=5 // pred_fallthru
      _
    %p9340 = scmp.le.s32.totalorder 2, %s13
    // Predicated region
    $region53: #{tpu_custom_call.1} parent=5 // pred_check
      %p9341 = pneg %p9340
    $region54: #{tpu_custom_call.1} parent=5 // pred_check_branch
      %9343 = sbr.rel (%p9341) target = $region56
    $region55: #{tpu_custom_call.1} parent=5 // pred_region
      %s9344 = ssub.s32 %s13, 2
      // Predicated region
      $region57: #{tpu_custom_call.1} parent=55 // pred_check
        %p9345 = pneg %p199
      $region58: #{tpu_custom_call.1} parent=55 // pred_check_branch
        %9347 = sbr.rel (%p9345) target = $region60
      $region59: #{tpu_custom_call.1} parent=55 // pred_region
        %s9348 = smul.u32 32, %s19
        %p9349 = scmp.lt.s32.totalorder %s9348, 127
        %s9350 = scalar_select %p9349, %s9348, 127
        %s9351 = smul.addr %s9350, 8
        %s9352 = scalar_lea.vmem %s7, %s9351
      $region60: #{tpu_custom_call.1} parent=55 // pred_fallthru
        _
    $region56: #{tpu_custom_call.1} parent=5 // pred_fallthru
      _
  $region6: #{tpu_custom_call.1} parent=0 // loop_footer
    %s17 = sadd.s32 1, %s13
  $region7: #{tpu_custom_call.1} parent=0 // loop_footer_branch
    %12 = sbr.rel target = $region3
  $region8: #{tpu_custom_call.1} parent=0 // loop_exit
    _

</llo_original>
